<compile_context>
chip_gen: v7x
topology: tpu7x:2x2x1
jax: 0.10.0
libtpu: 0.0.40
codegen_flags: <defaults>
</compile_context>

<pallas_src>
import functools

import jax
import jax.numpy as jnp
from jax.experimental import pallas as pl
from jax.experimental.pallas import tpu as pltpu

_VMEM_LIMIT = 32 * 1024 * 1024  # safe on v5e (16M default scoped), v6e, v7x (64M phys)
_EPS = 1e-5                     # InstanceNorm2d default eps


# ----------------------------- Pallas kernels -----------------------------

def _conv3x3_kernel(*refs, tile_h, out_w, inv_n, apply_tanh, with_stats,
                    pre_norm):
    """3x3 conv on one haloed row tile via 9 shift-and-accumulate MXU matmuls.

    refs (inputs..., outputs...):
      win_ref  : (tile_h+2, out_w+2, Cin) bf16 haloed input window
      w_ref    : (9, Cin, Cout)           bf16 taps, row-major (ky, kx)
      [pstats] : (2, Cin) f32 [sum, sumsq] over the pre-norm input plane; when
                 pre_norm, the window is InstanceNorm'd + LeakyReLU(0.1)
                 in-kernel before the conv (fused prologue).
      out_ref  : (tile_h, out_w, Cout)    conv output tile
      [stats]  : (2, Cout) f32 [sum, sumsq] of this conv's f32 output,
                 accumulated across row tiles (grid axis 1).
    """
    idx = 0
    win_ref = refs[idx]; idx += 1
    w_ref = refs[idx]; idx += 1
    pstats_ref = None
    if pre_norm:
        pstats_ref = refs[idx]; idx += 1
    out_ref = refs[idx]; idx += 1
    stats_ref = refs[idx] if with_stats else None

    cin = win_ref.shape[-1]
    cout = w_ref.shape[-1]

    win = win_ref[...]
    if pre_norm:
        ps = pstats_ref[...]                                  # (2, Cin) f32
        mean = (ps[0:1, :] * inv_n).reshape(1, 1, cin)
        ex2 = (ps[1:2, :] * inv_n).reshape(1, 1, cin)
        scale = jax.lax.rsqrt(ex2 - mean * mean + _EPS)       # biased var
        wf = (win.astype(jnp.float32) - mean) * scale
        wf = jnp.where(wf > 0, wf, 0.1 * wf)                  # LeakyReLU(0.1)
        win = wf.astype(jnp.bfloat16)

    acc = jnp.zeros((tile_h * out_w, cout), jnp.float32)
    for ky in range(3):
        for kx in range(3):
            lhs = win[ky:ky + tile_h, kx:kx + out_w, :].reshape(
                tile_h * out_w, cin)
            acc = acc + jnp.dot(lhs, w_ref[ky * 3 + kx],
                                preferred_element_type=jnp.float32)

    if with_stats:
        @pl.when(pl.program_id(1) == 0)
        def _():
            stats_ref[...] = jnp.zeros_like(stats_ref)

        s1 = jnp.sum(acc, axis=0, keepdims=True)
        s2 = jnp.sum(acc * acc, axis=0, keepdims=True)
        stats_ref[...] += jnp.concatenate([s1, s2], axis=0)

    y = jnp.tanh(acc) if apply_tanh else acc
    out_ref[...] = y.reshape(tile_h, out_w, cout).astype(out_ref.dtype)


def _instnorm_kernel(*refs, mode, inv_n, with_stats):
    """InstanceNorm from precomputed sums, with fused epilogue.

    refs (in order): x, stats_in, [res | gamma_beta], out, [stats_out]
      x          : (tile_h, W, C)  conv-output tile
      stats_in   : (2, C) f32      [sum, sum_sq] over the full (H, W) plane
      res        : (tile_h, W, C)  residual to add           (mode="residual")
      gamma_beta : (2, C) f32      affine scale / shift       (mode="affine")
      out        : (tile_h, W, C)
      stats_out  : (2, C) f32      sums of `out`, accumulated across row tiles
    """
    x_ref, stats_ref = refs[0], refs[1]
    i = 2
    res_ref = gb_ref = None
    if mode == "residual":
        res_ref = refs[i]; i += 1
    elif mode == "affine":
        gb_ref = refs[i]; i += 1
    out_ref = refs[i]; i += 1
    ostats_ref = refs[i] if with_stats else None

    c = x_ref.shape[-1]
    stats = stats_ref[...]                                   # (2, C) f32
    mean = (stats[0:1, :] * inv_n).reshape(1, 1, c)
    ex2 = (stats[1:2, :] * inv_n).reshape(1, 1, c)
    scale = jax.lax.rsqrt(ex2 - mean * mean + _EPS)          # biased var, eps=1e-5

    y = (x_ref[...].astype(jnp.float32) - mean) * scale
    if mode == "residual":
        y = res_ref[...].astype(jnp.float32) + y             # x + IN(conv(...))
    elif mode == "affine":
        gb = gb_ref[...]
        y = y * gb[0:1, :].reshape(1, 1, c) + gb[1:2, :].reshape(1, 1, c)
    out_ref[...] = y.astype(out_ref.dtype)

    if with_stats:
        @pl.when(pl.program_id(1) == 0)
        def _():
            ostats_ref[...] = jnp.zeros_like(ostats_ref)

        yf = y.reshape(-1, c)
        s1 = jnp.sum(yf, axis=0, keepdims=True)
        s2 = jnp.sum(yf * yf, axis=0, keepdims=True)
        ostats_ref[...] += jnp.concatenate([s1, s2], axis=0)


# ------------------------------- wrappers ---------------------------------

def _pick_tile_h(H, W):
    """Largest divisor of H whose per-step f32 conv tile stays ~<= 1 MiB."""
    budget = 1 << 20
    best = 1
    for th in range(1, H + 1):
        if H % th == 0 and th * W * 64 * 4 <= budget:
            best = th
    return best


def _build_windows(x, tile_h, pad_mode):
    """(B,H,W,C) -> bf16 (B, T, tile_h+2, W+2, C) overlapping haloed row tiles."""
    B, H, W, C = x.shape
    mode = "reflect" if pad_mode == "reflect" else "constant"
    xp = jnp.pad(x.astype(jnp.bfloat16), ((0, 0), (1, 1), (1, 1), (0, 0)),
                 mode=mode)
    T = H // tile_h
    return jnp.stack(
        [xp[:, t * tile_h: t * tile_h + tile_h + 2, :, :] for t in range(T)],
        axis=1)


def conv3x3(x, w_hwio, *, pad_mode, tile_h, pre_stats=None, apply_tanh=False,
            with_stats=False, out_dtype=jnp.bfloat16):
    """3x3 conv, stride 1, padding 1 (zero or reflect), no bias.

    pre_stats: optional (B, 2, Cin) sums of `x` -> IN + LeakyReLU(0.1) applied
    in-kernel to the haloed window before the conv (fused prologue).
    Returns `out` or `(out, stats)` with stats[b] = [sum_c, sumsq_c] over (H,W).
    """
    B, H, W, Cin = x.shape
    Cout = w_hwio.shape[-1]
    assert H % tile_h == 0
    T = H // tile_h
    Wp = W + 2
    pre_norm = pre_stats is not None
    wins = _build_windows(x, tile_h, pad_mode)
    wk = w_hwio.astype(jnp.bfloat16).reshape(9, Cin, Cout)

    in_specs = [
        pl.BlockSpec((None, None, tile_h + 2, Wp, Cin),
                     lambda b, t: (b, t, 0, 0, 0)),
        pl.BlockSpec((9, Cin, Cout), lambda b, t: (0, 0, 0)),  # VMEM-resident
    ]
    args = [wins, wk]
    if pre_norm:
        in_specs.append(pl.BlockSpec((None, 2, Cin), lambda b, t: (b, 0, 0)))
        args.append(pre_stats)

    out_shape = [jax.ShapeDtypeStruct((B, H, W, Cout), out_dtype)]
    out_specs = [pl.BlockSpec((None, tile_h, W, Cout), lambda b, t: (b, t, 0, 0))]
    if with_stats:
        out_shape.append(jax.ShapeDtypeStruct((B, 2, Cout), jnp.float32))
        out_specs.append(pl.BlockSpec((None, 2, Cout), lambda b, t: (b, 0, 0)))
    sems = ("parallel", "arbitrary") if with_stats else ("parallel", "parallel")

    return pl.pallas_call(
        functools.partial(_conv3x3_kernel, tile_h=tile_h, out_w=W,
                          inv_n=1.0 / (H * W), apply_tanh=apply_tanh,
                          with_stats=with_stats, pre_norm=pre_norm),
        out_shape=tuple(out_shape) if with_stats else out_shape[0],
        grid=(B, T),
        in_specs=in_specs,
        out_specs=tuple(out_specs) if with_stats else out_specs[0],
        compiler_params=pltpu.CompilerParams(
            dimension_semantics=sems, vmem_limit_bytes=_VMEM_LIMIT),
    )(*args)


def instnorm(x, stats, *, mode, tile_h, extra=None, out_dtype=jnp.bfloat16,
             with_stats=False):
    """InstanceNorm (biased var, eps=1e-5) from precomputed sums, fused epilogue."""
    B, H, W, C = x.shape
    assert H % tile_h == 0
    T = H // tile_h

    tile_spec = pl.BlockSpec((None, tile_h, W, C), lambda b, t: (b, t, 0, 0))
    stat_spec = pl.BlockSpec((None, 2, C), lambda b, t: (b, 0, 0))

    in_specs = [tile_spec, stat_spec]
    args = [x, stats]
    if mode == "residual":
        in_specs.append(tile_spec)
        args.append(extra)
    elif mode == "affine":
        in_specs.append(pl.BlockSpec((2, C), lambda b, t: (0, 0)))
        args.append(extra)

    out_shape = [jax.ShapeDtypeStruct((B, H, W, C), out_dtype)]
    out_specs = [tile_spec]
    if with_stats:
        out_shape.append(jax.ShapeDtypeStruct((B, 2, C), jnp.float32))
        out_specs.append(stat_spec)
    sems = ("parallel", "arbitrary") if with_stats else ("parallel", "parallel")

    return pl.pallas_call(
        functools.partial(_instnorm_kernel, mode=mode, inv_n=1.0 / (H * W),
                          with_stats=with_stats),
        out_shape=tuple(out_shape) if with_stats else out_shape[0],
        grid=(B, T),
        in_specs=in_specs,
        out_specs=tuple(out_specs) if with_stats else out_specs[0],
        compiler_params=pltpu.CompilerParams(
            dimension_semantics=sems, vmem_limit_bytes=_VMEM_LIMIT),
    )(*args)


def residual_block(h, w1, w2, *, tile_h, want_stats=False):
    """_Residual_Block: h + IN(conv(pad(LeakyReLU(IN(conv(pad(h)))))))."""
    # conv1 on reflect-padded h; emit per-(b,c) sums for the following IN.
    c1, s1 = conv3x3(h, w1, pad_mode="reflect", tile_h=tile_h, with_stats=True)
    # conv2 with the IN + LeakyReLU of c1 fused into its prologue (pointwise
    # ops commute with reflection padding, so normalizing the haloed window of
    # c1 is exact) -- saves one kernel launch + (B,H,W,64) HBM round trip.
    c2, s2 = conv3x3(c1, w2, pad_mode="reflect", tile_h=tile_h,
                     pre_stats=s1, with_stats=True)
    out = instnorm(c2, s2, mode="residual", extra=h, tile_h=tile_h,
                   with_stats=want_stats)
    if want_stats:
        return out          # (out, stats-of-out) for the following affine IN
    return out, None


def local_pathway_forward(x, params, tile_h=None):
    """x: (B,H,W,3) NHWC -> (out_feature (B,H,W,64) f32, local_img (B,H,W,3) f32)."""
    B, H, W, _ = x.shape
    if tile_h is None:
        tile_h = _pick_tile_h(H, W)
    assert H % tile_h == 0, "tile_h must divide H"

    # Conv2d(3, 64, 3, 1, 1, bias=False) -- no norm follows, so no stats.
    out = conv3x3(x, params["conv_w"], pad_mode="zeros", tile_h=tile_h)

    # forward() applies self.residual (3 shared-weight blocks) twice.
    apps = [wpair for _ in range(2) for wpair in params["res_ws"]]
    stats = None
    for i, (w1, w2) in enumerate(apps):
        out, stats = residual_block(out, w1, w2, tile_h=tile_h,
                                    want_stats=(i == len(apps) - 1))

    # out_feature = InstanceNorm2d(64, affine=True)(out); the sums of `out`
    # were already produced by the last residual-block kernel (single pass).
    gb = jnp.stack([params["in_gamma"], params["in_beta"]], 0).astype(jnp.float32)
    out_feature = instnorm(out, stats, mode="affine", extra=gb, tile_h=tile_h,
                           out_dtype=jnp.float32)

    # Conv2d(64, 3, 3, 1, 1, bias=False) + Tanh; pad Cout 3 -> 128 so the
    # writeback is lane-dense, slice the real channels afterwards.
    w_out = params["conv_out_w"]
    cout = w_out.shape[-1]
    w_out_p = jnp.pad(w_out, ((0, 0), (0, 0), (0, 0), (0, 128 - cout)))
    img = conv3x3(out_feature, w_out_p, pad_mode="zeros", tile_h=tile_h,
                  apply_tanh=True, out_dtype=jnp.float32)
    local_img = img[..., :cout]
    return out_feature, local_img

# TODO(synk): self.bn (BatchNorm2d) is constructed in __init__ but never used in
# forward, so it is intentionally not implemented.


# ------------------------- pure-JAX f32 reference --------------------------

def _ref_conv(x, w, pad_mode):
    if pad_mode == "reflect":
        x = jnp.pad(x, ((0, 0), (1, 1), (1, 1), (0, 0)), mode="reflect")
        padding = "VALID"
    else:
        padding = "SAME"
    return jax.lax.conv_general_dilated(
        x, w, window_strides=(1, 1), padding=padding,
        dimension_numbers=("NHWC", "HWIO", "NHWC"))


def _ref_in(x, gamma=None, beta=None):
    mean = jnp.mean(x, axis=(1, 2), keepdims=True)
    var = jnp.mean(jnp.square(x - mean), axis=(1, 2), keepdims=True)
    y = (x - mean) * jax.lax.rsqrt(var + _EPS)
    if gamma is not None:
        y = y * gamma.reshape(1, 1, 1, -1) + beta.reshape(1, 1, 1, -1)
    return y


def _ref_forward(x, params):
    out = _ref_conv(x, params["conv_w"], "zeros")
    for _ in range(2):
        for (w1, w2) in params["res_ws"]:
            h = _ref_in(_ref_conv(out, w1, "reflect"))
            h = jnp.where(h > 0, h, 0.1 * h)
            out = out + _ref_in(_ref_conv(h, w2, "reflect"))
    out_feature = _ref_in(out, params["in_gamma"], params["in_beta"])
    local_img = jnp.tanh(_ref_conv(out_feature, params["conv_out_w"], "zeros"))
    return out_feature, local_img


# --------------------------------- main ------------------------------------

if __name__ == "__main__":
    key = jax.random.PRNGKey(0)
    ks = jax.random.split(key, 11)

    B, H, W = 2, 16, 16
    x = jax.random.normal(ks[0], (B, H, W, 3), jnp.float32)

    params = {
        # Conv2d(3, 64, 3, 1, 1, bias=False)  -> HWIO (3,3,3,64)
        "conv_w": 0.1 * jax.random.normal(ks[1], (3, 3, 3, 64), jnp.float32),
        # 3 residual blocks, each with two Conv2d(64, 64, 3) (no bias)
        "res_ws": [
            (0.05 * jax.random.normal(ks[2 + 2 * i], (3, 3, 64, 64), jnp.float32),
             0.05 * jax.random.normal(ks[3 + 2 * i], (3, 3, 64, 64), jnp.float32))
            for i in range(3)
        ],
        # InstanceNorm2d(64, affine=True)
        "in_gamma": 1.0 + 0.1 * jax.random.normal(ks[8], (64,), jnp.float32),
        "in_beta": 0.1 * jax.random.normal(ks[9], (64,), jnp.float32),
        # Conv2d(64, 3, 3, 1, 1, bias=False) -> HWIO (3,3,64,3)
        "conv_out_w": 0.05 * jax.random.normal(ks[10], (3, 3, 64, 3), jnp.float32),
    }

    # tile_h=8 -> 2 row tiles per image: exercises the cross-tile stats
    # accumulation path (pl.when init + "+=") as well as the pipelined grid.
    fwd = jax.jit(functools.partial(local_pathway_forward, tile_h=8))
    out_feature, local_img = fwd(x, params)
    jax.block_until_ready(out_feature)
    jax.block_until_ready(local_img)

    assert out_feature.shape == (B, H, W, 64) and out_feature.dtype == jnp.float32
    assert local_img.shape == (B, H, W, 3)
    assert bool(jnp.all(jnp.isfinite(out_feature)))
    assert bool(jnp.all(jnp.abs(local_img) <= 1.0))

    # Loose sanity check vs. a pure-JAX f32 reference (Pallas path uses bf16
    # intermediates, so only gross errors would exceed these thresholds).
    ref_feat, ref_img = jax.jit(_ref_forward)(x, params)
    feat_err = float(jnp.max(jnp.abs(out_feature - ref_feat)))
    img_err = float(jnp.max(jnp.abs(local_img - ref_img)))
    assert feat_err < 0.5, f"out_feature mismatch vs reference: {feat_err}"
    assert img_err < 0.35, f"local_img mismatch vs reference: {img_err}"

    print("KERNEL_OK")
</pallas_src>

<mosaic_0001>
module attributes {stable_mosaic.version = 11 : i64} {
  func.func @_conv3x3_kernel(%arg0: i32, %arg1: i32, %arg2: memref<1x1x10x18x3xbf16, #tpu.memory_space<vmem>>, %arg3: memref<9x3x64xbf16, #tpu.memory_space<vmem>>, %arg4: memref<1x8x16x64xbf16, #tpu.memory_space<vmem>>) attributes {dimension_semantics = [#tpu.dimension_semantics<parallel>, #tpu.dimension_semantics<parallel>], iteration_bounds = array<i64: 2, 2>, scalar_prefetch = 0 : i64, scratch_operands = 0 : i64, tpu.core_type = #tpu.core_type<tc>, window_params = [{transform_indices = @transform_0, window_bounds = array<i64: 1, 1, 10, 18, 3>}, {pipeline_mode = #tpu.pipeline_mode<synchronous>, transform_indices = @transform_1, window_bounds = array<i64: 9, 3, 64>}, {transform_indices = @transform_2, window_bounds = array<i64: 1, 8, 16, 64>}]} {
    %c0 = arith.constant 0 : index
    %c0_0 = arith.constant 0 : index
    %c0_1 = arith.constant 0 : index
    %c0_2 = arith.constant 0 : index
    %c0_3 = arith.constant 0 : index
    %0 = vector.load %arg2[%c0, %c0_0, %c0_1, %c0_2, %c0_3] : memref<1x1x10x18x3xbf16, #tpu.memory_space<vmem>>, vector<1x1x10x18x3xbf16>
    %1 = vector.shape_cast %0 : vector<1x1x10x18x3xbf16> to vector<10x18x3xbf16>
    %cst = arith.constant 0.000000e+00 : f32
    %2 = vector.broadcast %cst : f32 to vector<128x64xf32>
    %3 = vector.extract_strided_slice %1 {offsets = [0, 0, 0], sizes = [8, 16, 3], strides = [1, 1, 1]} : vector<10x18x3xbf16> to vector<8x16x3xbf16>
    %4 = vector.shape_cast %3 : vector<8x16x3xbf16> to vector<128x3xbf16>
    %c0_4 = arith.constant 0 : index
    %c0_5 = arith.constant 0 : index
    %c0_6 = arith.constant 0 : index
    %5 = vector.load %arg3[%c0_4, %c0_5, %c0_6] : memref<9x3x64xbf16, #tpu.memory_space<vmem>>, vector<1x3x64xbf16>
    %6 = vector.shape_cast %5 : vector<1x3x64xbf16> to vector<3x64xbf16>
    %cst_7 = arith.constant dense<0.000000e+00> : vector<128x64xf32>
    %7 = tpu.matmul %4, %6, %cst_7 {dimension_numbers = #tpu.dot_dimension_numbers<[1], [0], [0], [1], [0, 0, 1, 1], [], []>} : vector<128x3xbf16>, vector<3x64xbf16>, vector<128x64xf32> -> vector<128x64xf32>
    %8 = arith.addf %2, %7 : vector<128x64xf32>
    %9 = vector.extract_strided_slice %1 {offsets = [0, 1, 0], sizes = [8, 16, 3], strides = [1, 1, 1]} : vector<10x18x3xbf16> to vector<8x16x3xbf16>
    %10 = vector.shape_cast %9 : vector<8x16x3xbf16> to vector<128x3xbf16>
    %c1 = arith.constant 1 : index
    %c0_8 = arith.constant 0 : index
    %c0_9 = arith.constant 0 : index
    %11 = vector.load %arg3[%c1, %c0_8, %c0_9] : memref<9x3x64xbf16, #tpu.memory_space<vmem>>, vector<1x3x64xbf16>
    %12 = vector.shape_cast %11 : vector<1x3x64xbf16> to vector<3x64xbf16>
    %cst_10 = arith.constant dense<0.000000e+00> : vector<128x64xf32>
    %13 = tpu.matmul %10, %12, %cst_10 {dimension_numbers = #tpu.dot_dimension_numbers<[1], [0], [0], [1], [0, 0, 1, 1], [], []>} : vector<128x3xbf16>, vector<3x64xbf16>, vector<128x64xf32> -> vector<128x64xf32>
    %14 = arith.addf %8, %13 : vector<128x64xf32>
    %15 = vector.extract_strided_slice %1 {offsets = [0, 2, 0], sizes = [8, 16, 3], strides = [1, 1, 1]} : vector<10x18x3xbf16> to vector<8x16x3xbf16>
    %16 = vector.shape_cast %15 : vector<8x16x3xbf16> to vector<128x3xbf16>
    %c2 = arith.constant 2 : index
    %c0_11 = arith.constant 0 : index
    %c0_12 = arith.constant 0 : index
    %17 = vector.load %arg3[%c2, %c0_11, %c0_12] : memref<9x3x64xbf16, #tpu.memory_space<vmem>>, vector<1x3x64xbf16>
    %18 = vector.shape_cast %17 : vector<1x3x64xbf16> to vector<3x64xbf16>
    %cst_13 = arith.constant dense<0.000000e+00> : vector<128x64xf32>
    %19 = tpu.matmul %16, %18, %cst_13 {dimension_numbers = #tpu.dot_dimension_numbers<[1], [0], [0], [1], [0, 0, 1, 1], [], []>} : vector<128x3xbf16>, vector<3x64xbf16>, vector<128x64xf32> -> vector<128x64xf32>
    %20 = arith.addf %14, %19 : vector<128x64xf32>
    %21 = vector.extract_strided_slice %1 {offsets = [1, 0, 0], sizes = [8, 16, 3], strides = [1, 1, 1]} : vector<10x18x3xbf16> to vector<8x16x3xbf16>
    %22 = vector.shape_cast %21 : vector<8x16x3xbf16> to vector<128x3xbf16>
    %c3 = arith.constant 3 : index
    %c0_14 = arith.constant 0 : index
    %c0_15 = arith.constant 0 : index
    %23 = vector.load %arg3[%c3, %c0_14, %c0_15] : memref<9x3x64xbf16, #tpu.memory_space<vmem>>, vector<1x3x64xbf16>
    %24 = vector.shape_cast %23 : vector<1x3x64xbf16> to vector<3x64xbf16>
    %cst_16 = arith.constant dense<0.000000e+00> : vector<128x64xf32>
    %25 = tpu.matmul %22, %24, %cst_16 {dimension_numbers = #tpu.dot_dimension_numbers<[1], [0], [0], [1], [0, 0, 1, 1], [], []>} : vector<128x3xbf16>, vector<3x64xbf16>, vector<128x64xf32> -> vector<128x64xf32>
    %26 = arith.addf %20, %25 : vector<128x64xf32>
    %27 = vector.extract_strided_slice %1 {offsets = [1, 1, 0], sizes = [8, 16, 3], strides = [1, 1, 1]} : vector<10x18x3xbf16> to vector<8x16x3xbf16>
    %28 = vector.shape_cast %27 : vector<8x16x3xbf16> to vector<128x3xbf16>
    %c4 = arith.constant 4 : index
    %c0_17 = arith.constant 0 : index
    %c0_18 = arith.constant 0 : index
    %29 = vector.load %arg3[%c4, %c0_17, %c0_18] : memref<9x3x64xbf16, #tpu.memory_space<vmem>>, vector<1x3x64xbf16>
    %30 = vector.shape_cast %29 : vector<1x3x64xbf16> to vector<3x64xbf16>
    %cst_19 = arith.constant dense<0.000000e+00> : vector<128x64xf32>
    %31 = tpu.matmul %28, %30, %cst_19 {dimension_numbers = #tpu.dot_dimension_numbers<[1], [0], [0], [1], [0, 0, 1, 1], [], []>} : vector<128x3xbf16>, vector<3x64xbf16>, vector<128x64xf32> -> vector<128x64xf32>
    %32 = arith.addf %26, %31 : vector<128x64xf32>
    %33 = vector.extract_strided_slice %1 {offsets = [1, 2, 0], sizes = [8, 16, 3], strides = [1, 1, 1]} : vector<10x18x3xbf16> to vector<8x16x3xbf16>
    %34 = vector.shape_cast %33 : vector<8x16x3xbf16> to vector<128x3xbf16>
    %c5 = arith.constant 5 : index
    %c0_20 = arith.constant 0 : index
    %c0_21 = arith.constant 0 : index
    %35 = vector.load %arg3[%c5, %c0_20, %c0_21] : memref<9x3x64xbf16, #tpu.memory_space<vmem>>, vector<1x3x64xbf16>
    %36 = vector.shape_cast %35 : vector<1x3x64xbf16> to vector<3x64xbf16>
    %cst_22 = arith.constant dense<0.000000e+00> : vector<128x64xf32>
    %37 = tpu.matmul %34, %36, %cst_22 {dimension_numbers = #tpu.dot_dimension_numbers<[1], [0], [0], [1], [0, 0, 1, 1], [], []>} : vector<128x3xbf16>, vector<3x64xbf16>, vector<128x64xf32> -> vector<128x64xf32>
    %38 = arith.addf %32, %37 : vector<128x64xf32>
    %39 = vector.extract_strided_slice %1 {offsets = [2, 0, 0], sizes = [8, 16, 3], strides = [1, 1, 1]} : vector<10x18x3xbf16> to vector<8x16x3xbf16>
    %40 = vector.shape_cast %39 : vector<8x16x3xbf16> to vector<128x3xbf16>
    %c6 = arith.constant 6 : index
    %c0_23 = arith.constant 0 : index
    %c0_24 = arith.constant 0 : index
    %41 = vector.load %arg3[%c6, %c0_23, %c0_24] : memref<9x3x64xbf16, #tpu.memory_space<vmem>>, vector<1x3x64xbf16>
    %42 = vector.shape_cast %41 : vector<1x3x64xbf16> to vector<3x64xbf16>
    %cst_25 = arith.constant dense<0.000000e+00> : vector<128x64xf32>
    %43 = tpu.matmul %40, %42, %cst_25 {dimension_numbers = #tpu.dot_dimension_numbers<[1], [0], [0], [1], [0, 0, 1, 1], [], []>} : vector<128x3xbf16>, vector<3x64xbf16>, vector<128x64xf32> -> vector<128x64xf32>
    %44 = arith.addf %38, %43 : vector<128x64xf32>
    %45 = vector.extract_strided_slice %1 {offsets = [2, 1, 0], sizes = [8, 16, 3], strides = [1, 1, 1]} : vector<10x18x3xbf16> to vector<8x16x3xbf16>
    %46 = vector.shape_cast %45 : vector<8x16x3xbf16> to vector<128x3xbf16>
    %c7 = arith.constant 7 : index
    %c0_26 = arith.constant 0 : index
    %c0_27 = arith.constant 0 : index
    %47 = vector.load %arg3[%c7, %c0_26, %c0_27] : memref<9x3x64xbf16, #tpu.memory_space<vmem>>, vector<1x3x64xbf16>
    %48 = vector.shape_cast %47 : vector<1x3x64xbf16> to vector<3x64xbf16>
    %cst_28 = arith.constant dense<0.000000e+00> : vector<128x64xf32>
    %49 = tpu.matmul %46, %48, %cst_28 {dimension_numbers = #tpu.dot_dimension_numbers<[1], [0], [0], [1], [0, 0, 1, 1], [], []>} : vector<128x3xbf16>, vector<3x64xbf16>, vector<128x64xf32> -> vector<128x64xf32>
    %50 = arith.addf %44, %49 : vector<128x64xf32>
    %51 = vector.extract_strided_slice %1 {offsets = [2, 2, 0], sizes = [8, 16, 3], strides = [1, 1, 1]} : vector<10x18x3xbf16> to vector<8x16x3xbf16>
    %52 = vector.shape_cast %51 : vector<8x16x3xbf16> to vector<128x3xbf16>
    %c8 = arith.constant 8 : index
    %c0_29 = arith.constant 0 : index
    %c0_30 = arith.constant 0 : index
    %53 = vector.load %arg3[%c8, %c0_29, %c0_30] : memref<9x3x64xbf16, #tpu.memory_space<vmem>>, vector<1x3x64xbf16>
    %54 = vector.shape_cast %53 : vector<1x3x64xbf16> to vector<3x64xbf16>
    %cst_31 = arith.constant dense<0.000000e+00> : vector<128x64xf32>
    %55 = tpu.matmul %52, %54, %cst_31 {dimension_numbers = #tpu.dot_dimension_numbers<[1], [0], [0], [1], [0, 0, 1, 1], [], []>} : vector<128x3xbf16>, vector<3x64xbf16>, vector<128x64xf32> -> vector<128x64xf32>
    %56 = arith.addf %50, %55 : vector<128x64xf32>
    %57 = vector.shape_cast %56 : vector<128x64xf32> to vector<8x16x64xf32>
    %58 = arith.truncf %57 : vector<8x16x64xf32> to vector<8x16x64xbf16>
    %c0_32 = arith.constant 0 : index
    %c0_33 = arith.constant 0 : index
    %c0_34 = arith.constant 0 : index
    %c0_35 = arith.constant 0 : index
    %59 = vector.load %arg4[%c0_32, %c0_33, %c0_34, %c0_35] : memref<1x8x16x64xbf16, #tpu.memory_space<vmem>>, vector<1x8x16x64xbf16>
    %60 = vector.shape_cast %59 : vector<1x8x16x64xbf16> to vector<8x16x64xbf16>
    %61 = vector.shape_cast %58 : vector<8x16x64xbf16> to vector<1x8x16x64xbf16>
    tpu.vector_store %arg4[%c0_32, %c0_33, %c0_34, %c0_35], %61 {strides = array<i32>} : memref<1x8x16x64xbf16, #tpu.memory_space<vmem>>, vector<1x8x16x64xbf16>,
    return
  }
  func.func @transform_0(%arg0: i32, %arg1: i32) -> (i32, i32, i32, i32, i32) {
    %c0_i32 = arith.constant 0 : i32
    %c0_i32_0 = arith.constant 0 : i32
    %c0_i32_1 = arith.constant 0 : i32
    %c0_i32_2 = arith.constant 0 : i32
    return %arg0, %arg1, %c0_i32, %c0_i32_0, %c0_i32_1 : i32, i32, i32, i32, i32
  }
  func.func @transform_1(%arg0: i32, %arg1: i32) -> (i32, i32, i32) {
    %c0_i32 = arith.constant 0 : i32
    %c0_i32_0 = arith.constant 0 : i32
    %c0_i32_1 = arith.constant 0 : i32
    %c0_i32_2 = arith.constant 0 : i32
    return %c0_i32, %c0_i32_0, %c0_i32_1 : i32, i32, i32
  }
  func.func @transform_2(%arg0: i32, %arg1: i32) -> (i32, i32, i32, i32) {
    %c0_i32 = arith.constant 0 : i32
    %c0_i32_0 = arith.constant 0 : i32
    %c0_i32_1 = arith.constant 0 : i32
    return %arg0, %arg1, %c0_i32, %c0_i32_0 : i32, i32, i32, i32
  }
}

module attributes {stable_mosaic.version = 11 : i64} {
  func.func @_conv3x3_kernel(%arg0: i32, %arg1: i32, %arg2: memref<1x1x10x18x64xbf16, #tpu.memory_space<vmem>>, %arg3: memref<9x64x64xbf16, #tpu.memory_space<vmem>>, %arg4: memref<1x8x16x64xbf16, #tpu.memory_space<vmem>>, %arg5: memref<1x2x64xf32, #tpu.memory_space<vmem>>) attributes {dimension_semantics = [#tpu.dimension_semantics<parallel>, #tpu.dimension_semantics<arbitrary>], iteration_bounds = array<i64: 2, 2>, scalar_prefetch = 0 : i64, scratch_operands = 0 : i64, tpu.core_type = #tpu.core_type<tc>, window_params = [{transform_indices = @transform_0, window_bounds = array<i64: 1, 1, 10, 18, 64>}, {pipeline_mode = #tpu.pipeline_mode<synchronous>, transform_indices = @transform_1, window_bounds = array<i64: 9, 64, 64>}, {transform_indices = @transform_2, window_bounds = array<i64: 1, 8, 16, 64>}, {transform_indices = @transform_3, window_bounds = array<i64: 1, 2, 64>}]} {
    %c0 = arith.constant 0 : index
    %c0_0 = arith.constant 0 : index
    %c0_1 = arith.constant 0 : index
    %c0_2 = arith.constant 0 : index
    %c0_3 = arith.constant 0 : index
    %0 = vector.load %arg2[%c0, %c0_0, %c0_1, %c0_2, %c0_3] : memref<1x1x10x18x64xbf16, #tpu.memory_space<vmem>>, vector<1x1x10x18x64xbf16>
    %1 = vector.shape_cast %0 : vector<1x1x10x18x64xbf16> to vector<10x18x64xbf16>
    %cst = arith.constant 0.000000e+00 : f32
    %2 = vector.broadcast %cst : f32 to vector<128x64xf32>
    %3 = vector.extract_strided_slice %1 {offsets = [0, 0, 0], sizes = [8, 16, 64], strides = [1, 1, 1]} : vector<10x18x64xbf16> to vector<8x16x64xbf16>
    %4 = vector.shape_cast %3 : vector<8x16x64xbf16> to vector<128x64xbf16>
    %c0_4 = arith.constant 0 : index
    %c0_5 = arith.constant 0 : index
    %c0_6 = arith.constant 0 : index
    %5 = vector.load %arg3[%c0_4, %c0_5, %c0_6] : memref<9x64x64xbf16, #tpu.memory_space<vmem>>, vector<1x64x64xbf16>
    %6 = vector.shape_cast %5 : vector<1x64x64xbf16> to vector<64x64xbf16>
    %cst_7 = arith.constant dense<0.000000e+00> : vector<128x64xf32>
    %7 = tpu.matmul %4, %6, %cst_7 {dimension_numbers = #tpu.dot_dimension_numbers<[1], [0], [0], [1], [0, 0, 1, 1], [], []>} : vector<128x64xbf16>, vector<64x64xbf16>, vector<128x64xf32> -> vector<128x64xf32>
    %8 = arith.addf %2, %7 : vector<128x64xf32>
    %9 = vector.extract_strided_slice %1 {offsets = [0, 1, 0], sizes = [8, 16, 64], strides = [1, 1, 1]} : vector<10x18x64xbf16> to vector<8x16x64xbf16>
    %10 = vector.shape_cast %9 : vector<8x16x64xbf16> to vector<128x64xbf16>
    %c1 = arith.constant 1 : index
    %c0_8 = arith.constant 0 : index
    %c0_9 = arith.constant 0 : index
    %11 = vector.load %arg3[%c1, %c0_8, %c0_9] : memref<9x64x64xbf16, #tpu.memory_space<vmem>>, vector<1x64x64xbf16>
    %12 = vector.shape_cast %11 : vector<1x64x64xbf16> to vector<64x64xbf16>
    %cst_10 = arith.constant dense<0.000000e+00> : vector<128x64xf32>
    %13 = tpu.matmul %10, %12, %cst_10 {dimension_numbers = #tpu.dot_dimension_numbers<[1], [0], [0], [1], [0, 0, 1, 1], [], []>} : vector<128x64xbf16>, vector<64x64xbf16>, vector<128x64xf32> -> vector<128x64xf32>
    %14 = arith.addf %8, %13 : vector<128x64xf32>
    %15 = vector.extract_strided_slice %1 {offsets = [0, 2, 0], sizes = [8, 16, 64], strides = [1, 1, 1]} : vector<10x18x64xbf16> to vector<8x16x64xbf16>
    %16 = vector.shape_cast %15 : vector<8x16x64xbf16> to vector<128x64xbf16>
    %c2 = arith.constant 2 : index
    %c0_11 = arith.constant 0 : index
    %c0_12 = arith.constant 0 : index
    %17 = vector.load %arg3[%c2, %c0_11, %c0_12] : memref<9x64x64xbf16, #tpu.memory_space<vmem>>, vector<1x64x64xbf16>
    %18 = vector.shape_cast %17 : vector<1x64x64xbf16> to vector<64x64xbf16>
    %cst_13 = arith.constant dense<0.000000e+00> : vector<128x64xf32>
    %19 = tpu.matmul %16, %18, %cst_13 {dimension_numbers = #tpu.dot_dimension_numbers<[1], [0], [0], [1], [0, 0, 1, 1], [], []>} : vector<128x64xbf16>, vector<64x64xbf16>, vector<128x64xf32> -> vector<128x64xf32>
    %20 = arith.addf %14, %19 : vector<128x64xf32>
    %21 = vector.extract_strided_slice %1 {offsets = [1, 0, 0], sizes = [8, 16, 64], strides = [1, 1, 1]} : vector<10x18x64xbf16> to vector<8x16x64xbf16>
    %22 = vector.shape_cast %21 : vector<8x16x64xbf16> to vector<128x64xbf16>
    %c3 = arith.constant 3 : index
    %c0_14 = arith.constant 0 : index
    %c0_15 = arith.constant 0 : index
    %23 = vector.load %arg3[%c3, %c0_14, %c0_15] : memref<9x64x64xbf16, #tpu.memory_space<vmem>>, vector<1x64x64xbf16>
    %24 = vector.shape_cast %23 : vector<1x64x64xbf16> to vector<64x64xbf16>
    %cst_16 = arith.constant dense<0.000000e+00> : vector<128x64xf32>
    %25 = tpu.matmul %22, %24, %cst_16 {dimension_numbers = #tpu.dot_dimension_numbers<[1], [0], [0], [1], [0, 0, 1, 1], [], []>} : vector<128x64xbf16>, vector<64x64xbf16>, vector<128x64xf32> -> vector<128x64xf32>
    %26 = arith.addf %20, %25 : vector<128x64xf32>
    %27 = vector.extract_strided_slice %1 {offsets = [1, 1, 0], sizes = [8, 16, 64], strides = [1, 1, 1]} : vector<10x18x64xbf16> to vector<8x16x64xbf16>
    %28 = vector.shape_cast %27 : vector<8x16x64xbf16> to vector<128x64xbf16>
    %c4 = arith.constant 4 : index
    %c0_17 = arith.constant 0 : index
    %c0_18 = arith.constant 0 : index
    %29 = vector.load %arg3[%c4, %c0_17, %c0_18] : memref<9x64x64xbf16, #tpu.memory_space<vmem>>, vector<1x64x64xbf16>
    %30 = vector.shape_cast %29 : vector<1x64x64xbf16> to vector<64x64xbf16>
    %cst_19 = arith.constant dense<0.000000e+00> : vector<128x64xf32>
    %31 = tpu.matmul %28, %30, %cst_19 {dimension_numbers = #tpu.dot_dimension_numbers<[1], [0], [0], [1], [0, 0, 1, 1], [], []>} : vector<128x64xbf16>, vector<64x64xbf16>, vector<128x64xf32> -> vector<128x64xf32>
    %32 = arith.addf %26, %31 : vector<128x64xf32>
    %33 = vector.extract_strided_slice %1 {offsets = [1, 2, 0], sizes = [8, 16, 64], strides = [1, 1, 1]} : vector<10x18x64xbf16> to vector<8x16x64xbf16>
    %34 = vector.shape_cast %33 : vector<8x16x64xbf16> to vector<128x64xbf16>
    %c5 = arith.constant 5 : index
    %c0_20 = arith.constant 0 : index
    %c0_21 = arith.constant 0 : index
    %35 = vector.load %arg3[%c5, %c0_20, %c0_21] : memref<9x64x64xbf16, #tpu.memory_space<vmem>>, vector<1x64x64xbf16>
    %36 = vector.shape_cast %35 : vector<1x64x64xbf16> to vector<64x64xbf16>
    %cst_22 = arith.constant dense<0.000000e+00> : vector<128x64xf32>
    %37 = tpu.matmul %34, %36, %cst_22 {dimension_numbers = #tpu.dot_dimension_numbers<[1], [0], [0], [1], [0, 0, 1, 1], [], []>} : vector<128x64xbf16>, vector<64x64xbf16>, vector<128x64xf32> -> vector<128x64xf32>
    %38 = arith.addf %32, %37 : vector<128x64xf32>
    %39 = vector.extract_strided_slice %1 {offsets = [2, 0, 0], sizes = [8, 16, 64], strides = [1, 1, 1]} : vector<10x18x64xbf16> to vector<8x16x64xbf16>
    %40 = vector.shape_cast %39 : vector<8x16x64xbf16> to vector<128x64xbf16>
    %c6 = arith.constant 6 : index
    %c0_23 = arith.constant 0 : index
    %c0_24 = arith.constant 0 : index
    %41 = vector.load %arg3[%c6, %c0_23, %c0_24] : memref<9x64x64xbf16, #tpu.memory_space<vmem>>, vector<1x64x64xbf16>
    %42 = vector.shape_cast %41 : vector<1x64x64xbf16> to vector<64x64xbf16>
    %cst_25 = arith.constant dense<0.000000e+00> : vector<128x64xf32>
    %43 = tpu.matmul %40, %42, %cst_25 {dimension_numbers = #tpu.dot_dimension_numbers<[1], [0], [0], [1], [0, 0, 1, 1], [], []>} : vector<128x64xbf16>, vector<64x64xbf16>, vector<128x64xf32> -> vector<128x64xf32>
    %44 = arith.addf %38, %43 : vector<128x64xf32>
    %45 = vector.extract_strided_slice %1 {offsets = [2, 1, 0], sizes = [8, 16, 64], strides = [1, 1, 1]} : vector<10x18x64xbf16> to vector<8x16x64xbf16>
    %46 = vector.shape_cast %45 : vector<8x16x64xbf16> to vector<128x64xbf16>
    %c7 = arith.constant 7 : index
    %c0_26 = arith.constant 0 : index
    %c0_27 = arith.constant 0 : index
    %47 = vector.load %arg3[%c7, %c0_26, %c0_27] : memref<9x64x64xbf16, #tpu.memory_space<vmem>>, vector<1x64x64xbf16>
    %48 = vector.shape_cast %47 : vector<1x64x64xbf16> to vector<64x64xbf16>
    %cst_28 = arith.constant dense<0.000000e+00> : vector<128x64xf32>
    %49 = tpu.matmul %46, %48, %cst_28 {dimension_numbers = #tpu.dot_dimension_numbers<[1], [0], [0], [1], [0, 0, 1, 1], [], []>} : vector<128x64xbf16>, vector<64x64xbf16>, vector<128x64xf32> -> vector<128x64xf32>
    %50 = arith.addf %44, %49 : vector<128x64xf32>
    %51 = vector.extract_strided_slice %1 {offsets = [2, 2, 0], sizes = [8, 16, 64], strides = [1, 1, 1]} : vector<10x18x64xbf16> to vector<8x16x64xbf16>
    %52 = vector.shape_cast %51 : vector<8x16x64xbf16> to vector<128x64xbf16>
    %c8 = arith.constant 8 : index
    %c0_29 = arith.constant 0 : index
    %c0_30 = arith.constant 0 : index
    %53 = vector.load %arg3[%c8, %c0_29, %c0_30] : memref<9x64x64xbf16, #tpu.memory_space<vmem>>, vector<1x64x64xbf16>
    %54 = vector.shape_cast %53 : vector<1x64x64xbf16> to vector<64x64xbf16>
    %cst_31 = arith.constant dense<0.000000e+00> : vector<128x64xf32>
    %55 = tpu.matmul %52, %54, %cst_31 {dimension_numbers = #tpu.dot_dimension_numbers<[1], [0], [0], [1], [0, 0, 1, 1], [], []>} : vector<128x64xbf16>, vector<64x64xbf16>, vector<128x64xf32> -> vector<128x64xf32>
    %56 = arith.addf %50, %55 : vector<128x64xf32>
    %c0_i32 = arith.constant 0 : i32
    %57 = arith.cmpi eq, %arg1, %c0_i32 : i32
    %58 = arith.extui %57 : i1 to i32
    %c0_i32_32 = arith.constant 0 : i32
    %59 = arith.cmpi ne, %58, %c0_i32_32 : i32
    scf.if %59 {
      %cst_45 = arith.constant 0.000000e+00 : f32
      %77 = vector.broadcast %cst_45 : f32 to vector<2x64xf32>
      %c0_46 = arith.constant 0 : index
      %c0_47 = arith.constant 0 : index
      %c0_48 = arith.constant 0 : index
      %78 = vector.load %arg5[%c0_46, %c0_47, %c0_48] : memref<1x2x64xf32, #tpu.memory_space<vmem>>, vector<1x2x64xf32>
      %79 = vector.shape_cast %78 : vector<1x2x64xf32> to vector<2x64xf32>
      %80 = vector.shape_cast %77 : vector<2x64xf32> to vector<1x2x64xf32>
      tpu.vector_store %arg5[%c0_46, %c0_47, %c0_48], %80 {strides = array<i32>} : memref<1x2x64xf32, #tpu.memory_space<vmem>>, vector<1x2x64xf32>,
    } else {
    }
    %cst_33 = arith.constant dense<0.000000e+00> : vector<64xf32>
    %60 = vector.multi_reduction <add>, %56, %cst_33 [0] : vector<128x64xf32> to vector<64xf32>
    %61 = vector.shape_cast %60 : vector<64xf32> to vector<1x64xf32>
    %62 = arith.mulf %56, %56 : vector<128x64xf32>
    %cst_34 = arith.constant dense<0.000000e+00> : vector<64xf32>
    %63 = vector.multi_reduction <add>, %62, %cst_34 [0] : vector<128x64xf32> to vector<64xf32>
    %64 = vector.shape_cast %63 : vector<64xf32> to vector<1x64xf32>
    %c0_35 = arith.constant 0 : index
    %c0_36 = arith.constant 0 : index
    %c0_37 = arith.constant 0 : index
    %65 = vector.load %arg5[%c0_35, %c0_36, %c0_37] : memref<1x2x64xf32, #tpu.memory_space<vmem>>, vector<1x2x64xf32>
    %66 = vector.shape_cast %65 : vector<1x2x64xf32> to vector<2x64xf32>
    %67 = tpu.concatenate %61, %64 in 0 : vector<1x64xf32>, vector<1x64xf32> -> vector<2x64xf32>
    %68 = arith.addf %66, %67 : vector<2x64xf32>
    %c0_38 = arith.constant 0 : index
    %c0_39 = arith.constant 0 : index
    %c0_40 = arith.constant 0 : index
    %69 = vector.load %arg5[%c0_38, %c0_39, %c0_40] : memref<1x2x64xf32, #tpu.memory_space<vmem>>, vector<1x2x64xf32>
    %70 = vector.shape_cast %69 : vector<1x2x64xf32> to vector<2x64xf32>
    %71 = vector.shape_cast %68 : vector<2x64xf32> to vector<1x2x64xf32>
    tpu.vector_store %arg5[%c0_38, %c0_39, %c0_40], %71 {strides = array<i32>} : memref<1x2x64xf32, #tpu.memory_space<vmem>>, vector<1x2x64xf32>,
    %72 = vector.shape_cast %56 : vector<128x64xf32> to vector<8x16x64xf32>
    %73 = arith.truncf %72 : vector<8x16x64xf32> to vector<8x16x64xbf16>
    %c0_41 = arith.constant 0 : index
    %c0_42 = arith.constant 0 : index
    %c0_43 = arith.constant 0 : index
    %c0_44 = arith.constant 0 : index
    %74 = vector.load %arg4[%c0_41, %c0_42, %c0_43, %c0_44] : memref<1x8x16x64xbf16, #tpu.memory_space<vmem>>, vector<1x8x16x64xbf16>
    %75 = vector.shape_cast %74 : vector<1x8x16x64xbf16> to vector<8x16x64xbf16>
    %76 = vector.shape_cast %73 : vector<8x16x64xbf16> to vector<1x8x16x64xbf16>
    tpu.vector_store %arg4[%c0_41, %c0_42, %c0_43, %c0_44], %76 {strides = array<i32>} : memref<1x8x16x64xbf16, #tpu.memory_space<vmem>>, vector<1x8x16x64xbf16>,
    return
  }
  func.func @transform_0(%arg0: i32, %arg1: i32) -> (i32, i32, i32, i32, i32) {
    %c0_i32 = arith.constant 0 : i32
    %c0_i32_0 = arith.constant 0 : i32
    %c0_i32_1 = arith.constant 0 : i32
    %c0_i32_2 = arith.constant 0 : i32
    return %arg0, %arg1, %c0_i32, %c0_i32_0, %c0_i32_1 : i32, i32, i32, i32, i32
  }
  func.func @transform_1(%arg0: i32, %arg1: i32) -> (i32, i32, i32) {
    %c0_i32 = arith.constant 0 : i32
    %c0_i32_0 = arith.constant 0 : i32
    %c0_i32_1 = arith.constant 0 : i32
    %c0_i32_2 = arith.constant 0 : i32
    return %c0_i32, %c0_i32_0, %c0_i32_1 : i32, i32, i32
  }
  func.func @transform_2(%arg0: i32, %arg1: i32) -> (i32, i32, i32, i32) {
    %c0_i32 = arith.constant 0 : i32
    %c0_i32_0 = arith.constant 0 : i32
    %c0_i32_1 = arith.constant 0 : i32
    return %arg0, %arg1, %c0_i32, %c0_i32_0 : i32, i32, i32, i32
  }
  func.func @transform_3(%arg0: i32, %arg1: i32) -> (i32, i32, i32) {
    %c0_i32 = arith.constant 0 : i32
    %c0_i32_0 = arith.constant 0 : i32
    %c0_i32_1 = arith.constant 0 : i32
    return %arg0, %c0_i32, %c0_i32_0 : i32, i32, i32
  }
}

module attributes {stable_mosaic.version = 11 : i64} {
  func.func @_conv3x3_kernel(%arg0: i32, %arg1: i32, %arg2: memref<1x1x10x18x64xbf16, #tpu.memory_space<vmem>>, %arg3: memref<9x64x64xbf16, #tpu.memory_space<vmem>>, %arg4: memref<1x2x64xf32, #tpu.memory_space<vmem>>, %arg5: memref<1x8x16x64xbf16, #tpu.memory_space<vmem>>, %arg6: memref<1x2x64xf32, #tpu.memory_space<vmem>>) attributes {dimension_semantics = [#tpu.dimension_semantics<parallel>, #tpu.dimension_semantics<arbitrary>], iteration_bounds = array<i64: 2, 2>, scalar_prefetch = 0 : i64, scratch_operands = 0 : i64, tpu.core_type = #tpu.core_type<tc>, window_params = [{transform_indices = @transform_0, window_bounds = array<i64: 1, 1, 10, 18, 64>}, {pipeline_mode = #tpu.pipeline_mode<synchronous>, transform_indices = @transform_1, window_bounds = array<i64: 9, 64, 64>}, {transform_indices = @transform_2, window_bounds = array<i64: 1, 2, 64>}, {transform_indices = @transform_3, window_bounds = array<i64: 1, 8, 16, 64>}, {transform_indices = @transform_4, window_bounds = array<i64: 1, 2, 64>}]} {
    %c0 = arith.constant 0 : index
    %c0_0 = arith.constant 0 : index
    %c0_1 = arith.constant 0 : index
    %c0_2 = arith.constant 0 : index
    %c0_3 = arith.constant 0 : index
    %0 = vector.load %arg2[%c0, %c0_0, %c0_1, %c0_2, %c0_3] : memref<1x1x10x18x64xbf16, #tpu.memory_space<vmem>>, vector<1x1x10x18x64xbf16>
    %1 = vector.shape_cast %0 : vector<1x1x10x18x64xbf16> to vector<10x18x64xbf16>
    %c0_4 = arith.constant 0 : index
    %c0_5 = arith.constant 0 : index
    %c0_6 = arith.constant 0 : index
    %2 = vector.load %arg4[%c0_4, %c0_5, %c0_6] : memref<1x2x64xf32, #tpu.memory_space<vmem>>, vector<1x2x64xf32>
    %3 = vector.shape_cast %2 : vector<1x2x64xf32> to vector<2x64xf32>
    %4 = vector.extract_strided_slice %3 {offsets = [0, 0], sizes = [1, 64], strides = [1, 1]} : vector<2x64xf32> to vector<1x64xf32>
    %cst = arith.constant 3.906250e-03 : f32
    %5 = vector.broadcast %cst : f32 to vector<1x64xf32>
    %6 = arith.mulf %4, %5 : vector<1x64xf32>
    %7 = vector.shape_cast %6 : vector<1x64xf32> to vector<1x1x64xf32>
    %8 = vector.extract_strided_slice %3 {offsets = [1, 0], sizes = [1, 64], strides = [1, 1]} : vector<2x64xf32> to vector<1x64xf32>
    %cst_7 = arith.constant 3.906250e-03 : f32
    %9 = vector.broadcast %cst_7 : f32 to vector<1x64xf32>
    %10 = arith.mulf %8, %9 : vector<1x64xf32>
    %11 = vector.shape_cast %10 : vector<1x64xf32> to vector<1x1x64xf32>
    %12 = arith.mulf %7, %7 : vector<1x1x64xf32>
    %13 = arith.subf %11, %12 : vector<1x1x64xf32>
    %cst_8 = arith.constant 9.99999974E-6 : f32
    %14 = vector.broadcast %cst_8 : f32 to vector<1x1x64xf32>
    %15 = arith.addf %13, %14 : vector<1x1x64xf32>
    %16 = math.rsqrt %15 : vector<1x1x64xf32>
    %17 = arith.extf %1 : vector<10x18x64xbf16> to vector<10x18x64xf32>
    %18 = vector.broadcast %7 : vector<1x1x64xf32> to vector<10x18x64xf32>
    %19 = arith.subf %17, %18 : vector<10x18x64xf32>
    %20 = vector.broadcast %16 : vector<1x1x64xf32> to vector<10x18x64xf32>
    %21 = arith.mulf %19, %20 : vector<10x18x64xf32>
    %cst_9 = arith.constant 0.000000e+00 : f32
    %22 = vector.broadcast %cst_9 : f32 to vector<10x18x64xf32>
    %23 = arith.cmpf ogt, %21, %22 : vector<10x18x64xf32>
    %cst_10 = arith.constant 1.000000e-01 : f32
    %24 = vector.broadcast %cst_10 : f32 to vector<10x18x64xf32>
    %25 = arith.mulf %24, %21 : vector<10x18x64xf32>
    %26 = arith.select %23, %21, %25 : vector<10x18x64xi1>, vector<10x18x64xf32>
    %27 = arith.truncf %26 : vector<10x18x64xf32> to vector<10x18x64xbf16>
    %cst_11 = arith.constant 0.000000e+00 : f32
    %28 = vector.broadcast %cst_11 : f32 to vector<128x64xf32>
    %29 = vector.extract_strided_slice %27 {offsets = [0, 0, 0], sizes = [8, 16, 64], strides = [1, 1, 1]} : vector<10x18x64xbf16> to vector<8x16x64xbf16>
    %30 = vector.shape_cast %29 : vector<8x16x64xbf16> to vector<128x64xbf16>
    %c0_12 = arith.constant 0 : index
    %c0_13 = arith.constant 0 : index
    %c0_14 = arith.constant 0 : index
    %31 = vector.load %arg3[%c0_12, %c0_13, %c0_14] : memref<9x64x64xbf16, #tpu.memory_space<vmem>>, vector<1x64x64xbf16>
    %32 = vector.shape_cast %31 : vector<1x64x64xbf16> to vector<64x64xbf16>
    %cst_15 = arith.constant dense<0.000000e+00> : vector<128x64xf32>
    %33 = tpu.matmul %30, %32, %cst_15 {dimension_numbers = #tpu.dot_dimension_numbers<[1], [0], [0], [1], [0, 0, 1, 1], [], []>} : vector<128x64xbf16>, vector<64x64xbf16>, vector<128x64xf32> -> vector<128x64xf32>
    %34 = arith.addf %28, %33 : vector<128x64xf32>
    %35 = vector.extract_strided_slice %27 {offsets = [0, 1, 0], sizes = [8, 16, 64], strides = [1, 1, 1]} : vector<10x18x64xbf16> to vector<8x16x64xbf16>
    %36 = vector.shape_cast %35 : vector<8x16x64xbf16> to vector<128x64xbf16>
    %c1 = arith.constant 1 : index
    %c0_16 = arith.constant 0 : index
    %c0_17 = arith.constant 0 : index
    %37 = vector.load %arg3[%c1, %c0_16, %c0_17] : memref<9x64x64xbf16, #tpu.memory_space<vmem>>, vector<1x64x64xbf16>
    %38 = vector.shape_cast %37 : vector<1x64x64xbf16> to vector<64x64xbf16>
    %cst_18 = arith.constant dense<0.000000e+00> : vector<128x64xf32>
    %39 = tpu.matmul %36, %38, %cst_18 {dimension_numbers = #tpu.dot_dimension_numbers<[1], [0], [0], [1], [0, 0, 1, 1], [], []>} : vector<128x64xbf16>, vector<64x64xbf16>, vector<128x64xf32> -> vector<128x64xf32>
    %40 = arith.addf %34, %39 : vector<128x64xf32>
    %41 = vector.extract_strided_slice %27 {offsets = [0, 2, 0], sizes = [8, 16, 64], strides = [1, 1, 1]} : vector<10x18x64xbf16> to vector<8x16x64xbf16>
    %42 = vector.shape_cast %41 : vector<8x16x64xbf16> to vector<128x64xbf16>
    %c2 = arith.constant 2 : index
    %c0_19 = arith.constant 0 : index
    %c0_20 = arith.constant 0 : index
    %43 = vector.load %arg3[%c2, %c0_19, %c0_20] : memref<9x64x64xbf16, #tpu.memory_space<vmem>>, vector<1x64x64xbf16>
    %44 = vector.shape_cast %43 : vector<1x64x64xbf16> to vector<64x64xbf16>
    %cst_21 = arith.constant dense<0.000000e+00> : vector<128x64xf32>
    %45 = tpu.matmul %42, %44, %cst_21 {dimension_numbers = #tpu.dot_dimension_numbers<[1], [0], [0], [1], [0, 0, 1, 1], [], []>} : vector<128x64xbf16>, vector<64x64xbf16>, vector<128x64xf32> -> vector<128x64xf32>
    %46 = arith.addf %40, %45 : vector<128x64xf32>
    %47 = vector.extract_strided_slice %27 {offsets = [1, 0, 0], sizes = [8, 16, 64], strides = [1, 1, 1]} : vector<10x18x64xbf16> to vector<8x16x64xbf16>
    %48 = vector.shape_cast %47 : vector<8x16x64xbf16> to vector<128x64xbf16>
    %c3 = arith.constant 3 : index
    %c0_22 = arith.constant 0 : index
    %c0_23 = arith.constant 0 : index
    %49 = vector.load %arg3[%c3, %c0_22, %c0_23] : memref<9x64x64xbf16, #tpu.memory_space<vmem>>, vector<1x64x64xbf16>
    %50 = vector.shape_cast %49 : vector<1x64x64xbf16> to vector<64x64xbf16>
    %cst_24 = arith.constant dense<0.000000e+00> : vector<128x64xf32>
    %51 = tpu.matmul %48, %50, %cst_24 {dimension_numbers = #tpu.dot_dimension_numbers<[1], [0], [0], [1], [0, 0, 1, 1], [], []>} : vector<128x64xbf16>, vector<64x64xbf16>, vector<128x64xf32> -> vector<128x64xf32>
    %52 = arith.addf %46, %51 : vector<128x64xf32>
    %53 = vector.extract_strided_slice %27 {offsets = [1, 1, 0], sizes = [8, 16, 64], strides = [1, 1, 1]} : vector<10x18x64xbf16> to vector<8x16x64xbf16>
    %54 = vector.shape_cast %53 : vector<8x16x64xbf16> to vector<128x64xbf16>
    %c4 = arith.constant 4 : index
    %c0_25 = arith.constant 0 : index
    %c0_26 = arith.constant 0 : index
    %55 = vector.load %arg3[%c4, %c0_25, %c0_26] : memref<9x64x64xbf16, #tpu.memory_space<vmem>>, vector<1x64x64xbf16>
    %56 = vector.shape_cast %55 : vector<1x64x64xbf16> to vector<64x64xbf16>
    %cst_27 = arith.constant dense<0.000000e+00> : vector<128x64xf32>
    %57 = tpu.matmul %54, %56, %cst_27 {dimension_numbers = #tpu.dot_dimension_numbers<[1], [0], [0], [1], [0, 0, 1, 1], [], []>} : vector<128x64xbf16>, vector<64x64xbf16>, vector<128x64xf32> -> vector<128x64xf32>
    %58 = arith.addf %52, %57 : vector<128x64xf32>
    %59 = vector.extract_strided_slice %27 {offsets = [1, 2, 0], sizes = [8, 16, 64], strides = [1, 1, 1]} : vector<10x18x64xbf16> to vector<8x16x64xbf16>
    %60 = vector.shape_cast %59 : vector<8x16x64xbf16> to vector<128x64xbf16>
    %c5 = arith.constant 5 : index
    %c0_28 = arith.constant 0 : index
    %c0_29 = arith.constant 0 : index
    %61 = vector.load %arg3[%c5, %c0_28, %c0_29] : memref<9x64x64xbf16, #tpu.memory_space<vmem>>, vector<1x64x64xbf16>
    %62 = vector.shape_cast %61 : vector<1x64x64xbf16> to vector<64x64xbf16>
    %cst_30 = arith.constant dense<0.000000e+00> : vector<128x64xf32>
    %63 = tpu.matmul %60, %62, %cst_30 {dimension_numbers = #tpu.dot_dimension_numbers<[1], [0], [0], [1], [0, 0, 1, 1], [], []>} : vector<128x64xbf16>, vector<64x64xbf16>, vector<128x64xf32> -> vector<128x64xf32>
    %64 = arith.addf %58, %63 : vector<128x64xf32>
    %65 = vector.extract_strided_slice %27 {offsets = [2, 0, 0], sizes = [8, 16, 64], strides = [1, 1, 1]} : vector<10x18x64xbf16> to vector<8x16x64xbf16>
    %66 = vector.shape_cast %65 : vector<8x16x64xbf16> to vector<128x64xbf16>
    %c6 = arith.constant 6 : index
    %c0_31 = arith.constant 0 : index
    %c0_32 = arith.constant 0 : index
    %67 = vector.load %arg3[%c6, %c0_31, %c0_32] : memref<9x64x64xbf16, #tpu.memory_space<vmem>>, vector<1x64x64xbf16>
    %68 = vector.shape_cast %67 : vector<1x64x64xbf16> to vector<64x64xbf16>
    %cst_33 = arith.constant dense<0.000000e+00> : vector<128x64xf32>
    %69 = tpu.matmul %66, %68, %cst_33 {dimension_numbers = #tpu.dot_dimension_numbers<[1], [0], [0], [1], [0, 0, 1, 1], [], []>} : vector<128x64xbf16>, vector<64x64xbf16>, vector<128x64xf32> -> vector<128x64xf32>
    %70 = arith.addf %64, %69 : vector<128x64xf32>
    %71 = vector.extract_strided_slice %27 {offsets = [2, 1, 0], sizes = [8, 16, 64], strides = [1, 1, 1]} : vector<10x18x64xbf16> to vector<8x16x64xbf16>
    %72 = vector.shape_cast %71 : vector<8x16x64xbf16> to vector<128x64xbf16>
    %c7 = arith.constant 7 : index
    %c0_34 = arith.constant 0 : index
    %c0_35 = arith.constant 0 : index
    %73 = vector.load %arg3[%c7, %c0_34, %c0_35] : memref<9x64x64xbf16, #tpu.memory_space<vmem>>, vector<1x64x64xbf16>
    %74 = vector.shape_cast %73 : vector<1x64x64xbf16> to vector<64x64xbf16>
    %cst_36 = arith.constant dense<0.000000e+00> : vector<128x64xf32>
    %75 = tpu.matmul %72, %74, %cst_36 {dimension_numbers = #tpu.dot_dimension_numbers<[1], [0], [0], [1], [0, 0, 1, 1], [], []>} : vector<128x64xbf16>, vector<64x64xbf16>, vector<128x64xf32> -> vector<128x64xf32>
    %76 = arith.addf %70, %75 : vector<128x64xf32>
    %77 = vector.extract_strided_slice %27 {offsets = [2, 2, 0], sizes = [8, 16, 64], strides = [1, 1, 1]} : vector<10x18x64xbf16> to vector<8x16x64xbf16>
    %78 = vector.shape_cast %77 : vector<8x16x64xbf16> to vector<128x64xbf16>
    %c8 = arith.constant 8 : index
    %c0_37 = arith.constant 0 : index
    %c0_38 = arith.constant 0 : index
    %79 = vector.load %arg3[%c8, %c0_37, %c0_38] : memref<9x64x64xbf16, #tpu.memory_space<vmem>>, vector<1x64x64xbf16>
    %80 = vector.shape_cast %79 : vector<1x64x64xbf16> to vector<64x64xbf16>
    %cst_39 = arith.constant dense<0.000000e+00> : vector<128x64xf32>
    %81 = tpu.matmul %78, %80, %cst_39 {dimension_numbers = #tpu.dot_dimension_numbers<[1], [0], [0], [1], [0, 0, 1, 1], [], []>} : vector<128x64xbf16>, vector<64x64xbf16>, vector<128x64xf32> -> vector<128x64xf32>
    %82 = arith.addf %76, %81 : vector<128x64xf32>
    %c0_i32 = arith.constant 0 : i32
    %83 = arith.cmpi eq, %arg1, %c0_i32 : i32
    %84 = arith.extui %83 : i1 to i32
    %c0_i32_40 = arith.constant 0 : i32
    %85 = arith.cmpi ne, %84, %c0_i32_40 : i32
    scf.if %85 {
      %cst_53 = arith.constant 0.000000e+00 : f32
      %103 = vector.broadcast %cst_53 : f32 to vector<2x64xf32>
      %c0_54 = arith.constant 0 : index
      %c0_55 = arith.constant 0 : index
      %c0_56 = arith.constant 0 : index
      %104 = vector.load %arg6[%c0_54, %c0_55, %c0_56] : memref<1x2x64xf32, #tpu.memory_space<vmem>>, vector<1x2x64xf32>
      %105 = vector.shape_cast %104 : vector<1x2x64xf32> to vector<2x64xf32>
      %106 = vector.shape_cast %103 : vector<2x64xf32> to vector<1x2x64xf32>
      tpu.vector_store %arg6[%c0_54, %c0_55, %c0_56], %106 {strides = array<i32>} : memref<1x2x64xf32, #tpu.memory_space<vmem>>, vector<1x2x64xf32>,
    } else {
    }
    %cst_41 = arith.constant dense<0.000000e+00> : vector<64xf32>
    %86 = vector.multi_reduction <add>, %82, %cst_41 [0] : vector<128x64xf32> to vector<64xf32>
    %87 = vector.shape_cast %86 : vector<64xf32> to vector<1x64xf32>
    %88 = arith.mulf %82, %82 : vector<128x64xf32>
    %cst_42 = arith.constant dense<0.000000e+00> : vector<64xf32>
    %89 = vector.multi_reduction <add>, %88, %cst_42 [0] : vector<128x64xf32> to vector<64xf32>
    %90 = vector.shape_cast %89 : vector<64xf32> to vector<1x64xf32>
    %c0_43 = arith.constant 0 : index
    %c0_44 = arith.constant 0 : index
    %c0_45 = arith.constant 0 : index
    %91 = vector.load %arg6[%c0_43, %c0_44, %c0_45] : memref<1x2x64xf32, #tpu.memory_space<vmem>>, vector<1x2x64xf32>
    %92 = vector.shape_cast %91 : vector<1x2x64xf32> to vector<2x64xf32>
    %93 = tpu.concatenate %87, %90 in 0 : vector<1x64xf32>, vector<1x64xf32> -> vector<2x64xf32>
    %94 = arith.addf %92, %93 : vector<2x64xf32>
    %c0_46 = arith.constant 0 : index
    %c0_47 = arith.constant 0 : index
    %c0_48 = arith.constant 0 : index
    %95 = vector.load %arg6[%c0_46, %c0_47, %c0_48] : memref<1x2x64xf32, #tpu.memory_space<vmem>>, vector<1x2x64xf32>
    %96 = vector.shape_cast %95 : vector<1x2x64xf32> to vector<2x64xf32>
    %97 = vector.shape_cast %94 : vector<2x64xf32> to vector<1x2x64xf32>
    tpu.vector_store %arg6[%c0_46, %c0_47, %c0_48], %97 {strides = array<i32>} : memref<1x2x64xf32, #tpu.memory_space<vmem>>, vector<1x2x64xf32>,
    %98 = vector.shape_cast %82 : vector<128x64xf32> to vector<8x16x64xf32>
    %99 = arith.truncf %98 : vector<8x16x64xf32> to vector<8x16x64xbf16>
    %c0_49 = arith.constant 0 : index
    %c0_50 = arith.constant 0 : index
    %c0_51 = arith.constant 0 : index
    %c0_52 = arith.constant 0 : index
    %100 = vector.load %arg5[%c0_49, %c0_50, %c0_51, %c0_52] : memref<1x8x16x64xbf16, #tpu.memory_space<vmem>>, vector<1x8x16x64xbf16>
    %101 = vector.shape_cast %100 : vector<1x8x16x64xbf16> to vector<8x16x64xbf16>
    %102 = vector.shape_cast %99 : vector<8x16x64xbf16> to vector<1x8x16x64xbf16>
    tpu.vector_store %arg5[%c0_49, %c0_50, %c0_51, %c0_52], %102 {strides = array<i32>} : memref<1x8x16x64xbf16, #tpu.memory_space<vmem>>, vector<1x8x16x64xbf16>,
    return
  }
  func.func @transform_0(%arg0: i32, %arg1: i32) -> (i32, i32, i32, i32, i32) {
    %c0_i32 = arith.constant 0 : i32
    %c0_i32_0 = arith.constant 0 : i32
    %c0_i32_1 = arith.constant 0 : i32
    %c0_i32_2 = arith.constant 0 : i32
    return %arg0, %arg1, %c0_i32, %c0_i32_0, %c0_i32_1 : i32, i32, i32, i32, i32
  }
  func.func @transform_1(%arg0: i32, %arg1: i32) -> (i32, i32, i32) {
    %c0_i32 = arith.constant 0 : i32
    %c0_i32_0 = arith.constant 0 : i32
    %c0_i32_1 = arith.constant 0 : i32
    %c0_i32_2 = arith.constant 0 : i32
    return %c0_i32, %c0_i32_0, %c0_i32_1 : i32, i32, i32
  }
  func.func @transform_2(%arg0: i32, %arg1: i32) -> (i32, i32, i32) {
    %c0_i32 = arith.constant 0 : i32
    %c0_i32_0 = arith.constant 0 : i32
    %c0_i32_1 = arith.constant 0 : i32
    return %arg0, %c0_i32, %c0_i32_0 : i32, i32, i32
  }
  func.func @transform_3(%arg0: i32, %arg1: i32) -> (i32, i32, i32, i32) {
    %c0_i32 = arith.constant 0 : i32
    %c0_i32_0 = arith.constant 0 : i32
    %c0_i32_1 = arith.constant 0 : i32
    return %arg0, %arg1, %c0_i32, %c0_i32_0 : i32, i32, i32, i32
  }
  func.func @transform_4(%arg0: i32, %arg1: i32) -> (i32, i32, i32) {
    %c0_i32 = arith.constant 0 : i32
    %c0_i32_0 = arith.constant 0 : i32
    %c0_i32_1 = arith.constant 0 : i32
    return %arg0, %c0_i32, %c0_i32_0 : i32, i32, i32
  }
}

module attributes {stable_mosaic.version = 11 : i64} {
  func.func @_instnorm_kernel(%arg0: i32, %arg1: i32, %arg2: memref<1x8x16x64xbf16, #tpu.memory_space<vmem>>, %arg3: memref<1x2x64xf32, #tpu.memory_space<vmem>>, %arg4: memref<1x8x16x64xbf16, #tpu.memory_space<vmem>>, %arg5: memref<1x8x16x64xbf16, #tpu.memory_space<vmem>>) attributes {dimension_semantics = [#tpu.dimension_semantics<parallel>, #tpu.dimension_semantics<parallel>], iteration_bounds = array<i64: 2, 2>, scalar_prefetch = 0 : i64, scratch_operands = 0 : i64, tpu.core_type = #tpu.core_type<tc>, window_params = [{transform_indices = @transform_0, window_bounds = array<i64: 1, 8, 16, 64>}, {transform_indices = @transform_1, window_bounds = array<i64: 1, 2, 64>}, {transform_indices = @transform_2, window_bounds = array<i64: 1, 8, 16, 64>}, {transform_indices = @transform_3, window_bounds = array<i64: 1, 8, 16, 64>}]} {
    %c0 = arith.constant 0 : index
    %c0_0 = arith.constant 0 : index
    %c0_1 = arith.constant 0 : index
    %0 = vector.load %arg3[%c0, %c0_0, %c0_1] : memref<1x2x64xf32, #tpu.memory_space<vmem>>, vector<1x2x64xf32>
    %1 = vector.shape_cast %0 : vector<1x2x64xf32> to vector<2x64xf32>
    %2 = vector.extract_strided_slice %1 {offsets = [0, 0], sizes = [1, 64], strides = [1, 1]} : vector<2x64xf32> to vector<1x64xf32>
    %cst = arith.constant 3.906250e-03 : f32
    %3 = vector.broadcast %cst : f32 to vector<1x64xf32>
    %4 = arith.mulf %2, %3 : vector<1x64xf32>
    %5 = vector.shape_cast %4 : vector<1x64xf32> to vector<1x1x64xf32>
    %6 = vector.extract_strided_slice %1 {offsets = [1, 0], sizes = [1, 64], strides = [1, 1]} : vector<2x64xf32> to vector<1x64xf32>
    %cst_2 = arith.constant 3.906250e-03 : f32
    %7 = vector.broadcast %cst_2 : f32 to vector<1x64xf32>
    %8 = arith.mulf %6, %7 : vector<1x64xf32>
    %9 = vector.shape_cast %8 : vector<1x64xf32> to vector<1x1x64xf32>
    %10 = arith.mulf %5, %5 : vector<1x1x64xf32>
    %11 = arith.subf %9, %10 : vector<1x1x64xf32>
    %cst_3 = arith.constant 9.99999974E-6 : f32
    %12 = vector.broadcast %cst_3 : f32 to vector<1x1x64xf32>
    %13 = arith.addf %11, %12 : vector<1x1x64xf32>
    %14 = math.rsqrt %13 : vector<1x1x64xf32>
    %c0_4 = arith.constant 0 : index
    %c0_5 = arith.constant 0 : index
    %c0_6 = arith.constant 0 : index
    %c0_7 = arith.constant 0 : index
    %15 = vector.load %arg2[%c0_4, %c0_5, %c0_6, %c0_7] : memref<1x8x16x64xbf16, #tpu.memory_space<vmem>>, vector<1x8x16x64xbf16>
    %16 = vector.shape_cast %15 : vector<1x8x16x64xbf16> to vector<8x16x64xbf16>
    %17 = arith.extf %16 : vector<8x16x64xbf16> to vector<8x16x64xf32>
    %18 = vector.broadcast %5 : vector<1x1x64xf32> to vector<8x16x64xf32>
    %19 = arith.subf %17, %18 : vector<8x16x64xf32>
    %20 = vector.broadcast %14 : vector<1x1x64xf32> to vector<8x16x64xf32>
    %21 = arith.mulf %19, %20 : vector<8x16x64xf32>
    %c0_8 = arith.constant 0 : index
    %c0_9 = arith.constant 0 : index
    %c0_10 = arith.constant 0 : index
    %c0_11 = arith.constant 0 : index
    %22 = vector.load %arg4[%c0_8, %c0_9, %c0_10, %c0_11] : memref<1x8x16x64xbf16, #tpu.memory_space<vmem>>, vector<1x8x16x64xbf16>
    %23 = vector.shape_cast %22 : vector<1x8x16x64xbf16> to vector<8x16x64xbf16>
    %24 = arith.extf %23 : vector<8x16x64xbf16> to vector<8x16x64xf32>
    %25 = arith.addf %24, %21 : vector<8x16x64xf32>
    %26 = arith.truncf %25 : vector<8x16x64xf32> to vector<8x16x64xbf16>
    %c0_12 = arith.constant 0 : index
    %c0_13 = arith.constant 0 : index
    %c0_14 = arith.constant 0 : index
    %c0_15 = arith.constant 0 : index
    %27 = vector.load %arg5[%c0_12, %c0_13, %c0_14, %c0_15] : memref<1x8x16x64xbf16, #tpu.memory_space<vmem>>, vector<1x8x16x64xbf16>
    %28 = vector.shape_cast %27 : vector<1x8x16x64xbf16> to vector<8x16x64xbf16>
    %29 = vector.shape_cast %26 : vector<8x16x64xbf16> to vector<1x8x16x64xbf16>
    tpu.vector_store %arg5[%c0_12, %c0_13, %c0_14, %c0_15], %29 {strides = array<i32>} : memref<1x8x16x64xbf16, #tpu.memory_space<vmem>>, vector<1x8x16x64xbf16>,
    return
  }
  func.func @transform_0(%arg0: i32, %arg1: i32) -> (i32, i32, i32, i32) {
    %c0_i32 = arith.constant 0 : i32
    %c0_i32_0 = arith.constant 0 : i32
    %c0_i32_1 = arith.constant 0 : i32
    return %arg0, %arg1, %c0_i32, %c0_i32_0 : i32, i32, i32, i32
  }
  func.func @transform_1(%arg0: i32, %arg1: i32) -> (i32, i32, i32) {
    %c0_i32 = arith.constant 0 : i32
    %c0_i32_0 = arith.constant 0 : i32
    %c0_i32_1 = arith.constant 0 : i32
    return %arg0, %c0_i32, %c0_i32_0 : i32, i32, i32
  }
  func.func @transform_2(%arg0: i32, %arg1: i32) -> (i32, i32, i32, i32) {
    %c0_i32 = arith.constant 0 : i32
    %c0_i32_0 = arith.constant 0 : i32
    %c0_i32_1 = arith.constant 0 : i32
    return %arg0, %arg1, %c0_i32, %c0_i32_0 : i32, i32, i32, i32
  }
  func.func @transform_3(%arg0: i32, %arg1: i32) -> (i32, i32, i32, i32) {
    %c0_i32 = arith.constant 0 : i32
    %c0_i32_0 = arith.constant 0 : i32
    %c0_i32_1 = arith.constant 0 : i32
    return %arg0, %arg1, %c0_i32, %c0_i32_0 : i32, i32, i32, i32
  }
}

module attributes {stable_mosaic.version = 11 : i64} {
  func.func @_instnorm_kernel(%arg0: i32, %arg1: i32, %arg2: memref<1x8x16x64xbf16, #tpu.memory_space<vmem>>, %arg3: memref<1x2x64xf32, #tpu.memory_space<vmem>>, %arg4: memref<1x8x16x64xbf16, #tpu.memory_space<vmem>>, %arg5: memref<1x8x16x64xbf16, #tpu.memory_space<vmem>>, %arg6: memref<1x2x64xf32, #tpu.memory_space<vmem>>) attributes {dimension_semantics = [#tpu.dimension_semantics<parallel>, #tpu.dimension_semantics<arbitrary>], iteration_bounds = array<i64: 2, 2>, scalar_prefetch = 0 : i64, scratch_operands = 0 : i64, tpu.core_type = #tpu.core_type<tc>, window_params = [{transform_indices = @transform_0, window_bounds = array<i64: 1, 8, 16, 64>}, {transform_indices = @transform_1, window_bounds = array<i64: 1, 2, 64>}, {transform_indices = @transform_2, window_bounds = array<i64: 1, 8, 16, 64>}, {transform_indices = @transform_3, window_bounds = array<i64: 1, 8, 16, 64>}, {transform_indices = @transform_4, window_bounds = array<i64: 1, 2, 64>}]} {
    %c0 = arith.constant 0 : index
    %c0_0 = arith.constant 0 : index
    %c0_1 = arith.constant 0 : index
    %0 = vector.load %arg3[%c0, %c0_0, %c0_1] : memref<1x2x64xf32, #tpu.memory_space<vmem>>, vector<1x2x64xf32>
    %1 = vector.shape_cast %0 : vector<1x2x64xf32> to vector<2x64xf32>
    %2 = vector.extract_strided_slice %1 {offsets = [0, 0], sizes = [1, 64], strides = [1, 1]} : vector<2x64xf32> to vector<1x64xf32>
    %cst = arith.constant 3.906250e-03 : f32
    %3 = vector.broadcast %cst : f32 to vector<1x64xf32>
    %4 = arith.mulf %2, %3 : vector<1x64xf32>
    %5 = vector.shape_cast %4 : vector<1x64xf32> to vector<1x1x64xf32>
    %6 = vector.extract_strided_slice %1 {offsets = [1, 0], sizes = [1, 64], strides = [1, 1]} : vector<2x64xf32> to vector<1x64xf32>
    %cst_2 = arith.constant 3.906250e-03 : f32
    %7 = vector.broadcast %cst_2 : f32 to vector<1x64xf32>
    %8 = arith.mulf %6, %7 : vector<1x64xf32>
    %9 = vector.shape_cast %8 : vector<1x64xf32> to vector<1x1x64xf32>
    %10 = arith.mulf %5, %5 : vector<1x1x64xf32>
    %11 = arith.subf %9, %10 : vector<1x1x64xf32>
    %cst_3 = arith.constant 9.99999974E-6 : f32
    %12 = vector.broadcast %cst_3 : f32 to vector<1x1x64xf32>
    %13 = arith.addf %11, %12 : vector<1x1x64xf32>
    %14 = math.rsqrt %13 : vector<1x1x64xf32>
    %c0_4 = arith.constant 0 : index
    %c0_5 = arith.constant 0 : index
    %c0_6 = arith.constant 0 : index
    %c0_7 = arith.constant 0 : index
    %15 = vector.load %arg2[%c0_4, %c0_5, %c0_6, %c0_7] : memref<1x8x16x64xbf16, #tpu.memory_space<vmem>>, vector<1x8x16x64xbf16>
    %16 = vector.shape_cast %15 : vector<1x8x16x64xbf16> to vector<8x16x64xbf16>
    %17 = arith.extf %16 : vector<8x16x64xbf16> to vector<8x16x64xf32>
    %18 = vector.broadcast %5 : vector<1x1x64xf32> to vector<8x16x64xf32>
    %19 = arith.subf %17, %18 : vector<8x16x64xf32>
    %20 = vector.broadcast %14 : vector<1x1x64xf32> to vector<8x16x64xf32>
    %21 = arith.mulf %19, %20 : vector<8x16x64xf32>
    %c0_8 = arith.constant 0 : index
    %c0_9 = arith.constant 0 : index
    %c0_10 = arith.constant 0 : index
    %c0_11 = arith.constant 0 : index
    %22 = vector.load %arg4[%c0_8, %c0_9, %c0_10, %c0_11] : memref<1x8x16x64xbf16, #tpu.memory_space<vmem>>, vector<1x8x16x64xbf16>
    %23 = vector.shape_cast %22 : vector<1x8x16x64xbf16> to vector<8x16x64xbf16>
    %24 = arith.extf %23 : vector<8x16x64xbf16> to vector<8x16x64xf32>
    %25 = arith.addf %24, %21 : vector<8x16x64xf32>
    %26 = arith.truncf %25 : vector<8x16x64xf32> to vector<8x16x64xbf16>
    %c0_12 = arith.constant 0 : index
    %c0_13 = arith.constant 0 : index
    %c0_14 = arith.constant 0 : index
    %c0_15 = arith.constant 0 : index
    %27 = vector.load %arg5[%c0_12, %c0_13, %c0_14, %c0_15] : memref<1x8x16x64xbf16, #tpu.memory_space<vmem>>, vector<1x8x16x64xbf16>
    %28 = vector.shape_cast %27 : vector<1x8x16x64xbf16> to vector<8x16x64xbf16>
    %29 = vector.shape_cast %26 : vector<8x16x64xbf16> to vector<1x8x16x64xbf16>
    tpu.vector_store %arg5[%c0_12, %c0_13, %c0_14, %c0_15], %29 {strides = array<i32>} : memref<1x8x16x64xbf16, #tpu.memory_space<vmem>>, vector<1x8x16x64xbf16>,
    %c0_i32 = arith.constant 0 : i32
    %30 = arith.cmpi eq, %arg1, %c0_i32 : i32
    %31 = arith.extui %30 : i1 to i32
    %c0_i32_16 = arith.constant 0 : i32
    %32 = arith.cmpi ne, %31, %c0_i32_16 : i32
    scf.if %32 {
      %cst_25 = arith.constant 0.000000e+00 : f32
      %46 = vector.broadcast %cst_25 : f32 to vector<2x64xf32>
      %c0_26 = arith.constant 0 : index
      %c0_27 = arith.constant 0 : index
      %c0_28 = arith.constant 0 : index
      %47 = vector.load %arg6[%c0_26, %c0_27, %c0_28] : memref<1x2x64xf32, #tpu.memory_space<vmem>>, vector<1x2x64xf32>
      %48 = vector.shape_cast %47 : vector<1x2x64xf32> to vector<2x64xf32>
      %49 = vector.shape_cast %46 : vector<2x64xf32> to vector<1x2x64xf32>
      tpu.vector_store %arg6[%c0_26, %c0_27, %c0_28], %49 {strides = array<i32>} : memref<1x2x64xf32, #tpu.memory_space<vmem>>, vector<1x2x64xf32>,
    } else {
    }
    %33 = vector.shape_cast %25 : vector<8x16x64xf32> to vector<128x64xf32>
    %cst_17 = arith.constant dense<0.000000e+00> : vector<64xf32>
    %34 = vector.multi_reduction <add>, %33, %cst_17 [0] : vector<128x64xf32> to vector<64xf32>
    %35 = vector.shape_cast %34 : vector<64xf32> to vector<1x64xf32>
    %36 = arith.mulf %33, %33 : vector<128x64xf32>
    %cst_18 = arith.constant dense<0.000000e+00> : vector<64xf32>
    %37 = vector.multi_reduction <add>, %36, %cst_18 [0] : vector<128x64xf32> to vector<64xf32>
    %38 = vector.shape_cast %37 : vector<64xf32> to vector<1x64xf32>
    %c0_19 = arith.constant 0 : index
    %c0_20 = arith.constant 0 : index
    %c0_21 = arith.constant 0 : index
    %39 = vector.load %arg6[%c0_19, %c0_20, %c0_21] : memref<1x2x64xf32, #tpu.memory_space<vmem>>, vector<1x2x64xf32>
    %40 = vector.shape_cast %39 : vector<1x2x64xf32> to vector<2x64xf32>
    %41 = tpu.concatenate %35, %38 in 0 : vector<1x64xf32>, vector<1x64xf32> -> vector<2x64xf32>
    %42 = arith.addf %40, %41 : vector<2x64xf32>
    %c0_22 = arith.constant 0 : index
    %c0_23 = arith.constant 0 : index
    %c0_24 = arith.constant 0 : index
    %43 = vector.load %arg6[%c0_22, %c0_23, %c0_24] : memref<1x2x64xf32, #tpu.memory_space<vmem>>, vector<1x2x64xf32>
    %44 = vector.shape_cast %43 : vector<1x2x64xf32> to vector<2x64xf32>
    %45 = vector.shape_cast %42 : vector<2x64xf32> to vector<1x2x64xf32>
    tpu.vector_store %arg6[%c0_22, %c0_23, %c0_24], %45 {strides = array<i32>} : memref<1x2x64xf32, #tpu.memory_space<vmem>>, vector<1x2x64xf32>,
    return
  }
  func.func @transform_0(%arg0: i32, %arg1: i32) -> (i32, i32, i32, i32) {
    %c0_i32 = arith.constant 0 : i32
    %c0_i32_0 = arith.constant 0 : i32
    %c0_i32_1 = arith.constant 0 : i32
    return %arg0, %arg1, %c0_i32, %c0_i32_0 : i32, i32, i32, i32
  }
  func.func @transform_1(%arg0: i32, %arg1: i32) -> (i32, i32, i32) {
    %c0_i32 = arith.constant 0 : i32
    %c0_i32_0 = arith.constant 0 : i32
    %c0_i32_1 = arith.constant 0 : i32
    return %arg0, %c0_i32, %c0_i32_0 : i32, i32, i32
  }
  func.func @transform_2(%arg0: i32, %arg1: i32) -> (i32, i32, i32, i32) {
    %c0_i32 = arith.constant 0 : i32
    %c0_i32_0 = arith.constant 0 : i32
    %c0_i32_1 = arith.constant 0 : i32
    return %arg0, %arg1, %c0_i32, %c0_i32_0 : i32, i32, i32, i32
  }
  func.func @transform_3(%arg0: i32, %arg1: i32) -> (i32, i32, i32, i32) {
    %c0_i32 = arith.constant 0 : i32
    %c0_i32_0 = arith.constant 0 : i32
    %c0_i32_1 = arith.constant 0 : i32
    return %arg0, %arg1, %c0_i32, %c0_i32_0 : i32, i32, i32, i32
  }
  func.func @transform_4(%arg0: i32, %arg1: i32) -> (i32, i32, i32) {
    %c0_i32 = arith.constant 0 : i32
    %c0_i32_0 = arith.constant 0 : i32
    %c0_i32_1 = arith.constant 0 : i32
    return %arg0, %c0_i32, %c0_i32_0 : i32, i32, i32
  }
}

module attributes {stable_mosaic.version = 11 : i64} {
  func.func @_instnorm_kernel(%arg0: i32, %arg1: i32, %arg2: memref<1x8x16x64xbf16, #tpu.memory_space<vmem>>, %arg3: memref<1x2x64xf32, #tpu.memory_space<vmem>>, %arg4: memref<2x64xf32, #tpu.memory_space<vmem>>, %arg5: memref<1x8x16x64xf32, #tpu.memory_space<vmem>>) attributes {dimension_semantics = [#tpu.dimension_semantics<parallel>, #tpu.dimension_semantics<parallel>], iteration_bounds = array<i64: 2, 2>, scalar_prefetch = 0 : i64, scratch_operands = 0 : i64, tpu.core_type = #tpu.core_type<tc>, window_params = [{transform_indices = @transform_0, window_bounds = array<i64: 1, 8, 16, 64>}, {transform_indices = @transform_1, window_bounds = array<i64: 1, 2, 64>}, {pipeline_mode = #tpu.pipeline_mode<synchronous>, transform_indices = @transform_2, window_bounds = array<i64: 2, 64>}, {transform_indices = @transform_3, window_bounds = array<i64: 1, 8, 16, 64>}]} {
    %c0 = arith.constant 0 : index
    %c0_0 = arith.constant 0 : index
    %c0_1 = arith.constant 0 : index
    %0 = vector.load %arg3[%c0, %c0_0, %c0_1] : memref<1x2x64xf32, #tpu.memory_space<vmem>>, vector<1x2x64xf32>
    %1 = vector.shape_cast %0 : vector<1x2x64xf32> to vector<2x64xf32>
    %2 = vector.extract_strided_slice %1 {offsets = [0, 0], sizes = [1, 64], strides = [1, 1]} : vector<2x64xf32> to vector<1x64xf32>
    %cst = arith.constant 3.906250e-03 : f32
    %3 = vector.broadcast %cst : f32 to vector<1x64xf32>
    %4 = arith.mulf %2, %3 : vector<1x64xf32>
    %5 = vector.shape_cast %4 : vector<1x64xf32> to vector<1x1x64xf32>
    %6 = vector.extract_strided_slice %1 {offsets = [1, 0], sizes = [1, 64], strides = [1, 1]} : vector<2x64xf32> to vector<1x64xf32>
    %cst_2 = arith.constant 3.906250e-03 : f32
    %7 = vector.broadcast %cst_2 : f32 to vector<1x64xf32>
    %8 = arith.mulf %6, %7 : vector<1x64xf32>
    %9 = vector.shape_cast %8 : vector<1x64xf32> to vector<1x1x64xf32>
    %10 = arith.mulf %5, %5 : vector<1x1x64xf32>
    %11 = arith.subf %9, %10 : vector<1x1x64xf32>
    %cst_3 = arith.constant 9.99999974E-6 : f32
    %12 = vector.broadcast %cst_3 : f32 to vector<1x1x64xf32>
    %13 = arith.addf %11, %12 : vector<1x1x64xf32>
    %14 = math.rsqrt %13 : vector<1x1x64xf32>
    %c0_4 = arith.constant 0 : index
    %c0_5 = arith.constant 0 : index
    %c0_6 = arith.constant 0 : index
    %c0_7 = arith.constant 0 : index
    %15 = vector.load %arg2[%c0_4, %c0_5, %c0_6, %c0_7] : memref<1x8x16x64xbf16, #tpu.memory_space<vmem>>, vector<1x8x16x64xbf16>
    %16 = vector.shape_cast %15 : vector<1x8x16x64xbf16> to vector<8x16x64xbf16>
    %17 = arith.extf %16 : vector<8x16x64xbf16> to vector<8x16x64xf32>
    %18 = vector.broadcast %5 : vector<1x1x64xf32> to vector<8x16x64xf32>
    %19 = arith.subf %17, %18 : vector<8x16x64xf32>
    %20 = vector.broadcast %14 : vector<1x1x64xf32> to vector<8x16x64xf32>
    %21 = arith.mulf %19, %20 : vector<8x16x64xf32>
    %c0_8 = arith.constant 0 : index
    %c0_9 = arith.constant 0 : index
    %22 = vector.load %arg4[%c0_8, %c0_9] : memref<2x64xf32, #tpu.memory_space<vmem>>, vector<2x64xf32>
    %23 = vector.extract_strided_slice %22 {offsets = [0, 0], sizes = [1, 64], strides = [1, 1]} : vector<2x64xf32> to vector<1x64xf32>
    %24 = vector.shape_cast %23 : vector<1x64xf32> to vector<1x1x64xf32>
    %25 = vector.broadcast %24 : vector<1x1x64xf32> to vector<8x16x64xf32>
    %26 = arith.mulf %21, %25 : vector<8x16x64xf32>
    %27 = vector.extract_strided_slice %22 {offsets = [1, 0], sizes = [1, 64], strides = [1, 1]} : vector<2x64xf32> to vector<1x64xf32>
    %28 = vector.shape_cast %27 : vector<1x64xf32> to vector<1x1x64xf32>
    %29 = vector.broadcast %28 : vector<1x1x64xf32> to vector<8x16x64xf32>
    %30 = arith.addf %26, %29 : vector<8x16x64xf32>
    %c0_10 = arith.constant 0 : index
    %c0_11 = arith.constant 0 : index
    %c0_12 = arith.constant 0 : index
    %c0_13 = arith.constant 0 : index
    %31 = vector.load %arg5[%c0_10, %c0_11, %c0_12, %c0_13] : memref<1x8x16x64xf32, #tpu.memory_space<vmem>>, vector<1x8x16x64xf32>
    %32 = vector.shape_cast %31 : vector<1x8x16x64xf32> to vector<8x16x64xf32>
    %33 = vector.shape_cast %30 : vector<8x16x64xf32> to vector<1x8x16x64xf32>
    tpu.vector_store %arg5[%c0_10, %c0_11, %c0_12, %c0_13], %33 {strides = array<i32>} : memref<1x8x16x64xf32, #tpu.memory_space<vmem>>, vector<1x8x16x64xf32>,
    return
  }
  func.func @transform_0(%arg0: i32, %arg1: i32) -> (i32, i32, i32, i32) {
    %c0_i32 = arith.constant 0 : i32
    %c0_i32_0 = arith.constant 0 : i32
    %c0_i32_1 = arith.constant 0 : i32
    return %arg0, %arg1, %c0_i32, %c0_i32_0 : i32, i32, i32, i32
  }
  func.func @transform_1(%arg0: i32, %arg1: i32) -> (i32, i32, i32) {
    %c0_i32 = arith.constant 0 : i32
    %c0_i32_0 = arith.constant 0 : i32
    %c0_i32_1 = arith.constant 0 : i32
    return %arg0, %c0_i32, %c0_i32_0 : i32, i32, i32
  }
  func.func @transform_2(%arg0: i32, %arg1: i32) -> (i32, i32) {
    %c0_i32 = arith.constant 0 : i32
    %c0_i32_0 = arith.constant 0 : i32
    %c0_i32_1 = arith.constant 0 : i32
    return %c0_i32, %c0_i32_0 : i32, i32
  }
  func.func @transform_3(%arg0: i32, %arg1: i32) -> (i32, i32, i32, i32) {
    %c0_i32 = arith.constant 0 : i32
    %c0_i32_0 = arith.constant 0 : i32
    %c0_i32_1 = arith.constant 0 : i32
    return %arg0, %arg1, %c0_i32, %c0_i32_0 : i32, i32, i32, i32
  }
}

module attributes {stable_mosaic.version = 11 : i64} {
  func.func @_conv3x3_kernel(%arg0: i32, %arg1: i32, %arg2: memref<1x1x10x18x64xbf16, #tpu.memory_space<vmem>>, %arg3: memref<9x64x128xbf16, #tpu.memory_space<vmem>>, %arg4: memref<1x8x16x128xf32, #tpu.memory_space<vmem>>) attributes {dimension_semantics = [#tpu.dimension_semantics<parallel>, #tpu.dimension_semantics<parallel>], iteration_bounds = array<i64: 2, 2>, scalar_prefetch = 0 : i64, scratch_operands = 0 : i64, tpu.core_type = #tpu.core_type<tc>, window_params = [{transform_indices = @transform_0, window_bounds = array<i64: 1, 1, 10, 18, 64>}, {pipeline_mode = #tpu.pipeline_mode<synchronous>, transform_indices = @transform_1, window_bounds = array<i64: 9, 64, 128>}, {transform_indices = @transform_2, window_bounds = array<i64: 1, 8, 16, 128>}]} {
    %c0 = arith.constant 0 : index
    %c0_0 = arith.constant 0 : index
    %c0_1 = arith.constant 0 : index
    %c0_2 = arith.constant 0 : index
    %c0_3 = arith.constant 0 : index
    %0 = vector.load %arg2[%c0, %c0_0, %c0_1, %c0_2, %c0_3] : memref<1x1x10x18x64xbf16, #tpu.memory_space<vmem>>, vector<1x1x10x18x64xbf16>
    %1 = vector.shape_cast %0 : vector<1x1x10x18x64xbf16> to vector<10x18x64xbf16>
    %cst = arith.constant 0.000000e+00 : f32
    %2 = vector.broadcast %cst : f32 to vector<128x128xf32>
    %3 = vector.extract_strided_slice %1 {offsets = [0, 0, 0], sizes = [8, 16, 64], strides = [1, 1, 1]} : vector<10x18x64xbf16> to vector<8x16x64xbf16>
    %4 = vector.shape_cast %3 : vector<8x16x64xbf16> to vector<128x64xbf16>
    %c0_4 = arith.constant 0 : index
    %c0_5 = arith.constant 0 : index
    %c0_6 = arith.constant 0 : index
    %5 = vector.load %arg3[%c0_4, %c0_5, %c0_6] : memref<9x64x128xbf16, #tpu.memory_space<vmem>>, vector<1x64x128xbf16>
    %6 = vector.shape_cast %5 : vector<1x64x128xbf16> to vector<64x128xbf16>
    %cst_7 = arith.constant dense<0.000000e+00> : vector<128x128xf32>
    %7 = tpu.matmul %4, %6, %cst_7 {dimension_numbers = #tpu.dot_dimension_numbers<[1], [0], [0], [1], [0, 0, 1, 1], [], []>} : vector<128x64xbf16>, vector<64x128xbf16>, vector<128x128xf32> -> vector<128x128xf32>
    %8 = arith.addf %2, %7 : vector<128x128xf32>
    %9 = vector.extract_strided_slice %1 {offsets = [0, 1, 0], sizes = [8, 16, 64], strides = [1, 1, 1]} : vector<10x18x64xbf16> to vector<8x16x64xbf16>
    %10 = vector.shape_cast %9 : vector<8x16x64xbf16> to vector<128x64xbf16>
    %c1 = arith.constant 1 : index
    %c0_8 = arith.constant 0 : index
    %c0_9 = arith.constant 0 : index
    %11 = vector.load %arg3[%c1, %c0_8, %c0_9] : memref<9x64x128xbf16, #tpu.memory_space<vmem>>, vector<1x64x128xbf16>
    %12 = vector.shape_cast %11 : vector<1x64x128xbf16> to vector<64x128xbf16>
    %cst_10 = arith.constant dense<0.000000e+00> : vector<128x128xf32>
    %13 = tpu.matmul %10, %12, %cst_10 {dimension_numbers = #tpu.dot_dimension_numbers<[1], [0], [0], [1], [0, 0, 1, 1], [], []>} : vector<128x64xbf16>, vector<64x128xbf16>, vector<128x128xf32> -> vector<128x128xf32>
    %14 = arith.addf %8, %13 : vector<128x128xf32>
    %15 = vector.extract_strided_slice %1 {offsets = [0, 2, 0], sizes = [8, 16, 64], strides = [1, 1, 1]} : vector<10x18x64xbf16> to vector<8x16x64xbf16>
    %16 = vector.shape_cast %15 : vector<8x16x64xbf16> to vector<128x64xbf16>
    %c2 = arith.constant 2 : index
    %c0_11 = arith.constant 0 : index
    %c0_12 = arith.constant 0 : index
    %17 = vector.load %arg3[%c2, %c0_11, %c0_12] : memref<9x64x128xbf16, #tpu.memory_space<vmem>>, vector<1x64x128xbf16>
    %18 = vector.shape_cast %17 : vector<1x64x128xbf16> to vector<64x128xbf16>
    %cst_13 = arith.constant dense<0.000000e+00> : vector<128x128xf32>
    %19 = tpu.matmul %16, %18, %cst_13 {dimension_numbers = #tpu.dot_dimension_numbers<[1], [0], [0], [1], [0, 0, 1, 1], [], []>} : vector<128x64xbf16>, vector<64x128xbf16>, vector<128x128xf32> -> vector<128x128xf32>
    %20 = arith.addf %14, %19 : vector<128x128xf32>
    %21 = vector.extract_strided_slice %1 {offsets = [1, 0, 0], sizes = [8, 16, 64], strides = [1, 1, 1]} : vector<10x18x64xbf16> to vector<8x16x64xbf16>
    %22 = vector.shape_cast %21 : vector<8x16x64xbf16> to vector<128x64xbf16>
    %c3 = arith.constant 3 : index
    %c0_14 = arith.constant 0 : index
    %c0_15 = arith.constant 0 : index
    %23 = vector.load %arg3[%c3, %c0_14, %c0_15] : memref<9x64x128xbf16, #tpu.memory_space<vmem>>, vector<1x64x128xbf16>
    %24 = vector.shape_cast %23 : vector<1x64x128xbf16> to vector<64x128xbf16>
    %cst_16 = arith.constant dense<0.000000e+00> : vector<128x128xf32>
    %25 = tpu.matmul %22, %24, %cst_16 {dimension_numbers = #tpu.dot_dimension_numbers<[1], [0], [0], [1], [0, 0, 1, 1], [], []>} : vector<128x64xbf16>, vector<64x128xbf16>, vector<128x128xf32> -> vector<128x128xf32>
    %26 = arith.addf %20, %25 : vector<128x128xf32>
    %27 = vector.extract_strided_slice %1 {offsets = [1, 1, 0], sizes = [8, 16, 64], strides = [1, 1, 1]} : vector<10x18x64xbf16> to vector<8x16x64xbf16>
    %28 = vector.shape_cast %27 : vector<8x16x64xbf16> to vector<128x64xbf16>
    %c4 = arith.constant 4 : index
    %c0_17 = arith.constant 0 : index
    %c0_18 = arith.constant 0 : index
    %29 = vector.load %arg3[%c4, %c0_17, %c0_18] : memref<9x64x128xbf16, #tpu.memory_space<vmem>>, vector<1x64x128xbf16>
    %30 = vector.shape_cast %29 : vector<1x64x128xbf16> to vector<64x128xbf16>
    %cst_19 = arith.constant dense<0.000000e+00> : vector<128x128xf32>
    %31 = tpu.matmul %28, %30, %cst_19 {dimension_numbers = #tpu.dot_dimension_numbers<[1], [0], [0], [1], [0, 0, 1, 1], [], []>} : vector<128x64xbf16>, vector<64x128xbf16>, vector<128x128xf32> -> vector<128x128xf32>
    %32 = arith.addf %26, %31 : vector<128x128xf32>
    %33 = vector.extract_strided_slice %1 {offsets = [1, 2, 0], sizes = [8, 16, 64], strides = [1, 1, 1]} : vector<10x18x64xbf16> to vector<8x16x64xbf16>
    %34 = vector.shape_cast %33 : vector<8x16x64xbf16> to vector<128x64xbf16>
    %c5 = arith.constant 5 : index
    %c0_20 = arith.constant 0 : index
    %c0_21 = arith.constant 0 : index
    %35 = vector.load %arg3[%c5, %c0_20, %c0_21] : memref<9x64x128xbf16, #tpu.memory_space<vmem>>, vector<1x64x128xbf16>
    %36 = vector.shape_cast %35 : vector<1x64x128xbf16> to vector<64x128xbf16>
    %cst_22 = arith.constant dense<0.000000e+00> : vector<128x128xf32>
    %37 = tpu.matmul %34, %36, %cst_22 {dimension_numbers = #tpu.dot_dimension_numbers<[1], [0], [0], [1], [0, 0, 1, 1], [], []>} : vector<128x64xbf16>, vector<64x128xbf16>, vector<128x128xf32> -> vector<128x128xf32>
    %38 = arith.addf %32, %37 : vector<128x128xf32>
    %39 = vector.extract_strided_slice %1 {offsets = [2, 0, 0], sizes = [8, 16, 64], strides = [1, 1, 1]} : vector<10x18x64xbf16> to vector<8x16x64xbf16>
    %40 = vector.shape_cast %39 : vector<8x16x64xbf16> to vector<128x64xbf16>
    %c6 = arith.constant 6 : index
    %c0_23 = arith.constant 0 : index
    %c0_24 = arith.constant 0 : index
    %41 = vector.load %arg3[%c6, %c0_23, %c0_24] : memref<9x64x128xbf16, #tpu.memory_space<vmem>>, vector<1x64x128xbf16>
    %42 = vector.shape_cast %41 : vector<1x64x128xbf16> to vector<64x128xbf16>
    %cst_25 = arith.constant dense<0.000000e+00> : vector<128x128xf32>
    %43 = tpu.matmul %40, %42, %cst_25 {dimension_numbers = #tpu.dot_dimension_numbers<[1], [0], [0], [1], [0, 0, 1, 1], [], []>} : vector<128x64xbf16>, vector<64x128xbf16>, vector<128x128xf32> -> vector<128x128xf32>
    %44 = arith.addf %38, %43 : vector<128x128xf32>
    %45 = vector.extract_strided_slice %1 {offsets = [2, 1, 0], sizes = [8, 16, 64], strides = [1, 1, 1]} : vector<10x18x64xbf16> to vector<8x16x64xbf16>
    %46 = vector.shape_cast %45 : vector<8x16x64xbf16> to vector<128x64xbf16>
    %c7 = arith.constant 7 : index
    %c0_26 = arith.constant 0 : index
    %c0_27 = arith.constant 0 : index
    %47 = vector.load %arg3[%c7, %c0_26, %c0_27] : memref<9x64x128xbf16, #tpu.memory_space<vmem>>, vector<1x64x128xbf16>
    %48 = vector.shape_cast %47 : vector<1x64x128xbf16> to vector<64x128xbf16>
    %cst_28 = arith.constant dense<0.000000e+00> : vector<128x128xf32>
    %49 = tpu.matmul %46, %48, %cst_28 {dimension_numbers = #tpu.dot_dimension_numbers<[1], [0], [0], [1], [0, 0, 1, 1], [], []>} : vector<128x64xbf16>, vector<64x128xbf16>, vector<128x128xf32> -> vector<128x128xf32>
    %50 = arith.addf %44, %49 : vector<128x128xf32>
    %51 = vector.extract_strided_slice %1 {offsets = [2, 2, 0], sizes = [8, 16, 64], strides = [1, 1, 1]} : vector<10x18x64xbf16> to vector<8x16x64xbf16>
    %52 = vector.shape_cast %51 : vector<8x16x64xbf16> to vector<128x64xbf16>
    %c8 = arith.constant 8 : index
    %c0_29 = arith.constant 0 : index
    %c0_30 = arith.constant 0 : index
    %53 = vector.load %arg3[%c8, %c0_29, %c0_30] : memref<9x64x128xbf16, #tpu.memory_space<vmem>>, vector<1x64x128xbf16>
    %54 = vector.shape_cast %53 : vector<1x64x128xbf16> to vector<64x128xbf16>
    %cst_31 = arith.constant dense<0.000000e+00> : vector<128x128xf32>
    %55 = tpu.matmul %52, %54, %cst_31 {dimension_numbers = #tpu.dot_dimension_numbers<[1], [0], [0], [1], [0, 0, 1, 1], [], []>} : vector<128x64xbf16>, vector<64x128xbf16>, vector<128x128xf32> -> vector<128x128xf32>
    %56 = arith.addf %50, %55 : vector<128x128xf32>
    %57 = math.tanh %56 : vector<128x128xf32>
    %58 = vector.shape_cast %57 : vector<128x128xf32> to vector<8x16x128xf32>
    %c0_32 = arith.constant 0 : index
    %c0_33 = arith.constant 0 : index
    %c0_34 = arith.constant 0 : index
    %c0_35 = arith.constant 0 : index
    %59 = vector.load %arg4[%c0_32, %c0_33, %c0_34, %c0_35] : memref<1x8x16x128xf32, #tpu.memory_space<vmem>>, vector<1x8x16x128xf32>
    %60 = vector.shape_cast %59 : vector<1x8x16x128xf32> to vector<8x16x128xf32>
    %61 = vector.shape_cast %58 : vector<8x16x128xf32> to vector<1x8x16x128xf32>
    tpu.vector_store %arg4[%c0_32, %c0_33, %c0_34, %c0_35], %61 {strides = array<i32>} : memref<1x8x16x128xf32, #tpu.memory_space<vmem>>, vector<1x8x16x128xf32>,
    return
  }
  func.func @transform_0(%arg0: i32, %arg1: i32) -> (i32, i32, i32, i32, i32) {
    %c0_i32 = arith.constant 0 : i32
    %c0_i32_0 = arith.constant 0 : i32
    %c0_i32_1 = arith.constant 0 : i32
    %c0_i32_2 = arith.constant 0 : i32
    return %arg0, %arg1, %c0_i32, %c0_i32_0, %c0_i32_1 : i32, i32, i32, i32, i32
  }
  func.func @transform_1(%arg0: i32, %arg1: i32) -> (i32, i32, i32) {
    %c0_i32 = arith.constant 0 : i32
    %c0_i32_0 = arith.constant 0 : i32
    %c0_i32_1 = arith.constant 0 : i32
    %c0_i32_2 = arith.constant 0 : i32
    return %c0_i32, %c0_i32_0, %c0_i32_1 : i32, i32, i32
  }
  func.func @transform_2(%arg0: i32, %arg1: i32) -> (i32, i32, i32, i32) {
    %c0_i32 = arith.constant 0 : i32
    %c0_i32_0 = arith.constant 0 : i32
    %c0_i32_1 = arith.constant 0 : i32
    return %arg0, %arg1, %c0_i32, %c0_i32_0 : i32, i32, i32, i32
  }
}

</mosaic_0001>

<llo_original>
// kernel: local_pathway_forward.21
$region0: #{local_pathway_forward.21}
  #allocation0 [shape = 'u32[]', space=smem, size = 0x4, offset = 0x4, fixed_abs, tag = 'smem constant byte address 0x4 - core index']
  #allocation1 [shape = 'u32[144,128]{1,0:T(1,128)}', space=vmem, size = 0x12000, scoped, tag = 'internal scratch']
  %s0 = inlined_call_operand.vmem [shape: bf16[2,2,10,18,3], index: 0, kind: input, shape index: {}]
  %s1 = inlined_call_operand.vmem [shape: bf16[9,3,64], index: 1, kind: input, shape index: {}]
  %s2 = inlined_call_operand.vmem [shape: bf16[2,16,16,64], index: 2, kind: output, shape index: {}]
  %s3 = sld [smem:[#allocation0]]
  $region41: #{local_pathway_forward.21} parent=0
    _
  %s5 = ssub.s32 1, %s3
  %s6 = scalar_select 0, %s5, %s3
  loop: start=0, step=1, limit=6
  $region2: #{local_pathway_forward.21} parent=0 // loop_pre_header
    _
  $region3: #{local_pathway_forward.21} parent=0 // loop_header
    %s8 = sphi 0, %s12
    %p9 = scmp.ge.s32.totalorder %s8, 6
    %s15 = sphi 0, %s27
    %s16 = sphi 0, %s23
    %s17 = sphi 0, %s15
    %s18 = sphi 0, %s16
    %s19 = sphi 0, %s17
    %s20 = sphi 0, %s18
    %s32 = sphi 0, %s34
    %s35 = sphi 0, %s32
    %s36 = sphi 0, %s35
    %s52 = sphi 0, %s36
    %s56 = sphi 0, %s56
    %s58 = sphi 0, %s56
    %s59 = sphi 0, %s58
    %s73 = sphi 0, %s59
    %s81 = sphi 0, %s83
    %s84 = sphi 0, %s81
    %s85 = sphi 0, %s84
    %s101 = sphi 0, %s85
  $region4: #{local_pathway_forward.21} parent=0 // loop_header_branch
    %11 = sbr.rel (%p9) target = $region8
  $region5: #{local_pathway_forward.21} parent=0 // loop_body
    %s13 = ssub.s32 %s8, 1
    %s14 = ssub.s32 %s8, 2
    %s21 = sadd.s32 1, %s16
    %p22 = scmp.ge.s32.totalorder %s21, 2
    %s23 = scalar_select %p22, 0, %s21
    %s24 = sadd.s32 1, %s15
    %s25 = scalar_select %p22, %s24, %s15
    %p26 = scmp.ge.s32.totalorder %s25, 2
    %s27 = scalar_select %p26, 0, %s25
    %s28 = ssub.s32 %s15, %s27
    %s29 = ssub.s32 %s16, %s23
    %s30 = sor.u32 %s28, %s29
    %p31 = scmp.eq.s32.totalorder %s30, 0
    %s33 = sadd.s32 %s32, 1
    %s34 = scalar_select %p31, %s32, %s33
    %p37 = pneg %p31
    %p38 = scmp.eq.s32.totalorder %s8, 3
    %p39 = por %p37, %p38
    %p40 = scmp.ne.s32.totalorder %s32, %s35
    %p41 = scmp.eq.s32.totalorder %s8, 0
    %p42 = por %p40, %p41
    %p43 = scmp.ne.s32.totalorder %s32, %s35
    %p44 = scmp.eq.s32.totalorder %s13, 3
    %p45 = por %p43, %p44
    %p46 = scmp.ne.s32.totalorder %s35, %s36
    %p47 = scmp.eq.s32.totalorder %s13, 0
    %p48 = por %p46, %p47
    %p49 = scmp.ne.s32.totalorder %s35, %s36
    %p50 = scmp.eq.s32.totalorder %s14, 3
    %p51 = por %p49, %p50
    %p53 = scmp.ne.s32.totalorder %s36, %s52
    %p54 = scmp.eq.s32.totalorder %s14, 0
    %p55 = por %p53, %p54
    %s57 = sadd.s32 %s56, 1
    %p60 = scmp.eq.s32.totalorder %s8, 3
    %p61 = scmp.ne.s32.totalorder %s56, %s58
    %p62 = scmp.eq.s32.totalorder %s8, 0
    %p63 = por %p61, %p62
    %p64 = scmp.ne.s32.totalorder %s56, %s58
    %p65 = scmp.eq.s32.totalorder %s13, 3
    %p66 = por %p64, %p65
    %p67 = scmp.ne.s32.totalorder %s58, %s59
    %p68 = scmp.eq.s32.totalorder %s13, 0
    %p69 = por %p67, %p68
    %p70 = scmp.ne.s32.totalorder %s58, %s59
    %p71 = scmp.eq.s32.totalorder %s14, 3
    %p72 = por %p70, %p71
    %p74 = scmp.ne.s32.totalorder %s59, %s73
    %p75 = scmp.eq.s32.totalorder %s14, 0
    %p76 = por %p74, %p75
    %s77 = ssub.s32 %s15, %s27
    %s78 = ssub.s32 %s16, %s23
    %s79 = sor.u32 %s77, %s78
    %p80 = scmp.eq.s32.totalorder %s79, 0
    %s82 = sadd.s32 %s81, 1
    %s83 = scalar_select %p80, %s81, %s82
    %p86 = pneg %p80
    %p87 = scmp.eq.s32.totalorder %s8, 3
    %p88 = por %p86, %p87
    %p89 = scmp.ne.s32.totalorder %s81, %s84
    %p90 = scmp.eq.s32.totalorder %s8, 0
    %p91 = por %p89, %p90
    %p92 = scmp.ne.s32.totalorder %s81, %s84
    %p93 = scmp.eq.s32.totalorder %s13, 3
    %p94 = por %p92, %p93
    %p95 = scmp.ne.s32.totalorder %s84, %s85
    %p96 = scmp.eq.s32.totalorder %s13, 0
    %p97 = por %p95, %p96
    %p98 = scmp.ne.s32.totalorder %s84, %s85
    %p99 = scmp.eq.s32.totalorder %s14, 3
    %p100 = por %p98, %p99
    %p102 = scmp.ne.s32.totalorder %s85, %s101
    %p103 = scmp.eq.s32.totalorder %s14, 0
    %p104 = por %p102, %p103
    %p105 = scmp.le.s32.totalorder 1, %s8
    %p106 = scmp.lt.s32.totalorder %s8, 5
    %p107 = pnand %p105, %p106
    %p108 = pneg %p107
    // Predicated region
    $region9: #{local_pathway_forward.21} parent=5 // pred_check
      _
    $region10: #{local_pathway_forward.21} parent=5 // pred_check_branch
      %110 = sbr.rel (%p107) target = $region12
    $region11: #{local_pathway_forward.21} parent=5 // pred_region
      %s111 = ssub.s32 %s8, 1
      // Predicated region
      $region13: #{local_pathway_forward.21} parent=11 // pred_check
        %p112 = pneg %p69
      $region14: #{local_pathway_forward.21} parent=11 // pred_check_branch
        %114 = sbr.rel (%p112) target = $region16
      $region15: #{local_pathway_forward.21} parent=11 // pred_region
        _
      $region16: #{local_pathway_forward.21} parent=11 // pred_fallthru
        _
    $region12: #{local_pathway_forward.21} parent=5 // pred_fallthru
      _
    %p115 = scmp.lt.s32.totalorder %s8, 4
    // Predicated region
    $region17: #{local_pathway_forward.21} parent=5 // pred_check
      %p116 = pneg %p115
    $region18: #{local_pathway_forward.21} parent=5 // pred_check_branch
      %118 = sbr.rel (%p116) target = $region20
    $region19: #{local_pathway_forward.21} parent=5 // pred_region
      // Predicated region
      $region21: #{local_pathway_forward.21} parent=19 // pred_check
        %p119 = pneg %p42
      $region22: #{local_pathway_forward.21} parent=19 // pred_check_branch
        %121 = sbr.rel (%p119) target = $region24
      $region23: #{local_pathway_forward.21} parent=19 // pred_region
        %p122 = scmp.lt.s32.totalorder %s15, 1
        %s123 = scalar_select %p122, %s15, 1
        %p124 = scmp.lt.s32.totalorder %s16, 1
        %s125 = scalar_select %p124, %s16, 1
        %s126 = smul.addr %s125, 30
        %s127 = smul.addr %s123, 60
        %s128 = sadd.s32 %s126, %s127
        %s129 = smul.addr %s128, 4
        %s130 = scalar_lea.vmem %s0, %s129
      $region24: #{local_pathway_forward.21} parent=19 // pred_fallthru
        _
    $region20: #{local_pathway_forward.21} parent=5 // pred_fallthru
      _
    %p131 = scmp.le.s32.totalorder 1, %s8
    %p132 = scmp.lt.s32.totalorder %s8, 5
    %p133 = pnand %p131, %p132
    %p134 = pneg %p133
    // Predicated region
    $region25: #{local_pathway_forward.21} parent=5 // pred_check
      _
    $region26: #{local_pathway_forward.21} parent=5 // pred_check_branch
      %136 = sbr.rel (%p133) target = $region28
    $region27: #{local_pathway_forward.21} parent=5 // pred_region
      %s137 = ssub.s32 %s8, 1
      %p138 = scmp.lt.s32.totalorder %s17, 1
      %s139 = scalar_select %p138, %s17, 1
      %p140 = scmp.lt.s32.totalorder %s18, 1
      %s141 = scalar_select %p140, %s18, 1
      %s142 = smul.addr %s141, 30
      %s143 = smul.addr %s139, 60
      %s144 = sadd.s32 %s142, %s143
      %s145 = smul.addr %s144, 4
      %s146 = scalar_lea.vmem %s0, %s145
      %p147 = pneg %p48
      %p148 = pneg %p45
      %p149 = pneg %p69
      %p150 = pneg %p66
      %p151 = pneg %p97
      %p152 = pneg %p94
      %s153 = smul.u32 8, %s18
      %p154 = scmp.lt.s32.totalorder %s17, 1
      %s155 = scalar_select %p154, %s17, 1
      %p156 = scmp.lt.s32.totalorder %s153, 15
      %s157 = scalar_select %p156, %s153, 15
      %s158 = smul.addr %s157, 2
      %s159 = smul.addr %s155, 32
      %s160 = sadd.s32 %s158, %s159
      %s161 = smul.addr %s160, 4
      %s162 = scalar_lea.vmem %s2, %s161
      %p163 = scmp.lt.s32.totalorder %s17, 1
      %s164 = scalar_select %p163, %s17, 1
      %p165 = scmp.lt.s32.totalorder %s18, 1
      %s166 = scalar_select %p165, %s18, 1
      %s167 = smul.addr %s166, 30
      %s168 = smul.addr %s164, 60
      %s169 = sadd.s32 %s167, %s168
      %s170 = smul.addr %s169, 4
      %s171 = scalar_lea.vmem %s0, %s170
      %s172 = smul.u32 8, %s18
      %p173 = scmp.lt.s32.totalorder %s17, 1
      %s174 = scalar_select %p173, %s17, 1
      %p175 = scmp.lt.s32.totalorder %s172, 15
      %s176 = scalar_select %p175, %s172, 15
      %s177 = smul.addr %s176, 2
      %s178 = smul.addr %s174, 32
      %s179 = sadd.s32 %s177, %s178
      %s180 = smul.addr %s179, 4
      %s181 = scalar_lea.vmem %s2, %s180
      %s182 = smul.u32 8, %s18
      %v184 = vld [vmem:[%s171] sm:$0xf]
      %v185 = vld [vmem:[%s171 + $0x4] sm:$0xf]
      %v186 = vld [vmem:[%s171 + $0x8] sm:$0x1]
      %v187 = vld [vmem:[%s171 + $0xc] sm:$0xf]
      %v188 = vld [vmem:[%s171 + $0x10] sm:$0xf]
      %v189 = vld [vmem:[%s171 + $0x14] sm:$0x1]
      %v190 = vld [vmem:[%s171 + $0x18] sm:$0xf]
      %v191 = vld [vmem:[%s171 + $0x1c] sm:$0xf]
      %v192 = vld [vmem:[%s171 + $0x20] sm:$0x1]
      %v193 = vld [vmem:[%s171 + $0x24] sm:$0xf]
      %v194 = vld [vmem:[%s171 + $0x28] sm:$0xf]
      %v195 = vld [vmem:[%s171 + $0x2c] sm:$0x1]
      %v196 = vld [vmem:[%s171 + $0x30] sm:$0xf]
      %v197 = vld [vmem:[%s171 + $0x34] sm:$0xf]
      %v198 = vld [vmem:[%s171 + $0x38] sm:$0x1]
      %v199 = vld [vmem:[%s171 + $0x3c] sm:$0xf]
      %v200 = vld [vmem:[%s171 + $0x40] sm:$0xf]
      %v201 = vld [vmem:[%s171 + $0x44] sm:$0x1]
      %v202 = vld [vmem:[%s171 + $0x48] sm:$0xf]
      %v203 = vld [vmem:[%s171 + $0x4c] sm:$0xf]
      %v204 = vld [vmem:[%s171 + $0x50] sm:$0x1]
      %v205 = vld [vmem:[%s171 + $0x54] sm:$0xf]
      %v206 = vld [vmem:[%s171 + $0x58] sm:$0xf]
      %v207 = vld [vmem:[%s171 + $0x5c] sm:$0x1]
      %v208 = vld [vmem:[%s171 + $0x60] sm:$0xf]
      %v209 = vld [vmem:[%s171 + $0x64] sm:$0xf]
      %v210 = vld [vmem:[%s171 + $0x68] sm:$0x1]
      %v211 = vld [vmem:[%s171 + $0x6c] sm:$0xf]
      %v212 = vld [vmem:[%s171 + $0x70] sm:$0xf]
      %v213 = vld [vmem:[%s171 + $0x74] sm:$0x1]
      %v214 = vld [vmem:[%s1] sm:$0x3]
      %vm215 = vsmask.f32 3328
      %vm216 = vsmask.f32 7440
      %vm217 = vmor %vm215, %vm216
      %v219 = vshrl.u32 %v184, 16
      %v221 = vrot.slane %v219, 4
      %v222 = vshll.u32 %v184, 16
      %v224 = vrot.slane %v222, 5
      %v225 = vor.u32 %v221, %v224
      %v226 = vrot.slane %v225, 4
      %v228 = vshll.u32 %v185, 16
      %v230 = vrot.slane %v228, 5
      %v231 = vsel %vm217, %v226, %v230
      %v232 = vshrl.u32 %v185, 16
      %v234 = vrot.slane %v232, 4
      %v235 = vor.u32 %v234, %v230
      %v236 = vrot.slane %v235, 4
      %v238 = vshll.u32 %v186, 16
      %v240 = vrot.slane %v238, 5
      %v241 = vsel %vm217, %v236, %v240
      %v243 = vshrl.u32 %v187, 16
      %v245 = vrot.slane %v243, 4
      %v246 = vshll.u32 %v187, 16
      %v248 = vrot.slane %v246, 5
      %v249 = vor.u32 %v245, %v248
      %v250 = vrot.slane %v249, 4
      %v252 = vshll.u32 %v188, 16
      %v254 = vrot.slane %v252, 5
      %v255 = vsel %vm217, %v250, %v254
      %v256 = vshrl.u32 %v188, 16
      %v258 = vrot.slane %v256, 4
      %v259 = vor.u32 %v258, %v254
      %v260 = vrot.slane %v259, 4
      %v262 = vshll.u32 %v189, 16
      %v264 = vrot.slane %v262, 5
      %v265 = vsel %vm217, %v260, %v264
      %v267 = vshrl.u32 %v190, 16
      %v269 = vrot.slane %v267, 4
      %v270 = vshll.u32 %v190, 16
      %v272 = vrot.slane %v270, 5
      %v273 = vor.u32 %v269, %v272
      %v274 = vrot.slane %v273, 4
      %v276 = vshll.u32 %v191, 16
      %v278 = vrot.slane %v276, 5
      %v279 = vsel %vm217, %v274, %v278
      %v280 = vshrl.u32 %v191, 16
      %v282 = vrot.slane %v280, 4
      %v283 = vor.u32 %v282, %v278
      %v284 = vrot.slane %v283, 4
      %v286 = vshll.u32 %v192, 16
      %v288 = vrot.slane %v286, 5
      %v289 = vsel %vm217, %v284, %v288
      %v291 = vshrl.u32 %v193, 16
      %v293 = vrot.slane %v291, 4
      %v294 = vshll.u32 %v193, 16
      %v296 = vrot.slane %v294, 5
      %v297 = vor.u32 %v293, %v296
      %v298 = vrot.slane %v297, 4
      %v300 = vshll.u32 %v194, 16
      %v302 = vrot.slane %v300, 5
      %v303 = vsel %vm217, %v298, %v302
      %v304 = vshrl.u32 %v194, 16
      %v306 = vrot.slane %v304, 4
      %v307 = vor.u32 %v306, %v302
      %v308 = vrot.slane %v307, 4
      %v310 = vshll.u32 %v195, 16
      %v312 = vrot.slane %v310, 5
      %v313 = vsel %vm217, %v308, %v312
      %v315 = vshrl.u32 %v196, 16
      %v317 = vrot.slane %v315, 4
      %v318 = vshll.u32 %v196, 16
      %v320 = vrot.slane %v318, 5
      %v321 = vor.u32 %v317, %v320
      %v322 = vrot.slane %v321, 4
      %v324 = vshll.u32 %v197, 16
      %v326 = vrot.slane %v324, 5
      %v327 = vsel %vm217, %v322, %v326
      %v328 = vshrl.u32 %v197, 16
      %v330 = vrot.slane %v328, 4
      %v331 = vor.u32 %v330, %v326
      %v332 = vrot.slane %v331, 4
      %v334 = vshll.u32 %v198, 16
      %v336 = vrot.slane %v334, 5
      %v337 = vsel %vm217, %v332, %v336
      %v339 = vshrl.u32 %v199, 16
      %v341 = vrot.slane %v339, 4
      %v342 = vshll.u32 %v199, 16
      %v344 = vrot.slane %v342, 5
      %v345 = vor.u32 %v341, %v344
      %v346 = vrot.slane %v345, 4
      %v348 = vshll.u32 %v200, 16
      %v350 = vrot.slane %v348, 5
      %v351 = vsel %vm217, %v346, %v350
      %v352 = vshrl.u32 %v200, 16
      %v354 = vrot.slane %v352, 4
      %v355 = vor.u32 %v354, %v350
      %v356 = vrot.slane %v355, 4
      %v358 = vshll.u32 %v201, 16
      %v360 = vrot.slane %v358, 5
      %v361 = vsel %vm217, %v356, %v360
      %v363 = vshrl.u32 %v202, 16
      %v365 = vrot.slane %v363, 4
      %v366 = vshll.u32 %v202, 16
      %v368 = vrot.slane %v366, 5
      %v369 = vor.u32 %v365, %v368
      %v370 = vrot.slane %v369, 4
      %v372 = vshll.u32 %v203, 16
      %v374 = vrot.slane %v372, 5
      %v375 = vsel %vm217, %v370, %v374
      %v376 = vshrl.u32 %v203, 16
      %v378 = vrot.slane %v376, 4
      %v379 = vor.u32 %v378, %v374
      %v380 = vrot.slane %v379, 4
      %v382 = vshll.u32 %v204, 16
      %v384 = vrot.slane %v382, 5
      %v385 = vsel %vm217, %v380, %v384
      %v387 = vshrl.u32 %v205, 16
      %v389 = vrot.slane %v387, 4
      %v390 = vshll.u32 %v205, 16
      %v392 = vrot.slane %v390, 5
      %v393 = vor.u32 %v389, %v392
      %v394 = vrot.slane %v393, 4
      %v396 = vshll.u32 %v206, 16
      %v398 = vrot.slane %v396, 5
      %v399 = vsel %vm217, %v394, %v398
      %v400 = vshrl.u32 %v206, 16
      %v402 = vrot.slane %v400, 4
      %v403 = vor.u32 %v402, %v398
      %v404 = vrot.slane %v403, 4
      %v406 = vshll.u32 %v207, 16
      %v408 = vrot.slane %v406, 5
      %v409 = vsel %vm217, %v404, %v408
      %s410 = scalar_lea.vmem %s1, 2
      %v411 = vld [vmem:[%s410] sm:$0x3]
      %v412 = vunpack.c.l.b16 %v231
      %v413 = vunpack.c.l.b16 %v241
      %v414 = vunpack.c.l.b16 %v255
      %v415 = vunpack.c.l.b16 %v265
      %v416 = vunpack.c.l.b16 %v279
      %v417 = vunpack.c.l.b16 %v289
      %v418 = vunpack.c.l.b16 %v303
      %v419 = vunpack.c.l.b16 %v313
      %v420 = vunpack.c.l.b16 %v327
      %v421 = vunpack.c.l.b16 %v337
      %v422 = vunpack.c.l.b16 %v351
      %v423 = vunpack.c.l.b16 %v361
      %v424 = vunpack.c.l.b16 %v375
      %v425 = vunpack.c.l.b16 %v385
      %v426 = vunpack.c.l.b16 %v399
      %v427 = vunpack.c.l.b16 %v409
      %v428 = vpack.c.b16 %v413, %v412
      %v429 = vpack.c.b16 %v415, %v414
      %v430 = vpack.c.b16 %v417, %v416
      %v431 = vpack.c.b16 %v419, %v418
      %v432 = vpack.c.b16 %v421, %v420
      %v433 = vpack.c.b16 %v423, %v422
      %v434 = vpack.c.b16 %v425, %v424
      %v435 = vpack.c.b16 %v427, %v426
      %vm436 = vcmask 23552
      %v438 = vsel %vm436, %v428, 0
      %v441 = vsel %vm436, %v429, 0
      %v444 = vsel %vm436, %v430, 0
      %v447 = vsel %vm436, %v431, 0
      %v450 = vsel %vm436, %v432, 0
      %v453 = vsel %vm436, %v433, 0
      %v456 = vsel %vm436, %v434, 0
      %v459 = vsel %vm436, %v435, 0
      %vm461 = vcmask 1040384
      %vm462 = vcmask 1041408
      %v463 = vsel %vm461, 4294967295, 65535
      %v464 = vsel %vm462, %v463, 0
      %v466 = vand.u32 %v411, %v464
      %468 = vmatprep.subr.bf16.mxu0 0
      %469 = vmatpush1.bf16.msra.mxu0 %v466
      %470 = vmatprep.subr.bf16.mxu0 0
      %471 = vmatpush1.bf16.msra.mxu0 0
      %472 = vmatprep.subr.bf16.mxu0 0
      %473 = vmatpush1.bf16.msra.mxu0 0
      %474 = vmatprep.subr.bf16.mxu0 0
      %475 = vmatpush1.bf16.msra.mxu0 0
      %476 = vmatprep.subr.bf16.mxu0 0
      %477 = vmatpush1.bf16.msra.mxu0 0
      %478 = vmatprep.subr.bf16.mxu0 0
      %479 = vmatpush1.bf16.msra.mxu0 0
      %480 = vmatprep.subr.bf16.mxu0 0
      %481 = vmatpush1.bf16.msra.mxu0 0
      %482 = vmatprep.subr.bf16.mxu0 0
      %483 = vmatpush1.bf16.msra.mxu0 0
      %484 = vmatprep.subr.bf16.mxu0 0
      %485 = vmatpush1.bf16.msra.mxu0 0
      %486 = vmatprep.subr.bf16.mxu0 0
      %487 = vmatpush1.bf16.msra.mxu0 0
      %488 = vmatprep.subr.bf16.mxu0 0
      %489 = vmatpush1.bf16.msra.mxu0 0
      %490 = vmatprep.subr.bf16.mxu0 0
      %491 = vmatpush1.bf16.msra.mxu0 0
      %492 = vmatprep.subr.bf16.mxu0 0
      %493 = vmatpush1.bf16.msra.mxu0 0
      %494 = vmatprep.subr.bf16.mxu0 0
      %495 = vmatpush1.bf16.msra.mxu0 0
      %496 = vmatprep.subr.bf16.mxu0 0
      %497 = vmatpush1.bf16.msra.mxu0 0
      %498 = vmatprep.subr.bf16.mxu0 0
      %499 = vmatpush1.bf16.msra.mxu0 0
      %500 = vmatprep.mubr.bf16.mxu0 0
      %501 = vmatmul.mubr.bf16.gmra.mrb[0].mxu0 %v438
      %v502 = vpop.f32.mrb[0].mxu0
      %v503 = vadd.f32 0.0, %v502
      %v504 = vpop.f32.mrb[0].mxu0
      %v505 = vpop.f32.mrb[0].mxu0
      %v506 = vadd.f32 0.0, %v505
      %v507 = vpop.f32.mrb[0].mxu0
      %508 = vmatprep.mubr.bf16.mxu0 0
      %509 = vmatmul.mubr.bf16.gmra.mrb[0].mxu0 %v441
      %v510 = vpop.f32.mrb[0].mxu0
      %v511 = vadd.f32 0.0, %v510
      %v512 = vpop.f32.mrb[0].mxu0
      %v513 = vpop.f32.mrb[0].mxu0
      %v514 = vadd.f32 0.0, %v513
      %v515 = vpop.f32.mrb[0].mxu0
      %516 = vmatprep.mubr.bf16.mxu0 0
      %517 = vmatmul.mubr.bf16.gmra.mrb[0].mxu0 %v444
      %v518 = vpop.f32.mrb[0].mxu0
      %v519 = vadd.f32 0.0, %v518
      %v520 = vpop.f32.mrb[0].mxu0
      %v521 = vpop.f32.mrb[0].mxu0
      %v522 = vadd.f32 0.0, %v521
      %v523 = vpop.f32.mrb[0].mxu0
      %524 = vmatprep.mubr.bf16.mxu0 0
      %525 = vmatmul.mubr.bf16.gmra.mrb[0].mxu0 %v447
      %v526 = vpop.f32.mrb[0].mxu0
      %v527 = vadd.f32 0.0, %v526
      %v528 = vpop.f32.mrb[0].mxu0
      %v529 = vpop.f32.mrb[0].mxu0
      %v530 = vadd.f32 0.0, %v529
      %v531 = vpop.f32.mrb[0].mxu0
      %532 = vmatprep.mubr.bf16.mxu0 0
      %533 = vmatmul.mubr.bf16.gmra.mrb[0].mxu0 %v450
      %v534 = vpop.f32.mrb[0].mxu0
      %v535 = vadd.f32 0.0, %v534
      %v536 = vpop.f32.mrb[0].mxu0
      %v537 = vpop.f32.mrb[0].mxu0
      %v538 = vadd.f32 0.0, %v537
      %v539 = vpop.f32.mrb[0].mxu0
      %540 = vmatprep.mubr.bf16.mxu0 0
      %541 = vmatmul.mubr.bf16.gmra.mrb[0].mxu0 %v453
      %v542 = vpop.f32.mrb[0].mxu0
      %v543 = vadd.f32 0.0, %v542
      %v544 = vpop.f32.mrb[0].mxu0
      %v545 = vpop.f32.mrb[0].mxu0
      %v546 = vadd.f32 0.0, %v545
      %v547 = vpop.f32.mrb[0].mxu0
      %548 = vmatprep.mubr.bf16.mxu0 0
      %549 = vmatmul.mubr.bf16.gmra.mrb[0].mxu0 %v456
      %v550 = vpop.f32.mrb[0].mxu0
      %v551 = vadd.f32 0.0, %v550
      %v552 = vpop.f32.mrb[0].mxu0
      %v553 = vpop.f32.mrb[0].mxu0
      %v554 = vadd.f32 0.0, %v553
      %v555 = vpop.f32.mrb[0].mxu0
      %556 = vmatprep.mubr.bf16.mxu0 0
      %557 = vmatmul.mubr.bf16.gmra.mrb[0].mxu0 %v459
      %v558 = vpop.f32.mrb[0].mxu0
      %v559 = vadd.f32 0.0, %v558
      %v560 = vpop.f32.mrb[0].mxu0
      %v561 = vpop.f32.mrb[0].mxu0
      %v562 = vadd.f32 0.0, %v561
      %v563 = vpop.f32.mrb[0].mxu0
      %564 = vdwg.mxu0
      %v581 = vunpack.c.l.b16 %v184
      %v582 = vunpack.c.l.b16 %v185
      %v583 = vunpack.c.l.b16 %v187
      %v584 = vunpack.c.l.b16 %v188
      %v585 = vunpack.c.l.b16 %v190
      %v586 = vunpack.c.l.b16 %v191
      %v587 = vunpack.c.l.b16 %v193
      %v588 = vunpack.c.l.b16 %v194
      %v589 = vunpack.c.l.b16 %v196
      %v590 = vunpack.c.l.b16 %v197
      %v591 = vunpack.c.l.b16 %v199
      %v592 = vunpack.c.l.b16 %v200
      %v593 = vunpack.c.l.b16 %v202
      %v594 = vunpack.c.l.b16 %v203
      %v595 = vunpack.c.l.b16 %v205
      %v596 = vunpack.c.l.b16 %v206
      %v597 = vpack.c.b16 %v582, %v581
      %v598 = vpack.c.b16 %v584, %v583
      %v599 = vpack.c.b16 %v586, %v585
      %v600 = vpack.c.b16 %v588, %v587
      %v601 = vpack.c.b16 %v590, %v589
      %v602 = vpack.c.b16 %v592, %v591
      %v603 = vpack.c.b16 %v594, %v593
      %v604 = vpack.c.b16 %v596, %v595
      %v606 = vsel %vm436, %v597, 0
      %v609 = vsel %vm436, %v598, 0
      %v612 = vsel %vm436, %v599, 0
      %v615 = vsel %vm436, %v600, 0
      %v618 = vsel %vm436, %v601, 0
      %v621 = vsel %vm436, %v602, 0
      %v624 = vsel %vm436, %v603, 0
      %v627 = vsel %vm436, %v604, 0
      %v630 = vand.u32 %v214, %v464
      %632 = vmatprep.subr.bf16.mxu0 0
      %633 = vmatpush1.bf16.msra.mxu0 %v630
      %634 = vmatprep.subr.bf16.mxu0 0
      %635 = vmatpush1.bf16.msra.mxu0 0
      %636 = vmatprep.subr.bf16.mxu0 0
      %637 = vmatpush1.bf16.msra.mxu0 0
      %638 = vmatprep.subr.bf16.mxu0 0
      %639 = vmatpush1.bf16.msra.mxu0 0
      %640 = vmatprep.subr.bf16.mxu0 0
      %641 = vmatpush1.bf16.msra.mxu0 0
      %642 = vmatprep.subr.bf16.mxu0 0
      %643 = vmatpush1.bf16.msra.mxu0 0
      %644 = vmatprep.subr.bf16.mxu0 0
      %645 = vmatpush1.bf16.msra.mxu0 0
      %646 = vmatprep.subr.bf16.mxu0 0
      %647 = vmatpush1.bf16.msra.mxu0 0
      %648 = vmatprep.subr.bf16.mxu0 0
      %649 = vmatpush1.bf16.msra.mxu0 0
      %650 = vmatprep.subr.bf16.mxu0 0
      %651 = vmatpush1.bf16.msra.mxu0 0
      %652 = vmatprep.subr.bf16.mxu0 0
      %653 = vmatpush1.bf16.msra.mxu0 0
      %654 = vmatprep.subr.bf16.mxu0 0
      %655 = vmatpush1.bf16.msra.mxu0 0
      %656 = vmatprep.subr.bf16.mxu0 0
      %657 = vmatpush1.bf16.msra.mxu0 0
      %658 = vmatprep.subr.bf16.mxu0 0
      %659 = vmatpush1.bf16.msra.mxu0 0
      %660 = vmatprep.subr.bf16.mxu0 0
      %661 = vmatpush1.bf16.msra.mxu0 0
      %662 = vmatprep.subr.bf16.mxu0 0
      %663 = vmatpush1.bf16.msra.mxu0 0
      %664 = vmatprep.mubr.bf16.mxu0 0
      %665 = vmatmul.mubr.bf16.gmra.mrb[0].mxu0 %v606
      %v666 = vpop.f32.mrb[0].mxu0
      %v667 = vadd.f32 %v503, %v666
      %v668 = vpop.f32.mrb[0].mxu0
      %v669 = vpop.f32.mrb[0].mxu0
      %v670 = vadd.f32 %v506, %v669
      %v671 = vpop.f32.mrb[0].mxu0
      %672 = vmatprep.mubr.bf16.mxu0 0
      %673 = vmatmul.mubr.bf16.gmra.mrb[0].mxu0 %v609
      %v674 = vpop.f32.mrb[0].mxu0
      %v675 = vadd.f32 %v511, %v674
      %v676 = vpop.f32.mrb[0].mxu0
      %v677 = vpop.f32.mrb[0].mxu0
      %v678 = vadd.f32 %v514, %v677
      %v679 = vpop.f32.mrb[0].mxu0
      %680 = vmatprep.mubr.bf16.mxu0 0
      %681 = vmatmul.mubr.bf16.gmra.mrb[0].mxu0 %v612
      %v682 = vpop.f32.mrb[0].mxu0
      %v683 = vadd.f32 %v519, %v682
      %v684 = vpop.f32.mrb[0].mxu0
      %v685 = vpop.f32.mrb[0].mxu0
      %v686 = vadd.f32 %v522, %v685
      %v687 = vpop.f32.mrb[0].mxu0
      %688 = vmatprep.mubr.bf16.mxu0 0
      %689 = vmatmul.mubr.bf16.gmra.mrb[0].mxu0 %v615
      %v690 = vpop.f32.mrb[0].mxu0
      %v691 = vadd.f32 %v527, %v690
      %v692 = vpop.f32.mrb[0].mxu0
      %v693 = vpop.f32.mrb[0].mxu0
      %v694 = vadd.f32 %v530, %v693
      %v695 = vpop.f32.mrb[0].mxu0
      %696 = vmatprep.mubr.bf16.mxu0 0
      %697 = vmatmul.mubr.bf16.gmra.mrb[0].mxu0 %v618
      %v698 = vpop.f32.mrb[0].mxu0
      %v699 = vadd.f32 %v535, %v698
      %v700 = vpop.f32.mrb[0].mxu0
      %v701 = vpop.f32.mrb[0].mxu0
      %v702 = vadd.f32 %v538, %v701
      %v703 = vpop.f32.mrb[0].mxu0
      %704 = vmatprep.mubr.bf16.mxu0 0
      %705 = vmatmul.mubr.bf16.gmra.mrb[0].mxu0 %v621
      %v706 = vpop.f32.mrb[0].mxu0
      %v707 = vadd.f32 %v543, %v706
      %v708 = vpop.f32.mrb[0].mxu0
      %v709 = vpop.f32.mrb[0].mxu0
      %v710 = vadd.f32 %v546, %v709
      %v711 = vpop.f32.mrb[0].mxu0
      %712 = vmatprep.mubr.bf16.mxu0 0
      %713 = vmatmul.mubr.bf16.gmra.mrb[0].mxu0 %v624
      %v714 = vpop.f32.mrb[0].mxu0
      %v715 = vadd.f32 %v551, %v714
      %v716 = vpop.f32.mrb[0].mxu0
      %v717 = vpop.f32.mrb[0].mxu0
      %v718 = vadd.f32 %v554, %v717
      %v719 = vpop.f32.mrb[0].mxu0
      %720 = vmatprep.mubr.bf16.mxu0 0
      %721 = vmatmul.mubr.bf16.gmra.mrb[0].mxu0 %v627
      %v722 = vpop.f32.mrb[0].mxu0
      %v723 = vadd.f32 %v559, %v722
      %v724 = vpop.f32.mrb[0].mxu0
      %v725 = vpop.f32.mrb[0].mxu0
      %v726 = vadd.f32 %v562, %v725
      %v727 = vpop.f32.mrb[0].mxu0
      %728 = vdwg.mxu0
      %vm737 = vcmask 1042432
      %vm738 = vcmask 1046532
      %vm739 = vmor %vm737, %vm738
      %v740 = vrot.slane %v184, 5
      %v741 = vrot.slane %v740, 4
      %v742 = vrot.slane %v185, 5
      %v743 = vsel %vm739, %v741, %v742
      %v744 = vrot.slane %v742, 4
      %v745 = vrot.slane %v186, 5
      %v746 = vsel %vm739, %v744, %v745
      %v747 = vrot.slane %v187, 5
      %v748 = vrot.slane %v747, 4
      %v749 = vrot.slane %v188, 5
      %v750 = vsel %vm739, %v748, %v749
      %v751 = vrot.slane %v749, 4
      %v752 = vrot.slane %v189, 5
      %v753 = vsel %vm739, %v751, %v752
      %v754 = vrot.slane %v190, 5
      %v755 = vrot.slane %v754, 4
      %v756 = vrot.slane %v191, 5
      %v757 = vsel %vm739, %v755, %v756
      %v758 = vrot.slane %v756, 4
      %v759 = vrot.slane %v192, 5
      %v760 = vsel %vm739, %v758, %v759
      %v761 = vrot.slane %v193, 5
      %v762 = vrot.slane %v761, 4
      %v763 = vrot.slane %v194, 5
      %v764 = vsel %vm739, %v762, %v763
      %v765 = vrot.slane %v763, 4
      %v766 = vrot.slane %v195, 5
      %v767 = vsel %vm739, %v765, %v766
      %v768 = vrot.slane %v196, 5
      %v769 = vrot.slane %v768, 4
      %v770 = vrot.slane %v197, 5
      %v771 = vsel %vm739, %v769, %v770
      %v772 = vrot.slane %v770, 4
      %v773 = vrot.slane %v198, 5
      %v774 = vsel %vm739, %v772, %v773
      %v775 = vrot.slane %v199, 5
      %v776 = vrot.slane %v775, 4
      %v777 = vrot.slane %v200, 5
      %v778 = vsel %vm739, %v776, %v777
      %v779 = vrot.slane %v777, 4
      %v780 = vrot.slane %v201, 5
      %v781 = vsel %vm739, %v779, %v780
      %v782 = vrot.slane %v202, 5
      %v783 = vrot.slane %v782, 4
      %v784 = vrot.slane %v203, 5
      %v785 = vsel %vm739, %v783, %v784
      %v786 = vrot.slane %v784, 4
      %v787 = vrot.slane %v204, 5
      %v788 = vsel %vm739, %v786, %v787
      %v789 = vrot.slane %v205, 5
      %v790 = vrot.slane %v789, 4
      %v791 = vrot.slane %v206, 5
      %v792 = vsel %vm739, %v790, %v791
      %v793 = vrot.slane %v791, 4
      %v794 = vrot.slane %v207, 5
      %v795 = vsel %vm739, %v793, %v794
      %s796 = scalar_lea.vmem %s1, 4
      %v797 = vld [vmem:[%s796] sm:$0x3]
      %v798 = vunpack.c.l.b16 %v743
      %v799 = vunpack.c.l.b16 %v746
      %v800 = vunpack.c.l.b16 %v750
      %v801 = vunpack.c.l.b16 %v753
      %v802 = vunpack.c.l.b16 %v757
      %v803 = vunpack.c.l.b16 %v760
      %v804 = vunpack.c.l.b16 %v764
      %v805 = vunpack.c.l.b16 %v767
      %v806 = vunpack.c.l.b16 %v771
      %v807 = vunpack.c.l.b16 %v774
      %v808 = vunpack.c.l.b16 %v778
      %v809 = vunpack.c.l.b16 %v781
      %v810 = vunpack.c.l.b16 %v785
      %v811 = vunpack.c.l.b16 %v788
      %v812 = vunpack.c.l.b16 %v792
      %v813 = vunpack.c.l.b16 %v795
      %v814 = vpack.c.b16 %v799, %v798
      %v815 = vpack.c.b16 %v801, %v800
      %v816 = vpack.c.b16 %v803, %v802
      %v817 = vpack.c.b16 %v805, %v804
      %v818 = vpack.c.b16 %v807, %v806
      %v819 = vpack.c.b16 %v809, %v808
      %v820 = vpack.c.b16 %v811, %v810
      %v821 = vpack.c.b16 %v813, %v812
      %v823 = vsel %vm436, %v814, 0
      %v826 = vsel %vm436, %v815, 0
      %v829 = vsel %vm436, %v816, 0
      %v832 = vsel %vm436, %v817, 0
      %v835 = vsel %vm436, %v818, 0
      %v838 = vsel %vm436, %v819, 0
      %v841 = vsel %vm436, %v820, 0
      %v844 = vsel %vm436, %v821, 0
      %v847 = vand.u32 %v797, %v464
      %849 = vmatprep.subr.bf16.mxu0 0
      %850 = vmatpush1.bf16.msra.mxu0 %v847
      %851 = vmatprep.subr.bf16.mxu0 0
      %852 = vmatpush1.bf16.msra.mxu0 0
      %853 = vmatprep.subr.bf16.mxu0 0
      %854 = vmatpush1.bf16.msra.mxu0 0
      %855 = vmatprep.subr.bf16.mxu0 0
      %856 = vmatpush1.bf16.msra.mxu0 0
      %857 = vmatprep.subr.bf16.mxu0 0
      %858 = vmatpush1.bf16.msra.mxu0 0
      %859 = vmatprep.subr.bf16.mxu0 0
      %860 = vmatpush1.bf16.msra.mxu0 0
      %861 = vmatprep.subr.bf16.mxu0 0
      %862 = vmatpush1.bf16.msra.mxu0 0
      %863 = vmatprep.subr.bf16.mxu0 0
      %864 = vmatpush1.bf16.msra.mxu0 0
      %865 = vmatprep.subr.bf16.mxu0 0
      %866 = vmatpush1.bf16.msra.mxu0 0
      %867 = vmatprep.subr.bf16.mxu0 0
      %868 = vmatpush1.bf16.msra.mxu0 0
      %869 = vmatprep.subr.bf16.mxu0 0
      %870 = vmatpush1.bf16.msra.mxu0 0
      %871 = vmatprep.subr.bf16.mxu0 0
      %872 = vmatpush1.bf16.msra.mxu0 0
      %873 = vmatprep.subr.bf16.mxu0 0
      %874 = vmatpush1.bf16.msra.mxu0 0
      %875 = vmatprep.subr.bf16.mxu0 0
      %876 = vmatpush1.bf16.msra.mxu0 0
      %877 = vmatprep.subr.bf16.mxu0 0
      %878 = vmatpush1.bf16.msra.mxu0 0
      %879 = vmatprep.subr.bf16.mxu0 0
      %880 = vmatpush1.bf16.msra.mxu0 0
      %881 = vmatprep.mubr.bf16.mxu0 0
      %882 = vmatmul.mubr.bf16.gmra.mrb[0].mxu0 %v823
      %v883 = vpop.f32.mrb[0].mxu0
      %v884 = vadd.f32 0.0, %v883
      %v885 = vpop.f32.mrb[0].mxu0
      %v886 = vpop.f32.mrb[0].mxu0
      %v887 = vadd.f32 0.0, %v886
      %v888 = vpop.f32.mrb[0].mxu0
      %889 = vmatprep.mubr.bf16.mxu0 0
      %890 = vmatmul.mubr.bf16.gmra.mrb[0].mxu0 %v826
      %v891 = vpop.f32.mrb[0].mxu0
      %v892 = vadd.f32 0.0, %v891
      %v893 = vpop.f32.mrb[0].mxu0
      %v894 = vpop.f32.mrb[0].mxu0
      %v895 = vadd.f32 0.0, %v894
      %v896 = vpop.f32.mrb[0].mxu0
      %897 = vmatprep.mubr.bf16.mxu0 0
      %898 = vmatmul.mubr.bf16.gmra.mrb[0].mxu0 %v829
      %v899 = vpop.f32.mrb[0].mxu0
      %v900 = vadd.f32 0.0, %v899
      %v901 = vpop.f32.mrb[0].mxu0
      %v902 = vpop.f32.mrb[0].mxu0
      %v903 = vadd.f32 0.0, %v902
      %v904 = vpop.f32.mrb[0].mxu0
      %905 = vmatprep.mubr.bf16.mxu0 0
      %906 = vmatmul.mubr.bf16.gmra.mrb[0].mxu0 %v832
      %v907 = vpop.f32.mrb[0].mxu0
      %v908 = vadd.f32 0.0, %v907
      %v909 = vpop.f32.mrb[0].mxu0
      %v910 = vpop.f32.mrb[0].mxu0
      %v911 = vadd.f32 0.0, %v910
      %v912 = vpop.f32.mrb[0].mxu0
      %913 = vmatprep.mubr.bf16.mxu0 0
      %914 = vmatmul.mubr.bf16.gmra.mrb[0].mxu0 %v835
      %v915 = vpop.f32.mrb[0].mxu0
      %v916 = vadd.f32 0.0, %v915
      %v917 = vpop.f32.mrb[0].mxu0
      %v918 = vpop.f32.mrb[0].mxu0
      %v919 = vadd.f32 0.0, %v918
      %v920 = vpop.f32.mrb[0].mxu0
      %921 = vmatprep.mubr.bf16.mxu0 0
      %922 = vmatmul.mubr.bf16.gmra.mrb[0].mxu0 %v838
      %v923 = vpop.f32.mrb[0].mxu0
      %v924 = vadd.f32 0.0, %v923
      %v925 = vpop.f32.mrb[0].mxu0
      %v926 = vpop.f32.mrb[0].mxu0
      %v927 = vadd.f32 0.0, %v926
      %v928 = vpop.f32.mrb[0].mxu0
      %929 = vmatprep.mubr.bf16.mxu0 0
      %930 = vmatmul.mubr.bf16.gmra.mrb[0].mxu0 %v841
      %v931 = vpop.f32.mrb[0].mxu0
      %v932 = vadd.f32 0.0, %v931
      %v933 = vpop.f32.mrb[0].mxu0
      %v934 = vpop.f32.mrb[0].mxu0
      %v935 = vadd.f32 0.0, %v934
      %v936 = vpop.f32.mrb[0].mxu0
      %937 = vmatprep.mubr.bf16.mxu0 0
      %938 = vmatmul.mubr.bf16.gmra.mrb[0].mxu0 %v844
      %v939 = vpop.f32.mrb[0].mxu0
      %v940 = vadd.f32 0.0, %v939
      %v941 = vpop.f32.mrb[0].mxu0
      %v942 = vpop.f32.mrb[0].mxu0
      %v943 = vadd.f32 0.0, %v942
      %v944 = vpop.f32.mrb[0].mxu0
      %945 = vdwg.mxu0
      %v946 = vadd.f32 %v667, %v884
      %v947 = vadd.f32 %v670, %v887
      %v948 = vadd.f32 %v675, %v892
      %v949 = vadd.f32 %v678, %v895
      %v950 = vadd.f32 %v683, %v900
      %v951 = vadd.f32 %v686, %v903
      %v952 = vadd.f32 %v691, %v908
      %v953 = vadd.f32 %v694, %v911
      %v954 = vadd.f32 %v699, %v916
      %v955 = vadd.f32 %v702, %v919
      %v956 = vadd.f32 %v707, %v924
      %v957 = vadd.f32 %v710, %v927
      %v958 = vadd.f32 %v715, %v932
      %v959 = vadd.f32 %v718, %v935
      %v960 = vadd.f32 %v723, %v940
      %v961 = vadd.f32 %v726, %v943
      %s962 = scalar_lea.vmem %s1, 6
      %v963 = vld [vmem:[%s962] sm:$0x3]
      %v966 = vunpack.c.l.b16 %v208
      %v967 = vunpack.c.l.b16 %v209
      %v968 = vpack.c.b16 %v967, %v966
      %v970 = vsel %vm436, %v968, 0
      %v973 = vand.u32 %v963, %v464
      %975 = vmatprep.subr.bf16.mxu0 0
      %976 = vmatpush1.bf16.msra.mxu0 %v973
      %977 = vmatprep.subr.bf16.mxu0 0
      %978 = vmatpush1.bf16.msra.mxu0 0
      %979 = vmatprep.subr.bf16.mxu0 0
      %980 = vmatpush1.bf16.msra.mxu0 0
      %981 = vmatprep.subr.bf16.mxu0 0
      %982 = vmatpush1.bf16.msra.mxu0 0
      %983 = vmatprep.subr.bf16.mxu0 0
      %984 = vmatpush1.bf16.msra.mxu0 0
      %985 = vmatprep.subr.bf16.mxu0 0
      %986 = vmatpush1.bf16.msra.mxu0 0
      %987 = vmatprep.subr.bf16.mxu0 0
      %988 = vmatpush1.bf16.msra.mxu0 0
      %989 = vmatprep.subr.bf16.mxu0 0
      %990 = vmatpush1.bf16.msra.mxu0 0
      %991 = vmatprep.subr.bf16.mxu0 0
      %992 = vmatpush1.bf16.msra.mxu0 0
      %993 = vmatprep.subr.bf16.mxu0 0
      %994 = vmatpush1.bf16.msra.mxu0 0
      %995 = vmatprep.subr.bf16.mxu0 0
      %996 = vmatpush1.bf16.msra.mxu0 0
      %997 = vmatprep.subr.bf16.mxu0 0
      %998 = vmatpush1.bf16.msra.mxu0 0
      %999 = vmatprep.subr.bf16.mxu0 0
      %1000 = vmatpush1.bf16.msra.mxu0 0
      %1001 = vmatprep.subr.bf16.mxu0 0
      %1002 = vmatpush1.bf16.msra.mxu0 0
      %1003 = vmatprep.subr.bf16.mxu0 0
      %1004 = vmatpush1.bf16.msra.mxu0 0
      %1005 = vmatprep.subr.bf16.mxu0 0
      %1006 = vmatpush1.bf16.msra.mxu0 0
      %1007 = vmatprep.mubr.bf16.mxu0 0
      %1008 = vmatmul.mubr.bf16.gmra.mrb[0].mxu0 %v609
      %v1009 = vpop.f32.mrb[0].mxu0
      %v1010 = vadd.f32 0.0, %v1009
      %v1011 = vpop.f32.mrb[0].mxu0
      %v1012 = vpop.f32.mrb[0].mxu0
      %v1013 = vadd.f32 0.0, %v1012
      %v1014 = vpop.f32.mrb[0].mxu0
      %1015 = vmatprep.mubr.bf16.mxu0 0
      %1016 = vmatmul.mubr.bf16.gmra.mrb[0].mxu0 %v612
      %v1017 = vpop.f32.mrb[0].mxu0
      %v1018 = vadd.f32 0.0, %v1017
      %v1019 = vpop.f32.mrb[0].mxu0
      %v1020 = vpop.f32.mrb[0].mxu0
      %v1021 = vadd.f32 0.0, %v1020
      %v1022 = vpop.f32.mrb[0].mxu0
      %1023 = vmatprep.mubr.bf16.mxu0 0
      %1024 = vmatmul.mubr.bf16.gmra.mrb[0].mxu0 %v615
      %v1025 = vpop.f32.mrb[0].mxu0
      %v1026 = vadd.f32 0.0, %v1025
      %v1027 = vpop.f32.mrb[0].mxu0
      %v1028 = vpop.f32.mrb[0].mxu0
      %v1029 = vadd.f32 0.0, %v1028
      %v1030 = vpop.f32.mrb[0].mxu0
      %1031 = vmatprep.mubr.bf16.mxu0 0
      %1032 = vmatmul.mubr.bf16.gmra.mrb[0].mxu0 %v618
      %v1033 = vpop.f32.mrb[0].mxu0
      %v1034 = vadd.f32 0.0, %v1033
      %v1035 = vpop.f32.mrb[0].mxu0
      %v1036 = vpop.f32.mrb[0].mxu0
      %v1037 = vadd.f32 0.0, %v1036
      %v1038 = vpop.f32.mrb[0].mxu0
      %1039 = vmatprep.mubr.bf16.mxu0 0
      %1040 = vmatmul.mubr.bf16.gmra.mrb[0].mxu0 %v621
      %v1041 = vpop.f32.mrb[0].mxu0
      %v1042 = vadd.f32 0.0, %v1041
      %v1043 = vpop.f32.mrb[0].mxu0
      %v1044 = vpop.f32.mrb[0].mxu0
      %v1045 = vadd.f32 0.0, %v1044
      %v1046 = vpop.f32.mrb[0].mxu0
      %1047 = vmatprep.mubr.bf16.mxu0 0
      %1048 = vmatmul.mubr.bf16.gmra.mrb[0].mxu0 %v624
      %v1049 = vpop.f32.mrb[0].mxu0
      %v1050 = vadd.f32 0.0, %v1049
      %v1051 = vpop.f32.mrb[0].mxu0
      %v1052 = vpop.f32.mrb[0].mxu0
      %v1053 = vadd.f32 0.0, %v1052
      %v1054 = vpop.f32.mrb[0].mxu0
      %1055 = vmatprep.mubr.bf16.mxu0 0
      %1056 = vmatmul.mubr.bf16.gmra.mrb[0].mxu0 %v627
      %v1057 = vpop.f32.mrb[0].mxu0
      %v1058 = vadd.f32 0.0, %v1057
      %v1059 = vpop.f32.mrb[0].mxu0
      %v1060 = vpop.f32.mrb[0].mxu0
      %v1061 = vadd.f32 0.0, %v1060
      %v1062 = vpop.f32.mrb[0].mxu0
      %1063 = vmatprep.mubr.bf16.mxu0 0
      %1064 = vmatmul.mubr.bf16.gmra.mrb[0].mxu0 %v970
      %v1065 = vpop.f32.mrb[0].mxu0
      %v1066 = vadd.f32 0.0, %v1065
      %v1067 = vpop.f32.mrb[0].mxu0
      %v1068 = vpop.f32.mrb[0].mxu0
      %v1069 = vadd.f32 0.0, %v1068
      %v1070 = vpop.f32.mrb[0].mxu0
      %1071 = vdwg.mxu0
      %v1072 = vadd.f32 %v946, %v1010
      %v1073 = vadd.f32 %v947, %v1013
      %v1074 = vadd.f32 %v948, %v1018
      %v1075 = vadd.f32 %v949, %v1021
      %v1076 = vadd.f32 %v950, %v1026
      %v1077 = vadd.f32 %v951, %v1029
      %v1078 = vadd.f32 %v952, %v1034
      %v1079 = vadd.f32 %v953, %v1037
      %v1080 = vadd.f32 %v954, %v1042
      %v1081 = vadd.f32 %v955, %v1045
      %v1082 = vadd.f32 %v956, %v1050
      %v1083 = vadd.f32 %v957, %v1053
      %v1084 = vadd.f32 %v958, %v1058
      %v1085 = vadd.f32 %v959, %v1061
      %v1086 = vadd.f32 %v960, %v1066
      %v1087 = vadd.f32 %v961, %v1069
      %v1089 = vshrl.u32 %v208, 16
      %v1091 = vrot.slane %v1089, 4
      %v1092 = vshll.u32 %v208, 16
      %v1094 = vrot.slane %v1092, 5
      %v1095 = vor.u32 %v1091, %v1094
      %v1096 = vrot.slane %v1095, 4
      %v1098 = vshll.u32 %v209, 16
      %v1100 = vrot.slane %v1098, 5
      %v1101 = vsel %vm217, %v1096, %v1100
      %v1102 = vshrl.u32 %v209, 16
      %v1104 = vrot.slane %v1102, 4
      %v1105 = vor.u32 %v1104, %v1100
      %v1106 = vrot.slane %v1105, 4
      %v1108 = vshll.u32 %v210, 16
      %v1110 = vrot.slane %v1108, 5
      %v1111 = vsel %vm217, %v1106, %v1110
      %s1112 = scalar_lea.vmem %s1, 8
      %v1113 = vld [vmem:[%s1112] sm:$0x3]
      %v1114 = vunpack.c.l.b16 %v1101
      %v1115 = vunpack.c.l.b16 %v1111
      %v1116 = vpack.c.b16 %v1115, %v1114
      %v1118 = vsel %vm436, %v1116, 0
      %v1121 = vand.u32 %v1113, %v464
      %1123 = vmatprep.subr.bf16.mxu0 0
      %1124 = vmatpush1.bf16.msra.mxu0 %v1121
      %1125 = vmatprep.subr.bf16.mxu0 0
      %1126 = vmatpush1.bf16.msra.mxu0 0
      %1127 = vmatprep.subr.bf16.mxu0 0
      %1128 = vmatpush1.bf16.msra.mxu0 0
      %1129 = vmatprep.subr.bf16.mxu0 0
      %1130 = vmatpush1.bf16.msra.mxu0 0
      %1131 = vmatprep.subr.bf16.mxu0 0
      %1132 = vmatpush1.bf16.msra.mxu0 0
      %1133 = vmatprep.subr.bf16.mxu0 0
      %1134 = vmatpush1.bf16.msra.mxu0 0
      %1135 = vmatprep.subr.bf16.mxu0 0
      %1136 = vmatpush1.bf16.msra.mxu0 0
      %1137 = vmatprep.subr.bf16.mxu0 0
      %1138 = vmatpush1.bf16.msra.mxu0 0
      %1139 = vmatprep.subr.bf16.mxu0 0
      %1140 = vmatpush1.bf16.msra.mxu0 0
      %1141 = vmatprep.subr.bf16.mxu0 0
      %1142 = vmatpush1.bf16.msra.mxu0 0
      %1143 = vmatprep.subr.bf16.mxu0 0
      %1144 = vmatpush1.bf16.msra.mxu0 0
      %1145 = vmatprep.subr.bf16.mxu0 0
      %1146 = vmatpush1.bf16.msra.mxu0 0
      %1147 = vmatprep.subr.bf16.mxu0 0
      %1148 = vmatpush1.bf16.msra.mxu0 0
      %1149 = vmatprep.subr.bf16.mxu0 0
      %1150 = vmatpush1.bf16.msra.mxu0 0
      %1151 = vmatprep.subr.bf16.mxu0 0
      %1152 = vmatpush1.bf16.msra.mxu0 0
      %1153 = vmatprep.subr.bf16.mxu0 0
      %1154 = vmatpush1.bf16.msra.mxu0 0
      %1155 = vmatprep.mubr.bf16.mxu0 0
      %1156 = vmatmul.mubr.bf16.gmra.mrb[0].mxu0 %v441
      %v1157 = vpop.f32.mrb[0].mxu0
      %v1158 = vadd.f32 0.0, %v1157
      %v1159 = vpop.f32.mrb[0].mxu0
      %v1160 = vpop.f32.mrb[0].mxu0
      %v1161 = vadd.f32 0.0, %v1160
      %v1162 = vpop.f32.mrb[0].mxu0
      %1163 = vmatprep.mubr.bf16.mxu0 0
      %1164 = vmatmul.mubr.bf16.gmra.mrb[0].mxu0 %v444
      %v1165 = vpop.f32.mrb[0].mxu0
      %v1166 = vadd.f32 0.0, %v1165
      %v1167 = vpop.f32.mrb[0].mxu0
      %v1168 = vpop.f32.mrb[0].mxu0
      %v1169 = vadd.f32 0.0, %v1168
      %v1170 = vpop.f32.mrb[0].mxu0
      %1171 = vmatprep.mubr.bf16.mxu0 0
      %1172 = vmatmul.mubr.bf16.gmra.mrb[0].mxu0 %v447
      %v1173 = vpop.f32.mrb[0].mxu0
      %v1174 = vadd.f32 0.0, %v1173
      %v1175 = vpop.f32.mrb[0].mxu0
      %v1176 = vpop.f32.mrb[0].mxu0
      %v1177 = vadd.f32 0.0, %v1176
      %v1178 = vpop.f32.mrb[0].mxu0
      %1179 = vmatprep.mubr.bf16.mxu0 0
      %1180 = vmatmul.mubr.bf16.gmra.mrb[0].mxu0 %v450
      %v1181 = vpop.f32.mrb[0].mxu0
      %v1182 = vadd.f32 0.0, %v1181
      %v1183 = vpop.f32.mrb[0].mxu0
      %v1184 = vpop.f32.mrb[0].mxu0
      %v1185 = vadd.f32 0.0, %v1184
      %v1186 = vpop.f32.mrb[0].mxu0
      %1187 = vmatprep.mubr.bf16.mxu0 0
      %1188 = vmatmul.mubr.bf16.gmra.mrb[0].mxu0 %v453
      %v1189 = vpop.f32.mrb[0].mxu0
      %v1190 = vadd.f32 0.0, %v1189
      %v1191 = vpop.f32.mrb[0].mxu0
      %v1192 = vpop.f32.mrb[0].mxu0
      %v1193 = vadd.f32 0.0, %v1192
      %v1194 = vpop.f32.mrb[0].mxu0
      %1195 = vmatprep.mubr.bf16.mxu0 0
      %1196 = vmatmul.mubr.bf16.gmra.mrb[0].mxu0 %v456
      %v1197 = vpop.f32.mrb[0].mxu0
      %v1198 = vadd.f32 0.0, %v1197
      %v1199 = vpop.f32.mrb[0].mxu0
      %v1200 = vpop.f32.mrb[0].mxu0
      %v1201 = vadd.f32 0.0, %v1200
      %v1202 = vpop.f32.mrb[0].mxu0
      %1203 = vmatprep.mubr.bf16.mxu0 0
      %1204 = vmatmul.mubr.bf16.gmra.mrb[0].mxu0 %v459
      %v1205 = vpop.f32.mrb[0].mxu0
      %v1206 = vadd.f32 0.0, %v1205
      %v1207 = vpop.f32.mrb[0].mxu0
      %v1208 = vpop.f32.mrb[0].mxu0
      %v1209 = vadd.f32 0.0, %v1208
      %v1210 = vpop.f32.mrb[0].mxu0
      %1211 = vmatprep.mubr.bf16.mxu0 0
      %1212 = vmatmul.mubr.bf16.gmra.mrb[0].mxu0 %v1118
      %v1213 = vpop.f32.mrb[0].mxu0
      %v1214 = vadd.f32 0.0, %v1213
      %v1215 = vpop.f32.mrb[0].mxu0
      %v1216 = vpop.f32.mrb[0].mxu0
      %v1217 = vadd.f32 0.0, %v1216
      %v1218 = vpop.f32.mrb[0].mxu0
      %1219 = vdwg.mxu0
      %v1220 = vadd.f32 %v1072, %v1158
      %v1221 = vadd.f32 %v1073, %v1161
      %v1222 = vadd.f32 %v1074, %v1166
      %v1223 = vadd.f32 %v1075, %v1169
      %v1224 = vadd.f32 %v1076, %v1174
      %v1225 = vadd.f32 %v1077, %v1177
      %v1226 = vadd.f32 %v1078, %v1182
      %v1227 = vadd.f32 %v1079, %v1185
      %v1228 = vadd.f32 %v1080, %v1190
      %v1229 = vadd.f32 %v1081, %v1193
      %v1230 = vadd.f32 %v1082, %v1198
      %v1231 = vadd.f32 %v1083, %v1201
      %v1232 = vadd.f32 %v1084, %v1206
      %v1233 = vadd.f32 %v1085, %v1209
      %v1234 = vadd.f32 %v1086, %v1214
      %v1235 = vadd.f32 %v1087, %v1217
      %v1237 = vrot.slane %v208, 5
      %v1238 = vrot.slane %v1237, 4
      %v1239 = vrot.slane %v209, 5
      %v1240 = vsel %vm739, %v1238, %v1239
      %v1241 = vrot.slane %v1239, 4
      %v1242 = vrot.slane %v210, 5
      %v1243 = vsel %vm739, %v1241, %v1242
      %s1244 = scalar_lea.vmem %s1, 10
      %v1245 = vld [vmem:[%s1244] sm:$0x3]
      %v1246 = vunpack.c.l.b16 %v1240
      %v1247 = vunpack.c.l.b16 %v1243
      %v1248 = vpack.c.b16 %v1247, %v1246
      %v1250 = vsel %vm436, %v1248, 0
      %v1253 = vand.u32 %v1245, %v464
      %1255 = vmatprep.subr.bf16.mxu0 0
      %1256 = vmatpush1.bf16.msra.mxu0 %v1253
      %1257 = vmatprep.subr.bf16.mxu0 0
      %1258 = vmatpush1.bf16.msra.mxu0 0
      %1259 = vmatprep.subr.bf16.mxu0 0
      %1260 = vmatpush1.bf16.msra.mxu0 0
      %1261 = vmatprep.subr.bf16.mxu0 0
      %1262 = vmatpush1.bf16.msra.mxu0 0
      %1263 = vmatprep.subr.bf16.mxu0 0
      %1264 = vmatpush1.bf16.msra.mxu0 0
      %1265 = vmatprep.subr.bf16.mxu0 0
      %1266 = vmatpush1.bf16.msra.mxu0 0
      %1267 = vmatprep.subr.bf16.mxu0 0
      %1268 = vmatpush1.bf16.msra.mxu0 0
      %1269 = vmatprep.subr.bf16.mxu0 0
      %1270 = vmatpush1.bf16.msra.mxu0 0
      %1271 = vmatprep.subr.bf16.mxu0 0
      %1272 = vmatpush1.bf16.msra.mxu0 0
      %1273 = vmatprep.subr.bf16.mxu0 0
      %1274 = vmatpush1.bf16.msra.mxu0 0
      %1275 = vmatprep.subr.bf16.mxu0 0
      %1276 = vmatpush1.bf16.msra.mxu0 0
      %1277 = vmatprep.subr.bf16.mxu0 0
      %1278 = vmatpush1.bf16.msra.mxu0 0
      %1279 = vmatprep.subr.bf16.mxu0 0
      %1280 = vmatpush1.bf16.msra.mxu0 0
      %1281 = vmatprep.subr.bf16.mxu0 0
      %1282 = vmatpush1.bf16.msra.mxu0 0
      %1283 = vmatprep.subr.bf16.mxu0 0
      %1284 = vmatpush1.bf16.msra.mxu0 0
      %1285 = vmatprep.subr.bf16.mxu0 0
      %1286 = vmatpush1.bf16.msra.mxu0 0
      %1287 = vmatprep.mubr.bf16.mxu0 0
      %1288 = vmatmul.mubr.bf16.gmra.mrb[0].mxu0 %v826
      %v1289 = vpop.f32.mrb[0].mxu0
      %v1290 = vadd.f32 0.0, %v1289
      %v1291 = vpop.f32.mrb[0].mxu0
      %v1292 = vpop.f32.mrb[0].mxu0
      %v1293 = vadd.f32 0.0, %v1292
      %v1294 = vpop.f32.mrb[0].mxu0
      %1295 = vmatprep.mubr.bf16.mxu0 0
      %1296 = vmatmul.mubr.bf16.gmra.mrb[0].mxu0 %v829
      %v1297 = vpop.f32.mrb[0].mxu0
      %v1298 = vadd.f32 0.0, %v1297
      %v1299 = vpop.f32.mrb[0].mxu0
      %v1300 = vpop.f32.mrb[0].mxu0
      %v1301 = vadd.f32 0.0, %v1300
      %v1302 = vpop.f32.mrb[0].mxu0
      %1303 = vmatprep.mubr.bf16.mxu0 0
      %1304 = vmatmul.mubr.bf16.gmra.mrb[0].mxu0 %v832
      %v1305 = vpop.f32.mrb[0].mxu0
      %v1306 = vadd.f32 0.0, %v1305
      %v1307 = vpop.f32.mrb[0].mxu0
      %v1308 = vpop.f32.mrb[0].mxu0
      %v1309 = vadd.f32 0.0, %v1308
      %v1310 = vpop.f32.mrb[0].mxu0
      %1311 = vmatprep.mubr.bf16.mxu0 0
      %1312 = vmatmul.mubr.bf16.gmra.mrb[0].mxu0 %v835
      %v1313 = vpop.f32.mrb[0].mxu0
      %v1314 = vadd.f32 0.0, %v1313
      %v1315 = vpop.f32.mrb[0].mxu0
      %v1316 = vpop.f32.mrb[0].mxu0
      %v1317 = vadd.f32 0.0, %v1316
      %v1318 = vpop.f32.mrb[0].mxu0
      %1319 = vmatprep.mubr.bf16.mxu0 0
      %1320 = vmatmul.mubr.bf16.gmra.mrb[0].mxu0 %v838
      %v1321 = vpop.f32.mrb[0].mxu0
      %v1322 = vadd.f32 0.0, %v1321
      %v1323 = vpop.f32.mrb[0].mxu0
      %v1324 = vpop.f32.mrb[0].mxu0
      %v1325 = vadd.f32 0.0, %v1324
      %v1326 = vpop.f32.mrb[0].mxu0
      %1327 = vmatprep.mubr.bf16.mxu0 0
      %1328 = vmatmul.mubr.bf16.gmra.mrb[0].mxu0 %v841
      %v1329 = vpop.f32.mrb[0].mxu0
      %v1330 = vadd.f32 0.0, %v1329
      %v1331 = vpop.f32.mrb[0].mxu0
      %v1332 = vpop.f32.mrb[0].mxu0
      %v1333 = vadd.f32 0.0, %v1332
      %v1334 = vpop.f32.mrb[0].mxu0
      %1335 = vmatprep.mubr.bf16.mxu0 0
      %1336 = vmatmul.mubr.bf16.gmra.mrb[0].mxu0 %v844
      %v1337 = vpop.f32.mrb[0].mxu0
      %v1338 = vadd.f32 0.0, %v1337
      %v1339 = vpop.f32.mrb[0].mxu0
      %v1340 = vpop.f32.mrb[0].mxu0
      %v1341 = vadd.f32 0.0, %v1340
      %v1342 = vpop.f32.mrb[0].mxu0
      %1343 = vmatprep.mubr.bf16.mxu0 0
      %1344 = vmatmul.mubr.bf16.gmra.mrb[0].mxu0 %v1250
      %v1345 = vpop.f32.mrb[0].mxu0
      %v1346 = vadd.f32 0.0, %v1345
      %v1347 = vpop.f32.mrb[0].mxu0
      %v1348 = vpop.f32.mrb[0].mxu0
      %v1349 = vadd.f32 0.0, %v1348
      %v1350 = vpop.f32.mrb[0].mxu0
      %1351 = vdwg.mxu0
      %v1352 = vadd.f32 %v1220, %v1290
      %v1353 = vadd.f32 %v1221, %v1293
      %v1354 = vadd.f32 %v1222, %v1298
      %v1355 = vadd.f32 %v1223, %v1301
      %v1356 = vadd.f32 %v1224, %v1306
      %v1357 = vadd.f32 %v1225, %v1309
      %v1358 = vadd.f32 %v1226, %v1314
      %v1359 = vadd.f32 %v1227, %v1317
      %v1360 = vadd.f32 %v1228, %v1322
      %v1361 = vadd.f32 %v1229, %v1325
      %v1362 = vadd.f32 %v1230, %v1330
      %v1363 = vadd.f32 %v1231, %v1333
      %v1364 = vadd.f32 %v1232, %v1338
      %v1365 = vadd.f32 %v1233, %v1341
      %v1366 = vadd.f32 %v1234, %v1346
      %v1367 = vadd.f32 %v1235, %v1349
      %s1368 = scalar_lea.vmem %s1, 12
      %v1369 = vld [vmem:[%s1368] sm:$0x3]
      %v1372 = vunpack.c.l.b16 %v211
      %v1373 = vunpack.c.l.b16 %v212
      %v1374 = vpack.c.b16 %v1373, %v1372
      %v1376 = vsel %vm436, %v1374, 0
      %v1379 = vand.u32 %v1369, %v464
      %1381 = vmatprep.subr.bf16.mxu0 0
      %1382 = vmatpush1.bf16.msra.mxu0 %v1379
      %1383 = vmatprep.subr.bf16.mxu0 0
      %1384 = vmatpush1.bf16.msra.mxu0 0
      %1385 = vmatprep.subr.bf16.mxu0 0
      %1386 = vmatpush1.bf16.msra.mxu0 0
      %1387 = vmatprep.subr.bf16.mxu0 0
      %1388 = vmatpush1.bf16.msra.mxu0 0
      %1389 = vmatprep.subr.bf16.mxu0 0
      %1390 = vmatpush1.bf16.msra.mxu0 0
      %1391 = vmatprep.subr.bf16.mxu0 0
      %1392 = vmatpush1.bf16.msra.mxu0 0
      %1393 = vmatprep.subr.bf16.mxu0 0
      %1394 = vmatpush1.bf16.msra.mxu0 0
      %1395 = vmatprep.subr.bf16.mxu0 0
      %1396 = vmatpush1.bf16.msra.mxu0 0
      %1397 = vmatprep.subr.bf16.mxu0 0
      %1398 = vmatpush1.bf16.msra.mxu0 0
      %1399 = vmatprep.subr.bf16.mxu0 0
      %1400 = vmatpush1.bf16.msra.mxu0 0
      %1401 = vmatprep.subr.bf16.mxu0 0
      %1402 = vmatpush1.bf16.msra.mxu0 0
      %1403 = vmatprep.subr.bf16.mxu0 0
      %1404 = vmatpush1.bf16.msra.mxu0 0
      %1405 = vmatprep.subr.bf16.mxu0 0
      %1406 = vmatpush1.bf16.msra.mxu0 0
      %1407 = vmatprep.subr.bf16.mxu0 0
      %1408 = vmatpush1.bf16.msra.mxu0 0
      %1409 = vmatprep.subr.bf16.mxu0 0
      %1410 = vmatpush1.bf16.msra.mxu0 0
      %1411 = vmatprep.subr.bf16.mxu0 0
      %1412 = vmatpush1.bf16.msra.mxu0 0
      %1413 = vmatprep.mubr.bf16.mxu0 0
      %1414 = vmatmul.mubr.bf16.gmra.mrb[0].mxu0 %v612
      %v1415 = vpop.f32.mrb[0].mxu0
      %v1416 = vadd.f32 0.0, %v1415
      %v1417 = vpop.f32.mrb[0].mxu0
      %v1418 = vpop.f32.mrb[0].mxu0
      %v1419 = vadd.f32 0.0, %v1418
      %v1420 = vpop.f32.mrb[0].mxu0
      %1421 = vmatprep.mubr.bf16.mxu0 0
      %1422 = vmatmul.mubr.bf16.gmra.mrb[0].mxu0 %v615
      %v1423 = vpop.f32.mrb[0].mxu0
      %v1424 = vadd.f32 0.0, %v1423
      %v1425 = vpop.f32.mrb[0].mxu0
      %v1426 = vpop.f32.mrb[0].mxu0
      %v1427 = vadd.f32 0.0, %v1426
      %v1428 = vpop.f32.mrb[0].mxu0
      %1429 = vmatprep.mubr.bf16.mxu0 0
      %1430 = vmatmul.mubr.bf16.gmra.mrb[0].mxu0 %v618
      %v1431 = vpop.f32.mrb[0].mxu0
      %v1432 = vadd.f32 0.0, %v1431
      %v1433 = vpop.f32.mrb[0].mxu0
      %v1434 = vpop.f32.mrb[0].mxu0
      %v1435 = vadd.f32 0.0, %v1434
      %v1436 = vpop.f32.mrb[0].mxu0
      %1437 = vmatprep.mubr.bf16.mxu0 0
      %1438 = vmatmul.mubr.bf16.gmra.mrb[0].mxu0 %v621
      %v1439 = vpop.f32.mrb[0].mxu0
      %v1440 = vadd.f32 0.0, %v1439
      %v1441 = vpop.f32.mrb[0].mxu0
      %v1442 = vpop.f32.mrb[0].mxu0
      %v1443 = vadd.f32 0.0, %v1442
      %v1444 = vpop.f32.mrb[0].mxu0
      %1445 = vmatprep.mubr.bf16.mxu0 0
      %1446 = vmatmul.mubr.bf16.gmra.mrb[0].mxu0 %v624
      %v1447 = vpop.f32.mrb[0].mxu0
      %v1448 = vadd.f32 0.0, %v1447
      %v1449 = vpop.f32.mrb[0].mxu0
      %v1450 = vpop.f32.mrb[0].mxu0
      %v1451 = vadd.f32 0.0, %v1450
      %v1452 = vpop.f32.mrb[0].mxu0
      %1453 = vmatprep.mubr.bf16.mxu0 0
      %1454 = vmatmul.mubr.bf16.gmra.mrb[0].mxu0 %v627
      %v1455 = vpop.f32.mrb[0].mxu0
      %v1456 = vadd.f32 0.0, %v1455
      %v1457 = vpop.f32.mrb[0].mxu0
      %v1458 = vpop.f32.mrb[0].mxu0
      %v1459 = vadd.f32 0.0, %v1458
      %v1460 = vpop.f32.mrb[0].mxu0
      %1461 = vmatprep.mubr.bf16.mxu0 0
      %1462 = vmatmul.mubr.bf16.gmra.mrb[0].mxu0 %v970
      %v1463 = vpop.f32.mrb[0].mxu0
      %v1464 = vadd.f32 0.0, %v1463
      %v1465 = vpop.f32.mrb[0].mxu0
      %v1466 = vpop.f32.mrb[0].mxu0
      %v1467 = vadd.f32 0.0, %v1466
      %v1468 = vpop.f32.mrb[0].mxu0
      %1469 = vmatprep.mubr.bf16.mxu0 0
      %1470 = vmatmul.mubr.bf16.gmra.mrb[0].mxu0 %v1376
      %v1471 = vpop.f32.mrb[0].mxu0
      %v1472 = vadd.f32 0.0, %v1471
      %v1473 = vpop.f32.mrb[0].mxu0
      %v1474 = vpop.f32.mrb[0].mxu0
      %v1475 = vadd.f32 0.0, %v1474
      %v1476 = vpop.f32.mrb[0].mxu0
      %1477 = vdwg.mxu0
      %v1478 = vadd.f32 %v1352, %v1416
      %v1479 = vadd.f32 %v1353, %v1419
      %v1480 = vadd.f32 %v1354, %v1424
      %v1481 = vadd.f32 %v1355, %v1427
      %v1482 = vadd.f32 %v1356, %v1432
      %v1483 = vadd.f32 %v1357, %v1435
      %v1484 = vadd.f32 %v1358, %v1440
      %v1485 = vadd.f32 %v1359, %v1443
      %v1486 = vadd.f32 %v1360, %v1448
      %v1487 = vadd.f32 %v1361, %v1451
      %v1488 = vadd.f32 %v1362, %v1456
      %v1489 = vadd.f32 %v1363, %v1459
      %v1490 = vadd.f32 %v1364, %v1464
      %v1491 = vadd.f32 %v1365, %v1467
      %v1492 = vadd.f32 %v1366, %v1472
      %v1493 = vadd.f32 %v1367, %v1475
      %v1495 = vshrl.u32 %v211, 16
      %v1497 = vrot.slane %v1495, 4
      %v1498 = vshll.u32 %v211, 16
      %v1500 = vrot.slane %v1498, 5
      %v1501 = vor.u32 %v1497, %v1500
      %v1502 = vrot.slane %v1501, 4
      %v1504 = vshll.u32 %v212, 16
      %v1506 = vrot.slane %v1504, 5
      %v1507 = vsel %vm217, %v1502, %v1506
      %v1508 = vshrl.u32 %v212, 16
      %v1510 = vrot.slane %v1508, 4
      %v1511 = vor.u32 %v1510, %v1506
      %v1512 = vrot.slane %v1511, 4
      %v1514 = vshll.u32 %v213, 16
      %v1516 = vrot.slane %v1514, 5
      %v1517 = vsel %vm217, %v1512, %v1516
      %s1518 = scalar_lea.vmem %s1, 14
      %v1519 = vld [vmem:[%s1518] sm:$0x3]
      %v1520 = vunpack.c.l.b16 %v1507
      %v1521 = vunpack.c.l.b16 %v1517
      %v1522 = vpack.c.b16 %v1521, %v1520
      %v1524 = vsel %vm436, %v1522, 0
      %v1527 = vand.u32 %v1519, %v464
      %1529 = vmatprep.subr.bf16.mxu0 0
      %1530 = vmatpush1.bf16.msra.mxu0 %v1527
      %1531 = vmatprep.subr.bf16.mxu0 0
      %1532 = vmatpush1.bf16.msra.mxu0 0
      %1533 = vmatprep.subr.bf16.mxu0 0
      %1534 = vmatpush1.bf16.msra.mxu0 0
      %1535 = vmatprep.subr.bf16.mxu0 0
      %1536 = vmatpush1.bf16.msra.mxu0 0
      %1537 = vmatprep.subr.bf16.mxu0 0
      %1538 = vmatpush1.bf16.msra.mxu0 0
      %1539 = vmatprep.subr.bf16.mxu0 0
      %1540 = vmatpush1.bf16.msra.mxu0 0
      %1541 = vmatprep.subr.bf16.mxu0 0
      %1542 = vmatpush1.bf16.msra.mxu0 0
      %1543 = vmatprep.subr.bf16.mxu0 0
      %1544 = vmatpush1.bf16.msra.mxu0 0
      %1545 = vmatprep.subr.bf16.mxu0 0
      %1546 = vmatpush1.bf16.msra.mxu0 0
      %1547 = vmatprep.subr.bf16.mxu0 0
      %1548 = vmatpush1.bf16.msra.mxu0 0
      %1549 = vmatprep.subr.bf16.mxu0 0
      %1550 = vmatpush1.bf16.msra.mxu0 0
      %1551 = vmatprep.subr.bf16.mxu0 0
      %1552 = vmatpush1.bf16.msra.mxu0 0
      %1553 = vmatprep.subr.bf16.mxu0 0
      %1554 = vmatpush1.bf16.msra.mxu0 0
      %1555 = vmatprep.subr.bf16.mxu0 0
      %1556 = vmatpush1.bf16.msra.mxu0 0
      %1557 = vmatprep.subr.bf16.mxu0 0
      %1558 = vmatpush1.bf16.msra.mxu0 0
      %1559 = vmatprep.subr.bf16.mxu0 0
      %1560 = vmatpush1.bf16.msra.mxu0 0
      %1561 = vmatprep.mubr.bf16.mxu0 0
      %1562 = vmatmul.mubr.bf16.gmra.mrb[0].mxu0 %v444
      %v1563 = vpop.f32.mrb[0].mxu0
      %v1564 = vadd.f32 0.0, %v1563
      %v1565 = vpop.f32.mrb[0].mxu0
      %v1566 = vpop.f32.mrb[0].mxu0
      %v1567 = vadd.f32 0.0, %v1566
      %v1568 = vpop.f32.mrb[0].mxu0
      %1569 = vmatprep.mubr.bf16.mxu0 0
      %1570 = vmatmul.mubr.bf16.gmra.mrb[0].mxu0 %v447
      %v1571 = vpop.f32.mrb[0].mxu0
      %v1572 = vadd.f32 0.0, %v1571
      %v1573 = vpop.f32.mrb[0].mxu0
      %v1574 = vpop.f32.mrb[0].mxu0
      %v1575 = vadd.f32 0.0, %v1574
      %v1576 = vpop.f32.mrb[0].mxu0
      %1577 = vmatprep.mubr.bf16.mxu0 0
      %1578 = vmatmul.mubr.bf16.gmra.mrb[0].mxu0 %v450
      %v1579 = vpop.f32.mrb[0].mxu0
      %v1580 = vadd.f32 0.0, %v1579
      %v1581 = vpop.f32.mrb[0].mxu0
      %v1582 = vpop.f32.mrb[0].mxu0
      %v1583 = vadd.f32 0.0, %v1582
      %v1584 = vpop.f32.mrb[0].mxu0
      %1585 = vmatprep.mubr.bf16.mxu0 0
      %1586 = vmatmul.mubr.bf16.gmra.mrb[0].mxu0 %v453
      %v1587 = vpop.f32.mrb[0].mxu0
      %v1588 = vadd.f32 0.0, %v1587
      %v1589 = vpop.f32.mrb[0].mxu0
      %v1590 = vpop.f32.mrb[0].mxu0
      %v1591 = vadd.f32 0.0, %v1590
      %v1592 = vpop.f32.mrb[0].mxu0
      %1593 = vmatprep.mubr.bf16.mxu0 0
      %1594 = vmatmul.mubr.bf16.gmra.mrb[0].mxu0 %v456
      %v1595 = vpop.f32.mrb[0].mxu0
      %v1596 = vadd.f32 0.0, %v1595
      %v1597 = vpop.f32.mrb[0].mxu0
      %v1598 = vpop.f32.mrb[0].mxu0
      %v1599 = vadd.f32 0.0, %v1598
      %v1600 = vpop.f32.mrb[0].mxu0
      %1601 = vmatprep.mubr.bf16.mxu0 0
      %1602 = vmatmul.mubr.bf16.gmra.mrb[0].mxu0 %v459
      %v1603 = vpop.f32.mrb[0].mxu0
      %v1604 = vadd.f32 0.0, %v1603
      %v1605 = vpop.f32.mrb[0].mxu0
      %v1606 = vpop.f32.mrb[0].mxu0
      %v1607 = vadd.f32 0.0, %v1606
      %v1608 = vpop.f32.mrb[0].mxu0
      %1609 = vmatprep.mubr.bf16.mxu0 0
      %1610 = vmatmul.mubr.bf16.gmra.mrb[0].mxu0 %v1118
      %v1611 = vpop.f32.mrb[0].mxu0
      %v1612 = vadd.f32 0.0, %v1611
      %v1613 = vpop.f32.mrb[0].mxu0
      %v1614 = vpop.f32.mrb[0].mxu0
      %v1615 = vadd.f32 0.0, %v1614
      %v1616 = vpop.f32.mrb[0].mxu0
      %1617 = vmatprep.mubr.bf16.mxu0 0
      %1618 = vmatmul.mubr.bf16.gmra.mrb[0].mxu0 %v1524
      %v1619 = vpop.f32.mrb[0].mxu0
      %v1620 = vadd.f32 0.0, %v1619
      %v1621 = vpop.f32.mrb[0].mxu0
      %v1622 = vpop.f32.mrb[0].mxu0
      %v1623 = vadd.f32 0.0, %v1622
      %v1624 = vpop.f32.mrb[0].mxu0
      %1625 = vdwg.mxu0
      %v1626 = vadd.f32 %v1478, %v1564
      %v1627 = vadd.f32 %v1479, %v1567
      %v1628 = vadd.f32 %v1480, %v1572
      %v1629 = vadd.f32 %v1481, %v1575
      %v1630 = vadd.f32 %v1482, %v1580
      %v1631 = vadd.f32 %v1483, %v1583
      %v1632 = vadd.f32 %v1484, %v1588
      %v1633 = vadd.f32 %v1485, %v1591
      %v1634 = vadd.f32 %v1486, %v1596
      %v1635 = vadd.f32 %v1487, %v1599
      %v1636 = vadd.f32 %v1488, %v1604
      %v1637 = vadd.f32 %v1489, %v1607
      %v1638 = vadd.f32 %v1490, %v1612
      %v1639 = vadd.f32 %v1491, %v1615
      %v1640 = vadd.f32 %v1492, %v1620
      %v1641 = vadd.f32 %v1493, %v1623
      %v1643 = vrot.slane %v211, 5
      %v1644 = vrot.slane %v1643, 4
      %v1645 = vrot.slane %v212, 5
      %v1646 = vsel %vm739, %v1644, %v1645
      %v1647 = vrot.slane %v1645, 4
      %v1648 = vrot.slane %v213, 5
      %v1649 = vsel %vm739, %v1647, %v1648
      %s1650 = scalar_lea.vmem %s1, 16
      %v1651 = vld [vmem:[%s1650] sm:$0x3]
      %v1652 = vunpack.c.l.b16 %v1646
      %v1653 = vunpack.c.l.b16 %v1649
      %v1654 = vpack.c.b16 %v1653, %v1652
      %v1656 = vsel %vm436, %v1654, 0
      %v1659 = vand.u32 %v1651, %v464
      %1661 = vmatprep.subr.bf16.mxu0 0
      %1662 = vmatpush1.bf16.msra.mxu0 %v1659
      %1663 = vmatprep.subr.bf16.mxu0 0
      %1664 = vmatpush1.bf16.msra.mxu0 0
      %1665 = vmatprep.subr.bf16.mxu0 0
      %1666 = vmatpush1.bf16.msra.mxu0 0
      %1667 = vmatprep.subr.bf16.mxu0 0
      %1668 = vmatpush1.bf16.msra.mxu0 0
      %1669 = vmatprep.subr.bf16.mxu0 0
      %1670 = vmatpush1.bf16.msra.mxu0 0
      %1671 = vmatprep.subr.bf16.mxu0 0
      %1672 = vmatpush1.bf16.msra.mxu0 0
      %1673 = vmatprep.subr.bf16.mxu0 0
      %1674 = vmatpush1.bf16.msra.mxu0 0
      %1675 = vmatprep.subr.bf16.mxu0 0
      %1676 = vmatpush1.bf16.msra.mxu0 0
      %1677 = vmatprep.subr.bf16.mxu0 0
      %1678 = vmatpush1.bf16.msra.mxu0 0
      %1679 = vmatprep.subr.bf16.mxu0 0
      %1680 = vmatpush1.bf16.msra.mxu0 0
      %1681 = vmatprep.subr.bf16.mxu0 0
      %1682 = vmatpush1.bf16.msra.mxu0 0
      %1683 = vmatprep.subr.bf16.mxu0 0
      %1684 = vmatpush1.bf16.msra.mxu0 0
      %1685 = vmatprep.subr.bf16.mxu0 0
      %1686 = vmatpush1.bf16.msra.mxu0 0
      %1687 = vmatprep.subr.bf16.mxu0 0
      %1688 = vmatpush1.bf16.msra.mxu0 0
      %1689 = vmatprep.subr.bf16.mxu0 0
      %1690 = vmatpush1.bf16.msra.mxu0 0
      %1691 = vmatprep.subr.bf16.mxu0 0
      %1692 = vmatpush1.bf16.msra.mxu0 0
      %1693 = vmatprep.mubr.bf16.mxu0 0
      %1694 = vmatmul.mubr.bf16.gmra.mrb[0].mxu0 %v829
      %v1695 = vpop.f32.mrb[0].mxu0
      %v1696 = vadd.f32 0.0, %v1695
      %v1697 = vpop.f32.mrb[0].mxu0
      %v1698 = vpop.f32.mrb[0].mxu0
      %v1699 = vadd.f32 0.0, %v1698
      %v1700 = vpop.f32.mrb[0].mxu0
      %1701 = vmatprep.mubr.bf16.mxu0 0
      %1702 = vmatmul.mubr.bf16.gmra.mrb[0].mxu0 %v832
      %v1703 = vpop.f32.mrb[0].mxu0
      %v1704 = vadd.f32 0.0, %v1703
      %v1705 = vpop.f32.mrb[0].mxu0
      %v1706 = vpop.f32.mrb[0].mxu0
      %v1707 = vadd.f32 0.0, %v1706
      %v1708 = vpop.f32.mrb[0].mxu0
      %1709 = vmatprep.mubr.bf16.mxu0 0
      %1710 = vmatmul.mubr.bf16.gmra.mrb[0].mxu0 %v835
      %v1711 = vpop.f32.mrb[0].mxu0
      %v1712 = vadd.f32 0.0, %v1711
      %v1713 = vpop.f32.mrb[0].mxu0
      %v1714 = vpop.f32.mrb[0].mxu0
      %v1715 = vadd.f32 0.0, %v1714
      %v1716 = vpop.f32.mrb[0].mxu0
      %1717 = vmatprep.mubr.bf16.mxu0 0
      %1718 = vmatmul.mubr.bf16.gmra.mrb[0].mxu0 %v838
      %v1719 = vpop.f32.mrb[0].mxu0
      %v1720 = vadd.f32 0.0, %v1719
      %v1721 = vpop.f32.mrb[0].mxu0
      %v1722 = vpop.f32.mrb[0].mxu0
      %v1723 = vadd.f32 0.0, %v1722
      %v1724 = vpop.f32.mrb[0].mxu0
      %1725 = vmatprep.mubr.bf16.mxu0 0
      %1726 = vmatmul.mubr.bf16.gmra.mrb[0].mxu0 %v841
      %v1727 = vpop.f32.mrb[0].mxu0
      %v1728 = vadd.f32 0.0, %v1727
      %v1729 = vpop.f32.mrb[0].mxu0
      %v1730 = vpop.f32.mrb[0].mxu0
      %v1731 = vadd.f32 0.0, %v1730
      %v1732 = vpop.f32.mrb[0].mxu0
      %1733 = vmatprep.mubr.bf16.mxu0 0
      %1734 = vmatmul.mubr.bf16.gmra.mrb[0].mxu0 %v844
      %v1735 = vpop.f32.mrb[0].mxu0
      %v1736 = vadd.f32 0.0, %v1735
      %v1737 = vpop.f32.mrb[0].mxu0
      %v1738 = vpop.f32.mrb[0].mxu0
      %v1739 = vadd.f32 0.0, %v1738
      %v1740 = vpop.f32.mrb[0].mxu0
      %1741 = vmatprep.mubr.bf16.mxu0 0
      %1742 = vmatmul.mubr.bf16.gmra.mrb[0].mxu0 %v1250
      %v1743 = vpop.f32.mrb[0].mxu0
      %v1744 = vadd.f32 0.0, %v1743
      %v1745 = vpop.f32.mrb[0].mxu0
      %v1746 = vpop.f32.mrb[0].mxu0
      %v1747 = vadd.f32 0.0, %v1746
      %v1748 = vpop.f32.mrb[0].mxu0
      %1749 = vmatprep.mubr.bf16.mxu0 0
      %1750 = vmatmul.mubr.bf16.gmra.mrb[0].mxu0 %v1656
      %v1751 = vpop.f32.mrb[0].mxu0
      %v1752 = vadd.f32 0.0, %v1751
      %v1753 = vpop.f32.mrb[0].mxu0
      %v1754 = vpop.f32.mrb[0].mxu0
      %v1755 = vadd.f32 0.0, %v1754
      %v1756 = vpop.f32.mrb[0].mxu0
      %1757 = vdwg.mxu0
      %v1758 = vadd.f32 %v1626, %v1696
      %v1759 = vadd.f32 %v1627, %v1699
      %v1760 = vadd.f32 %v1628, %v1704
      %v1761 = vadd.f32 %v1629, %v1707
      %v1762 = vadd.f32 %v1630, %v1712
      %v1763 = vadd.f32 %v1631, %v1715
      %v1764 = vadd.f32 %v1632, %v1720
      %v1765 = vadd.f32 %v1633, %v1723
      %v1766 = vadd.f32 %v1634, %v1728
      %v1767 = vadd.f32 %v1635, %v1731
      %v1768 = vadd.f32 %v1636, %v1736
      %v1769 = vadd.f32 %v1637, %v1739
      %v1770 = vadd.f32 %v1638, %v1744
      %v1771 = vadd.f32 %v1639, %v1747
      %v1772 = vadd.f32 %v1640, %v1752
      %v1773 = vadd.f32 %v1641, %v1755
      %v1774 = vpack.c.bf16 %v1759, %v1758
      %v1775 = vpack.c.bf16 %v1761, %v1760
      %v1776 = vpack.c.bf16 %v1763, %v1762
      %v1777 = vpack.c.bf16 %v1765, %v1764
      %v1778 = vpack.c.bf16 %v1767, %v1766
      %v1779 = vpack.c.bf16 %v1769, %v1768
      %v1780 = vpack.c.bf16 %v1771, %v1770
      %v1781 = vpack.c.bf16 %v1773, %v1772
      %v1790 = vunpack.c.l.b16 %v1774
      %v1791 = vunpack.c.h.b16 %v1774
      %v1792 = vunpack.c.l.b16 %v1775
      %v1793 = vunpack.c.h.b16 %v1775
      %v1794 = vunpack.c.l.b16 %v1776
      %v1795 = vunpack.c.h.b16 %v1776
      %v1796 = vunpack.c.l.b16 %v1777
      %v1797 = vunpack.c.h.b16 %v1777
      %v1798 = vunpack.c.l.b16 %v1778
      %v1799 = vunpack.c.h.b16 %v1778
      %v1800 = vunpack.c.l.b16 %v1779
      %v1801 = vunpack.c.h.b16 %v1779
      %v1802 = vunpack.c.l.b16 %v1780
      %v1803 = vunpack.c.h.b16 %v1780
      %v1804 = vunpack.c.l.b16 %v1781
      %v1805 = vunpack.c.h.b16 %v1781
      %v1806 = vpack.c.b16 %v1790, %v1790
      %v1807 = vpack.c.b16 %v1791, %v1791
      %v1808 = vpack.c.b16 %v1792, %v1792
      %v1809 = vpack.c.b16 %v1793, %v1793
      %v1810 = vpack.c.b16 %v1794, %v1794
      %v1811 = vpack.c.b16 %v1795, %v1795
      %v1812 = vpack.c.b16 %v1796, %v1796
      %v1813 = vpack.c.b16 %v1797, %v1797
      %v1814 = vpack.c.b16 %v1798, %v1798
      %v1815 = vpack.c.b16 %v1799, %v1799
      %v1816 = vpack.c.b16 %v1800, %v1800
      %v1817 = vpack.c.b16 %v1801, %v1801
      %v1818 = vpack.c.b16 %v1802, %v1802
      %v1819 = vpack.c.b16 %v1803, %v1803
      %v1820 = vpack.c.b16 %v1804, %v1804
      %v1821 = vpack.c.b16 %v1805, %v1805
      %vm1838 = vcmask 519168
      %1839 = vst.msk [vmem:[%s181] sm:$0xf] %vm1838, %v1806
      %1840 = vst.msk [vmem:[%s181 + $0x4] sm:$0xf] %vm1838, %v1807
      %1841 = vst.msk [vmem:[%s181 + $0x8] sm:$0xf] %vm1838, %v1808
      %1842 = vst.msk [vmem:[%s181 + $0xc] sm:$0xf] %vm1838, %v1809
      %1843 = vst.msk [vmem:[%s181 + $0x10] sm:$0xf] %vm1838, %v1810
      %1844 = vst.msk [vmem:[%s181 + $0x14] sm:$0xf] %vm1838, %v1811
      %1845 = vst.msk [vmem:[%s181 + $0x18] sm:$0xf] %vm1838, %v1812
      %1846 = vst.msk [vmem:[%s181 + $0x1c] sm:$0xf] %vm1838, %v1813
      %1847 = vst.msk [vmem:[%s181 + $0x20] sm:$0xf] %vm1838, %v1814
      %1848 = vst.msk [vmem:[%s181 + $0x24] sm:$0xf] %vm1838, %v1815
      %1849 = vst.msk [vmem:[%s181 + $0x28] sm:$0xf] %vm1838, %v1816
      %1850 = vst.msk [vmem:[%s181 + $0x2c] sm:$0xf] %vm1838, %v1817
      %1851 = vst.msk [vmem:[%s181 + $0x30] sm:$0xf] %vm1838, %v1818
      %1852 = vst.msk [vmem:[%s181 + $0x34] sm:$0xf] %vm1838, %v1819
      %1853 = vst.msk [vmem:[%s181 + $0x38] sm:$0xf] %vm1838, %v1820
      %1854 = vst.msk [vmem:[%s181 + $0x3c] sm:$0xf] %vm1838, %v1821
      %s1855 = smul.u32 8, %s18
      %p1856 = scmp.lt.s32.totalorder %s17, 1
      %s1857 = scalar_select %p1856, %s17, 1
      %p1858 = scmp.lt.s32.totalorder %s1855, 15
      %s1859 = scalar_select %p1858, %s1855, 15
      %s1860 = smul.addr %s1859, 2
      %s1861 = smul.addr %s1857, 32
      %s1862 = sadd.s32 %s1860, %s1861
      %s1863 = smul.addr %s1862, 4
      %s1864 = scalar_lea.vmem %s2, %s1863
      // Predicated region
      $region29: #{local_pathway_forward.21} parent=27 // pred_check
        %p1865 = pneg %p94
      $region30: #{local_pathway_forward.21} parent=27 // pred_check_branch
        %1867 = sbr.rel (%p1865) target = $region32
      $region31: #{local_pathway_forward.21} parent=27 // pred_region
        %s1868 = smul.u32 8, %s18
      $region32: #{local_pathway_forward.21} parent=27 // pred_fallthru
        _
    $region28: #{local_pathway_forward.21} parent=5 // pred_fallthru
      _
    %p1869 = scmp.le.s32.totalorder 2, %s8
    // Predicated region
    $region33: #{local_pathway_forward.21} parent=5 // pred_check
      %p1870 = pneg %p1869
    $region34: #{local_pathway_forward.21} parent=5 // pred_check_branch
      %1872 = sbr.rel (%p1870) target = $region36
    $region35: #{local_pathway_forward.21} parent=5 // pred_region
      %s1873 = ssub.s32 %s8, 2
      // Predicated region
      $region37: #{local_pathway_forward.21} parent=35 // pred_check
        %p1874 = pneg %p100
      $region38: #{local_pathway_forward.21} parent=35 // pred_check_branch
        %1876 = sbr.rel (%p1874) target = $region40
      $region39: #{local_pathway_forward.21} parent=35 // pred_region
        %s1877 = smul.u32 8, %s20
        %p1878 = scmp.lt.s32.totalorder %s19, 1
        %s1879 = scalar_select %p1878, %s19, 1
        %p1880 = scmp.lt.s32.totalorder %s1877, 15
        %s1881 = scalar_select %p1880, %s1877, 15
        %s1882 = smul.addr %s1881, 2
        %s1883 = smul.addr %s1879, 32
        %s1884 = sadd.s32 %s1882, %s1883
        %s1885 = smul.addr %s1884, 4
        %s1886 = scalar_lea.vmem %s2, %s1885
      $region40: #{local_pathway_forward.21} parent=35 // pred_fallthru
        _
    $region36: #{local_pathway_forward.21} parent=5 // pred_fallthru
      _
  $region6: #{local_pathway_forward.21} parent=0 // loop_footer
    %s12 = sadd.s32 1, %s8
  $region7: #{local_pathway_forward.21} parent=0 // loop_footer_branch
    %7 = sbr.rel target = $region3
  $region8: #{local_pathway_forward.21} parent=0 // loop_exit
    _

// kernel: local_pathway_forward.24
$region0: #{local_pathway_forward.24}
  #allocation0 [shape = 'u32[]', space=smem, size = 0x4, offset = 0x4, fixed_abs, tag = 'smem constant byte address 0x4 - core index']
  #allocation1 [shape = 'u32[144,128]{1,0:T(1,128)}', space=vmem, size = 0x12000, scoped, tag = 'internal scratch']
  %s0 = inlined_call_operand.vmem [shape: bf16[2,16,16,64], index: 0, kind: input, shape index: {}]
  %s1 = inlined_call_operand.vmem [shape: f32[2,2,64], index: 1, kind: input, shape index: {}]
  %s2 = inlined_call_operand.vmem [shape: bf16[2,16,16,64], index: 2, kind: input, shape index: {}]
  %s3 = inlined_call_operand.vmem [shape: bf16[2,16,16,64], index: 3, kind: output, shape index: {}]
  %s4 = sld [smem:[#allocation0]]
  $region45: #{local_pathway_forward.24} parent=0
    _
  %s6 = ssub.s32 1, %s4
  %s7 = scalar_select 0, %s6, %s4
  loop: start=0, step=1, limit=6
  $region2: #{local_pathway_forward.24} parent=0 // loop_pre_header
    _
  $region3: #{local_pathway_forward.24} parent=0 // loop_header
    %s9 = sphi 0, %s13
    %p10 = scmp.ge.s32.totalorder %s9, 6
    %s16 = sphi 0, %s28
    %s17 = sphi 0, %s24
    %s18 = sphi 0, %s16
    %s19 = sphi 0, %s17
    %s20 = sphi 0, %s18
    %s21 = sphi 0, %s19
    %s33 = sphi 0, %s35
    %s36 = sphi 0, %s33
    %s37 = sphi 0, %s36
    %s53 = sphi 0, %s37
    %s59 = sphi 0, %s61
    %s62 = sphi 0, %s59
    %s63 = sphi 0, %s62
    %s79 = sphi 0, %s63
    %s87 = sphi 0, %s89
    %s90 = sphi 0, %s87
    %s91 = sphi 0, %s90
    %s107 = sphi 0, %s91
    %s115 = sphi 0, %s117
    %s118 = sphi 0, %s115
    %s119 = sphi 0, %s118
    %s135 = sphi 0, %s119
  $region4: #{local_pathway_forward.24} parent=0 // loop_header_branch
    %12 = sbr.rel (%p10) target = $region8
  $region5: #{local_pathway_forward.24} parent=0 // loop_body
    %s14 = ssub.s32 %s9, 1
    %s15 = ssub.s32 %s9, 2
    %s22 = sadd.s32 1, %s17
    %p23 = scmp.ge.s32.totalorder %s22, 2
    %s24 = scalar_select %p23, 0, %s22
    %s25 = sadd.s32 1, %s16
    %s26 = scalar_select %p23, %s25, %s16
    %p27 = scmp.ge.s32.totalorder %s26, 2
    %s28 = scalar_select %p27, 0, %s26
    %s29 = ssub.s32 %s16, %s28
    %s30 = ssub.s32 %s17, %s24
    %s31 = sor.u32 %s29, %s30
    %p32 = scmp.eq.s32.totalorder %s31, 0
    %s34 = sadd.s32 %s33, 1
    %s35 = scalar_select %p32, %s33, %s34
    %p38 = pneg %p32
    %p39 = scmp.eq.s32.totalorder %s9, 3
    %p40 = por %p38, %p39
    %p41 = scmp.ne.s32.totalorder %s33, %s36
    %p42 = scmp.eq.s32.totalorder %s9, 0
    %p43 = por %p41, %p42
    %p44 = scmp.ne.s32.totalorder %s33, %s36
    %p45 = scmp.eq.s32.totalorder %s14, 3
    %p46 = por %p44, %p45
    %p47 = scmp.ne.s32.totalorder %s36, %s37
    %p48 = scmp.eq.s32.totalorder %s14, 0
    %p49 = por %p47, %p48
    %p50 = scmp.ne.s32.totalorder %s36, %s37
    %p51 = scmp.eq.s32.totalorder %s15, 3
    %p52 = por %p50, %p51
    %p54 = scmp.ne.s32.totalorder %s37, %s53
    %p55 = scmp.eq.s32.totalorder %s15, 0
    %p56 = por %p54, %p55
    %s57 = ssub.s32 %s16, %s28
    %p58 = scmp.eq.s32.totalorder %s57, 0
    %s60 = sadd.s32 %s59, 1
    %s61 = scalar_select %p58, %s59, %s60
    %p64 = pneg %p58
    %p65 = scmp.eq.s32.totalorder %s9, 3
    %p66 = por %p64, %p65
    %p67 = scmp.ne.s32.totalorder %s59, %s62
    %p68 = scmp.eq.s32.totalorder %s9, 0
    %p69 = por %p67, %p68
    %p70 = scmp.ne.s32.totalorder %s59, %s62
    %p71 = scmp.eq.s32.totalorder %s14, 3
    %p72 = por %p70, %p71
    %p73 = scmp.ne.s32.totalorder %s62, %s63
    %p74 = scmp.eq.s32.totalorder %s14, 0
    %p75 = por %p73, %p74
    %p76 = scmp.ne.s32.totalorder %s62, %s63
    %p77 = scmp.eq.s32.totalorder %s15, 3
    %p78 = por %p76, %p77
    %p80 = scmp.ne.s32.totalorder %s63, %s79
    %p81 = scmp.eq.s32.totalorder %s15, 0
    %p82 = por %p80, %p81
    %s83 = ssub.s32 %s16, %s28
    %s84 = ssub.s32 %s17, %s24
    %s85 = sor.u32 %s83, %s84
    %p86 = scmp.eq.s32.totalorder %s85, 0
    %s88 = sadd.s32 %s87, 1
    %s89 = scalar_select %p86, %s87, %s88
    %p92 = pneg %p86
    %p93 = scmp.eq.s32.totalorder %s9, 3
    %p94 = por %p92, %p93
    %p95 = scmp.ne.s32.totalorder %s87, %s90
    %p96 = scmp.eq.s32.totalorder %s9, 0
    %p97 = por %p95, %p96
    %p98 = scmp.ne.s32.totalorder %s87, %s90
    %p99 = scmp.eq.s32.totalorder %s14, 3
    %p100 = por %p98, %p99
    %p101 = scmp.ne.s32.totalorder %s90, %s91
    %p102 = scmp.eq.s32.totalorder %s14, 0
    %p103 = por %p101, %p102
    %p104 = scmp.ne.s32.totalorder %s90, %s91
    %p105 = scmp.eq.s32.totalorder %s15, 3
    %p106 = por %p104, %p105
    %p108 = scmp.ne.s32.totalorder %s91, %s107
    %p109 = scmp.eq.s32.totalorder %s15, 0
    %p110 = por %p108, %p109
    %s111 = ssub.s32 %s16, %s28
    %s112 = ssub.s32 %s17, %s24
    %s113 = sor.u32 %s111, %s112
    %p114 = scmp.eq.s32.totalorder %s113, 0
    %s116 = sadd.s32 %s115, 1
    %s117 = scalar_select %p114, %s115, %s116
    %p120 = pneg %p114
    %p121 = scmp.eq.s32.totalorder %s9, 3
    %p122 = por %p120, %p121
    %p123 = scmp.ne.s32.totalorder %s115, %s118
    %p124 = scmp.eq.s32.totalorder %s9, 0
    %p125 = por %p123, %p124
    %p126 = scmp.ne.s32.totalorder %s115, %s118
    %p127 = scmp.eq.s32.totalorder %s14, 3
    %p128 = por %p126, %p127
    %p129 = scmp.ne.s32.totalorder %s118, %s119
    %p130 = scmp.eq.s32.totalorder %s14, 0
    %p131 = por %p129, %p130
    %p132 = scmp.ne.s32.totalorder %s118, %s119
    %p133 = scmp.eq.s32.totalorder %s15, 3
    %p134 = por %p132, %p133
    %p136 = scmp.ne.s32.totalorder %s119, %s135
    %p137 = scmp.eq.s32.totalorder %s15, 0
    %p138 = por %p136, %p137
    %p139 = scmp.le.s32.totalorder 1, %s9
    %p140 = scmp.lt.s32.totalorder %s9, 5
    %p141 = pnand %p139, %p140
    %p142 = pneg %p141
    // Predicated region
    $region9: #{local_pathway_forward.24} parent=5 // pred_check
      _
    $region10: #{local_pathway_forward.24} parent=5 // pred_check_branch
      %144 = sbr.rel (%p141) target = $region12
    $region11: #{local_pathway_forward.24} parent=5 // pred_region
      %s145 = ssub.s32 %s9, 1
    $region12: #{local_pathway_forward.24} parent=5 // pred_fallthru
      _
    %p146 = scmp.lt.s32.totalorder %s9, 4
    // Predicated region
    $region13: #{local_pathway_forward.24} parent=5 // pred_check
      %p147 = pneg %p146
    $region14: #{local_pathway_forward.24} parent=5 // pred_check_branch
      %149 = sbr.rel (%p147) target = $region16
    $region15: #{local_pathway_forward.24} parent=5 // pred_region
      // Predicated region
      $region17: #{local_pathway_forward.24} parent=15 // pred_check
        %p150 = pneg %p43
      $region18: #{local_pathway_forward.24} parent=15 // pred_check_branch
        %152 = sbr.rel (%p150) target = $region20
      $region19: #{local_pathway_forward.24} parent=15 // pred_region
        %s153 = smul.u32 8, %s17
        %p154 = scmp.lt.s32.totalorder %s16, 1
        %s155 = scalar_select %p154, %s16, 1
        %p156 = scmp.lt.s32.totalorder %s153, 15
        %s157 = scalar_select %p156, %s153, 15
        %s158 = smul.addr %s157, 2
        %s159 = smul.addr %s155, 32
        %s160 = sadd.s32 %s158, %s159
        %s161 = smul.addr %s160, 4
        %s162 = scalar_lea.vmem %s0, %s161
        %s163 = smul.u32 8, %s17
      $region20: #{local_pathway_forward.24} parent=15 // pred_fallthru
        _
      // Predicated region
      $region21: #{local_pathway_forward.24} parent=15 // pred_check
        %p164 = pneg %p69
      $region22: #{local_pathway_forward.24} parent=15 // pred_check_branch
        %166 = sbr.rel (%p164) target = $region24
      $region23: #{local_pathway_forward.24} parent=15 // pred_region
        %p167 = scmp.lt.s32.totalorder %s16, 1
        %s168 = scalar_select %p167, %s16, 1
        %s169 = smul.addr %s168, 2
        %s170 = scalar_lea.vmem %s1, %s169
      $region24: #{local_pathway_forward.24} parent=15 // pred_fallthru
        _
      // Predicated region
      $region25: #{local_pathway_forward.24} parent=15 // pred_check
        %p171 = pneg %p97
      $region26: #{local_pathway_forward.24} parent=15 // pred_check_branch
        %173 = sbr.rel (%p171) target = $region28
      $region27: #{local_pathway_forward.24} parent=15 // pred_region
        %s174 = smul.u32 8, %s17
        %p175 = scmp.lt.s32.totalorder %s16, 1
        %s176 = scalar_select %p175, %s16, 1
        %p177 = scmp.lt.s32.totalorder %s174, 15
        %s178 = scalar_select %p177, %s174, 15
        %s179 = smul.addr %s178, 2
        %s180 = smul.addr %s176, 32
        %s181 = sadd.s32 %s179, %s180
        %s182 = smul.addr %s181, 4
        %s183 = scalar_lea.vmem %s2, %s182
        %s184 = smul.u32 8, %s17
      $region28: #{local_pathway_forward.24} parent=15 // pred_fallthru
        _
    $region16: #{local_pathway_forward.24} parent=5 // pred_fallthru
      _
    %p185 = scmp.le.s32.totalorder 1, %s9
    %p186 = scmp.lt.s32.totalorder %s9, 5
    %p187 = pnand %p185, %p186
    %p188 = pneg %p187
    // Predicated region
    $region29: #{local_pathway_forward.24} parent=5 // pred_check
      _
    $region30: #{local_pathway_forward.24} parent=5 // pred_check_branch
      %190 = sbr.rel (%p187) target = $region32
    $region31: #{local_pathway_forward.24} parent=5 // pred_region
      %s191 = ssub.s32 %s9, 1
      %s192 = smul.u32 8, %s19
      %p193 = scmp.lt.s32.totalorder %s18, 1
      %s194 = scalar_select %p193, %s18, 1
      %p195 = scmp.lt.s32.totalorder %s192, 15
      %s196 = scalar_select %p195, %s192, 15
      %s197 = smul.addr %s196, 2
      %s198 = smul.addr %s194, 32
      %s199 = sadd.s32 %s197, %s198
      %s200 = smul.addr %s199, 4
      %s201 = scalar_lea.vmem %s0, %s200
      %p202 = pneg %p49
      %p203 = pneg %p46
      %p204 = scmp.lt.s32.totalorder %s18, 1
      %s205 = scalar_select %p204, %s18, 1
      %s206 = smul.addr %s205, 2
      %s207 = scalar_lea.vmem %s1, %s206
      %p208 = pneg %p75
      %p209 = pneg %p72
      %s210 = smul.u32 8, %s19
      %p211 = scmp.lt.s32.totalorder %s18, 1
      %s212 = scalar_select %p211, %s18, 1
      %p213 = scmp.lt.s32.totalorder %s210, 15
      %s214 = scalar_select %p213, %s210, 15
      %s215 = smul.addr %s214, 2
      %s216 = smul.addr %s212, 32
      %s217 = sadd.s32 %s215, %s216
      %s218 = smul.addr %s217, 4
      %s219 = scalar_lea.vmem %s2, %s218
      %p220 = pneg %p103
      %p221 = pneg %p100
      %p222 = pneg %p131
      %p223 = pneg %p128
      %s224 = smul.u32 8, %s19
      %p225 = scmp.lt.s32.totalorder %s18, 1
      %s226 = scalar_select %p225, %s18, 1
      %p227 = scmp.lt.s32.totalorder %s224, 15
      %s228 = scalar_select %p227, %s224, 15
      %s229 = smul.addr %s228, 2
      %s230 = smul.addr %s226, 32
      %s231 = sadd.s32 %s229, %s230
      %s232 = smul.addr %s231, 4
      %s233 = scalar_lea.vmem %s3, %s232
      %s234 = smul.u32 8, %s19
      %p235 = scmp.lt.s32.totalorder %s18, 1
      %s236 = scalar_select %p235, %s18, 1
      %p237 = scmp.lt.s32.totalorder %s234, 15
      %s238 = scalar_select %p237, %s234, 15
      %s239 = smul.addr %s238, 2
      %s240 = smul.addr %s236, 32
      %s241 = sadd.s32 %s239, %s240
      %s242 = smul.addr %s241, 4
      %s243 = scalar_lea.vmem %s0, %s242
      %s244 = smul.u32 8, %s19
      %p245 = scmp.lt.s32.totalorder %s18, 1
      %s246 = scalar_select %p245, %s18, 1
      %s247 = smul.addr %s246, 2
      %s248 = scalar_lea.vmem %s1, %s247
      %s249 = smul.u32 8, %s19
      %p250 = scmp.lt.s32.totalorder %s18, 1
      %s251 = scalar_select %p250, %s18, 1
      %p252 = scmp.lt.s32.totalorder %s249, 15
      %s253 = scalar_select %p252, %s249, 15
      %s254 = smul.addr %s253, 2
      %s255 = smul.addr %s251, 32
      %s256 = sadd.s32 %s254, %s255
      %s257 = smul.addr %s256, 4
      %s258 = scalar_lea.vmem %s2, %s257
      %s259 = smul.u32 8, %s19
      %s260 = smul.u32 8, %s19
      %p261 = scmp.lt.s32.totalorder %s18, 1
      %s262 = scalar_select %p261, %s18, 1
      %p263 = scmp.lt.s32.totalorder %s260, 15
      %s264 = scalar_select %p263, %s260, 15
      %s265 = smul.addr %s264, 2
      %s266 = smul.addr %s262, 32
      %s267 = sadd.s32 %s265, %s266
      %s268 = smul.addr %s267, 4
      %s269 = scalar_lea.vmem %s3, %s268
      %s270 = smul.u32 8, %s19
      %v271 = vld [vmem:[%s248] sm:$0x3]
      %v272 = vmul.f32 %v271, 0.00390625
      %v273 = vmul.f32 %v272, %v272
      %v275 = vrot.slane %v273, 7
      %v277 = vsub.f32 %v272, %v275
      %v278 = vadd.f32 %v277, 1e-05
      %v279 = vrsqrt.pop %v278
      %v280 = vld [vmem:[%s243] sm:$0xf]
      %v281 = vld [vmem:[%s243 + $0x4] sm:$0xf]
      %v282 = vld [vmem:[%s243 + $0x8] sm:$0xf]
      %v283 = vld [vmem:[%s243 + $0xc] sm:$0xf]
      %v284 = vld [vmem:[%s243 + $0x10] sm:$0xf]
      %v285 = vld [vmem:[%s243 + $0x14] sm:$0xf]
      %v286 = vld [vmem:[%s243 + $0x18] sm:$0xf]
      %v287 = vld [vmem:[%s243 + $0x1c] sm:$0xf]
      %v288 = vld [vmem:[%s243 + $0x20] sm:$0xf]
      %v289 = vld [vmem:[%s243 + $0x24] sm:$0xf]
      %v290 = vld [vmem:[%s243 + $0x28] sm:$0xf]
      %v291 = vld [vmem:[%s243 + $0x2c] sm:$0xf]
      %v292 = vld [vmem:[%s243 + $0x30] sm:$0xf]
      %v293 = vld [vmem:[%s243 + $0x34] sm:$0xf]
      %v294 = vld [vmem:[%s243 + $0x38] sm:$0xf]
      %v295 = vld [vmem:[%s243 + $0x3c] sm:$0xf]
      %v296 = vunpack.c.l.bf16 %v280
      %v297 = vunpack.c.l.bf16 %v281
      %v298 = vunpack.c.l.bf16 %v282
      %v299 = vunpack.c.l.bf16 %v283
      %v300 = vunpack.c.l.bf16 %v284
      %v301 = vunpack.c.l.bf16 %v285
      %v302 = vunpack.c.l.bf16 %v286
      %v303 = vunpack.c.l.bf16 %v287
      %v304 = vunpack.c.l.bf16 %v288
      %v305 = vunpack.c.l.bf16 %v289
      %v306 = vunpack.c.l.bf16 %v290
      %v307 = vunpack.c.l.bf16 %v291
      %v308 = vunpack.c.l.bf16 %v292
      %v309 = vunpack.c.l.bf16 %v293
      %v310 = vunpack.c.l.bf16 %v294
      %v311 = vunpack.c.l.bf16 %v295
      %v312 = vlaneseq
      %v313 = vshrl.u32 %v312, 7
      %v314 = vsub.s32 0, %v313
      %v315 = vrot.slane %v272, %v314
      %v316 = vsub.f32 %v296, %v315
      %v317 = vsub.f32 %v297, %v315
      %v318 = vsub.f32 %v298, %v315
      %v319 = vsub.f32 %v299, %v315
      %v320 = vsub.f32 %v300, %v315
      %v321 = vsub.f32 %v301, %v315
      %v322 = vsub.f32 %v302, %v315
      %v323 = vsub.f32 %v303, %v315
      %v324 = vsub.f32 %v304, %v315
      %v325 = vsub.f32 %v305, %v315
      %v326 = vsub.f32 %v306, %v315
      %v327 = vsub.f32 %v307, %v315
      %v328 = vsub.f32 %v308, %v315
      %v329 = vsub.f32 %v309, %v315
      %v330 = vsub.f32 %v310, %v315
      %v331 = vsub.f32 %v311, %v315
      %v332 = vlaneseq
      %v333 = vshrl.u32 %v332, 7
      %v334 = vsub.s32 1, %v333
      %v335 = vrot.slane %v279, %v334
      %v336 = vmul.f32 %v316, %v335
      %v337 = vmul.f32 %v317, %v335
      %v338 = vmul.f32 %v318, %v335
      %v339 = vmul.f32 %v319, %v335
      %v340 = vmul.f32 %v320, %v335
      %v341 = vmul.f32 %v321, %v335
      %v342 = vmul.f32 %v322, %v335
      %v343 = vmul.f32 %v323, %v335
      %v344 = vmul.f32 %v324, %v335
      %v345 = vmul.f32 %v325, %v335
      %v346 = vmul.f32 %v326, %v335
      %v347 = vmul.f32 %v327, %v335
      %v348 = vmul.f32 %v328, %v335
      %v349 = vmul.f32 %v329, %v335
      %v350 = vmul.f32 %v330, %v335
      %v351 = vmul.f32 %v331, %v335
      %v352 = vld [vmem:[%s258] sm:$0xf]
      %v353 = vld [vmem:[%s258 + $0x4] sm:$0xf]
      %v354 = vld [vmem:[%s258 + $0x8] sm:$0xf]
      %v355 = vld [vmem:[%s258 + $0xc] sm:$0xf]
      %v356 = vld [vmem:[%s258 + $0x10] sm:$0xf]
      %v357 = vld [vmem:[%s258 + $0x14] sm:$0xf]
      %v358 = vld [vmem:[%s258 + $0x18] sm:$0xf]
      %v359 = vld [vmem:[%s258 + $0x1c] sm:$0xf]
      %v360 = vld [vmem:[%s258 + $0x20] sm:$0xf]
      %v361 = vld [vmem:[%s258 + $0x24] sm:$0xf]
      %v362 = vld [vmem:[%s258 + $0x28] sm:$0xf]
      %v363 = vld [vmem:[%s258 + $0x2c] sm:$0xf]
      %v364 = vld [vmem:[%s258 + $0x30] sm:$0xf]
      %v365 = vld [vmem:[%s258 + $0x34] sm:$0xf]
      %v366 = vld [vmem:[%s258 + $0x38] sm:$0xf]
      %v367 = vld [vmem:[%s258 + $0x3c] sm:$0xf]
      %v368 = vunpack.c.l.bf16 %v352
      %v369 = vunpack.c.l.bf16 %v353
      %v370 = vunpack.c.l.bf16 %v354
      %v371 = vunpack.c.l.bf16 %v355
      %v372 = vunpack.c.l.bf16 %v356
      %v373 = vunpack.c.l.bf16 %v357
      %v374 = vunpack.c.l.bf16 %v358
      %v375 = vunpack.c.l.bf16 %v359
      %v376 = vunpack.c.l.bf16 %v360
      %v377 = vunpack.c.l.bf16 %v361
      %v378 = vunpack.c.l.bf16 %v362
      %v379 = vunpack.c.l.bf16 %v363
      %v380 = vunpack.c.l.bf16 %v364
      %v381 = vunpack.c.l.bf16 %v365
      %v382 = vunpack.c.l.bf16 %v366
      %v383 = vunpack.c.l.bf16 %v367
      %v384 = vadd.f32 %v368, %v336
      %v385 = vadd.f32 %v369, %v337
      %v386 = vadd.f32 %v370, %v338
      %v387 = vadd.f32 %v371, %v339
      %v388 = vadd.f32 %v372, %v340
      %v389 = vadd.f32 %v373, %v341
      %v390 = vadd.f32 %v374, %v342
      %v391 = vadd.f32 %v375, %v343
      %v392 = vadd.f32 %v376, %v344
      %v393 = vadd.f32 %v377, %v345
      %v394 = vadd.f32 %v378, %v346
      %v395 = vadd.f32 %v379, %v347
      %v396 = vadd.f32 %v380, %v348
      %v397 = vadd.f32 %v381, %v349
      %v398 = vadd.f32 %v382, %v350
      %v399 = vadd.f32 %v383, %v351
      %v400 = vpack.c.bf16 %v385, %v384
      %v401 = vpack.c.bf16 %v387, %v386
      %v402 = vpack.c.bf16 %v389, %v388
      %v403 = vpack.c.bf16 %v391, %v390
      %v404 = vpack.c.bf16 %v393, %v392
      %v405 = vpack.c.bf16 %v395, %v394
      %v406 = vpack.c.bf16 %v397, %v396
      %v407 = vpack.c.bf16 %v399, %v398
      %v416 = vunpack.c.l.b16 %v400
      %v417 = vunpack.c.h.b16 %v400
      %v418 = vunpack.c.l.b16 %v401
      %v419 = vunpack.c.h.b16 %v401
      %v420 = vunpack.c.l.b16 %v402
      %v421 = vunpack.c.h.b16 %v402
      %v422 = vunpack.c.l.b16 %v403
      %v423 = vunpack.c.h.b16 %v403
      %v424 = vunpack.c.l.b16 %v404
      %v425 = vunpack.c.h.b16 %v404
      %v426 = vunpack.c.l.b16 %v405
      %v427 = vunpack.c.h.b16 %v405
      %v428 = vunpack.c.l.b16 %v406
      %v429 = vunpack.c.h.b16 %v406
      %v430 = vunpack.c.l.b16 %v407
      %v431 = vunpack.c.h.b16 %v407
      %v432 = vpack.c.b16 %v416, %v416
      %v433 = vpack.c.b16 %v417, %v417
      %v434 = vpack.c.b16 %v418, %v418
      %v435 = vpack.c.b16 %v419, %v419
      %v436 = vpack.c.b16 %v420, %v420
      %v437 = vpack.c.b16 %v421, %v421
      %v438 = vpack.c.b16 %v422, %v422
      %v439 = vpack.c.b16 %v423, %v423
      %v440 = vpack.c.b16 %v424, %v424
      %v441 = vpack.c.b16 %v425, %v425
      %v442 = vpack.c.b16 %v426, %v426
      %v443 = vpack.c.b16 %v427, %v427
      %v444 = vpack.c.b16 %v428, %v428
      %v445 = vpack.c.b16 %v429, %v429
      %v446 = vpack.c.b16 %v430, %v430
      %v447 = vpack.c.b16 %v431, %v431
      %vm464 = vcmask 519168
      %465 = vst.msk [vmem:[%s269] sm:$0xf] %vm464, %v432
      %466 = vst.msk [vmem:[%s269 + $0x4] sm:$0xf] %vm464, %v433
      %467 = vst.msk [vmem:[%s269 + $0x8] sm:$0xf] %vm464, %v434
      %468 = vst.msk [vmem:[%s269 + $0xc] sm:$0xf] %vm464, %v435
      %469 = vst.msk [vmem:[%s269 + $0x10] sm:$0xf] %vm464, %v436
      %470 = vst.msk [vmem:[%s269 + $0x14] sm:$0xf] %vm464, %v437
      %471 = vst.msk [vmem:[%s269 + $0x18] sm:$0xf] %vm464, %v438
      %472 = vst.msk [vmem:[%s269 + $0x1c] sm:$0xf] %vm464, %v439
      %473 = vst.msk [vmem:[%s269 + $0x20] sm:$0xf] %vm464, %v440
      %474 = vst.msk [vmem:[%s269 + $0x24] sm:$0xf] %vm464, %v441
      %475 = vst.msk [vmem:[%s269 + $0x28] sm:$0xf] %vm464, %v442
      %476 = vst.msk [vmem:[%s269 + $0x2c] sm:$0xf] %vm464, %v443
      %477 = vst.msk [vmem:[%s269 + $0x30] sm:$0xf] %vm464, %v444
      %478 = vst.msk [vmem:[%s269 + $0x34] sm:$0xf] %vm464, %v445
      %479 = vst.msk [vmem:[%s269 + $0x38] sm:$0xf] %vm464, %v446
      %480 = vst.msk [vmem:[%s269 + $0x3c] sm:$0xf] %vm464, %v447
      %s481 = smul.u32 8, %s19
      %p482 = scmp.lt.s32.totalorder %s18, 1
      %s483 = scalar_select %p482, %s18, 1
      %p484 = scmp.lt.s32.totalorder %s481, 15
      %s485 = scalar_select %p484, %s481, 15
      %s486 = smul.addr %s485, 2
      %s487 = smul.addr %s483, 32
      %s488 = sadd.s32 %s486, %s487
      %s489 = smul.addr %s488, 4
      %s490 = scalar_lea.vmem %s3, %s489
      // Predicated region
      $region33: #{local_pathway_forward.24} parent=31 // pred_check
        %p491 = pneg %p128
      $region34: #{local_pathway_forward.24} parent=31 // pred_check_branch
        %493 = sbr.rel (%p491) target = $region36
      $region35: #{local_pathway_forward.24} parent=31 // pred_region
        %s494 = smul.u32 8, %s19
      $region36: #{local_pathway_forward.24} parent=31 // pred_fallthru
        _
    $region32: #{local_pathway_forward.24} parent=5 // pred_fallthru
      _
    %p495 = scmp.le.s32.totalorder 2, %s9
    // Predicated region
    $region37: #{local_pathway_forward.24} parent=5 // pred_check
      %p496 = pneg %p495
    $region38: #{local_pathway_forward.24} parent=5 // pred_check_branch
      %498 = sbr.rel (%p496) target = $region40
    $region39: #{local_pathway_forward.24} parent=5 // pred_region
      %s499 = ssub.s32 %s9, 2
      // Predicated region
      $region41: #{local_pathway_forward.24} parent=39 // pred_check
        %p500 = pneg %p134
      $region42: #{local_pathway_forward.24} parent=39 // pred_check_branch
        %502 = sbr.rel (%p500) target = $region44
      $region43: #{local_pathway_forward.24} parent=39 // pred_region
        %s503 = smul.u32 8, %s21
        %p504 = scmp.lt.s32.totalorder %s20, 1
        %s505 = scalar_select %p504, %s20, 1
        %p506 = scmp.lt.s32.totalorder %s503, 15
        %s507 = scalar_select %p506, %s503, 15
        %s508 = smul.addr %s507, 2
        %s509 = smul.addr %s505, 32
        %s510 = sadd.s32 %s508, %s509
        %s511 = smul.addr %s510, 4
        %s512 = scalar_lea.vmem %s3, %s511
      $region44: #{local_pathway_forward.24} parent=39 // pred_fallthru
        _
    $region40: #{local_pathway_forward.24} parent=5 // pred_fallthru
      _
  $region6: #{local_pathway_forward.24} parent=0 // loop_footer
    %s13 = sadd.s32 1, %s9
  $region7: #{local_pathway_forward.24} parent=0 // loop_footer_branch
    %8 = sbr.rel target = $region3
  $region8: #{local_pathway_forward.24} parent=0 // loop_exit
    _

// kernel: local_pathway_forward.23
$region0: #{local_pathway_forward.23}
  #allocation0 [shape = 'u32[]', space=smem, size = 0x4, offset = 0x4, fixed_abs, tag = 'smem constant byte address 0x4 - core index']
  #allocation1 [shape = 'u32[144,128]{1,0:T(1,128)}', space=vmem, size = 0x12000, scoped, tag = 'internal scratch']
  %s0 = inlined_call_operand.vmem [shape: bf16[2,2,10,18,64], index: 0, kind: input, shape index: {}]
  %s1 = inlined_call_operand.vmem [shape: bf16[9,64,64], index: 1, kind: input, shape index: {}]
  %s2 = inlined_call_operand.vmem [shape: f32[2,2,64], index: 2, kind: input, shape index: {}]
  %s3 = inlined_call_operand.vmem [shape: bf16[2,16,16,64], index: 3, kind: output, shape index: {0}]
  %s4 = inlined_call_operand.vmem [shape: f32[2,2,64], index: 4, kind: output, shape index: {1}]
  %5 = xla_tuple %s3, %s4
  %s6 = sld [smem:[#allocation0]]
  $region57: #{local_pathway_forward.23} parent=0
    _
  %s8 = ssub.s32 1, %s6
  %s9 = scalar_select 0, %s8, %s6
  loop: start=0, step=1, limit=6
  $region2: #{local_pathway_forward.23} parent=0 // loop_pre_header
    _
  $region3: #{local_pathway_forward.23} parent=0 // loop_header
    %s11 = sphi 0, %s15
    %p12 = scmp.ge.s32.totalorder %s11, 6
    %s18 = sphi 0, %s30
    %s19 = sphi 0, %s26
    %s20 = sphi 0, %s18
    %s21 = sphi 0, %s19
    %s22 = sphi 0, %s20
    %s23 = sphi 0, %s21
    %s35 = sphi 0, %s37
    %s38 = sphi 0, %s35
    %s39 = sphi 0, %s38
    %s55 = sphi 0, %s39
    %s59 = sphi 0, %s59
    %s61 = sphi 0, %s59
    %s62 = sphi 0, %s61
    %s76 = sphi 0, %s62
    %s82 = sphi 0, %s84
    %s85 = sphi 0, %s82
    %s86 = sphi 0, %s85
    %s102 = sphi 0, %s86
    %s110 = sphi 0, %s112
    %s113 = sphi 0, %s110
    %s114 = sphi 0, %s113
    %s130 = sphi 0, %s114
    %s136 = sphi 0, %s138
    %s139 = sphi 0, %s136
    %s140 = sphi 0, %s139
    %s156 = sphi 0, %s140
  $region4: #{local_pathway_forward.23} parent=0 // loop_header_branch
    %14 = sbr.rel (%p12) target = $region8
  $region5: #{local_pathway_forward.23} parent=0 // loop_body
    %s16 = ssub.s32 %s11, 1
    %s17 = ssub.s32 %s11, 2
    %s24 = sadd.s32 1, %s19
    %p25 = scmp.ge.s32.totalorder %s24, 2
    %s26 = scalar_select %p25, 0, %s24
    %s27 = sadd.s32 1, %s18
    %s28 = scalar_select %p25, %s27, %s18
    %p29 = scmp.ge.s32.totalorder %s28, 2
    %s30 = scalar_select %p29, 0, %s28
    %s31 = ssub.s32 %s18, %s30
    %s32 = ssub.s32 %s19, %s26
    %s33 = sor.u32 %s31, %s32
    %p34 = scmp.eq.s32.totalorder %s33, 0
    %s36 = sadd.s32 %s35, 1
    %s37 = scalar_select %p34, %s35, %s36
    %p40 = pneg %p34
    %p41 = scmp.eq.s32.totalorder %s11, 3
    %p42 = por %p40, %p41
    %p43 = scmp.ne.s32.totalorder %s35, %s38
    %p44 = scmp.eq.s32.totalorder %s11, 0
    %p45 = por %p43, %p44
    %p46 = scmp.ne.s32.totalorder %s35, %s38
    %p47 = scmp.eq.s32.totalorder %s16, 3
    %p48 = por %p46, %p47
    %p49 = scmp.ne.s32.totalorder %s38, %s39
    %p50 = scmp.eq.s32.totalorder %s16, 0
    %p51 = por %p49, %p50
    %p52 = scmp.ne.s32.totalorder %s38, %s39
    %p53 = scmp.eq.s32.totalorder %s17, 3
    %p54 = por %p52, %p53
    %p56 = scmp.ne.s32.totalorder %s39, %s55
    %p57 = scmp.eq.s32.totalorder %s17, 0
    %p58 = por %p56, %p57
    %s60 = sadd.s32 %s59, 1
    %p63 = scmp.eq.s32.totalorder %s11, 3
    %p64 = scmp.ne.s32.totalorder %s59, %s61
    %p65 = scmp.eq.s32.totalorder %s11, 0
    %p66 = por %p64, %p65
    %p67 = scmp.ne.s32.totalorder %s59, %s61
    %p68 = scmp.eq.s32.totalorder %s16, 3
    %p69 = por %p67, %p68
    %p70 = scmp.ne.s32.totalorder %s61, %s62
    %p71 = scmp.eq.s32.totalorder %s16, 0
    %p72 = por %p70, %p71
    %p73 = scmp.ne.s32.totalorder %s61, %s62
    %p74 = scmp.eq.s32.totalorder %s17, 3
    %p75 = por %p73, %p74
    %p77 = scmp.ne.s32.totalorder %s62, %s76
    %p78 = scmp.eq.s32.totalorder %s17, 0
    %p79 = por %p77, %p78
    %s80 = ssub.s32 %s18, %s30
    %p81 = scmp.eq.s32.totalorder %s80, 0
    %s83 = sadd.s32 %s82, 1
    %s84 = scalar_select %p81, %s82, %s83
    %p87 = pneg %p81
    %p88 = scmp.eq.s32.totalorder %s11, 3
    %p89 = por %p87, %p88
    %p90 = scmp.ne.s32.totalorder %s82, %s85
    %p91 = scmp.eq.s32.totalorder %s11, 0
    %p92 = por %p90, %p91
    %p93 = scmp.ne.s32.totalorder %s82, %s85
    %p94 = scmp.eq.s32.totalorder %s16, 3
    %p95 = por %p93, %p94
    %p96 = scmp.ne.s32.totalorder %s85, %s86
    %p97 = scmp.eq.s32.totalorder %s16, 0
    %p98 = por %p96, %p97
    %p99 = scmp.ne.s32.totalorder %s85, %s86
    %p100 = scmp.eq.s32.totalorder %s17, 3
    %p101 = por %p99, %p100
    %p103 = scmp.ne.s32.totalorder %s86, %s102
    %p104 = scmp.eq.s32.totalorder %s17, 0
    %p105 = por %p103, %p104
    %s106 = ssub.s32 %s18, %s30
    %s107 = ssub.s32 %s19, %s26
    %s108 = sor.u32 %s106, %s107
    %p109 = scmp.eq.s32.totalorder %s108, 0
    %s111 = sadd.s32 %s110, 1
    %s112 = scalar_select %p109, %s110, %s111
    %p115 = pneg %p109
    %p116 = scmp.eq.s32.totalorder %s11, 3
    %p117 = por %p115, %p116
    %p118 = scmp.ne.s32.totalorder %s110, %s113
    %p119 = scmp.eq.s32.totalorder %s11, 0
    %p120 = por %p118, %p119
    %p121 = scmp.ne.s32.totalorder %s110, %s113
    %p122 = scmp.eq.s32.totalorder %s16, 3
    %p123 = por %p121, %p122
    %p124 = scmp.ne.s32.totalorder %s113, %s114
    %p125 = scmp.eq.s32.totalorder %s16, 0
    %p126 = por %p124, %p125
    %p127 = scmp.ne.s32.totalorder %s113, %s114
    %p128 = scmp.eq.s32.totalorder %s17, 3
    %p129 = por %p127, %p128
    %p131 = scmp.ne.s32.totalorder %s114, %s130
    %p132 = scmp.eq.s32.totalorder %s17, 0
    %p133 = por %p131, %p132
    %s134 = ssub.s32 %s18, %s30
    %p135 = scmp.eq.s32.totalorder %s134, 0
    %s137 = sadd.s32 %s136, 1
    %s138 = scalar_select %p135, %s136, %s137
    %p141 = pneg %p135
    %p142 = scmp.eq.s32.totalorder %s11, 3
    %p143 = por %p141, %p142
    %p144 = scmp.ne.s32.totalorder %s136, %s139
    %p145 = scmp.eq.s32.totalorder %s11, 0
    %p146 = por %p144, %p145
    %p147 = scmp.ne.s32.totalorder %s136, %s139
    %p148 = scmp.eq.s32.totalorder %s16, 3
    %p149 = por %p147, %p148
    %p150 = scmp.ne.s32.totalorder %s139, %s140
    %p151 = scmp.eq.s32.totalorder %s16, 0
    %p152 = por %p150, %p151
    %p153 = scmp.ne.s32.totalorder %s139, %s140
    %p154 = scmp.eq.s32.totalorder %s17, 3
    %p155 = por %p153, %p154
    %p157 = scmp.ne.s32.totalorder %s140, %s156
    %p158 = scmp.eq.s32.totalorder %s17, 0
    %p159 = por %p157, %p158
    %p160 = scmp.le.s32.totalorder 1, %s11
    %p161 = scmp.lt.s32.totalorder %s11, 5
    %p162 = pnand %p160, %p161
    %p163 = pneg %p162
    // Predicated region
    $region9: #{local_pathway_forward.23} parent=5 // pred_check
      _
    $region10: #{local_pathway_forward.23} parent=5 // pred_check_branch
      %165 = sbr.rel (%p162) target = $region12
    $region11: #{local_pathway_forward.23} parent=5 // pred_region
      %s166 = ssub.s32 %s11, 1
      // Predicated region
      $region13: #{local_pathway_forward.23} parent=11 // pred_check
        %p167 = pneg %p72
      $region14: #{local_pathway_forward.23} parent=11 // pred_check_branch
        %169 = sbr.rel (%p167) target = $region16
      $region15: #{local_pathway_forward.23} parent=11 // pred_region
        _
      $region16: #{local_pathway_forward.23} parent=11 // pred_fallthru
        _
    $region12: #{local_pathway_forward.23} parent=5 // pred_fallthru
      _
    %p170 = scmp.lt.s32.totalorder %s11, 4
    // Predicated region
    $region17: #{local_pathway_forward.23} parent=5 // pred_check
      %p171 = pneg %p170
    $region18: #{local_pathway_forward.23} parent=5 // pred_check_branch
      %173 = sbr.rel (%p171) target = $region20
    $region19: #{local_pathway_forward.23} parent=5 // pred_region
      // Predicated region
      $region21: #{local_pathway_forward.23} parent=19 // pred_check
        %p174 = pneg %p45
      $region22: #{local_pathway_forward.23} parent=19 // pred_check_branch
        %176 = sbr.rel (%p174) target = $region24
      $region23: #{local_pathway_forward.23} parent=19 // pred_region
        %p177 = scmp.lt.s32.totalorder %s18, 1
        %s178 = scalar_select %p177, %s18, 1
        %p179 = scmp.lt.s32.totalorder %s19, 1
        %s180 = scalar_select %p179, %s19, 1
        %s181 = smul.addr %s180, 30
        %s182 = smul.addr %s178, 60
        %s183 = sadd.s32 %s181, %s182
        %s184 = smul.addr %s183, 4
        %s185 = scalar_lea.vmem %s0, %s184
      $region24: #{local_pathway_forward.23} parent=19 // pred_fallthru
        _
      // Predicated region
      $region25: #{local_pathway_forward.23} parent=19 // pred_check
        %p186 = pneg %p92
      $region26: #{local_pathway_forward.23} parent=19 // pred_check_branch
        %188 = sbr.rel (%p186) target = $region28
      $region27: #{local_pathway_forward.23} parent=19 // pred_region
        %p189 = scmp.lt.s32.totalorder %s18, 1
        %s190 = scalar_select %p189, %s18, 1
        %s191 = smul.addr %s190, 2
        %s192 = scalar_lea.vmem %s2, %s191
      $region28: #{local_pathway_forward.23} parent=19 // pred_fallthru
        _
    $region20: #{local_pathway_forward.23} parent=5 // pred_fallthru
      _
    %p193 = scmp.le.s32.totalorder 1, %s11
    %p194 = scmp.lt.s32.totalorder %s11, 5
    %p195 = pnand %p193, %p194
    %p196 = pneg %p195
    // Predicated region
    $region29: #{local_pathway_forward.23} parent=5 // pred_check
      _
    $region30: #{local_pathway_forward.23} parent=5 // pred_check_branch
      %198 = sbr.rel (%p195) target = $region32
    $region31: #{local_pathway_forward.23} parent=5 // pred_region
      %s199 = ssub.s32 %s11, 1
      %p200 = scmp.lt.s32.totalorder %s20, 1
      %s201 = scalar_select %p200, %s20, 1
      %p202 = scmp.lt.s32.totalorder %s21, 1
      %s203 = scalar_select %p202, %s21, 1
      %s204 = smul.addr %s203, 30
      %s205 = smul.addr %s201, 60
      %s206 = sadd.s32 %s204, %s205
      %s207 = smul.addr %s206, 4
      %s208 = scalar_lea.vmem %s0, %s207
      %p209 = pneg %p51
      %p210 = pneg %p48
      %p211 = pneg %p72
      %p212 = pneg %p69
      %p213 = scmp.lt.s32.totalorder %s20, 1
      %s214 = scalar_select %p213, %s20, 1
      %s215 = smul.addr %s214, 2
      %s216 = scalar_lea.vmem %s2, %s215
      %p217 = pneg %p98
      %p218 = pneg %p95
      %p219 = pneg %p126
      %p220 = pneg %p123
      %s221 = smul.u32 8, %s21
      %p222 = scmp.lt.s32.totalorder %s20, 1
      %s223 = scalar_select %p222, %s20, 1
      %p224 = scmp.lt.s32.totalorder %s221, 15
      %s225 = scalar_select %p224, %s221, 15
      %s226 = smul.addr %s225, 2
      %s227 = smul.addr %s223, 32
      %s228 = sadd.s32 %s226, %s227
      %s229 = smul.addr %s228, 4
      %s230 = scalar_lea.vmem %s3, %s229
      %p231 = pneg %p152
      %p232 = pneg %p149
      %p233 = scmp.lt.s32.totalorder %s20, 1
      %s234 = scalar_select %p233, %s20, 1
      %s235 = smul.addr %s234, 2
      %s236 = scalar_lea.vmem %s4, %s235
      %p237 = scmp.lt.s32.totalorder %s20, 1
      %s238 = scalar_select %p237, %s20, 1
      %p239 = scmp.lt.s32.totalorder %s21, 1
      %s240 = scalar_select %p239, %s21, 1
      %s241 = smul.addr %s240, 30
      %s242 = smul.addr %s238, 60
      %s243 = sadd.s32 %s241, %s242
      %s244 = smul.addr %s243, 4
      %s245 = scalar_lea.vmem %s0, %s244
      %p246 = scmp.lt.s32.totalorder %s20, 1
      %s247 = scalar_select %p246, %s20, 1
      %s248 = smul.addr %s247, 2
      %s249 = scalar_lea.vmem %s2, %s248
      %s250 = smul.u32 8, %s21
      %p251 = scmp.lt.s32.totalorder %s20, 1
      %s252 = scalar_select %p251, %s20, 1
      %p253 = scmp.lt.s32.totalorder %s250, 15
      %s254 = scalar_select %p253, %s250, 15
      %s255 = smul.addr %s254, 2
      %s256 = smul.addr %s252, 32
      %s257 = sadd.s32 %s255, %s256
      %s258 = smul.addr %s257, 4
      %s259 = scalar_lea.vmem %s3, %s258
      %s260 = smul.u32 8, %s21
      %p261 = scmp.lt.s32.totalorder %s20, 1
      %s262 = scalar_select %p261, %s20, 1
      %s263 = smul.addr %s262, 2
      %s264 = scalar_lea.vmem %s4, %s263
      %v266 = vld [vmem:[%s245] sm:$0xf]
      %v267 = vld [vmem:[%s245 + $0x4] sm:$0xf]
      %v268 = vld [vmem:[%s245 + $0x8] sm:$0x1]
      %v269 = vld [vmem:[%s245 + $0xc] sm:$0xf]
      %v270 = vld [vmem:[%s245 + $0x10] sm:$0xf]
      %v271 = vld [vmem:[%s245 + $0x14] sm:$0x1]
      %v272 = vld [vmem:[%s245 + $0x18] sm:$0xf]
      %v273 = vld [vmem:[%s245 + $0x1c] sm:$0xf]
      %v274 = vld [vmem:[%s245 + $0x20] sm:$0x1]
      %v275 = vld [vmem:[%s245 + $0x24] sm:$0xf]
      %v276 = vld [vmem:[%s245 + $0x28] sm:$0xf]
      %v277 = vld [vmem:[%s245 + $0x2c] sm:$0x1]
      %v278 = vld [vmem:[%s245 + $0x30] sm:$0xf]
      %v279 = vld [vmem:[%s245 + $0x34] sm:$0xf]
      %v280 = vld [vmem:[%s245 + $0x38] sm:$0x1]
      %v281 = vld [vmem:[%s245 + $0x3c] sm:$0xf]
      %v282 = vld [vmem:[%s245 + $0x40] sm:$0xf]
      %v283 = vld [vmem:[%s245 + $0x44] sm:$0x1]
      %v284 = vld [vmem:[%s245 + $0x48] sm:$0xf]
      %v285 = vld [vmem:[%s245 + $0x4c] sm:$0xf]
      %v286 = vld [vmem:[%s245 + $0x50] sm:$0x1]
      %v287 = vld [vmem:[%s245 + $0x54] sm:$0xf]
      %v288 = vld [vmem:[%s245 + $0x58] sm:$0xf]
      %v289 = vld [vmem:[%s245 + $0x5c] sm:$0x1]
      %v290 = vld [vmem:[%s245 + $0x60] sm:$0xf]
      %v291 = vld [vmem:[%s245 + $0x64] sm:$0xf]
      %v292 = vld [vmem:[%s245 + $0x68] sm:$0x1]
      %v293 = vld [vmem:[%s245 + $0x6c] sm:$0xf]
      %v294 = vld [vmem:[%s245 + $0x70] sm:$0xf]
      %v295 = vld [vmem:[%s245 + $0x74] sm:$0x1]
      %v296 = vld [vmem:[%s249] sm:$0x3]
      %v297 = vmul.f32 %v296, 0.00390625
      %v298 = vmul.f32 %v297, %v297
      %v300 = vrot.slane %v298, 7
      %v302 = vsub.f32 %v297, %v300
      %v303 = vadd.f32 %v302, 1e-05
      %v304 = vrsqrt.pop %v303
      %v305 = vunpack.c.l.bf16 %v266
      %v306 = vunpack.c.l.bf16 %v267
      %v307 = vunpack.c.l.bf16 %v268
      %v308 = vunpack.c.l.bf16 %v269
      %v309 = vunpack.c.l.bf16 %v270
      %v310 = vunpack.c.l.bf16 %v271
      %v311 = vunpack.c.l.bf16 %v272
      %v312 = vunpack.c.l.bf16 %v273
      %v313 = vunpack.c.l.bf16 %v274
      %v314 = vunpack.c.l.bf16 %v275
      %v315 = vunpack.c.l.bf16 %v276
      %v316 = vunpack.c.l.bf16 %v277
      %v317 = vunpack.c.l.bf16 %v278
      %v318 = vunpack.c.l.bf16 %v279
      %v319 = vunpack.c.l.bf16 %v280
      %v320 = vunpack.c.l.bf16 %v281
      %v321 = vunpack.c.l.bf16 %v282
      %v322 = vunpack.c.l.bf16 %v283
      %v323 = vunpack.c.l.bf16 %v284
      %v324 = vunpack.c.l.bf16 %v285
      %v325 = vunpack.c.l.bf16 %v286
      %v326 = vunpack.c.l.bf16 %v287
      %v327 = vunpack.c.l.bf16 %v288
      %v328 = vunpack.c.l.bf16 %v289
      %v329 = vunpack.c.l.bf16 %v290
      %v330 = vunpack.c.l.bf16 %v291
      %v331 = vunpack.c.l.bf16 %v292
      %v332 = vunpack.c.l.bf16 %v293
      %v333 = vunpack.c.l.bf16 %v294
      %v334 = vunpack.c.l.bf16 %v295
      %v335 = vlaneseq
      %v336 = vshrl.u32 %v335, 7
      %v337 = vsub.s32 0, %v336
      %v338 = vrot.slane %v297, %v337
      %v339 = vsub.f32 %v305, %v338
      %v340 = vsub.f32 %v306, %v338
      %v341 = vsub.f32 %v307, %v338
      %v342 = vsub.f32 %v308, %v338
      %v343 = vsub.f32 %v309, %v338
      %v344 = vsub.f32 %v310, %v338
      %v345 = vsub.f32 %v311, %v338
      %v346 = vsub.f32 %v312, %v338
      %v347 = vsub.f32 %v313, %v338
      %v348 = vsub.f32 %v314, %v338
      %v349 = vsub.f32 %v315, %v338
      %v350 = vsub.f32 %v316, %v338
      %v351 = vsub.f32 %v317, %v338
      %v352 = vsub.f32 %v318, %v338
      %v353 = vsub.f32 %v319, %v338
      %v354 = vsub.f32 %v320, %v338
      %v355 = vsub.f32 %v321, %v338
      %v356 = vsub.f32 %v322, %v338
      %v357 = vsub.f32 %v323, %v338
      %v358 = vsub.f32 %v324, %v338
      %v359 = vsub.f32 %v325, %v338
      %v360 = vsub.f32 %v326, %v338
      %v361 = vsub.f32 %v327, %v338
      %v362 = vsub.f32 %v328, %v338
      %v363 = vsub.f32 %v329, %v338
      %v364 = vsub.f32 %v330, %v338
      %v365 = vsub.f32 %v331, %v338
      %v366 = vsub.f32 %v332, %v338
      %v367 = vsub.f32 %v333, %v338
      %v368 = vsub.f32 %v334, %v338
      %v369 = vlaneseq
      %v370 = vshrl.u32 %v369, 7
      %v371 = vsub.s32 1, %v370
      %v372 = vrot.slane %v304, %v371
      %v373 = vmul.f32 %v339, %v372
      %v374 = vmul.f32 %v340, %v372
      %v375 = vmul.f32 %v341, %v372
      %v376 = vmul.f32 %v342, %v372
      %v377 = vmul.f32 %v343, %v372
      %v378 = vmul.f32 %v344, %v372
      %v379 = vmul.f32 %v345, %v372
      %v380 = vmul.f32 %v346, %v372
      %v381 = vmul.f32 %v347, %v372
      %v382 = vmul.f32 %v348, %v372
      %v383 = vmul.f32 %v349, %v372
      %v384 = vmul.f32 %v350, %v372
      %v385 = vmul.f32 %v351, %v372
      %v386 = vmul.f32 %v352, %v372
      %v387 = vmul.f32 %v353, %v372
      %v388 = vmul.f32 %v354, %v372
      %v389 = vmul.f32 %v355, %v372
      %v390 = vmul.f32 %v356, %v372
      %v391 = vmul.f32 %v357, %v372
      %v392 = vmul.f32 %v358, %v372
      %v393 = vmul.f32 %v359, %v372
      %v394 = vmul.f32 %v360, %v372
      %v395 = vmul.f32 %v361, %v372
      %v396 = vmul.f32 %v362, %v372
      %v397 = vmul.f32 %v363, %v372
      %v398 = vmul.f32 %v364, %v372
      %v399 = vmul.f32 %v365, %v372
      %v400 = vmul.f32 %v366, %v372
      %v401 = vmul.f32 %v367, %v372
      %v402 = vmul.f32 %v368, %v372
      %vm403 = vcmp.gt.f32.partialorder %v373, 0.0
      %vm404 = vcmp.gt.f32.partialorder %v374, 0.0
      %vm405 = vcmp.gt.f32.partialorder %v375, 0.0
      %vm406 = vcmp.gt.f32.partialorder %v376, 0.0
      %vm407 = vcmp.gt.f32.partialorder %v377, 0.0
      %vm408 = vcmp.gt.f32.partialorder %v378, 0.0
      %vm409 = vcmp.gt.f32.partialorder %v379, 0.0
      %vm410 = vcmp.gt.f32.partialorder %v380, 0.0
      %vm411 = vcmp.gt.f32.partialorder %v381, 0.0
      %vm412 = vcmp.gt.f32.partialorder %v382, 0.0
      %vm413 = vcmp.gt.f32.partialorder %v383, 0.0
      %vm414 = vcmp.gt.f32.partialorder %v384, 0.0
      %vm415 = vcmp.gt.f32.partialorder %v385, 0.0
      %vm416 = vcmp.gt.f32.partialorder %v386, 0.0
      %vm417 = vcmp.gt.f32.partialorder %v387, 0.0
      %vm418 = vcmp.gt.f32.partialorder %v388, 0.0
      %vm419 = vcmp.gt.f32.partialorder %v389, 0.0
      %vm420 = vcmp.gt.f32.partialorder %v390, 0.0
      %vm421 = vcmp.gt.f32.partialorder %v391, 0.0
      %vm422 = vcmp.gt.f32.partialorder %v392, 0.0
      %vm423 = vcmp.gt.f32.partialorder %v393, 0.0
      %vm424 = vcmp.gt.f32.partialorder %v394, 0.0
      %vm425 = vcmp.gt.f32.partialorder %v395, 0.0
      %vm426 = vcmp.gt.f32.partialorder %v396, 0.0
      %vm427 = vcmp.gt.f32.partialorder %v397, 0.0
      %vm428 = vcmp.gt.f32.partialorder %v398, 0.0
      %vm429 = vcmp.gt.f32.partialorder %v399, 0.0
      %vm430 = vcmp.gt.f32.partialorder %v400, 0.0
      %vm431 = vcmp.gt.f32.partialorder %v401, 0.0
      %vm432 = vcmp.gt.f32.partialorder %v402, 0.0
      %v433 = vmul.f32 %v373, 0.1
      %v434 = vmul.f32 %v374, 0.1
      %v435 = vmul.f32 %v375, 0.1
      %v436 = vmul.f32 %v376, 0.1
      %v437 = vmul.f32 %v377, 0.1
      %v438 = vmul.f32 %v378, 0.1
      %v439 = vmul.f32 %v379, 0.1
      %v440 = vmul.f32 %v380, 0.1
      %v441 = vmul.f32 %v381, 0.1
      %v442 = vmul.f32 %v382, 0.1
      %v443 = vmul.f32 %v383, 0.1
      %v444 = vmul.f32 %v384, 0.1
      %v445 = vmul.f32 %v385, 0.1
      %v446 = vmul.f32 %v386, 0.1
      %v447 = vmul.f32 %v387, 0.1
      %v448 = vmul.f32 %v388, 0.1
      %v449 = vmul.f32 %v389, 0.1
      %v450 = vmul.f32 %v390, 0.1
      %v451 = vmul.f32 %v391, 0.1
      %v452 = vmul.f32 %v392, 0.1
      %v453 = vmul.f32 %v393, 0.1
      %v454 = vmul.f32 %v394, 0.1
      %v455 = vmul.f32 %v395, 0.1
      %v456 = vmul.f32 %v396, 0.1
      %v457 = vmul.f32 %v397, 0.1
      %v458 = vmul.f32 %v398, 0.1
      %v459 = vmul.f32 %v399, 0.1
      %v460 = vmul.f32 %v400, 0.1
      %v461 = vmul.f32 %v401, 0.1
      %v462 = vmul.f32 %v402, 0.1
      %v463 = vsel %vm403, %v373, %v433
      %v464 = vsel %vm404, %v374, %v434
      %v465 = vsel %vm405, %v375, %v435
      %v466 = vsel %vm406, %v376, %v436
      %v467 = vsel %vm407, %v377, %v437
      %v468 = vsel %vm408, %v378, %v438
      %v469 = vsel %vm409, %v379, %v439
      %v470 = vsel %vm410, %v380, %v440
      %v471 = vsel %vm411, %v381, %v441
      %v472 = vsel %vm412, %v382, %v442
      %v473 = vsel %vm413, %v383, %v443
      %v474 = vsel %vm414, %v384, %v444
      %v475 = vsel %vm415, %v385, %v445
      %v476 = vsel %vm416, %v386, %v446
      %v477 = vsel %vm417, %v387, %v447
      %v478 = vsel %vm418, %v388, %v448
      %v479 = vsel %vm419, %v389, %v449
      %v480 = vsel %vm420, %v390, %v450
      %v481 = vsel %vm421, %v391, %v451
      %v482 = vsel %vm422, %v392, %v452
      %v483 = vsel %vm423, %v393, %v453
      %v484 = vsel %vm424, %v394, %v454
      %v485 = vsel %vm425, %v395, %v455
      %v486 = vsel %vm426, %v396, %v456
      %v487 = vsel %vm427, %v397, %v457
      %v488 = vsel %vm428, %v398, %v458
      %v489 = vsel %vm429, %v399, %v459
      %v490 = vsel %vm430, %v400, %v460
      %v491 = vsel %vm431, %v401, %v461
      %v492 = vsel %vm432, %v402, %v462
      %v493 = vpack.c.bf16 %v464, %v463
      %v494 = vpack.c.bf16 %v465, %v465
      %v495 = vpack.c.bf16 %v467, %v466
      %v496 = vpack.c.bf16 %v468, %v468
      %v497 = vpack.c.bf16 %v470, %v469
      %v498 = vpack.c.bf16 %v471, %v471
      %v499 = vpack.c.bf16 %v473, %v472
      %v500 = vpack.c.bf16 %v474, %v474
      %v501 = vpack.c.bf16 %v476, %v475
      %v502 = vpack.c.bf16 %v477, %v477
      %v503 = vpack.c.bf16 %v479, %v478
      %v504 = vpack.c.bf16 %v480, %v480
      %v505 = vpack.c.bf16 %v482, %v481
      %v506 = vpack.c.bf16 %v483, %v483
      %v507 = vpack.c.bf16 %v485, %v484
      %v508 = vpack.c.bf16 %v486, %v486
      %v509 = vpack.c.bf16 %v488, %v487
      %v510 = vpack.c.bf16 %v489, %v489
      %v511 = vpack.c.bf16 %v491, %v490
      %v512 = vpack.c.bf16 %v492, %v492
      %v513 = vld [vmem:[%s1] sm:$0xf]
      %v514 = vld [vmem:[%s1 + $0x4] sm:$0xf]
      %v515 = vld [vmem:[%s1 + $0x8] sm:$0xf]
      %v516 = vld [vmem:[%s1 + $0xc] sm:$0xf]
      %v517 = vld [vmem:[%s1 + $0x10] sm:$0xf]
      %v518 = vld [vmem:[%s1 + $0x14] sm:$0xf]
      %v519 = vld [vmem:[%s1 + $0x18] sm:$0xf]
      %v520 = vld [vmem:[%s1 + $0x1c] sm:$0xf]
      %vm521 = vsmask.f32 7424
      %v523 = vshrl.u32 %v493, 16
      %v525 = vshll.u32 %v493, 16
      %v527 = vrot.slane %v525, 1
      %v528 = vor.u32 %v523, %v527
      %v530 = vshll.u32 %v494, 16
      %v532 = vrot.slane %v530, 1
      %v533 = vsel %vm521, %v528, %v532
      %v535 = vshrl.u32 %v495, 16
      %v537 = vshll.u32 %v495, 16
      %v539 = vrot.slane %v537, 1
      %v540 = vor.u32 %v535, %v539
      %v542 = vshll.u32 %v496, 16
      %v544 = vrot.slane %v542, 1
      %v545 = vsel %vm521, %v540, %v544
      %v547 = vshrl.u32 %v497, 16
      %v549 = vshll.u32 %v497, 16
      %v551 = vrot.slane %v549, 1
      %v552 = vor.u32 %v547, %v551
      %v554 = vshll.u32 %v498, 16
      %v556 = vrot.slane %v554, 1
      %v557 = vsel %vm521, %v552, %v556
      %v559 = vshrl.u32 %v499, 16
      %v561 = vshll.u32 %v499, 16
      %v563 = vrot.slane %v561, 1
      %v564 = vor.u32 %v559, %v563
      %v566 = vshll.u32 %v500, 16
      %v568 = vrot.slane %v566, 1
      %v569 = vsel %vm521, %v564, %v568
      %v571 = vshrl.u32 %v501, 16
      %v573 = vshll.u32 %v501, 16
      %v575 = vrot.slane %v573, 1
      %v576 = vor.u32 %v571, %v575
      %v578 = vshll.u32 %v502, 16
      %v580 = vrot.slane %v578, 1
      %v581 = vsel %vm521, %v576, %v580
      %v583 = vshrl.u32 %v503, 16
      %v585 = vshll.u32 %v503, 16
      %v587 = vrot.slane %v585, 1
      %v588 = vor.u32 %v583, %v587
      %v590 = vshll.u32 %v504, 16
      %v592 = vrot.slane %v590, 1
      %v593 = vsel %vm521, %v588, %v592
      %v595 = vshrl.u32 %v505, 16
      %v597 = vshll.u32 %v505, 16
      %v599 = vrot.slane %v597, 1
      %v600 = vor.u32 %v595, %v599
      %v602 = vshll.u32 %v506, 16
      %v604 = vrot.slane %v602, 1
      %v605 = vsel %vm521, %v600, %v604
      %v607 = vshrl.u32 %v507, 16
      %v609 = vshll.u32 %v507, 16
      %v611 = vrot.slane %v609, 1
      %v612 = vor.u32 %v607, %v611
      %v614 = vshll.u32 %v508, 16
      %v616 = vrot.slane %v614, 1
      %v617 = vsel %vm521, %v612, %v616
      %s618 = scalar_lea.vmem %s1, 32
      %v619 = vld [vmem:[%s618] sm:$0xf]
      %v620 = vld [vmem:[%s618 + $0x4] sm:$0xf]
      %v621 = vld [vmem:[%s618 + $0x8] sm:$0xf]
      %v622 = vld [vmem:[%s618 + $0xc] sm:$0xf]
      %v623 = vld [vmem:[%s618 + $0x10] sm:$0xf]
      %v624 = vld [vmem:[%s618 + $0x14] sm:$0xf]
      %v625 = vld [vmem:[%s618 + $0x18] sm:$0xf]
      %v626 = vld [vmem:[%s618 + $0x1c] sm:$0xf]
      %v635 = vunpack.c.l.b16 %v619
      %v636 = vunpack.c.l.b16 %v620
      %v637 = vunpack.c.l.b16 %v621
      %v638 = vunpack.c.l.b16 %v622
      %v639 = vunpack.c.l.b16 %v623
      %v640 = vunpack.c.l.b16 %v624
      %v641 = vunpack.c.l.b16 %v625
      %v642 = vunpack.c.l.b16 %v626
      %v643 = vpack.c.b16 %v636, %v635
      %v644 = vpack.c.b16 %v638, %v637
      %v645 = vpack.c.b16 %v640, %v639
      %v646 = vpack.c.b16 %v642, %v641
      %vm651 = vcmask 523264
      %v653 = vsel %vm651, %v533, 0
      %v656 = vsel %vm651, %v545, 0
      %v659 = vsel %vm651, %v557, 0
      %v662 = vsel %vm651, %v569, 0
      %v665 = vsel %vm651, %v581, 0
      %v668 = vsel %vm651, %v593, 0
      %v671 = vsel %vm651, %v605, 0
      %v674 = vsel %vm651, %v617, 0
      %676 = vmatprep.subr.bf16.mxu0 0
      %677 = vmatpush1.bf16.msra.mxu0 %v643
      %678 = vmatprep.subr.bf16.mxu0 0
      %679 = vmatpush1.bf16.msra.mxu0 %v644
      %680 = vmatprep.subr.bf16.mxu0 0
      %681 = vmatpush1.bf16.msra.mxu0 %v645
      %682 = vmatprep.subr.bf16.mxu0 0
      %683 = vmatpush1.bf16.msra.mxu0 %v646
      %684 = vmatprep.subr.bf16.mxu0 0
      %685 = vmatpush1.bf16.msra.mxu0 0
      %686 = vmatprep.subr.bf16.mxu0 0
      %687 = vmatpush1.bf16.msra.mxu0 0
      %688 = vmatprep.subr.bf16.mxu0 0
      %689 = vmatpush1.bf16.msra.mxu0 0
      %690 = vmatprep.subr.bf16.mxu0 0
      %691 = vmatpush1.bf16.msra.mxu0 0
      %692 = vmatprep.subr.bf16.mxu0 0
      %693 = vmatpush1.bf16.msra.mxu0 0
      %694 = vmatprep.subr.bf16.mxu0 0
      %695 = vmatpush1.bf16.msra.mxu0 0
      %696 = vmatprep.subr.bf16.mxu0 0
      %697 = vmatpush1.bf16.msra.mxu0 0
      %698 = vmatprep.subr.bf16.mxu0 0
      %699 = vmatpush1.bf16.msra.mxu0 0
      %700 = vmatprep.subr.bf16.mxu0 0
      %701 = vmatpush1.bf16.msra.mxu0 0
      %702 = vmatprep.subr.bf16.mxu0 0
      %703 = vmatpush1.bf16.msra.mxu0 0
      %704 = vmatprep.subr.bf16.mxu0 0
      %705 = vmatpush1.bf16.msra.mxu0 0
      %706 = vmatprep.subr.bf16.mxu0 0
      %707 = vmatpush1.bf16.msra.mxu0 0
      %708 = vmatprep.mubr.bf16.mxu0 0
      %709 = vmatmul.mubr.bf16.gmra.mrb[0].mxu0 %v653
      %v710 = vpop.f32.mrb[0].mxu0
      %v711 = vadd.f32 0.0, %v710
      %v712 = vpop.f32.mrb[0].mxu0
      %v713 = vpop.f32.mrb[0].mxu0
      %v714 = vadd.f32 0.0, %v713
      %v715 = vpop.f32.mrb[0].mxu0
      %716 = vmatprep.mubr.bf16.mxu0 0
      %717 = vmatmul.mubr.bf16.gmra.mrb[0].mxu0 %v656
      %v718 = vpop.f32.mrb[0].mxu0
      %v719 = vadd.f32 0.0, %v718
      %v720 = vpop.f32.mrb[0].mxu0
      %v721 = vpop.f32.mrb[0].mxu0
      %v722 = vadd.f32 0.0, %v721
      %v723 = vpop.f32.mrb[0].mxu0
      %724 = vmatprep.mubr.bf16.mxu0 0
      %725 = vmatmul.mubr.bf16.gmra.mrb[0].mxu0 %v659
      %v726 = vpop.f32.mrb[0].mxu0
      %v727 = vadd.f32 0.0, %v726
      %v728 = vpop.f32.mrb[0].mxu0
      %v729 = vpop.f32.mrb[0].mxu0
      %v730 = vadd.f32 0.0, %v729
      %v731 = vpop.f32.mrb[0].mxu0
      %732 = vmatprep.mubr.bf16.mxu0 0
      %733 = vmatmul.mubr.bf16.gmra.mrb[0].mxu0 %v662
      %v734 = vpop.f32.mrb[0].mxu0
      %v735 = vadd.f32 0.0, %v734
      %v736 = vpop.f32.mrb[0].mxu0
      %v737 = vpop.f32.mrb[0].mxu0
      %v738 = vadd.f32 0.0, %v737
      %v739 = vpop.f32.mrb[0].mxu0
      %740 = vmatprep.mubr.bf16.mxu0 0
      %741 = vmatmul.mubr.bf16.gmra.mrb[0].mxu0 %v665
      %v742 = vpop.f32.mrb[0].mxu0
      %v743 = vadd.f32 0.0, %v742
      %v744 = vpop.f32.mrb[0].mxu0
      %v745 = vpop.f32.mrb[0].mxu0
      %v746 = vadd.f32 0.0, %v745
      %v747 = vpop.f32.mrb[0].mxu0
      %748 = vmatprep.mubr.bf16.mxu0 0
      %749 = vmatmul.mubr.bf16.gmra.mrb[0].mxu0 %v668
      %v750 = vpop.f32.mrb[0].mxu0
      %v751 = vadd.f32 0.0, %v750
      %v752 = vpop.f32.mrb[0].mxu0
      %v753 = vpop.f32.mrb[0].mxu0
      %v754 = vadd.f32 0.0, %v753
      %v755 = vpop.f32.mrb[0].mxu0
      %756 = vmatprep.mubr.bf16.mxu0 0
      %757 = vmatmul.mubr.bf16.gmra.mrb[0].mxu0 %v671
      %v758 = vpop.f32.mrb[0].mxu0
      %v759 = vadd.f32 0.0, %v758
      %v760 = vpop.f32.mrb[0].mxu0
      %v761 = vpop.f32.mrb[0].mxu0
      %v762 = vadd.f32 0.0, %v761
      %v763 = vpop.f32.mrb[0].mxu0
      %764 = vmatprep.mubr.bf16.mxu0 0
      %765 = vmatmul.mubr.bf16.gmra.mrb[0].mxu0 %v674
      %v766 = vpop.f32.mrb[0].mxu0
      %v767 = vadd.f32 0.0, %v766
      %v768 = vpop.f32.mrb[0].mxu0
      %v769 = vpop.f32.mrb[0].mxu0
      %v770 = vadd.f32 0.0, %v769
      %v771 = vpop.f32.mrb[0].mxu0
      %772 = vdwg.mxu0
      %v781 = vunpack.c.l.b16 %v513
      %v782 = vunpack.c.l.b16 %v514
      %v783 = vunpack.c.l.b16 %v515
      %v784 = vunpack.c.l.b16 %v516
      %v785 = vunpack.c.l.b16 %v517
      %v786 = vunpack.c.l.b16 %v518
      %v787 = vunpack.c.l.b16 %v519
      %v788 = vunpack.c.l.b16 %v520
      %v789 = vpack.c.b16 %v782, %v781
      %v790 = vpack.c.b16 %v784, %v783
      %v791 = vpack.c.b16 %v786, %v785
      %v792 = vpack.c.b16 %v788, %v787
      %v797 = vsel %vm651, %v493, 0
      %v799 = vsel %vm651, %v495, 0
      %v801 = vsel %vm651, %v497, 0
      %v803 = vsel %vm651, %v499, 0
      %v805 = vsel %vm651, %v501, 0
      %v807 = vsel %vm651, %v503, 0
      %v809 = vsel %vm651, %v505, 0
      %v811 = vsel %vm651, %v507, 0
      %813 = vmatprep.subr.bf16.mxu0 0
      %814 = vmatpush1.bf16.msra.mxu0 %v789
      %815 = vmatprep.subr.bf16.mxu0 0
      %816 = vmatpush1.bf16.msra.mxu0 %v790
      %817 = vmatprep.subr.bf16.mxu0 0
      %818 = vmatpush1.bf16.msra.mxu0 %v791
      %819 = vmatprep.subr.bf16.mxu0 0
      %820 = vmatpush1.bf16.msra.mxu0 %v792
      %821 = vmatprep.subr.bf16.mxu0 0
      %822 = vmatpush1.bf16.msra.mxu0 0
      %823 = vmatprep.subr.bf16.mxu0 0
      %824 = vmatpush1.bf16.msra.mxu0 0
      %825 = vmatprep.subr.bf16.mxu0 0
      %826 = vmatpush1.bf16.msra.mxu0 0
      %827 = vmatprep.subr.bf16.mxu0 0
      %828 = vmatpush1.bf16.msra.mxu0 0
      %829 = vmatprep.subr.bf16.mxu0 0
      %830 = vmatpush1.bf16.msra.mxu0 0
      %831 = vmatprep.subr.bf16.mxu0 0
      %832 = vmatpush1.bf16.msra.mxu0 0
      %833 = vmatprep.subr.bf16.mxu0 0
      %834 = vmatpush1.bf16.msra.mxu0 0
      %835 = vmatprep.subr.bf16.mxu0 0
      %836 = vmatpush1.bf16.msra.mxu0 0
      %837 = vmatprep.subr.bf16.mxu0 0
      %838 = vmatpush1.bf16.msra.mxu0 0
      %839 = vmatprep.subr.bf16.mxu0 0
      %840 = vmatpush1.bf16.msra.mxu0 0
      %841 = vmatprep.subr.bf16.mxu0 0
      %842 = vmatpush1.bf16.msra.mxu0 0
      %843 = vmatprep.subr.bf16.mxu0 0
      %844 = vmatpush1.bf16.msra.mxu0 0
      %845 = vmatprep.mubr.bf16.mxu0 0
      %846 = vmatmul.mubr.bf16.gmra.mrb[0].mxu0 %v797
      %v847 = vpop.f32.mrb[0].mxu0
      %v848 = vadd.f32 %v711, %v847
      %v849 = vpop.f32.mrb[0].mxu0
      %v850 = vpop.f32.mrb[0].mxu0
      %v851 = vadd.f32 %v714, %v850
      %v852 = vpop.f32.mrb[0].mxu0
      %853 = vmatprep.mubr.bf16.mxu0 0
      %854 = vmatmul.mubr.bf16.gmra.mrb[0].mxu0 %v799
      %v855 = vpop.f32.mrb[0].mxu0
      %v856 = vadd.f32 %v719, %v855
      %v857 = vpop.f32.mrb[0].mxu0
      %v858 = vpop.f32.mrb[0].mxu0
      %v859 = vadd.f32 %v722, %v858
      %v860 = vpop.f32.mrb[0].mxu0
      %861 = vmatprep.mubr.bf16.mxu0 0
      %862 = vmatmul.mubr.bf16.gmra.mrb[0].mxu0 %v801
      %v863 = vpop.f32.mrb[0].mxu0
      %v864 = vadd.f32 %v727, %v863
      %v865 = vpop.f32.mrb[0].mxu0
      %v866 = vpop.f32.mrb[0].mxu0
      %v867 = vadd.f32 %v730, %v866
      %v868 = vpop.f32.mrb[0].mxu0
      %869 = vmatprep.mubr.bf16.mxu0 0
      %870 = vmatmul.mubr.bf16.gmra.mrb[0].mxu0 %v803
      %v871 = vpop.f32.mrb[0].mxu0
      %v872 = vadd.f32 %v735, %v871
      %v873 = vpop.f32.mrb[0].mxu0
      %v874 = vpop.f32.mrb[0].mxu0
      %v875 = vadd.f32 %v738, %v874
      %v876 = vpop.f32.mrb[0].mxu0
      %877 = vmatprep.mubr.bf16.mxu0 0
      %878 = vmatmul.mubr.bf16.gmra.mrb[0].mxu0 %v805
      %v879 = vpop.f32.mrb[0].mxu0
      %v880 = vadd.f32 %v743, %v879
      %v881 = vpop.f32.mrb[0].mxu0
      %v882 = vpop.f32.mrb[0].mxu0
      %v883 = vadd.f32 %v746, %v882
      %v884 = vpop.f32.mrb[0].mxu0
      %885 = vmatprep.mubr.bf16.mxu0 0
      %886 = vmatmul.mubr.bf16.gmra.mrb[0].mxu0 %v807
      %v887 = vpop.f32.mrb[0].mxu0
      %v888 = vadd.f32 %v751, %v887
      %v889 = vpop.f32.mrb[0].mxu0
      %v890 = vpop.f32.mrb[0].mxu0
      %v891 = vadd.f32 %v754, %v890
      %v892 = vpop.f32.mrb[0].mxu0
      %893 = vmatprep.mubr.bf16.mxu0 0
      %894 = vmatmul.mubr.bf16.gmra.mrb[0].mxu0 %v809
      %v895 = vpop.f32.mrb[0].mxu0
      %v896 = vadd.f32 %v759, %v895
      %v897 = vpop.f32.mrb[0].mxu0
      %v898 = vpop.f32.mrb[0].mxu0
      %v899 = vadd.f32 %v762, %v898
      %v900 = vpop.f32.mrb[0].mxu0
      %901 = vmatprep.mubr.bf16.mxu0 0
      %902 = vmatmul.mubr.bf16.gmra.mrb[0].mxu0 %v811
      %v903 = vpop.f32.mrb[0].mxu0
      %v904 = vadd.f32 %v767, %v903
      %v905 = vpop.f32.mrb[0].mxu0
      %v906 = vpop.f32.mrb[0].mxu0
      %v907 = vadd.f32 %v770, %v906
      %v908 = vpop.f32.mrb[0].mxu0
      %909 = vdwg.mxu0
      %vm926 = vcmask 1046528
      %v927 = vrot.slane %v493, 1
      %v928 = vrot.slane %v494, 1
      %v929 = vsel %vm926, %v927, %v928
      %v930 = vrot.slane %v495, 1
      %v931 = vrot.slane %v496, 1
      %v932 = vsel %vm926, %v930, %v931
      %v933 = vrot.slane %v497, 1
      %v934 = vrot.slane %v498, 1
      %v935 = vsel %vm926, %v933, %v934
      %v936 = vrot.slane %v499, 1
      %v937 = vrot.slane %v500, 1
      %v938 = vsel %vm926, %v936, %v937
      %v939 = vrot.slane %v501, 1
      %v940 = vrot.slane %v502, 1
      %v941 = vsel %vm926, %v939, %v940
      %v942 = vrot.slane %v503, 1
      %v943 = vrot.slane %v504, 1
      %v944 = vsel %vm926, %v942, %v943
      %v945 = vrot.slane %v505, 1
      %v946 = vrot.slane %v506, 1
      %v947 = vsel %vm926, %v945, %v946
      %v948 = vrot.slane %v507, 1
      %v949 = vrot.slane %v508, 1
      %v950 = vsel %vm926, %v948, %v949
      %s951 = scalar_lea.vmem %s1, 64
      %v952 = vld [vmem:[%s951] sm:$0xf]
      %v953 = vld [vmem:[%s951 + $0x4] sm:$0xf]
      %v954 = vld [vmem:[%s951 + $0x8] sm:$0xf]
      %v955 = vld [vmem:[%s951 + $0xc] sm:$0xf]
      %v956 = vld [vmem:[%s951 + $0x10] sm:$0xf]
      %v957 = vld [vmem:[%s951 + $0x14] sm:$0xf]
      %v958 = vld [vmem:[%s951 + $0x18] sm:$0xf]
      %v959 = vld [vmem:[%s951 + $0x1c] sm:$0xf]
      %v968 = vunpack.c.l.b16 %v952
      %v969 = vunpack.c.l.b16 %v953
      %v970 = vunpack.c.l.b16 %v954
      %v971 = vunpack.c.l.b16 %v955
      %v972 = vunpack.c.l.b16 %v956
      %v973 = vunpack.c.l.b16 %v957
      %v974 = vunpack.c.l.b16 %v958
      %v975 = vunpack.c.l.b16 %v959
      %v976 = vpack.c.b16 %v969, %v968
      %v977 = vpack.c.b16 %v971, %v970
      %v978 = vpack.c.b16 %v973, %v972
      %v979 = vpack.c.b16 %v975, %v974
      %v985 = vsel %vm651, %v929, 0
      %v988 = vsel %vm651, %v932, 0
      %v991 = vsel %vm651, %v935, 0
      %v994 = vsel %vm651, %v938, 0
      %v997 = vsel %vm651, %v941, 0
      %v1000 = vsel %vm651, %v944, 0
      %v1003 = vsel %vm651, %v947, 0
      %v1006 = vsel %vm651, %v950, 0
      %1008 = vmatprep.subr.bf16.mxu0 0
      %1009 = vmatpush1.bf16.msra.mxu0 %v976
      %1010 = vmatprep.subr.bf16.mxu0 0
      %1011 = vmatpush1.bf16.msra.mxu0 %v977
      %1012 = vmatprep.subr.bf16.mxu0 0
      %1013 = vmatpush1.bf16.msra.mxu0 %v978
      %1014 = vmatprep.subr.bf16.mxu0 0
      %1015 = vmatpush1.bf16.msra.mxu0 %v979
      %1016 = vmatprep.subr.bf16.mxu0 0
      %1017 = vmatpush1.bf16.msra.mxu0 0
      %1018 = vmatprep.subr.bf16.mxu0 0
      %1019 = vmatpush1.bf16.msra.mxu0 0
      %1020 = vmatprep.subr.bf16.mxu0 0
      %1021 = vmatpush1.bf16.msra.mxu0 0
      %1022 = vmatprep.subr.bf16.mxu0 0
      %1023 = vmatpush1.bf16.msra.mxu0 0
      %1024 = vmatprep.subr.bf16.mxu0 0
      %1025 = vmatpush1.bf16.msra.mxu0 0
      %1026 = vmatprep.subr.bf16.mxu0 0
      %1027 = vmatpush1.bf16.msra.mxu0 0
      %1028 = vmatprep.subr.bf16.mxu0 0
      %1029 = vmatpush1.bf16.msra.mxu0 0
      %1030 = vmatprep.subr.bf16.mxu0 0
      %1031 = vmatpush1.bf16.msra.mxu0 0
      %1032 = vmatprep.subr.bf16.mxu0 0
      %1033 = vmatpush1.bf16.msra.mxu0 0
      %1034 = vmatprep.subr.bf16.mxu0 0
      %1035 = vmatpush1.bf16.msra.mxu0 0
      %1036 = vmatprep.subr.bf16.mxu0 0
      %1037 = vmatpush1.bf16.msra.mxu0 0
      %1038 = vmatprep.subr.bf16.mxu0 0
      %1039 = vmatpush1.bf16.msra.mxu0 0
      %1040 = vmatprep.mubr.bf16.mxu0 0
      %1041 = vmatmul.mubr.bf16.gmra.mrb[0].mxu0 %v985
      %v1042 = vpop.f32.mrb[0].mxu0
      %v1043 = vadd.f32 0.0, %v1042
      %v1044 = vpop.f32.mrb[0].mxu0
      %v1045 = vpop.f32.mrb[0].mxu0
      %v1046 = vadd.f32 0.0, %v1045
      %v1047 = vpop.f32.mrb[0].mxu0
      %1048 = vmatprep.mubr.bf16.mxu0 0
      %1049 = vmatmul.mubr.bf16.gmra.mrb[0].mxu0 %v988
      %v1050 = vpop.f32.mrb[0].mxu0
      %v1051 = vadd.f32 0.0, %v1050
      %v1052 = vpop.f32.mrb[0].mxu0
      %v1053 = vpop.f32.mrb[0].mxu0
      %v1054 = vadd.f32 0.0, %v1053
      %v1055 = vpop.f32.mrb[0].mxu0
      %1056 = vmatprep.mubr.bf16.mxu0 0
      %1057 = vmatmul.mubr.bf16.gmra.mrb[0].mxu0 %v991
      %v1058 = vpop.f32.mrb[0].mxu0
      %v1059 = vadd.f32 0.0, %v1058
      %v1060 = vpop.f32.mrb[0].mxu0
      %v1061 = vpop.f32.mrb[0].mxu0
      %v1062 = vadd.f32 0.0, %v1061
      %v1063 = vpop.f32.mrb[0].mxu0
      %1064 = vmatprep.mubr.bf16.mxu0 0
      %1065 = vmatmul.mubr.bf16.gmra.mrb[0].mxu0 %v994
      %v1066 = vpop.f32.mrb[0].mxu0
      %v1067 = vadd.f32 0.0, %v1066
      %v1068 = vpop.f32.mrb[0].mxu0
      %v1069 = vpop.f32.mrb[0].mxu0
      %v1070 = vadd.f32 0.0, %v1069
      %v1071 = vpop.f32.mrb[0].mxu0
      %1072 = vmatprep.mubr.bf16.mxu0 0
      %1073 = vmatmul.mubr.bf16.gmra.mrb[0].mxu0 %v997
      %v1074 = vpop.f32.mrb[0].mxu0
      %v1075 = vadd.f32 0.0, %v1074
      %v1076 = vpop.f32.mrb[0].mxu0
      %v1077 = vpop.f32.mrb[0].mxu0
      %v1078 = vadd.f32 0.0, %v1077
      %v1079 = vpop.f32.mrb[0].mxu0
      %1080 = vmatprep.mubr.bf16.mxu0 0
      %1081 = vmatmul.mubr.bf16.gmra.mrb[0].mxu0 %v1000
      %v1082 = vpop.f32.mrb[0].mxu0
      %v1083 = vadd.f32 0.0, %v1082
      %v1084 = vpop.f32.mrb[0].mxu0
      %v1085 = vpop.f32.mrb[0].mxu0
      %v1086 = vadd.f32 0.0, %v1085
      %v1087 = vpop.f32.mrb[0].mxu0
      %1088 = vmatprep.mubr.bf16.mxu0 0
      %1089 = vmatmul.mubr.bf16.gmra.mrb[0].mxu0 %v1003
      %v1090 = vpop.f32.mrb[0].mxu0
      %v1091 = vadd.f32 0.0, %v1090
      %v1092 = vpop.f32.mrb[0].mxu0
      %v1093 = vpop.f32.mrb[0].mxu0
      %v1094 = vadd.f32 0.0, %v1093
      %v1095 = vpop.f32.mrb[0].mxu0
      %1096 = vmatprep.mubr.bf16.mxu0 0
      %1097 = vmatmul.mubr.bf16.gmra.mrb[0].mxu0 %v1006
      %v1098 = vpop.f32.mrb[0].mxu0
      %v1099 = vadd.f32 0.0, %v1098
      %v1100 = vpop.f32.mrb[0].mxu0
      %v1101 = vpop.f32.mrb[0].mxu0
      %v1102 = vadd.f32 0.0, %v1101
      %v1103 = vpop.f32.mrb[0].mxu0
      %1104 = vdwg.mxu0
      %v1105 = vadd.f32 %v848, %v1043
      %v1106 = vadd.f32 %v851, %v1046
      %v1107 = vadd.f32 %v856, %v1051
      %v1108 = vadd.f32 %v859, %v1054
      %v1109 = vadd.f32 %v864, %v1059
      %v1110 = vadd.f32 %v867, %v1062
      %v1111 = vadd.f32 %v872, %v1067
      %v1112 = vadd.f32 %v875, %v1070
      %v1113 = vadd.f32 %v880, %v1075
      %v1114 = vadd.f32 %v883, %v1078
      %v1115 = vadd.f32 %v888, %v1083
      %v1116 = vadd.f32 %v891, %v1086
      %v1117 = vadd.f32 %v896, %v1091
      %v1118 = vadd.f32 %v899, %v1094
      %v1119 = vadd.f32 %v904, %v1099
      %v1120 = vadd.f32 %v907, %v1102
      %s1121 = scalar_lea.vmem %s1, 96
      %v1122 = vld [vmem:[%s1121] sm:$0xf]
      %v1123 = vld [vmem:[%s1121 + $0x4] sm:$0xf]
      %v1124 = vld [vmem:[%s1121 + $0x8] sm:$0xf]
      %v1125 = vld [vmem:[%s1121 + $0xc] sm:$0xf]
      %v1126 = vld [vmem:[%s1121 + $0x10] sm:$0xf]
      %v1127 = vld [vmem:[%s1121 + $0x14] sm:$0xf]
      %v1128 = vld [vmem:[%s1121 + $0x18] sm:$0xf]
      %v1129 = vld [vmem:[%s1121 + $0x1c] sm:$0xf]
      %v1138 = vunpack.c.l.b16 %v1122
      %v1139 = vunpack.c.l.b16 %v1123
      %v1140 = vunpack.c.l.b16 %v1124
      %v1141 = vunpack.c.l.b16 %v1125
      %v1142 = vunpack.c.l.b16 %v1126
      %v1143 = vunpack.c.l.b16 %v1127
      %v1144 = vunpack.c.l.b16 %v1128
      %v1145 = vunpack.c.l.b16 %v1129
      %v1146 = vpack.c.b16 %v1139, %v1138
      %v1147 = vpack.c.b16 %v1141, %v1140
      %v1148 = vpack.c.b16 %v1143, %v1142
      %v1149 = vpack.c.b16 %v1145, %v1144
      %v1155 = vsel %vm651, %v509, 0
      %1157 = vmatprep.subr.bf16.mxu0 0
      %1158 = vmatpush1.bf16.msra.mxu0 %v1146
      %1159 = vmatprep.subr.bf16.mxu0 0
      %1160 = vmatpush1.bf16.msra.mxu0 %v1147
      %1161 = vmatprep.subr.bf16.mxu0 0
      %1162 = vmatpush1.bf16.msra.mxu0 %v1148
      %1163 = vmatprep.subr.bf16.mxu0 0
      %1164 = vmatpush1.bf16.msra.mxu0 %v1149
      %1165 = vmatprep.subr.bf16.mxu0 0
      %1166 = vmatpush1.bf16.msra.mxu0 0
      %1167 = vmatprep.subr.bf16.mxu0 0
      %1168 = vmatpush1.bf16.msra.mxu0 0
      %1169 = vmatprep.subr.bf16.mxu0 0
      %1170 = vmatpush1.bf16.msra.mxu0 0
      %1171 = vmatprep.subr.bf16.mxu0 0
      %1172 = vmatpush1.bf16.msra.mxu0 0
      %1173 = vmatprep.subr.bf16.mxu0 0
      %1174 = vmatpush1.bf16.msra.mxu0 0
      %1175 = vmatprep.subr.bf16.mxu0 0
      %1176 = vmatpush1.bf16.msra.mxu0 0
      %1177 = vmatprep.subr.bf16.mxu0 0
      %1178 = vmatpush1.bf16.msra.mxu0 0
      %1179 = vmatprep.subr.bf16.mxu0 0
      %1180 = vmatpush1.bf16.msra.mxu0 0
      %1181 = vmatprep.subr.bf16.mxu0 0
      %1182 = vmatpush1.bf16.msra.mxu0 0
      %1183 = vmatprep.subr.bf16.mxu0 0
      %1184 = vmatpush1.bf16.msra.mxu0 0
      %1185 = vmatprep.subr.bf16.mxu0 0
      %1186 = vmatpush1.bf16.msra.mxu0 0
      %1187 = vmatprep.subr.bf16.mxu0 0
      %1188 = vmatpush1.bf16.msra.mxu0 0
      %1189 = vmatprep.mubr.bf16.mxu0 0
      %1190 = vmatmul.mubr.bf16.gmra.mrb[0].mxu0 %v799
      %v1191 = vpop.f32.mrb[0].mxu0
      %v1192 = vadd.f32 0.0, %v1191
      %v1193 = vpop.f32.mrb[0].mxu0
      %v1194 = vpop.f32.mrb[0].mxu0
      %v1195 = vadd.f32 0.0, %v1194
      %v1196 = vpop.f32.mrb[0].mxu0
      %1197 = vmatprep.mubr.bf16.mxu0 0
      %1198 = vmatmul.mubr.bf16.gmra.mrb[0].mxu0 %v801
      %v1199 = vpop.f32.mrb[0].mxu0
      %v1200 = vadd.f32 0.0, %v1199
      %v1201 = vpop.f32.mrb[0].mxu0
      %v1202 = vpop.f32.mrb[0].mxu0
      %v1203 = vadd.f32 0.0, %v1202
      %v1204 = vpop.f32.mrb[0].mxu0
      %1205 = vmatprep.mubr.bf16.mxu0 0
      %1206 = vmatmul.mubr.bf16.gmra.mrb[0].mxu0 %v803
      %v1207 = vpop.f32.mrb[0].mxu0
      %v1208 = vadd.f32 0.0, %v1207
      %v1209 = vpop.f32.mrb[0].mxu0
      %v1210 = vpop.f32.mrb[0].mxu0
      %v1211 = vadd.f32 0.0, %v1210
      %v1212 = vpop.f32.mrb[0].mxu0
      %1213 = vmatprep.mubr.bf16.mxu0 0
      %1214 = vmatmul.mubr.bf16.gmra.mrb[0].mxu0 %v805
      %v1215 = vpop.f32.mrb[0].mxu0
      %v1216 = vadd.f32 0.0, %v1215
      %v1217 = vpop.f32.mrb[0].mxu0
      %v1218 = vpop.f32.mrb[0].mxu0
      %v1219 = vadd.f32 0.0, %v1218
      %v1220 = vpop.f32.mrb[0].mxu0
      %1221 = vmatprep.mubr.bf16.mxu0 0
      %1222 = vmatmul.mubr.bf16.gmra.mrb[0].mxu0 %v807
      %v1223 = vpop.f32.mrb[0].mxu0
      %v1224 = vadd.f32 0.0, %v1223
      %v1225 = vpop.f32.mrb[0].mxu0
      %v1226 = vpop.f32.mrb[0].mxu0
      %v1227 = vadd.f32 0.0, %v1226
      %v1228 = vpop.f32.mrb[0].mxu0
      %1229 = vmatprep.mubr.bf16.mxu0 0
      %1230 = vmatmul.mubr.bf16.gmra.mrb[0].mxu0 %v809
      %v1231 = vpop.f32.mrb[0].mxu0
      %v1232 = vadd.f32 0.0, %v1231
      %v1233 = vpop.f32.mrb[0].mxu0
      %v1234 = vpop.f32.mrb[0].mxu0
      %v1235 = vadd.f32 0.0, %v1234
      %v1236 = vpop.f32.mrb[0].mxu0
      %1237 = vmatprep.mubr.bf16.mxu0 0
      %1238 = vmatmul.mubr.bf16.gmra.mrb[0].mxu0 %v811
      %v1239 = vpop.f32.mrb[0].mxu0
      %v1240 = vadd.f32 0.0, %v1239
      %v1241 = vpop.f32.mrb[0].mxu0
      %v1242 = vpop.f32.mrb[0].mxu0
      %v1243 = vadd.f32 0.0, %v1242
      %v1244 = vpop.f32.mrb[0].mxu0
      %1245 = vmatprep.mubr.bf16.mxu0 0
      %1246 = vmatmul.mubr.bf16.gmra.mrb[0].mxu0 %v1155
      %v1247 = vpop.f32.mrb[0].mxu0
      %v1248 = vadd.f32 0.0, %v1247
      %v1249 = vpop.f32.mrb[0].mxu0
      %v1250 = vpop.f32.mrb[0].mxu0
      %v1251 = vadd.f32 0.0, %v1250
      %v1252 = vpop.f32.mrb[0].mxu0
      %1253 = vdwg.mxu0
      %v1254 = vadd.f32 %v1105, %v1192
      %v1255 = vadd.f32 %v1106, %v1195
      %v1256 = vadd.f32 %v1107, %v1200
      %v1257 = vadd.f32 %v1108, %v1203
      %v1258 = vadd.f32 %v1109, %v1208
      %v1259 = vadd.f32 %v1110, %v1211
      %v1260 = vadd.f32 %v1111, %v1216
      %v1261 = vadd.f32 %v1112, %v1219
      %v1262 = vadd.f32 %v1113, %v1224
      %v1263 = vadd.f32 %v1114, %v1227
      %v1264 = vadd.f32 %v1115, %v1232
      %v1265 = vadd.f32 %v1116, %v1235
      %v1266 = vadd.f32 %v1117, %v1240
      %v1267 = vadd.f32 %v1118, %v1243
      %v1268 = vadd.f32 %v1119, %v1248
      %v1269 = vadd.f32 %v1120, %v1251
      %v1270 = vshrl.u32 %v509, 16
      %v1272 = vshll.u32 %v509, 16
      %v1274 = vrot.slane %v1272, 1
      %v1275 = vor.u32 %v1270, %v1274
      %v1277 = vshll.u32 %v510, 16
      %v1279 = vrot.slane %v1277, 1
      %v1280 = vsel %vm521, %v1275, %v1279
      %s1281 = scalar_lea.vmem %s1, 128
      %v1282 = vld [vmem:[%s1281] sm:$0xf]
      %v1283 = vld [vmem:[%s1281 + $0x4] sm:$0xf]
      %v1284 = vld [vmem:[%s1281 + $0x8] sm:$0xf]
      %v1285 = vld [vmem:[%s1281 + $0xc] sm:$0xf]
      %v1286 = vld [vmem:[%s1281 + $0x10] sm:$0xf]
      %v1287 = vld [vmem:[%s1281 + $0x14] sm:$0xf]
      %v1288 = vld [vmem:[%s1281 + $0x18] sm:$0xf]
      %v1289 = vld [vmem:[%s1281 + $0x1c] sm:$0xf]
      %v1298 = vunpack.c.l.b16 %v1282
      %v1299 = vunpack.c.l.b16 %v1283
      %v1300 = vunpack.c.l.b16 %v1284
      %v1301 = vunpack.c.l.b16 %v1285
      %v1302 = vunpack.c.l.b16 %v1286
      %v1303 = vunpack.c.l.b16 %v1287
      %v1304 = vunpack.c.l.b16 %v1288
      %v1305 = vunpack.c.l.b16 %v1289
      %v1306 = vpack.c.b16 %v1299, %v1298
      %v1307 = vpack.c.b16 %v1301, %v1300
      %v1308 = vpack.c.b16 %v1303, %v1302
      %v1309 = vpack.c.b16 %v1305, %v1304
      %v1315 = vsel %vm651, %v1280, 0
      %1317 = vmatprep.subr.bf16.mxu0 0
      %1318 = vmatpush1.bf16.msra.mxu0 %v1306
      %1319 = vmatprep.subr.bf16.mxu0 0
      %1320 = vmatpush1.bf16.msra.mxu0 %v1307
      %1321 = vmatprep.subr.bf16.mxu0 0
      %1322 = vmatpush1.bf16.msra.mxu0 %v1308
      %1323 = vmatprep.subr.bf16.mxu0 0
      %1324 = vmatpush1.bf16.msra.mxu0 %v1309
      %1325 = vmatprep.subr.bf16.mxu0 0
      %1326 = vmatpush1.bf16.msra.mxu0 0
      %1327 = vmatprep.subr.bf16.mxu0 0
      %1328 = vmatpush1.bf16.msra.mxu0 0
      %1329 = vmatprep.subr.bf16.mxu0 0
      %1330 = vmatpush1.bf16.msra.mxu0 0
      %1331 = vmatprep.subr.bf16.mxu0 0
      %1332 = vmatpush1.bf16.msra.mxu0 0
      %1333 = vmatprep.subr.bf16.mxu0 0
      %1334 = vmatpush1.bf16.msra.mxu0 0
      %1335 = vmatprep.subr.bf16.mxu0 0
      %1336 = vmatpush1.bf16.msra.mxu0 0
      %1337 = vmatprep.subr.bf16.mxu0 0
      %1338 = vmatpush1.bf16.msra.mxu0 0
      %1339 = vmatprep.subr.bf16.mxu0 0
      %1340 = vmatpush1.bf16.msra.mxu0 0
      %1341 = vmatprep.subr.bf16.mxu0 0
      %1342 = vmatpush1.bf16.msra.mxu0 0
      %1343 = vmatprep.subr.bf16.mxu0 0
      %1344 = vmatpush1.bf16.msra.mxu0 0
      %1345 = vmatprep.subr.bf16.mxu0 0
      %1346 = vmatpush1.bf16.msra.mxu0 0
      %1347 = vmatprep.subr.bf16.mxu0 0
      %1348 = vmatpush1.bf16.msra.mxu0 0
      %1349 = vmatprep.mubr.bf16.mxu0 0
      %1350 = vmatmul.mubr.bf16.gmra.mrb[0].mxu0 %v656
      %v1351 = vpop.f32.mrb[0].mxu0
      %v1352 = vadd.f32 0.0, %v1351
      %v1353 = vpop.f32.mrb[0].mxu0
      %v1354 = vpop.f32.mrb[0].mxu0
      %v1355 = vadd.f32 0.0, %v1354
      %v1356 = vpop.f32.mrb[0].mxu0
      %1357 = vmatprep.mubr.bf16.mxu0 0
      %1358 = vmatmul.mubr.bf16.gmra.mrb[0].mxu0 %v659
      %v1359 = vpop.f32.mrb[0].mxu0
      %v1360 = vadd.f32 0.0, %v1359
      %v1361 = vpop.f32.mrb[0].mxu0
      %v1362 = vpop.f32.mrb[0].mxu0
      %v1363 = vadd.f32 0.0, %v1362
      %v1364 = vpop.f32.mrb[0].mxu0
      %1365 = vmatprep.mubr.bf16.mxu0 0
      %1366 = vmatmul.mubr.bf16.gmra.mrb[0].mxu0 %v662
      %v1367 = vpop.f32.mrb[0].mxu0
      %v1368 = vadd.f32 0.0, %v1367
      %v1369 = vpop.f32.mrb[0].mxu0
      %v1370 = vpop.f32.mrb[0].mxu0
      %v1371 = vadd.f32 0.0, %v1370
      %v1372 = vpop.f32.mrb[0].mxu0
      %1373 = vmatprep.mubr.bf16.mxu0 0
      %1374 = vmatmul.mubr.bf16.gmra.mrb[0].mxu0 %v665
      %v1375 = vpop.f32.mrb[0].mxu0
      %v1376 = vadd.f32 0.0, %v1375
      %v1377 = vpop.f32.mrb[0].mxu0
      %v1378 = vpop.f32.mrb[0].mxu0
      %v1379 = vadd.f32 0.0, %v1378
      %v1380 = vpop.f32.mrb[0].mxu0
      %1381 = vmatprep.mubr.bf16.mxu0 0
      %1382 = vmatmul.mubr.bf16.gmra.mrb[0].mxu0 %v668
      %v1383 = vpop.f32.mrb[0].mxu0
      %v1384 = vadd.f32 0.0, %v1383
      %v1385 = vpop.f32.mrb[0].mxu0
      %v1386 = vpop.f32.mrb[0].mxu0
      %v1387 = vadd.f32 0.0, %v1386
      %v1388 = vpop.f32.mrb[0].mxu0
      %1389 = vmatprep.mubr.bf16.mxu0 0
      %1390 = vmatmul.mubr.bf16.gmra.mrb[0].mxu0 %v671
      %v1391 = vpop.f32.mrb[0].mxu0
      %v1392 = vadd.f32 0.0, %v1391
      %v1393 = vpop.f32.mrb[0].mxu0
      %v1394 = vpop.f32.mrb[0].mxu0
      %v1395 = vadd.f32 0.0, %v1394
      %v1396 = vpop.f32.mrb[0].mxu0
      %1397 = vmatprep.mubr.bf16.mxu0 0
      %1398 = vmatmul.mubr.bf16.gmra.mrb[0].mxu0 %v674
      %v1399 = vpop.f32.mrb[0].mxu0
      %v1400 = vadd.f32 0.0, %v1399
      %v1401 = vpop.f32.mrb[0].mxu0
      %v1402 = vpop.f32.mrb[0].mxu0
      %v1403 = vadd.f32 0.0, %v1402
      %v1404 = vpop.f32.mrb[0].mxu0
      %1405 = vmatprep.mubr.bf16.mxu0 0
      %1406 = vmatmul.mubr.bf16.gmra.mrb[0].mxu0 %v1315
      %v1407 = vpop.f32.mrb[0].mxu0
      %v1408 = vadd.f32 0.0, %v1407
      %v1409 = vpop.f32.mrb[0].mxu0
      %v1410 = vpop.f32.mrb[0].mxu0
      %v1411 = vadd.f32 0.0, %v1410
      %v1412 = vpop.f32.mrb[0].mxu0
      %1413 = vdwg.mxu0
      %v1414 = vadd.f32 %v1254, %v1352
      %v1415 = vadd.f32 %v1255, %v1355
      %v1416 = vadd.f32 %v1256, %v1360
      %v1417 = vadd.f32 %v1257, %v1363
      %v1418 = vadd.f32 %v1258, %v1368
      %v1419 = vadd.f32 %v1259, %v1371
      %v1420 = vadd.f32 %v1260, %v1376
      %v1421 = vadd.f32 %v1261, %v1379
      %v1422 = vadd.f32 %v1262, %v1384
      %v1423 = vadd.f32 %v1263, %v1387
      %v1424 = vadd.f32 %v1264, %v1392
      %v1425 = vadd.f32 %v1265, %v1395
      %v1426 = vadd.f32 %v1266, %v1400
      %v1427 = vadd.f32 %v1267, %v1403
      %v1428 = vadd.f32 %v1268, %v1408
      %v1429 = vadd.f32 %v1269, %v1411
      %v1432 = vrot.slane %v509, 1
      %v1433 = vrot.slane %v510, 1
      %v1434 = vsel %vm926, %v1432, %v1433
      %s1435 = scalar_lea.vmem %s1, 160
      %v1436 = vld [vmem:[%s1435] sm:$0xf]
      %v1437 = vld [vmem:[%s1435 + $0x4] sm:$0xf]
      %v1438 = vld [vmem:[%s1435 + $0x8] sm:$0xf]
      %v1439 = vld [vmem:[%s1435 + $0xc] sm:$0xf]
      %v1440 = vld [vmem:[%s1435 + $0x10] sm:$0xf]
      %v1441 = vld [vmem:[%s1435 + $0x14] sm:$0xf]
      %v1442 = vld [vmem:[%s1435 + $0x18] sm:$0xf]
      %v1443 = vld [vmem:[%s1435 + $0x1c] sm:$0xf]
      %v1452 = vunpack.c.l.b16 %v1436
      %v1453 = vunpack.c.l.b16 %v1437
      %v1454 = vunpack.c.l.b16 %v1438
      %v1455 = vunpack.c.l.b16 %v1439
      %v1456 = vunpack.c.l.b16 %v1440
      %v1457 = vunpack.c.l.b16 %v1441
      %v1458 = vunpack.c.l.b16 %v1442
      %v1459 = vunpack.c.l.b16 %v1443
      %v1460 = vpack.c.b16 %v1453, %v1452
      %v1461 = vpack.c.b16 %v1455, %v1454
      %v1462 = vpack.c.b16 %v1457, %v1456
      %v1463 = vpack.c.b16 %v1459, %v1458
      %v1469 = vsel %vm651, %v1434, 0
      %1471 = vmatprep.subr.bf16.mxu0 0
      %1472 = vmatpush1.bf16.msra.mxu0 %v1460
      %1473 = vmatprep.subr.bf16.mxu0 0
      %1474 = vmatpush1.bf16.msra.mxu0 %v1461
      %1475 = vmatprep.subr.bf16.mxu0 0
      %1476 = vmatpush1.bf16.msra.mxu0 %v1462
      %1477 = vmatprep.subr.bf16.mxu0 0
      %1478 = vmatpush1.bf16.msra.mxu0 %v1463
      %1479 = vmatprep.subr.bf16.mxu0 0
      %1480 = vmatpush1.bf16.msra.mxu0 0
      %1481 = vmatprep.subr.bf16.mxu0 0
      %1482 = vmatpush1.bf16.msra.mxu0 0
      %1483 = vmatprep.subr.bf16.mxu0 0
      %1484 = vmatpush1.bf16.msra.mxu0 0
      %1485 = vmatprep.subr.bf16.mxu0 0
      %1486 = vmatpush1.bf16.msra.mxu0 0
      %1487 = vmatprep.subr.bf16.mxu0 0
      %1488 = vmatpush1.bf16.msra.mxu0 0
      %1489 = vmatprep.subr.bf16.mxu0 0
      %1490 = vmatpush1.bf16.msra.mxu0 0
      %1491 = vmatprep.subr.bf16.mxu0 0
      %1492 = vmatpush1.bf16.msra.mxu0 0
      %1493 = vmatprep.subr.bf16.mxu0 0
      %1494 = vmatpush1.bf16.msra.mxu0 0
      %1495 = vmatprep.subr.bf16.mxu0 0
      %1496 = vmatpush1.bf16.msra.mxu0 0
      %1497 = vmatprep.subr.bf16.mxu0 0
      %1498 = vmatpush1.bf16.msra.mxu0 0
      %1499 = vmatprep.subr.bf16.mxu0 0
      %1500 = vmatpush1.bf16.msra.mxu0 0
      %1501 = vmatprep.subr.bf16.mxu0 0
      %1502 = vmatpush1.bf16.msra.mxu0 0
      %1503 = vmatprep.mubr.bf16.mxu0 0
      %1504 = vmatmul.mubr.bf16.gmra.mrb[0].mxu0 %v988
      %v1505 = vpop.f32.mrb[0].mxu0
      %v1506 = vadd.f32 0.0, %v1505
      %v1507 = vpop.f32.mrb[0].mxu0
      %v1508 = vpop.f32.mrb[0].mxu0
      %v1509 = vadd.f32 0.0, %v1508
      %v1510 = vpop.f32.mrb[0].mxu0
      %1511 = vmatprep.mubr.bf16.mxu0 0
      %1512 = vmatmul.mubr.bf16.gmra.mrb[0].mxu0 %v991
      %v1513 = vpop.f32.mrb[0].mxu0
      %v1514 = vadd.f32 0.0, %v1513
      %v1515 = vpop.f32.mrb[0].mxu0
      %v1516 = vpop.f32.mrb[0].mxu0
      %v1517 = vadd.f32 0.0, %v1516
      %v1518 = vpop.f32.mrb[0].mxu0
      %1519 = vmatprep.mubr.bf16.mxu0 0
      %1520 = vmatmul.mubr.bf16.gmra.mrb[0].mxu0 %v994
      %v1521 = vpop.f32.mrb[0].mxu0
      %v1522 = vadd.f32 0.0, %v1521
      %v1523 = vpop.f32.mrb[0].mxu0
      %v1524 = vpop.f32.mrb[0].mxu0
      %v1525 = vadd.f32 0.0, %v1524
      %v1526 = vpop.f32.mrb[0].mxu0
      %1527 = vmatprep.mubr.bf16.mxu0 0
      %1528 = vmatmul.mubr.bf16.gmra.mrb[0].mxu0 %v997
      %v1529 = vpop.f32.mrb[0].mxu0
      %v1530 = vadd.f32 0.0, %v1529
      %v1531 = vpop.f32.mrb[0].mxu0
      %v1532 = vpop.f32.mrb[0].mxu0
      %v1533 = vadd.f32 0.0, %v1532
      %v1534 = vpop.f32.mrb[0].mxu0
      %1535 = vmatprep.mubr.bf16.mxu0 0
      %1536 = vmatmul.mubr.bf16.gmra.mrb[0].mxu0 %v1000
      %v1537 = vpop.f32.mrb[0].mxu0
      %v1538 = vadd.f32 0.0, %v1537
      %v1539 = vpop.f32.mrb[0].mxu0
      %v1540 = vpop.f32.mrb[0].mxu0
      %v1541 = vadd.f32 0.0, %v1540
      %v1542 = vpop.f32.mrb[0].mxu0
      %1543 = vmatprep.mubr.bf16.mxu0 0
      %1544 = vmatmul.mubr.bf16.gmra.mrb[0].mxu0 %v1003
      %v1545 = vpop.f32.mrb[0].mxu0
      %v1546 = vadd.f32 0.0, %v1545
      %v1547 = vpop.f32.mrb[0].mxu0
      %v1548 = vpop.f32.mrb[0].mxu0
      %v1549 = vadd.f32 0.0, %v1548
      %v1550 = vpop.f32.mrb[0].mxu0
      %1551 = vmatprep.mubr.bf16.mxu0 0
      %1552 = vmatmul.mubr.bf16.gmra.mrb[0].mxu0 %v1006
      %v1553 = vpop.f32.mrb[0].mxu0
      %v1554 = vadd.f32 0.0, %v1553
      %v1555 = vpop.f32.mrb[0].mxu0
      %v1556 = vpop.f32.mrb[0].mxu0
      %v1557 = vadd.f32 0.0, %v1556
      %v1558 = vpop.f32.mrb[0].mxu0
      %1559 = vmatprep.mubr.bf16.mxu0 0
      %1560 = vmatmul.mubr.bf16.gmra.mrb[0].mxu0 %v1469
      %v1561 = vpop.f32.mrb[0].mxu0
      %v1562 = vadd.f32 0.0, %v1561
      %v1563 = vpop.f32.mrb[0].mxu0
      %v1564 = vpop.f32.mrb[0].mxu0
      %v1565 = vadd.f32 0.0, %v1564
      %v1566 = vpop.f32.mrb[0].mxu0
      %1567 = vdwg.mxu0
      %v1568 = vadd.f32 %v1414, %v1506
      %v1569 = vadd.f32 %v1415, %v1509
      %v1570 = vadd.f32 %v1416, %v1514
      %v1571 = vadd.f32 %v1417, %v1517
      %v1572 = vadd.f32 %v1418, %v1522
      %v1573 = vadd.f32 %v1419, %v1525
      %v1574 = vadd.f32 %v1420, %v1530
      %v1575 = vadd.f32 %v1421, %v1533
      %v1576 = vadd.f32 %v1422, %v1538
      %v1577 = vadd.f32 %v1423, %v1541
      %v1578 = vadd.f32 %v1424, %v1546
      %v1579 = vadd.f32 %v1425, %v1549
      %v1580 = vadd.f32 %v1426, %v1554
      %v1581 = vadd.f32 %v1427, %v1557
      %v1582 = vadd.f32 %v1428, %v1562
      %v1583 = vadd.f32 %v1429, %v1565
      %s1584 = scalar_lea.vmem %s1, 192
      %v1585 = vld [vmem:[%s1584] sm:$0xf]
      %v1586 = vld [vmem:[%s1584 + $0x4] sm:$0xf]
      %v1587 = vld [vmem:[%s1584 + $0x8] sm:$0xf]
      %v1588 = vld [vmem:[%s1584 + $0xc] sm:$0xf]
      %v1589 = vld [vmem:[%s1584 + $0x10] sm:$0xf]
      %v1590 = vld [vmem:[%s1584 + $0x14] sm:$0xf]
      %v1591 = vld [vmem:[%s1584 + $0x18] sm:$0xf]
      %v1592 = vld [vmem:[%s1584 + $0x1c] sm:$0xf]
      %v1601 = vunpack.c.l.b16 %v1585
      %v1602 = vunpack.c.l.b16 %v1586
      %v1603 = vunpack.c.l.b16 %v1587
      %v1604 = vunpack.c.l.b16 %v1588
      %v1605 = vunpack.c.l.b16 %v1589
      %v1606 = vunpack.c.l.b16 %v1590
      %v1607 = vunpack.c.l.b16 %v1591
      %v1608 = vunpack.c.l.b16 %v1592
      %v1609 = vpack.c.b16 %v1602, %v1601
      %v1610 = vpack.c.b16 %v1604, %v1603
      %v1611 = vpack.c.b16 %v1606, %v1605
      %v1612 = vpack.c.b16 %v1608, %v1607
      %v1618 = vsel %vm651, %v511, 0
      %1620 = vmatprep.subr.bf16.mxu0 0
      %1621 = vmatpush1.bf16.msra.mxu0 %v1609
      %1622 = vmatprep.subr.bf16.mxu0 0
      %1623 = vmatpush1.bf16.msra.mxu0 %v1610
      %1624 = vmatprep.subr.bf16.mxu0 0
      %1625 = vmatpush1.bf16.msra.mxu0 %v1611
      %1626 = vmatprep.subr.bf16.mxu0 0
      %1627 = vmatpush1.bf16.msra.mxu0 %v1612
      %1628 = vmatprep.subr.bf16.mxu0 0
      %1629 = vmatpush1.bf16.msra.mxu0 0
      %1630 = vmatprep.subr.bf16.mxu0 0
      %1631 = vmatpush1.bf16.msra.mxu0 0
      %1632 = vmatprep.subr.bf16.mxu0 0
      %1633 = vmatpush1.bf16.msra.mxu0 0
      %1634 = vmatprep.subr.bf16.mxu0 0
      %1635 = vmatpush1.bf16.msra.mxu0 0
      %1636 = vmatprep.subr.bf16.mxu0 0
      %1637 = vmatpush1.bf16.msra.mxu0 0
      %1638 = vmatprep.subr.bf16.mxu0 0
      %1639 = vmatpush1.bf16.msra.mxu0 0
      %1640 = vmatprep.subr.bf16.mxu0 0
      %1641 = vmatpush1.bf16.msra.mxu0 0
      %1642 = vmatprep.subr.bf16.mxu0 0
      %1643 = vmatpush1.bf16.msra.mxu0 0
      %1644 = vmatprep.subr.bf16.mxu0 0
      %1645 = vmatpush1.bf16.msra.mxu0 0
      %1646 = vmatprep.subr.bf16.mxu0 0
      %1647 = vmatpush1.bf16.msra.mxu0 0
      %1648 = vmatprep.subr.bf16.mxu0 0
      %1649 = vmatpush1.bf16.msra.mxu0 0
      %1650 = vmatprep.subr.bf16.mxu0 0
      %1651 = vmatpush1.bf16.msra.mxu0 0
      %1652 = vmatprep.mubr.bf16.mxu0 0
      %1653 = vmatmul.mubr.bf16.gmra.mrb[0].mxu0 %v801
      %v1654 = vpop.f32.mrb[0].mxu0
      %v1655 = vadd.f32 0.0, %v1654
      %v1656 = vpop.f32.mrb[0].mxu0
      %v1657 = vpop.f32.mrb[0].mxu0
      %v1658 = vadd.f32 0.0, %v1657
      %v1659 = vpop.f32.mrb[0].mxu0
      %1660 = vmatprep.mubr.bf16.mxu0 0
      %1661 = vmatmul.mubr.bf16.gmra.mrb[0].mxu0 %v803
      %v1662 = vpop.f32.mrb[0].mxu0
      %v1663 = vadd.f32 0.0, %v1662
      %v1664 = vpop.f32.mrb[0].mxu0
      %v1665 = vpop.f32.mrb[0].mxu0
      %v1666 = vadd.f32 0.0, %v1665
      %v1667 = vpop.f32.mrb[0].mxu0
      %1668 = vmatprep.mubr.bf16.mxu0 0
      %1669 = vmatmul.mubr.bf16.gmra.mrb[0].mxu0 %v805
      %v1670 = vpop.f32.mrb[0].mxu0
      %v1671 = vadd.f32 0.0, %v1670
      %v1672 = vpop.f32.mrb[0].mxu0
      %v1673 = vpop.f32.mrb[0].mxu0
      %v1674 = vadd.f32 0.0, %v1673
      %v1675 = vpop.f32.mrb[0].mxu0
      %1676 = vmatprep.mubr.bf16.mxu0 0
      %1677 = vmatmul.mubr.bf16.gmra.mrb[0].mxu0 %v807
      %v1678 = vpop.f32.mrb[0].mxu0
      %v1679 = vadd.f32 0.0, %v1678
      %v1680 = vpop.f32.mrb[0].mxu0
      %v1681 = vpop.f32.mrb[0].mxu0
      %v1682 = vadd.f32 0.0, %v1681
      %v1683 = vpop.f32.mrb[0].mxu0
      %1684 = vmatprep.mubr.bf16.mxu0 0
      %1685 = vmatmul.mubr.bf16.gmra.mrb[0].mxu0 %v809
      %v1686 = vpop.f32.mrb[0].mxu0
      %v1687 = vadd.f32 0.0, %v1686
      %v1688 = vpop.f32.mrb[0].mxu0
      %v1689 = vpop.f32.mrb[0].mxu0
      %v1690 = vadd.f32 0.0, %v1689
      %v1691 = vpop.f32.mrb[0].mxu0
      %1692 = vmatprep.mubr.bf16.mxu0 0
      %1693 = vmatmul.mubr.bf16.gmra.mrb[0].mxu0 %v811
      %v1694 = vpop.f32.mrb[0].mxu0
      %v1695 = vadd.f32 0.0, %v1694
      %v1696 = vpop.f32.mrb[0].mxu0
      %v1697 = vpop.f32.mrb[0].mxu0
      %v1698 = vadd.f32 0.0, %v1697
      %v1699 = vpop.f32.mrb[0].mxu0
      %1700 = vmatprep.mubr.bf16.mxu0 0
      %1701 = vmatmul.mubr.bf16.gmra.mrb[0].mxu0 %v1155
      %v1702 = vpop.f32.mrb[0].mxu0
      %v1703 = vadd.f32 0.0, %v1702
      %v1704 = vpop.f32.mrb[0].mxu0
      %v1705 = vpop.f32.mrb[0].mxu0
      %v1706 = vadd.f32 0.0, %v1705
      %v1707 = vpop.f32.mrb[0].mxu0
      %1708 = vmatprep.mubr.bf16.mxu0 0
      %1709 = vmatmul.mubr.bf16.gmra.mrb[0].mxu0 %v1618
      %v1710 = vpop.f32.mrb[0].mxu0
      %v1711 = vadd.f32 0.0, %v1710
      %v1712 = vpop.f32.mrb[0].mxu0
      %v1713 = vpop.f32.mrb[0].mxu0
      %v1714 = vadd.f32 0.0, %v1713
      %v1715 = vpop.f32.mrb[0].mxu0
      %1716 = vdwg.mxu0
      %v1717 = vadd.f32 %v1568, %v1655
      %v1718 = vadd.f32 %v1569, %v1658
      %v1719 = vadd.f32 %v1570, %v1663
      %v1720 = vadd.f32 %v1571, %v1666
      %v1721 = vadd.f32 %v1572, %v1671
      %v1722 = vadd.f32 %v1573, %v1674
      %v1723 = vadd.f32 %v1574, %v1679
      %v1724 = vadd.f32 %v1575, %v1682
      %v1725 = vadd.f32 %v1576, %v1687
      %v1726 = vadd.f32 %v1577, %v1690
      %v1727 = vadd.f32 %v1578, %v1695
      %v1728 = vadd.f32 %v1579, %v1698
      %v1729 = vadd.f32 %v1580, %v1703
      %v1730 = vadd.f32 %v1581, %v1706
      %v1731 = vadd.f32 %v1582, %v1711
      %v1732 = vadd.f32 %v1583, %v1714
      %v1733 = vshrl.u32 %v511, 16
      %v1735 = vshll.u32 %v511, 16
      %v1737 = vrot.slane %v1735, 1
      %v1738 = vor.u32 %v1733, %v1737
      %v1740 = vshll.u32 %v512, 16
      %v1742 = vrot.slane %v1740, 1
      %v1743 = vsel %vm521, %v1738, %v1742
      %s1744 = scalar_lea.vmem %s1, 224
      %v1745 = vld [vmem:[%s1744] sm:$0xf]
      %v1746 = vld [vmem:[%s1744 + $0x4] sm:$0xf]
      %v1747 = vld [vmem:[%s1744 + $0x8] sm:$0xf]
      %v1748 = vld [vmem:[%s1744 + $0xc] sm:$0xf]
      %v1749 = vld [vmem:[%s1744 + $0x10] sm:$0xf]
      %v1750 = vld [vmem:[%s1744 + $0x14] sm:$0xf]
      %v1751 = vld [vmem:[%s1744 + $0x18] sm:$0xf]
      %v1752 = vld [vmem:[%s1744 + $0x1c] sm:$0xf]
      %v1761 = vunpack.c.l.b16 %v1745
      %v1762 = vunpack.c.l.b16 %v1746
      %v1763 = vunpack.c.l.b16 %v1747
      %v1764 = vunpack.c.l.b16 %v1748
      %v1765 = vunpack.c.l.b16 %v1749
      %v1766 = vunpack.c.l.b16 %v1750
      %v1767 = vunpack.c.l.b16 %v1751
      %v1768 = vunpack.c.l.b16 %v1752
      %v1769 = vpack.c.b16 %v1762, %v1761
      %v1770 = vpack.c.b16 %v1764, %v1763
      %v1771 = vpack.c.b16 %v1766, %v1765
      %v1772 = vpack.c.b16 %v1768, %v1767
      %v1778 = vsel %vm651, %v1743, 0
      %1780 = vmatprep.subr.bf16.mxu0 0
      %1781 = vmatpush1.bf16.msra.mxu0 %v1769
      %1782 = vmatprep.subr.bf16.mxu0 0
      %1783 = vmatpush1.bf16.msra.mxu0 %v1770
      %1784 = vmatprep.subr.bf16.mxu0 0
      %1785 = vmatpush1.bf16.msra.mxu0 %v1771
      %1786 = vmatprep.subr.bf16.mxu0 0
      %1787 = vmatpush1.bf16.msra.mxu0 %v1772
      %1788 = vmatprep.subr.bf16.mxu0 0
      %1789 = vmatpush1.bf16.msra.mxu0 0
      %1790 = vmatprep.subr.bf16.mxu0 0
      %1791 = vmatpush1.bf16.msra.mxu0 0
      %1792 = vmatprep.subr.bf16.mxu0 0
      %1793 = vmatpush1.bf16.msra.mxu0 0
      %1794 = vmatprep.subr.bf16.mxu0 0
      %1795 = vmatpush1.bf16.msra.mxu0 0
      %1796 = vmatprep.subr.bf16.mxu0 0
      %1797 = vmatpush1.bf16.msra.mxu0 0
      %1798 = vmatprep.subr.bf16.mxu0 0
      %1799 = vmatpush1.bf16.msra.mxu0 0
      %1800 = vmatprep.subr.bf16.mxu0 0
      %1801 = vmatpush1.bf16.msra.mxu0 0
      %1802 = vmatprep.subr.bf16.mxu0 0
      %1803 = vmatpush1.bf16.msra.mxu0 0
      %1804 = vmatprep.subr.bf16.mxu0 0
      %1805 = vmatpush1.bf16.msra.mxu0 0
      %1806 = vmatprep.subr.bf16.mxu0 0
      %1807 = vmatpush1.bf16.msra.mxu0 0
      %1808 = vmatprep.subr.bf16.mxu0 0
      %1809 = vmatpush1.bf16.msra.mxu0 0
      %1810 = vmatprep.subr.bf16.mxu0 0
      %1811 = vmatpush1.bf16.msra.mxu0 0
      %1812 = vmatprep.mubr.bf16.mxu0 0
      %1813 = vmatmul.mubr.bf16.gmra.mrb[0].mxu0 %v659
      %v1814 = vpop.f32.mrb[0].mxu0
      %v1815 = vadd.f32 0.0, %v1814
      %v1816 = vpop.f32.mrb[0].mxu0
      %v1817 = vpop.f32.mrb[0].mxu0
      %v1818 = vadd.f32 0.0, %v1817
      %v1819 = vpop.f32.mrb[0].mxu0
      %1820 = vmatprep.mubr.bf16.mxu0 0
      %1821 = vmatmul.mubr.bf16.gmra.mrb[0].mxu0 %v662
      %v1822 = vpop.f32.mrb[0].mxu0
      %v1823 = vadd.f32 0.0, %v1822
      %v1824 = vpop.f32.mrb[0].mxu0
      %v1825 = vpop.f32.mrb[0].mxu0
      %v1826 = vadd.f32 0.0, %v1825
      %v1827 = vpop.f32.mrb[0].mxu0
      %1828 = vmatprep.mubr.bf16.mxu0 0
      %1829 = vmatmul.mubr.bf16.gmra.mrb[0].mxu0 %v665
      %v1830 = vpop.f32.mrb[0].mxu0
      %v1831 = vadd.f32 0.0, %v1830
      %v1832 = vpop.f32.mrb[0].mxu0
      %v1833 = vpop.f32.mrb[0].mxu0
      %v1834 = vadd.f32 0.0, %v1833
      %v1835 = vpop.f32.mrb[0].mxu0
      %1836 = vmatprep.mubr.bf16.mxu0 0
      %1837 = vmatmul.mubr.bf16.gmra.mrb[0].mxu0 %v668
      %v1838 = vpop.f32.mrb[0].mxu0
      %v1839 = vadd.f32 0.0, %v1838
      %v1840 = vpop.f32.mrb[0].mxu0
      %v1841 = vpop.f32.mrb[0].mxu0
      %v1842 = vadd.f32 0.0, %v1841
      %v1843 = vpop.f32.mrb[0].mxu0
      %1844 = vmatprep.mubr.bf16.mxu0 0
      %1845 = vmatmul.mubr.bf16.gmra.mrb[0].mxu0 %v671
      %v1846 = vpop.f32.mrb[0].mxu0
      %v1847 = vadd.f32 0.0, %v1846
      %v1848 = vpop.f32.mrb[0].mxu0
      %v1849 = vpop.f32.mrb[0].mxu0
      %v1850 = vadd.f32 0.0, %v1849
      %v1851 = vpop.f32.mrb[0].mxu0
      %1852 = vmatprep.mubr.bf16.mxu0 0
      %1853 = vmatmul.mubr.bf16.gmra.mrb[0].mxu0 %v674
      %v1854 = vpop.f32.mrb[0].mxu0
      %v1855 = vadd.f32 0.0, %v1854
      %v1856 = vpop.f32.mrb[0].mxu0
      %v1857 = vpop.f32.mrb[0].mxu0
      %v1858 = vadd.f32 0.0, %v1857
      %v1859 = vpop.f32.mrb[0].mxu0
      %1860 = vmatprep.mubr.bf16.mxu0 0
      %1861 = vmatmul.mubr.bf16.gmra.mrb[0].mxu0 %v1315
      %v1862 = vpop.f32.mrb[0].mxu0
      %v1863 = vadd.f32 0.0, %v1862
      %v1864 = vpop.f32.mrb[0].mxu0
      %v1865 = vpop.f32.mrb[0].mxu0
      %v1866 = vadd.f32 0.0, %v1865
      %v1867 = vpop.f32.mrb[0].mxu0
      %1868 = vmatprep.mubr.bf16.mxu0 0
      %1869 = vmatmul.mubr.bf16.gmra.mrb[0].mxu0 %v1778
      %v1870 = vpop.f32.mrb[0].mxu0
      %v1871 = vadd.f32 0.0, %v1870
      %v1872 = vpop.f32.mrb[0].mxu0
      %v1873 = vpop.f32.mrb[0].mxu0
      %v1874 = vadd.f32 0.0, %v1873
      %v1875 = vpop.f32.mrb[0].mxu0
      %1876 = vdwg.mxu0
      %v1877 = vadd.f32 %v1717, %v1815
      %v1878 = vadd.f32 %v1718, %v1818
      %v1879 = vadd.f32 %v1719, %v1823
      %v1880 = vadd.f32 %v1720, %v1826
      %v1881 = vadd.f32 %v1721, %v1831
      %v1882 = vadd.f32 %v1722, %v1834
      %v1883 = vadd.f32 %v1723, %v1839
      %v1884 = vadd.f32 %v1724, %v1842
      %v1885 = vadd.f32 %v1725, %v1847
      %v1886 = vadd.f32 %v1726, %v1850
      %v1887 = vadd.f32 %v1727, %v1855
      %v1888 = vadd.f32 %v1728, %v1858
      %v1889 = vadd.f32 %v1729, %v1863
      %v1890 = vadd.f32 %v1730, %v1866
      %v1891 = vadd.f32 %v1731, %v1871
      %v1892 = vadd.f32 %v1732, %v1874
      %v1895 = vrot.slane %v511, 1
      %v1896 = vrot.slane %v512, 1
      %v1897 = vsel %vm926, %v1895, %v1896
      %s1898 = scalar_lea.vmem %s1, 256
      %v1899 = vld [vmem:[%s1898] sm:$0xf]
      %v1900 = vld [vmem:[%s1898 + $0x4] sm:$0xf]
      %v1901 = vld [vmem:[%s1898 + $0x8] sm:$0xf]
      %v1902 = vld [vmem:[%s1898 + $0xc] sm:$0xf]
      %v1903 = vld [vmem:[%s1898 + $0x10] sm:$0xf]
      %v1904 = vld [vmem:[%s1898 + $0x14] sm:$0xf]
      %v1905 = vld [vmem:[%s1898 + $0x18] sm:$0xf]
      %v1906 = vld [vmem:[%s1898 + $0x1c] sm:$0xf]
      %v1915 = vunpack.c.l.b16 %v1899
      %v1916 = vunpack.c.l.b16 %v1900
      %v1917 = vunpack.c.l.b16 %v1901
      %v1918 = vunpack.c.l.b16 %v1902
      %v1919 = vunpack.c.l.b16 %v1903
      %v1920 = vunpack.c.l.b16 %v1904
      %v1921 = vunpack.c.l.b16 %v1905
      %v1922 = vunpack.c.l.b16 %v1906
      %v1923 = vpack.c.b16 %v1916, %v1915
      %v1924 = vpack.c.b16 %v1918, %v1917
      %v1925 = vpack.c.b16 %v1920, %v1919
      %v1926 = vpack.c.b16 %v1922, %v1921
      %v1932 = vsel %vm651, %v1897, 0
      %1934 = vmatprep.subr.bf16.mxu0 0
      %1935 = vmatpush1.bf16.msra.mxu0 %v1923
      %1936 = vmatprep.subr.bf16.mxu0 0
      %1937 = vmatpush1.bf16.msra.mxu0 %v1924
      %1938 = vmatprep.subr.bf16.mxu0 0
      %1939 = vmatpush1.bf16.msra.mxu0 %v1925
      %1940 = vmatprep.subr.bf16.mxu0 0
      %1941 = vmatpush1.bf16.msra.mxu0 %v1926
      %1942 = vmatprep.subr.bf16.mxu0 0
      %1943 = vmatpush1.bf16.msra.mxu0 0
      %1944 = vmatprep.subr.bf16.mxu0 0
      %1945 = vmatpush1.bf16.msra.mxu0 0
      %1946 = vmatprep.subr.bf16.mxu0 0
      %1947 = vmatpush1.bf16.msra.mxu0 0
      %1948 = vmatprep.subr.bf16.mxu0 0
      %1949 = vmatpush1.bf16.msra.mxu0 0
      %1950 = vmatprep.subr.bf16.mxu0 0
      %1951 = vmatpush1.bf16.msra.mxu0 0
      %1952 = vmatprep.subr.bf16.mxu0 0
      %1953 = vmatpush1.bf16.msra.mxu0 0
      %1954 = vmatprep.subr.bf16.mxu0 0
      %1955 = vmatpush1.bf16.msra.mxu0 0
      %1956 = vmatprep.subr.bf16.mxu0 0
      %1957 = vmatpush1.bf16.msra.mxu0 0
      %1958 = vmatprep.subr.bf16.mxu0 0
      %1959 = vmatpush1.bf16.msra.mxu0 0
      %1960 = vmatprep.subr.bf16.mxu0 0
      %1961 = vmatpush1.bf16.msra.mxu0 0
      %1962 = vmatprep.subr.bf16.mxu0 0
      %1963 = vmatpush1.bf16.msra.mxu0 0
      %1964 = vmatprep.subr.bf16.mxu0 0
      %1965 = vmatpush1.bf16.msra.mxu0 0
      %1966 = vmatprep.mubr.bf16.mxu0 0
      %1967 = vmatmul.mubr.bf16.gmra.mrb[0].mxu0 %v991
      %v1968 = vpop.f32.mrb[0].mxu0
      %v1969 = vadd.f32 0.0, %v1968
      %v1970 = vpop.f32.mrb[0].mxu0
      %v1971 = vpop.f32.mrb[0].mxu0
      %v1972 = vadd.f32 0.0, %v1971
      %v1973 = vpop.f32.mrb[0].mxu0
      %1974 = vmatprep.mubr.bf16.mxu0 0
      %1975 = vmatmul.mubr.bf16.gmra.mrb[0].mxu0 %v994
      %v1976 = vpop.f32.mrb[0].mxu0
      %v1977 = vadd.f32 0.0, %v1976
      %v1978 = vpop.f32.mrb[0].mxu0
      %v1979 = vpop.f32.mrb[0].mxu0
      %v1980 = vadd.f32 0.0, %v1979
      %v1981 = vpop.f32.mrb[0].mxu0
      %1982 = vmatprep.mubr.bf16.mxu0 0
      %1983 = vmatmul.mubr.bf16.gmra.mrb[0].mxu0 %v997
      %v1984 = vpop.f32.mrb[0].mxu0
      %v1985 = vadd.f32 0.0, %v1984
      %v1986 = vpop.f32.mrb[0].mxu0
      %v1987 = vpop.f32.mrb[0].mxu0
      %v1988 = vadd.f32 0.0, %v1987
      %v1989 = vpop.f32.mrb[0].mxu0
      %1990 = vmatprep.mubr.bf16.mxu0 0
      %1991 = vmatmul.mubr.bf16.gmra.mrb[0].mxu0 %v1000
      %v1992 = vpop.f32.mrb[0].mxu0
      %v1993 = vadd.f32 0.0, %v1992
      %v1994 = vpop.f32.mrb[0].mxu0
      %v1995 = vpop.f32.mrb[0].mxu0
      %v1996 = vadd.f32 0.0, %v1995
      %v1997 = vpop.f32.mrb[0].mxu0
      %1998 = vmatprep.mubr.bf16.mxu0 0
      %1999 = vmatmul.mubr.bf16.gmra.mrb[0].mxu0 %v1003
      %v2000 = vpop.f32.mrb[0].mxu0
      %v2001 = vadd.f32 0.0, %v2000
      %v2002 = vpop.f32.mrb[0].mxu0
      %v2003 = vpop.f32.mrb[0].mxu0
      %v2004 = vadd.f32 0.0, %v2003
      %v2005 = vpop.f32.mrb[0].mxu0
      %2006 = vmatprep.mubr.bf16.mxu0 0
      %2007 = vmatmul.mubr.bf16.gmra.mrb[0].mxu0 %v1006
      %v2008 = vpop.f32.mrb[0].mxu0
      %v2009 = vadd.f32 0.0, %v2008
      %v2010 = vpop.f32.mrb[0].mxu0
      %v2011 = vpop.f32.mrb[0].mxu0
      %v2012 = vadd.f32 0.0, %v2011
      %v2013 = vpop.f32.mrb[0].mxu0
      %2014 = vmatprep.mubr.bf16.mxu0 0
      %2015 = vmatmul.mubr.bf16.gmra.mrb[0].mxu0 %v1469
      %v2016 = vpop.f32.mrb[0].mxu0
      %v2017 = vadd.f32 0.0, %v2016
      %v2018 = vpop.f32.mrb[0].mxu0
      %v2019 = vpop.f32.mrb[0].mxu0
      %v2020 = vadd.f32 0.0, %v2019
      %v2021 = vpop.f32.mrb[0].mxu0
      %2022 = vmatprep.mubr.bf16.mxu0 0
      %2023 = vmatmul.mubr.bf16.gmra.mrb[0].mxu0 %v1932
      %v2024 = vpop.f32.mrb[0].mxu0
      %v2025 = vadd.f32 0.0, %v2024
      %v2026 = vpop.f32.mrb[0].mxu0
      %v2027 = vpop.f32.mrb[0].mxu0
      %v2028 = vadd.f32 0.0, %v2027
      %v2029 = vpop.f32.mrb[0].mxu0
      %2030 = vdwg.mxu0
      %v2031 = vadd.f32 %v1877, %v1969
      %v2032 = vadd.f32 %v1878, %v1972
      %v2033 = vadd.f32 %v1879, %v1977
      %v2034 = vadd.f32 %v1880, %v1980
      %v2035 = vadd.f32 %v1881, %v1985
      %v2036 = vadd.f32 %v1882, %v1988
      %v2037 = vadd.f32 %v1883, %v1993
      %v2038 = vadd.f32 %v1884, %v1996
      %v2039 = vadd.f32 %v1885, %v2001
      %v2040 = vadd.f32 %v1886, %v2004
      %v2041 = vadd.f32 %v1887, %v2009
      %v2042 = vadd.f32 %v1888, %v2012
      %v2043 = vadd.f32 %v1889, %v2017
      %v2044 = vadd.f32 %v1890, %v2020
      %v2045 = vadd.f32 %v1891, %v2025
      %v2046 = vadd.f32 %v1892, %v2028
      %p2047 = scmp.eq.s32.totalorder %s21, 0
      // Predicated region
      $region33: #{local_pathway_forward.23} parent=31 // pred_check
        %p2048 = pneg %p2047
      $region34: #{local_pathway_forward.23} parent=31 // pred_check_branch
        %2050 = sbr.rel (%p2048) target = $region36
      $region35: #{local_pathway_forward.23} parent=31 // pred_region
        %vm2051 = vcmask 517120
        %2052 = vst.msk [vmem:[%s264] sm:$0x3] %vm2051, 0.0
      $region36: #{local_pathway_forward.23} parent=31 // pred_fallthru
        _
      %v2053 = vsel %vm651, %v2031, 0.0
      %v2054 = vsel %vm651, %v2032, 0.0
      %v2055 = vadd.f32 %v2053, %v2054
      %v2056 = vsel %vm651, %v2033, 0.0
      %v2057 = vadd.f32 %v2055, %v2056
      %v2058 = vsel %vm651, %v2034, 0.0
      %v2059 = vadd.f32 %v2057, %v2058
      %v2060 = vsel %vm651, %v2035, 0.0
      %v2061 = vadd.f32 %v2059, %v2060
      %v2062 = vsel %vm651, %v2036, 0.0
      %v2063 = vadd.f32 %v2061, %v2062
      %v2064 = vsel %vm651, %v2037, 0.0
      %v2065 = vadd.f32 %v2063, %v2064
      %v2066 = vsel %vm651, %v2038, 0.0
      %v2067 = vadd.f32 %v2065, %v2066
      %v2068 = vsel %vm651, %v2039, 0.0
      %v2069 = vadd.f32 %v2067, %v2068
      %v2070 = vsel %vm651, %v2040, 0.0
      %v2071 = vadd.f32 %v2069, %v2070
      %v2072 = vsel %vm651, %v2041, 0.0
      %v2073 = vadd.f32 %v2071, %v2072
      %v2074 = vsel %vm651, %v2042, 0.0
      %v2075 = vadd.f32 %v2073, %v2074
      %v2076 = vsel %vm651, %v2043, 0.0
      %v2077 = vadd.f32 %v2075, %v2076
      %v2078 = vsel %vm651, %v2044, 0.0
      %v2079 = vadd.f32 %v2077, %v2078
      %v2080 = vsel %vm651, %v2045, 0.0
      %v2081 = vadd.f32 %v2079, %v2080
      %v2082 = vsel %vm651, %v2046, 0.0
      %v2083 = vadd.f32 %v2081, %v2082
      %v2084 = vrot.slane %v2083, 4
      %v2085 = vadd.f32 %v2083, %v2084
      %v2086 = vrot.slane %v2085, 2
      %v2087 = vadd.f32 %v2085, %v2086
      %v2088 = vrot.slane %v2087, 1
      %v2089 = vadd.f32 %v2087, %v2088
      %v2090 = vmul.f32 %v2031, %v2031
      %v2091 = vmul.f32 %v2032, %v2032
      %v2092 = vmul.f32 %v2033, %v2033
      %v2093 = vmul.f32 %v2034, %v2034
      %v2094 = vmul.f32 %v2035, %v2035
      %v2095 = vmul.f32 %v2036, %v2036
      %v2096 = vmul.f32 %v2037, %v2037
      %v2097 = vmul.f32 %v2038, %v2038
      %v2098 = vmul.f32 %v2039, %v2039
      %v2099 = vmul.f32 %v2040, %v2040
      %v2100 = vmul.f32 %v2041, %v2041
      %v2101 = vmul.f32 %v2042, %v2042
      %v2102 = vmul.f32 %v2043, %v2043
      %v2103 = vmul.f32 %v2044, %v2044
      %v2104 = vmul.f32 %v2045, %v2045
      %v2105 = vmul.f32 %v2046, %v2046
      %v2106 = vsel %vm651, %v2090, 0.0
      %v2107 = vsel %vm651, %v2091, 0.0
      %v2108 = vadd.f32 %v2106, %v2107
      %v2109 = vsel %vm651, %v2092, 0.0
      %v2110 = vadd.f32 %v2108, %v2109
      %v2111 = vsel %vm651, %v2093, 0.0
      %v2112 = vadd.f32 %v2110, %v2111
      %v2113 = vsel %vm651, %v2094, 0.0
      %v2114 = vadd.f32 %v2112, %v2113
      %v2115 = vsel %vm651, %v2095, 0.0
      %v2116 = vadd.f32 %v2114, %v2115
      %v2117 = vsel %vm651, %v2096, 0.0
      %v2118 = vadd.f32 %v2116, %v2117
      %v2119 = vsel %vm651, %v2097, 0.0
      %v2120 = vadd.f32 %v2118, %v2119
      %v2121 = vsel %vm651, %v2098, 0.0
      %v2122 = vadd.f32 %v2120, %v2121
      %v2123 = vsel %vm651, %v2099, 0.0
      %v2124 = vadd.f32 %v2122, %v2123
      %v2125 = vsel %vm651, %v2100, 0.0
      %v2126 = vadd.f32 %v2124, %v2125
      %v2127 = vsel %vm651, %v2101, 0.0
      %v2128 = vadd.f32 %v2126, %v2127
      %v2129 = vsel %vm651, %v2102, 0.0
      %v2130 = vadd.f32 %v2128, %v2129
      %v2131 = vsel %vm651, %v2103, 0.0
      %v2132 = vadd.f32 %v2130, %v2131
      %v2133 = vsel %vm651, %v2104, 0.0
      %v2134 = vadd.f32 %v2132, %v2133
      %v2135 = vsel %vm651, %v2105, 0.0
      %v2136 = vadd.f32 %v2134, %v2135
      %v2137 = vrot.slane %v2136, 4
      %v2138 = vadd.f32 %v2136, %v2137
      %v2139 = vrot.slane %v2138, 2
      %v2140 = vadd.f32 %v2138, %v2139
      %v2141 = vrot.slane %v2140, 1
      %v2142 = vadd.f32 %v2140, %v2141
      %v2143 = vld [vmem:[%s264] sm:$0x3]
      %vm2144 = vcmask 1040384
      %v2145 = vsel %vm2144, %v2089, %v2142
      %v2146 = vadd.f32 %v2143, %v2145
      %vm2147 = vcmask 517120
      %2148 = vst.msk [vmem:[%s264] sm:$0x3] %vm2147, %v2146
      %v2149 = vpack.c.bf16 %v2032, %v2031
      %v2150 = vpack.c.bf16 %v2034, %v2033
      %v2151 = vpack.c.bf16 %v2036, %v2035
      %v2152 = vpack.c.bf16 %v2038, %v2037
      %v2153 = vpack.c.bf16 %v2040, %v2039
      %v2154 = vpack.c.bf16 %v2042, %v2041
      %v2155 = vpack.c.bf16 %v2044, %v2043
      %v2156 = vpack.c.bf16 %v2046, %v2045
      %v2165 = vunpack.c.l.b16 %v2149
      %v2166 = vunpack.c.h.b16 %v2149
      %v2167 = vunpack.c.l.b16 %v2150
      %v2168 = vunpack.c.h.b16 %v2150
      %v2169 = vunpack.c.l.b16 %v2151
      %v2170 = vunpack.c.h.b16 %v2151
      %v2171 = vunpack.c.l.b16 %v2152
      %v2172 = vunpack.c.h.b16 %v2152
      %v2173 = vunpack.c.l.b16 %v2153
      %v2174 = vunpack.c.h.b16 %v2153
      %v2175 = vunpack.c.l.b16 %v2154
      %v2176 = vunpack.c.h.b16 %v2154
      %v2177 = vunpack.c.l.b16 %v2155
      %v2178 = vunpack.c.h.b16 %v2155
      %v2179 = vunpack.c.l.b16 %v2156
      %v2180 = vunpack.c.h.b16 %v2156
      %v2181 = vpack.c.b16 %v2165, %v2165
      %v2182 = vpack.c.b16 %v2166, %v2166
      %v2183 = vpack.c.b16 %v2167, %v2167
      %v2184 = vpack.c.b16 %v2168, %v2168
      %v2185 = vpack.c.b16 %v2169, %v2169
      %v2186 = vpack.c.b16 %v2170, %v2170
      %v2187 = vpack.c.b16 %v2171, %v2171
      %v2188 = vpack.c.b16 %v2172, %v2172
      %v2189 = vpack.c.b16 %v2173, %v2173
      %v2190 = vpack.c.b16 %v2174, %v2174
      %v2191 = vpack.c.b16 %v2175, %v2175
      %v2192 = vpack.c.b16 %v2176, %v2176
      %v2193 = vpack.c.b16 %v2177, %v2177
      %v2194 = vpack.c.b16 %v2178, %v2178
      %v2195 = vpack.c.b16 %v2179, %v2179
      %v2196 = vpack.c.b16 %v2180, %v2180
      %vm2213 = vcmask 519168
      %2214 = vst.msk [vmem:[%s259] sm:$0xf] %vm2213, %v2181
      %2215 = vst.msk [vmem:[%s259 + $0x4] sm:$0xf] %vm2213, %v2182
      %2216 = vst.msk [vmem:[%s259 + $0x8] sm:$0xf] %vm2213, %v2183
      %2217 = vst.msk [vmem:[%s259 + $0xc] sm:$0xf] %vm2213, %v2184
      %2218 = vst.msk [vmem:[%s259 + $0x10] sm:$0xf] %vm2213, %v2185
      %2219 = vst.msk [vmem:[%s259 + $0x14] sm:$0xf] %vm2213, %v2186
      %2220 = vst.msk [vmem:[%s259 + $0x18] sm:$0xf] %vm2213, %v2187
      %2221 = vst.msk [vmem:[%s259 + $0x1c] sm:$0xf] %vm2213, %v2188
      %2222 = vst.msk [vmem:[%s259 + $0x20] sm:$0xf] %vm2213, %v2189
      %2223 = vst.msk [vmem:[%s259 + $0x24] sm:$0xf] %vm2213, %v2190
      %2224 = vst.msk [vmem:[%s259 + $0x28] sm:$0xf] %vm2213, %v2191
      %2225 = vst.msk [vmem:[%s259 + $0x2c] sm:$0xf] %vm2213, %v2192
      %2226 = vst.msk [vmem:[%s259 + $0x30] sm:$0xf] %vm2213, %v2193
      %2227 = vst.msk [vmem:[%s259 + $0x34] sm:$0xf] %vm2213, %v2194
      %2228 = vst.msk [vmem:[%s259 + $0x38] sm:$0xf] %vm2213, %v2195
      %2229 = vst.msk [vmem:[%s259 + $0x3c] sm:$0xf] %vm2213, %v2196
      %s2230 = smul.u32 8, %s21
      %p2231 = scmp.lt.s32.totalorder %s20, 1
      %s2232 = scalar_select %p2231, %s20, 1
      %p2233 = scmp.lt.s32.totalorder %s2230, 15
      %s2234 = scalar_select %p2233, %s2230, 15
      %s2235 = smul.addr %s2234, 2
      %s2236 = smul.addr %s2232, 32
      %s2237 = sadd.s32 %s2235, %s2236
      %s2238 = smul.addr %s2237, 4
      %s2239 = scalar_lea.vmem %s3, %s2238
      %p2240 = scmp.lt.s32.totalorder %s20, 1
      %s2241 = scalar_select %p2240, %s20, 1
      %s2242 = smul.addr %s2241, 2
      %s2243 = scalar_lea.vmem %s4, %s2242
      // Predicated region
      $region37: #{local_pathway_forward.23} parent=31 // pred_check
        %p2244 = pneg %p123
      $region38: #{local_pathway_forward.23} parent=31 // pred_check_branch
        %2246 = sbr.rel (%p2244) target = $region40
      $region39: #{local_pathway_forward.23} parent=31 // pred_region
        %s2247 = smul.u32 8, %s21
      $region40: #{local_pathway_forward.23} parent=31 // pred_fallthru
        _
      // Predicated region
      $region41: #{local_pathway_forward.23} parent=31 // pred_check
        %p2248 = pneg %p149
      $region42: #{local_pathway_forward.23} parent=31 // pred_check_branch
        %2250 = sbr.rel (%p2248) target = $region44
      $region43: #{local_pathway_forward.23} parent=31 // pred_region
        _
      $region44: #{local_pathway_forward.23} parent=31 // pred_fallthru
        _
    $region32: #{local_pathway_forward.23} parent=5 // pred_fallthru
      _
    %p2251 = scmp.le.s32.totalorder 2, %s11
    // Predicated region
    $region45: #{local_pathway_forward.23} parent=5 // pred_check
      %p2252 = pneg %p2251
    $region46: #{local_pathway_forward.23} parent=5 // pred_check_branch
      %2254 = sbr.rel (%p2252) target = $region48
    $region47: #{local_pathway_forward.23} parent=5 // pred_region
      %s2255 = ssub.s32 %s11, 2
      // Predicated region
      $region49: #{local_pathway_forward.23} parent=47 // pred_check
        %p2256 = pneg %p129
      $region50: #{local_pathway_forward.23} parent=47 // pred_check_branch
        %2258 = sbr.rel (%p2256) target = $region52
      $region51: #{local_pathway_forward.23} parent=47 // pred_region
        %s2259 = smul.u32 8, %s23
        %p2260 = scmp.lt.s32.totalorder %s22, 1
        %s2261 = scalar_select %p2260, %s22, 1
        %p2262 = scmp.lt.s32.totalorder %s2259, 15
        %s2263 = scalar_select %p2262, %s2259, 15
        %s2264 = smul.addr %s2263, 2
        %s2265 = smul.addr %s2261, 32
        %s2266 = sadd.s32 %s2264, %s2265
        %s2267 = smul.addr %s2266, 4
        %s2268 = scalar_lea.vmem %s3, %s2267
      $region52: #{local_pathway_forward.23} parent=47 // pred_fallthru
        _
      // Predicated region
      $region53: #{local_pathway_forward.23} parent=47 // pred_check
        %p2269 = pneg %p155
      $region54: #{local_pathway_forward.23} parent=47 // pred_check_branch
        %2271 = sbr.rel (%p2269) target = $region56
      $region55: #{local_pathway_forward.23} parent=47 // pred_region
        %p2272 = scmp.lt.s32.totalorder %s22, 1
        %s2273 = scalar_select %p2272, %s22, 1
        %s2274 = smul.addr %s2273, 2
        %s2275 = scalar_lea.vmem %s4, %s2274
      $region56: #{local_pathway_forward.23} parent=47 // pred_fallthru
        _
    $region48: #{local_pathway_forward.23} parent=5 // pred_fallthru
      _
  $region6: #{local_pathway_forward.23} parent=0 // loop_footer
    %s15 = sadd.s32 1, %s11
  $region7: #{local_pathway_forward.23} parent=0 // loop_footer_branch
    %10 = sbr.rel target = $region3
  $region8: #{local_pathway_forward.23} parent=0 // loop_exit
    _

// kernel: local_pathway_forward.22
$region0: #{local_pathway_forward.22}
  #allocation0 [shape = 'u32[]', space=smem, size = 0x4, offset = 0x4, fixed_abs, tag = 'smem constant byte address 0x4 - core index']
  #allocation1 [shape = 'u32[144,128]{1,0:T(1,128)}', space=vmem, size = 0x12000, scoped, tag = 'internal scratch']
  %s0 = inlined_call_operand.vmem [shape: bf16[2,2,10,18,64], index: 0, kind: input, shape index: {}]
  %s1 = inlined_call_operand.vmem [shape: bf16[9,64,64], index: 1, kind: input, shape index: {}]
  %s2 = inlined_call_operand.vmem [shape: bf16[2,16,16,64], index: 2, kind: output, shape index: {0}]
  %s3 = inlined_call_operand.vmem [shape: f32[2,2,64], index: 3, kind: output, shape index: {1}]
  %4 = xla_tuple %s2, %s3
  %s5 = sld [smem:[#allocation0]]
  $region53: #{local_pathway_forward.22} parent=0
    _
  %s7 = ssub.s32 1, %s5
  %s8 = scalar_select 0, %s7, %s5
  loop: start=0, step=1, limit=6
  $region2: #{local_pathway_forward.22} parent=0 // loop_pre_header
    _
  $region3: #{local_pathway_forward.22} parent=0 // loop_header
    %s10 = sphi 0, %s14
    %p11 = scmp.ge.s32.totalorder %s10, 6
    %s17 = sphi 0, %s29
    %s18 = sphi 0, %s25
    %s19 = sphi 0, %s17
    %s20 = sphi 0, %s18
    %s21 = sphi 0, %s19
    %s22 = sphi 0, %s20
    %s34 = sphi 0, %s36
    %s37 = sphi 0, %s34
    %s38 = sphi 0, %s37
    %s54 = sphi 0, %s38
    %s58 = sphi 0, %s58
    %s60 = sphi 0, %s58
    %s61 = sphi 0, %s60
    %s75 = sphi 0, %s61
    %s83 = sphi 0, %s85
    %s86 = sphi 0, %s83
    %s87 = sphi 0, %s86
    %s103 = sphi 0, %s87
    %s109 = sphi 0, %s111
    %s112 = sphi 0, %s109
    %s113 = sphi 0, %s112
    %s129 = sphi 0, %s113
  $region4: #{local_pathway_forward.22} parent=0 // loop_header_branch
    %13 = sbr.rel (%p11) target = $region8
  $region5: #{local_pathway_forward.22} parent=0 // loop_body
    %s15 = ssub.s32 %s10, 1
    %s16 = ssub.s32 %s10, 2
    %s23 = sadd.s32 1, %s18
    %p24 = scmp.ge.s32.totalorder %s23, 2
    %s25 = scalar_select %p24, 0, %s23
    %s26 = sadd.s32 1, %s17
    %s27 = scalar_select %p24, %s26, %s17
    %p28 = scmp.ge.s32.totalorder %s27, 2
    %s29 = scalar_select %p28, 0, %s27
    %s30 = ssub.s32 %s17, %s29
    %s31 = ssub.s32 %s18, %s25
    %s32 = sor.u32 %s30, %s31
    %p33 = scmp.eq.s32.totalorder %s32, 0
    %s35 = sadd.s32 %s34, 1
    %s36 = scalar_select %p33, %s34, %s35
    %p39 = pneg %p33
    %p40 = scmp.eq.s32.totalorder %s10, 3
    %p41 = por %p39, %p40
    %p42 = scmp.ne.s32.totalorder %s34, %s37
    %p43 = scmp.eq.s32.totalorder %s10, 0
    %p44 = por %p42, %p43
    %p45 = scmp.ne.s32.totalorder %s34, %s37
    %p46 = scmp.eq.s32.totalorder %s15, 3
    %p47 = por %p45, %p46
    %p48 = scmp.ne.s32.totalorder %s37, %s38
    %p49 = scmp.eq.s32.totalorder %s15, 0
    %p50 = por %p48, %p49
    %p51 = scmp.ne.s32.totalorder %s37, %s38
    %p52 = scmp.eq.s32.totalorder %s16, 3
    %p53 = por %p51, %p52
    %p55 = scmp.ne.s32.totalorder %s38, %s54
    %p56 = scmp.eq.s32.totalorder %s16, 0
    %p57 = por %p55, %p56
    %s59 = sadd.s32 %s58, 1
    %p62 = scmp.eq.s32.totalorder %s10, 3
    %p63 = scmp.ne.s32.totalorder %s58, %s60
    %p64 = scmp.eq.s32.totalorder %s10, 0
    %p65 = por %p63, %p64
    %p66 = scmp.ne.s32.totalorder %s58, %s60
    %p67 = scmp.eq.s32.totalorder %s15, 3
    %p68 = por %p66, %p67
    %p69 = scmp.ne.s32.totalorder %s60, %s61
    %p70 = scmp.eq.s32.totalorder %s15, 0
    %p71 = por %p69, %p70
    %p72 = scmp.ne.s32.totalorder %s60, %s61
    %p73 = scmp.eq.s32.totalorder %s16, 3
    %p74 = por %p72, %p73
    %p76 = scmp.ne.s32.totalorder %s61, %s75
    %p77 = scmp.eq.s32.totalorder %s16, 0
    %p78 = por %p76, %p77
    %s79 = ssub.s32 %s17, %s29
    %s80 = ssub.s32 %s18, %s25
    %s81 = sor.u32 %s79, %s80
    %p82 = scmp.eq.s32.totalorder %s81, 0
    %s84 = sadd.s32 %s83, 1
    %s85 = scalar_select %p82, %s83, %s84
    %p88 = pneg %p82
    %p89 = scmp.eq.s32.totalorder %s10, 3
    %p90 = por %p88, %p89
    %p91 = scmp.ne.s32.totalorder %s83, %s86
    %p92 = scmp.eq.s32.totalorder %s10, 0
    %p93 = por %p91, %p92
    %p94 = scmp.ne.s32.totalorder %s83, %s86
    %p95 = scmp.eq.s32.totalorder %s15, 3
    %p96 = por %p94, %p95
    %p97 = scmp.ne.s32.totalorder %s86, %s87
    %p98 = scmp.eq.s32.totalorder %s15, 0
    %p99 = por %p97, %p98
    %p100 = scmp.ne.s32.totalorder %s86, %s87
    %p101 = scmp.eq.s32.totalorder %s16, 3
    %p102 = por %p100, %p101
    %p104 = scmp.ne.s32.totalorder %s87, %s103
    %p105 = scmp.eq.s32.totalorder %s16, 0
    %p106 = por %p104, %p105
    %s107 = ssub.s32 %s17, %s29
    %p108 = scmp.eq.s32.totalorder %s107, 0
    %s110 = sadd.s32 %s109, 1
    %s111 = scalar_select %p108, %s109, %s110
    %p114 = pneg %p108
    %p115 = scmp.eq.s32.totalorder %s10, 3
    %p116 = por %p114, %p115
    %p117 = scmp.ne.s32.totalorder %s109, %s112
    %p118 = scmp.eq.s32.totalorder %s10, 0
    %p119 = por %p117, %p118
    %p120 = scmp.ne.s32.totalorder %s109, %s112
    %p121 = scmp.eq.s32.totalorder %s15, 3
    %p122 = por %p120, %p121
    %p123 = scmp.ne.s32.totalorder %s112, %s113
    %p124 = scmp.eq.s32.totalorder %s15, 0
    %p125 = por %p123, %p124
    %p126 = scmp.ne.s32.totalorder %s112, %s113
    %p127 = scmp.eq.s32.totalorder %s16, 3
    %p128 = por %p126, %p127
    %p130 = scmp.ne.s32.totalorder %s113, %s129
    %p131 = scmp.eq.s32.totalorder %s16, 0
    %p132 = por %p130, %p131
    %p133 = scmp.le.s32.totalorder 1, %s10
    %p134 = scmp.lt.s32.totalorder %s10, 5
    %p135 = pnand %p133, %p134
    %p136 = pneg %p135
    // Predicated region
    $region9: #{local_pathway_forward.22} parent=5 // pred_check
      _
    $region10: #{local_pathway_forward.22} parent=5 // pred_check_branch
      %138 = sbr.rel (%p135) target = $region12
    $region11: #{local_pathway_forward.22} parent=5 // pred_region
      %s139 = ssub.s32 %s10, 1
      // Predicated region
      $region13: #{local_pathway_forward.22} parent=11 // pred_check
        %p140 = pneg %p71
      $region14: #{local_pathway_forward.22} parent=11 // pred_check_branch
        %142 = sbr.rel (%p140) target = $region16
      $region15: #{local_pathway_forward.22} parent=11 // pred_region
        _
      $region16: #{local_pathway_forward.22} parent=11 // pred_fallthru
        _
    $region12: #{local_pathway_forward.22} parent=5 // pred_fallthru
      _
    %p143 = scmp.lt.s32.totalorder %s10, 4
    // Predicated region
    $region17: #{local_pathway_forward.22} parent=5 // pred_check
      %p144 = pneg %p143
    $region18: #{local_pathway_forward.22} parent=5 // pred_check_branch
      %146 = sbr.rel (%p144) target = $region20
    $region19: #{local_pathway_forward.22} parent=5 // pred_region
      // Predicated region
      $region21: #{local_pathway_forward.22} parent=19 // pred_check
        %p147 = pneg %p44
      $region22: #{local_pathway_forward.22} parent=19 // pred_check_branch
        %149 = sbr.rel (%p147) target = $region24
      $region23: #{local_pathway_forward.22} parent=19 // pred_region
        %p150 = scmp.lt.s32.totalorder %s17, 1
        %s151 = scalar_select %p150, %s17, 1
        %p152 = scmp.lt.s32.totalorder %s18, 1
        %s153 = scalar_select %p152, %s18, 1
        %s154 = smul.addr %s153, 30
        %s155 = smul.addr %s151, 60
        %s156 = sadd.s32 %s154, %s155
        %s157 = smul.addr %s156, 4
        %s158 = scalar_lea.vmem %s0, %s157
      $region24: #{local_pathway_forward.22} parent=19 // pred_fallthru
        _
    $region20: #{local_pathway_forward.22} parent=5 // pred_fallthru
      _
    %p159 = scmp.le.s32.totalorder 1, %s10
    %p160 = scmp.lt.s32.totalorder %s10, 5
    %p161 = pnand %p159, %p160
    %p162 = pneg %p161
    // Predicated region
    $region25: #{local_pathway_forward.22} parent=5 // pred_check
      _
    $region26: #{local_pathway_forward.22} parent=5 // pred_check_branch
      %164 = sbr.rel (%p161) target = $region28
    $region27: #{local_pathway_forward.22} parent=5 // pred_region
      %s165 = ssub.s32 %s10, 1
      %p166 = scmp.lt.s32.totalorder %s19, 1
      %s167 = scalar_select %p166, %s19, 1
      %p168 = scmp.lt.s32.totalorder %s20, 1
      %s169 = scalar_select %p168, %s20, 1
      %s170 = smul.addr %s169, 30
      %s171 = smul.addr %s167, 60
      %s172 = sadd.s32 %s170, %s171
      %s173 = smul.addr %s172, 4
      %s174 = scalar_lea.vmem %s0, %s173
      %p175 = pneg %p50
      %p176 = pneg %p47
      %p177 = pneg %p71
      %p178 = pneg %p68
      %p179 = pneg %p99
      %p180 = pneg %p96
      %s181 = smul.u32 8, %s20
      %p182 = scmp.lt.s32.totalorder %s19, 1
      %s183 = scalar_select %p182, %s19, 1
      %p184 = scmp.lt.s32.totalorder %s181, 15
      %s185 = scalar_select %p184, %s181, 15
      %s186 = smul.addr %s185, 2
      %s187 = smul.addr %s183, 32
      %s188 = sadd.s32 %s186, %s187
      %s189 = smul.addr %s188, 4
      %s190 = scalar_lea.vmem %s2, %s189
      %p191 = pneg %p125
      %p192 = pneg %p122
      %p193 = scmp.lt.s32.totalorder %s19, 1
      %s194 = scalar_select %p193, %s19, 1
      %s195 = smul.addr %s194, 2
      %s196 = scalar_lea.vmem %s3, %s195
      %p197 = scmp.lt.s32.totalorder %s19, 1
      %s198 = scalar_select %p197, %s19, 1
      %p199 = scmp.lt.s32.totalorder %s20, 1
      %s200 = scalar_select %p199, %s20, 1
      %s201 = smul.addr %s200, 30
      %s202 = smul.addr %s198, 60
      %s203 = sadd.s32 %s201, %s202
      %s204 = smul.addr %s203, 4
      %s205 = scalar_lea.vmem %s0, %s204
      %s206 = smul.u32 8, %s20
      %p207 = scmp.lt.s32.totalorder %s19, 1
      %s208 = scalar_select %p207, %s19, 1
      %p209 = scmp.lt.s32.totalorder %s206, 15
      %s210 = scalar_select %p209, %s206, 15
      %s211 = smul.addr %s210, 2
      %s212 = smul.addr %s208, 32
      %s213 = sadd.s32 %s211, %s212
      %s214 = smul.addr %s213, 4
      %s215 = scalar_lea.vmem %s2, %s214
      %s216 = smul.u32 8, %s20
      %p217 = scmp.lt.s32.totalorder %s19, 1
      %s218 = scalar_select %p217, %s19, 1
      %s219 = smul.addr %s218, 2
      %s220 = scalar_lea.vmem %s3, %s219
      %v222 = vld [vmem:[%s205] sm:$0xf]
      %v223 = vld [vmem:[%s205 + $0x4] sm:$0xf]
      %v224 = vld [vmem:[%s205 + $0x8] sm:$0x1]
      %v225 = vld [vmem:[%s205 + $0xc] sm:$0xf]
      %v226 = vld [vmem:[%s205 + $0x10] sm:$0xf]
      %v227 = vld [vmem:[%s205 + $0x14] sm:$0x1]
      %v228 = vld [vmem:[%s205 + $0x18] sm:$0xf]
      %v229 = vld [vmem:[%s205 + $0x1c] sm:$0xf]
      %v230 = vld [vmem:[%s205 + $0x20] sm:$0x1]
      %v231 = vld [vmem:[%s205 + $0x24] sm:$0xf]
      %v232 = vld [vmem:[%s205 + $0x28] sm:$0xf]
      %v233 = vld [vmem:[%s205 + $0x2c] sm:$0x1]
      %v234 = vld [vmem:[%s205 + $0x30] sm:$0xf]
      %v235 = vld [vmem:[%s205 + $0x34] sm:$0xf]
      %v236 = vld [vmem:[%s205 + $0x38] sm:$0x1]
      %v237 = vld [vmem:[%s205 + $0x3c] sm:$0xf]
      %v238 = vld [vmem:[%s205 + $0x40] sm:$0xf]
      %v239 = vld [vmem:[%s205 + $0x44] sm:$0x1]
      %v240 = vld [vmem:[%s205 + $0x48] sm:$0xf]
      %v241 = vld [vmem:[%s205 + $0x4c] sm:$0xf]
      %v242 = vld [vmem:[%s205 + $0x50] sm:$0x1]
      %v243 = vld [vmem:[%s205 + $0x54] sm:$0xf]
      %v244 = vld [vmem:[%s205 + $0x58] sm:$0xf]
      %v245 = vld [vmem:[%s205 + $0x5c] sm:$0x1]
      %v246 = vld [vmem:[%s205 + $0x60] sm:$0xf]
      %v247 = vld [vmem:[%s205 + $0x64] sm:$0xf]
      %v248 = vld [vmem:[%s205 + $0x68] sm:$0x1]
      %v249 = vld [vmem:[%s205 + $0x6c] sm:$0xf]
      %v250 = vld [vmem:[%s205 + $0x70] sm:$0xf]
      %v251 = vld [vmem:[%s205 + $0x74] sm:$0x1]
      %v252 = vld [vmem:[%s1] sm:$0xf]
      %v253 = vld [vmem:[%s1 + $0x4] sm:$0xf]
      %v254 = vld [vmem:[%s1 + $0x8] sm:$0xf]
      %v255 = vld [vmem:[%s1 + $0xc] sm:$0xf]
      %v256 = vld [vmem:[%s1 + $0x10] sm:$0xf]
      %v257 = vld [vmem:[%s1 + $0x14] sm:$0xf]
      %v258 = vld [vmem:[%s1 + $0x18] sm:$0xf]
      %v259 = vld [vmem:[%s1 + $0x1c] sm:$0xf]
      %vm260 = vsmask.f32 3328
      %vm261 = vsmask.f32 7440
      %vm262 = vmor %vm260, %vm261
      %v264 = vshrl.u32 %v222, 16
      %v266 = vrot.slane %v264, 4
      %v267 = vshll.u32 %v222, 16
      %v269 = vrot.slane %v267, 5
      %v270 = vor.u32 %v266, %v269
      %v271 = vrot.slane %v270, 4
      %v273 = vshll.u32 %v223, 16
      %v275 = vrot.slane %v273, 5
      %v276 = vsel %vm262, %v271, %v275
      %v277 = vshrl.u32 %v223, 16
      %v279 = vrot.slane %v277, 4
      %v280 = vor.u32 %v279, %v275
      %v281 = vrot.slane %v280, 4
      %v283 = vshll.u32 %v224, 16
      %v285 = vrot.slane %v283, 5
      %v286 = vsel %vm262, %v281, %v285
      %v288 = vshrl.u32 %v225, 16
      %v290 = vrot.slane %v288, 4
      %v291 = vshll.u32 %v225, 16
      %v293 = vrot.slane %v291, 5
      %v294 = vor.u32 %v290, %v293
      %v295 = vrot.slane %v294, 4
      %v297 = vshll.u32 %v226, 16
      %v299 = vrot.slane %v297, 5
      %v300 = vsel %vm262, %v295, %v299
      %v301 = vshrl.u32 %v226, 16
      %v303 = vrot.slane %v301, 4
      %v304 = vor.u32 %v303, %v299
      %v305 = vrot.slane %v304, 4
      %v307 = vshll.u32 %v227, 16
      %v309 = vrot.slane %v307, 5
      %v310 = vsel %vm262, %v305, %v309
      %v312 = vshrl.u32 %v228, 16
      %v314 = vrot.slane %v312, 4
      %v315 = vshll.u32 %v228, 16
      %v317 = vrot.slane %v315, 5
      %v318 = vor.u32 %v314, %v317
      %v319 = vrot.slane %v318, 4
      %v321 = vshll.u32 %v229, 16
      %v323 = vrot.slane %v321, 5
      %v324 = vsel %vm262, %v319, %v323
      %v325 = vshrl.u32 %v229, 16
      %v327 = vrot.slane %v325, 4
      %v328 = vor.u32 %v327, %v323
      %v329 = vrot.slane %v328, 4
      %v331 = vshll.u32 %v230, 16
      %v333 = vrot.slane %v331, 5
      %v334 = vsel %vm262, %v329, %v333
      %v336 = vshrl.u32 %v231, 16
      %v338 = vrot.slane %v336, 4
      %v339 = vshll.u32 %v231, 16
      %v341 = vrot.slane %v339, 5
      %v342 = vor.u32 %v338, %v341
      %v343 = vrot.slane %v342, 4
      %v345 = vshll.u32 %v232, 16
      %v347 = vrot.slane %v345, 5
      %v348 = vsel %vm262, %v343, %v347
      %v349 = vshrl.u32 %v232, 16
      %v351 = vrot.slane %v349, 4
      %v352 = vor.u32 %v351, %v347
      %v353 = vrot.slane %v352, 4
      %v355 = vshll.u32 %v233, 16
      %v357 = vrot.slane %v355, 5
      %v358 = vsel %vm262, %v353, %v357
      %v360 = vshrl.u32 %v234, 16
      %v362 = vrot.slane %v360, 4
      %v363 = vshll.u32 %v234, 16
      %v365 = vrot.slane %v363, 5
      %v366 = vor.u32 %v362, %v365
      %v367 = vrot.slane %v366, 4
      %v369 = vshll.u32 %v235, 16
      %v371 = vrot.slane %v369, 5
      %v372 = vsel %vm262, %v367, %v371
      %v373 = vshrl.u32 %v235, 16
      %v375 = vrot.slane %v373, 4
      %v376 = vor.u32 %v375, %v371
      %v377 = vrot.slane %v376, 4
      %v379 = vshll.u32 %v236, 16
      %v381 = vrot.slane %v379, 5
      %v382 = vsel %vm262, %v377, %v381
      %v384 = vshrl.u32 %v237, 16
      %v386 = vrot.slane %v384, 4
      %v387 = vshll.u32 %v237, 16
      %v389 = vrot.slane %v387, 5
      %v390 = vor.u32 %v386, %v389
      %v391 = vrot.slane %v390, 4
      %v393 = vshll.u32 %v238, 16
      %v395 = vrot.slane %v393, 5
      %v396 = vsel %vm262, %v391, %v395
      %v397 = vshrl.u32 %v238, 16
      %v399 = vrot.slane %v397, 4
      %v400 = vor.u32 %v399, %v395
      %v401 = vrot.slane %v400, 4
      %v403 = vshll.u32 %v239, 16
      %v405 = vrot.slane %v403, 5
      %v406 = vsel %vm262, %v401, %v405
      %v408 = vshrl.u32 %v240, 16
      %v410 = vrot.slane %v408, 4
      %v411 = vshll.u32 %v240, 16
      %v413 = vrot.slane %v411, 5
      %v414 = vor.u32 %v410, %v413
      %v415 = vrot.slane %v414, 4
      %v417 = vshll.u32 %v241, 16
      %v419 = vrot.slane %v417, 5
      %v420 = vsel %vm262, %v415, %v419
      %v421 = vshrl.u32 %v241, 16
      %v423 = vrot.slane %v421, 4
      %v424 = vor.u32 %v423, %v419
      %v425 = vrot.slane %v424, 4
      %v427 = vshll.u32 %v242, 16
      %v429 = vrot.slane %v427, 5
      %v430 = vsel %vm262, %v425, %v429
      %v432 = vshrl.u32 %v243, 16
      %v434 = vrot.slane %v432, 4
      %v435 = vshll.u32 %v243, 16
      %v437 = vrot.slane %v435, 5
      %v438 = vor.u32 %v434, %v437
      %v439 = vrot.slane %v438, 4
      %v441 = vshll.u32 %v244, 16
      %v443 = vrot.slane %v441, 5
      %v444 = vsel %vm262, %v439, %v443
      %v445 = vshrl.u32 %v244, 16
      %v447 = vrot.slane %v445, 4
      %v448 = vor.u32 %v447, %v443
      %v449 = vrot.slane %v448, 4
      %v451 = vshll.u32 %v245, 16
      %v453 = vrot.slane %v451, 5
      %v454 = vsel %vm262, %v449, %v453
      %s455 = scalar_lea.vmem %s1, 32
      %v456 = vld [vmem:[%s455] sm:$0xf]
      %v457 = vld [vmem:[%s455 + $0x4] sm:$0xf]
      %v458 = vld [vmem:[%s455 + $0x8] sm:$0xf]
      %v459 = vld [vmem:[%s455 + $0xc] sm:$0xf]
      %v460 = vld [vmem:[%s455 + $0x10] sm:$0xf]
      %v461 = vld [vmem:[%s455 + $0x14] sm:$0xf]
      %v462 = vld [vmem:[%s455 + $0x18] sm:$0xf]
      %v463 = vld [vmem:[%s455 + $0x1c] sm:$0xf]
      %v464 = vunpack.c.l.b16 %v276
      %v465 = vunpack.c.l.b16 %v286
      %v466 = vunpack.c.l.b16 %v300
      %v467 = vunpack.c.l.b16 %v310
      %v468 = vunpack.c.l.b16 %v324
      %v469 = vunpack.c.l.b16 %v334
      %v470 = vunpack.c.l.b16 %v348
      %v471 = vunpack.c.l.b16 %v358
      %v472 = vunpack.c.l.b16 %v372
      %v473 = vunpack.c.l.b16 %v382
      %v474 = vunpack.c.l.b16 %v396
      %v475 = vunpack.c.l.b16 %v406
      %v476 = vunpack.c.l.b16 %v420
      %v477 = vunpack.c.l.b16 %v430
      %v478 = vunpack.c.l.b16 %v444
      %v479 = vunpack.c.l.b16 %v454
      %v480 = vpack.c.b16 %v465, %v464
      %v481 = vpack.c.b16 %v467, %v466
      %v482 = vpack.c.b16 %v469, %v468
      %v483 = vpack.c.b16 %v471, %v470
      %v484 = vpack.c.b16 %v473, %v472
      %v485 = vpack.c.b16 %v475, %v474
      %v486 = vpack.c.b16 %v477, %v476
      %v487 = vpack.c.b16 %v479, %v478
      %v496 = vunpack.c.l.b16 %v456
      %v497 = vunpack.c.l.b16 %v457
      %v498 = vunpack.c.l.b16 %v458
      %v499 = vunpack.c.l.b16 %v459
      %v500 = vunpack.c.l.b16 %v460
      %v501 = vunpack.c.l.b16 %v461
      %v502 = vunpack.c.l.b16 %v462
      %v503 = vunpack.c.l.b16 %v463
      %v504 = vpack.c.b16 %v497, %v496
      %v505 = vpack.c.b16 %v499, %v498
      %v506 = vpack.c.b16 %v501, %v500
      %v507 = vpack.c.b16 %v503, %v502
      %vm512 = vcmask 523264
      %v514 = vsel %vm512, %v480, 0
      %v517 = vsel %vm512, %v481, 0
      %v520 = vsel %vm512, %v482, 0
      %v523 = vsel %vm512, %v483, 0
      %v526 = vsel %vm512, %v484, 0
      %v529 = vsel %vm512, %v485, 0
      %v532 = vsel %vm512, %v486, 0
      %v535 = vsel %vm512, %v487, 0
      %537 = vmatprep.subr.bf16.mxu0 0
      %538 = vmatpush1.bf16.msra.mxu0 %v504
      %539 = vmatprep.subr.bf16.mxu0 0
      %540 = vmatpush1.bf16.msra.mxu0 %v505
      %541 = vmatprep.subr.bf16.mxu0 0
      %542 = vmatpush1.bf16.msra.mxu0 %v506
      %543 = vmatprep.subr.bf16.mxu0 0
      %544 = vmatpush1.bf16.msra.mxu0 %v507
      %545 = vmatprep.subr.bf16.mxu0 0
      %546 = vmatpush1.bf16.msra.mxu0 0
      %547 = vmatprep.subr.bf16.mxu0 0
      %548 = vmatpush1.bf16.msra.mxu0 0
      %549 = vmatprep.subr.bf16.mxu0 0
      %550 = vmatpush1.bf16.msra.mxu0 0
      %551 = vmatprep.subr.bf16.mxu0 0
      %552 = vmatpush1.bf16.msra.mxu0 0
      %553 = vmatprep.subr.bf16.mxu0 0
      %554 = vmatpush1.bf16.msra.mxu0 0
      %555 = vmatprep.subr.bf16.mxu0 0
      %556 = vmatpush1.bf16.msra.mxu0 0
      %557 = vmatprep.subr.bf16.mxu0 0
      %558 = vmatpush1.bf16.msra.mxu0 0
      %559 = vmatprep.subr.bf16.mxu0 0
      %560 = vmatpush1.bf16.msra.mxu0 0
      %561 = vmatprep.subr.bf16.mxu0 0
      %562 = vmatpush1.bf16.msra.mxu0 0
      %563 = vmatprep.subr.bf16.mxu0 0
      %564 = vmatpush1.bf16.msra.mxu0 0
      %565 = vmatprep.subr.bf16.mxu0 0
      %566 = vmatpush1.bf16.msra.mxu0 0
      %567 = vmatprep.subr.bf16.mxu0 0
      %568 = vmatpush1.bf16.msra.mxu0 0
      %569 = vmatprep.mubr.bf16.mxu0 0
      %570 = vmatmul.mubr.bf16.gmra.mrb[0].mxu0 %v514
      %v571 = vpop.f32.mrb[0].mxu0
      %v572 = vadd.f32 0.0, %v571
      %v573 = vpop.f32.mrb[0].mxu0
      %v574 = vpop.f32.mrb[0].mxu0
      %v575 = vadd.f32 0.0, %v574
      %v576 = vpop.f32.mrb[0].mxu0
      %577 = vmatprep.mubr.bf16.mxu0 0
      %578 = vmatmul.mubr.bf16.gmra.mrb[0].mxu0 %v517
      %v579 = vpop.f32.mrb[0].mxu0
      %v580 = vadd.f32 0.0, %v579
      %v581 = vpop.f32.mrb[0].mxu0
      %v582 = vpop.f32.mrb[0].mxu0
      %v583 = vadd.f32 0.0, %v582
      %v584 = vpop.f32.mrb[0].mxu0
      %585 = vmatprep.mubr.bf16.mxu0 0
      %586 = vmatmul.mubr.bf16.gmra.mrb[0].mxu0 %v520
      %v587 = vpop.f32.mrb[0].mxu0
      %v588 = vadd.f32 0.0, %v587
      %v589 = vpop.f32.mrb[0].mxu0
      %v590 = vpop.f32.mrb[0].mxu0
      %v591 = vadd.f32 0.0, %v590
      %v592 = vpop.f32.mrb[0].mxu0
      %593 = vmatprep.mubr.bf16.mxu0 0
      %594 = vmatmul.mubr.bf16.gmra.mrb[0].mxu0 %v523
      %v595 = vpop.f32.mrb[0].mxu0
      %v596 = vadd.f32 0.0, %v595
      %v597 = vpop.f32.mrb[0].mxu0
      %v598 = vpop.f32.mrb[0].mxu0
      %v599 = vadd.f32 0.0, %v598
      %v600 = vpop.f32.mrb[0].mxu0
      %601 = vmatprep.mubr.bf16.mxu0 0
      %602 = vmatmul.mubr.bf16.gmra.mrb[0].mxu0 %v526
      %v603 = vpop.f32.mrb[0].mxu0
      %v604 = vadd.f32 0.0, %v603
      %v605 = vpop.f32.mrb[0].mxu0
      %v606 = vpop.f32.mrb[0].mxu0
      %v607 = vadd.f32 0.0, %v606
      %v608 = vpop.f32.mrb[0].mxu0
      %609 = vmatprep.mubr.bf16.mxu0 0
      %610 = vmatmul.mubr.bf16.gmra.mrb[0].mxu0 %v529
      %v611 = vpop.f32.mrb[0].mxu0
      %v612 = vadd.f32 0.0, %v611
      %v613 = vpop.f32.mrb[0].mxu0
      %v614 = vpop.f32.mrb[0].mxu0
      %v615 = vadd.f32 0.0, %v614
      %v616 = vpop.f32.mrb[0].mxu0
      %617 = vmatprep.mubr.bf16.mxu0 0
      %618 = vmatmul.mubr.bf16.gmra.mrb[0].mxu0 %v532
      %v619 = vpop.f32.mrb[0].mxu0
      %v620 = vadd.f32 0.0, %v619
      %v621 = vpop.f32.mrb[0].mxu0
      %v622 = vpop.f32.mrb[0].mxu0
      %v623 = vadd.f32 0.0, %v622
      %v624 = vpop.f32.mrb[0].mxu0
      %625 = vmatprep.mubr.bf16.mxu0 0
      %626 = vmatmul.mubr.bf16.gmra.mrb[0].mxu0 %v535
      %v627 = vpop.f32.mrb[0].mxu0
      %v628 = vadd.f32 0.0, %v627
      %v629 = vpop.f32.mrb[0].mxu0
      %v630 = vpop.f32.mrb[0].mxu0
      %v631 = vadd.f32 0.0, %v630
      %v632 = vpop.f32.mrb[0].mxu0
      %633 = vdwg.mxu0
      %v650 = vunpack.c.l.b16 %v222
      %v651 = vunpack.c.l.b16 %v223
      %v652 = vunpack.c.l.b16 %v225
      %v653 = vunpack.c.l.b16 %v226
      %v654 = vunpack.c.l.b16 %v228
      %v655 = vunpack.c.l.b16 %v229
      %v656 = vunpack.c.l.b16 %v231
      %v657 = vunpack.c.l.b16 %v232
      %v658 = vunpack.c.l.b16 %v234
      %v659 = vunpack.c.l.b16 %v235
      %v660 = vunpack.c.l.b16 %v237
      %v661 = vunpack.c.l.b16 %v238
      %v662 = vunpack.c.l.b16 %v240
      %v663 = vunpack.c.l.b16 %v241
      %v664 = vunpack.c.l.b16 %v243
      %v665 = vunpack.c.l.b16 %v244
      %v666 = vpack.c.b16 %v651, %v650
      %v667 = vpack.c.b16 %v653, %v652
      %v668 = vpack.c.b16 %v655, %v654
      %v669 = vpack.c.b16 %v657, %v656
      %v670 = vpack.c.b16 %v659, %v658
      %v671 = vpack.c.b16 %v661, %v660
      %v672 = vpack.c.b16 %v663, %v662
      %v673 = vpack.c.b16 %v665, %v664
      %v682 = vunpack.c.l.b16 %v252
      %v683 = vunpack.c.l.b16 %v253
      %v684 = vunpack.c.l.b16 %v254
      %v685 = vunpack.c.l.b16 %v255
      %v686 = vunpack.c.l.b16 %v256
      %v687 = vunpack.c.l.b16 %v257
      %v688 = vunpack.c.l.b16 %v258
      %v689 = vunpack.c.l.b16 %v259
      %v690 = vpack.c.b16 %v683, %v682
      %v691 = vpack.c.b16 %v685, %v684
      %v692 = vpack.c.b16 %v687, %v686
      %v693 = vpack.c.b16 %v689, %v688
      %v699 = vsel %vm512, %v666, 0
      %v702 = vsel %vm512, %v667, 0
      %v705 = vsel %vm512, %v668, 0
      %v708 = vsel %vm512, %v669, 0
      %v711 = vsel %vm512, %v670, 0
      %v714 = vsel %vm512, %v671, 0
      %v717 = vsel %vm512, %v672, 0
      %v720 = vsel %vm512, %v673, 0
      %722 = vmatprep.subr.bf16.mxu0 0
      %723 = vmatpush1.bf16.msra.mxu0 %v690
      %724 = vmatprep.subr.bf16.mxu0 0
      %725 = vmatpush1.bf16.msra.mxu0 %v691
      %726 = vmatprep.subr.bf16.mxu0 0
      %727 = vmatpush1.bf16.msra.mxu0 %v692
      %728 = vmatprep.subr.bf16.mxu0 0
      %729 = vmatpush1.bf16.msra.mxu0 %v693
      %730 = vmatprep.subr.bf16.mxu0 0
      %731 = vmatpush1.bf16.msra.mxu0 0
      %732 = vmatprep.subr.bf16.mxu0 0
      %733 = vmatpush1.bf16.msra.mxu0 0
      %734 = vmatprep.subr.bf16.mxu0 0
      %735 = vmatpush1.bf16.msra.mxu0 0
      %736 = vmatprep.subr.bf16.mxu0 0
      %737 = vmatpush1.bf16.msra.mxu0 0
      %738 = vmatprep.subr.bf16.mxu0 0
      %739 = vmatpush1.bf16.msra.mxu0 0
      %740 = vmatprep.subr.bf16.mxu0 0
      %741 = vmatpush1.bf16.msra.mxu0 0
      %742 = vmatprep.subr.bf16.mxu0 0
      %743 = vmatpush1.bf16.msra.mxu0 0
      %744 = vmatprep.subr.bf16.mxu0 0
      %745 = vmatpush1.bf16.msra.mxu0 0
      %746 = vmatprep.subr.bf16.mxu0 0
      %747 = vmatpush1.bf16.msra.mxu0 0
      %748 = vmatprep.subr.bf16.mxu0 0
      %749 = vmatpush1.bf16.msra.mxu0 0
      %750 = vmatprep.subr.bf16.mxu0 0
      %751 = vmatpush1.bf16.msra.mxu0 0
      %752 = vmatprep.subr.bf16.mxu0 0
      %753 = vmatpush1.bf16.msra.mxu0 0
      %754 = vmatprep.mubr.bf16.mxu0 0
      %755 = vmatmul.mubr.bf16.gmra.mrb[0].mxu0 %v699
      %v756 = vpop.f32.mrb[0].mxu0
      %v757 = vadd.f32 %v572, %v756
      %v758 = vpop.f32.mrb[0].mxu0
      %v759 = vpop.f32.mrb[0].mxu0
      %v760 = vadd.f32 %v575, %v759
      %v761 = vpop.f32.mrb[0].mxu0
      %762 = vmatprep.mubr.bf16.mxu0 0
      %763 = vmatmul.mubr.bf16.gmra.mrb[0].mxu0 %v702
      %v764 = vpop.f32.mrb[0].mxu0
      %v765 = vadd.f32 %v580, %v764
      %v766 = vpop.f32.mrb[0].mxu0
      %v767 = vpop.f32.mrb[0].mxu0
      %v768 = vadd.f32 %v583, %v767
      %v769 = vpop.f32.mrb[0].mxu0
      %770 = vmatprep.mubr.bf16.mxu0 0
      %771 = vmatmul.mubr.bf16.gmra.mrb[0].mxu0 %v705
      %v772 = vpop.f32.mrb[0].mxu0
      %v773 = vadd.f32 %v588, %v772
      %v774 = vpop.f32.mrb[0].mxu0
      %v775 = vpop.f32.mrb[0].mxu0
      %v776 = vadd.f32 %v591, %v775
      %v777 = vpop.f32.mrb[0].mxu0
      %778 = vmatprep.mubr.bf16.mxu0 0
      %779 = vmatmul.mubr.bf16.gmra.mrb[0].mxu0 %v708
      %v780 = vpop.f32.mrb[0].mxu0
      %v781 = vadd.f32 %v596, %v780
      %v782 = vpop.f32.mrb[0].mxu0
      %v783 = vpop.f32.mrb[0].mxu0
      %v784 = vadd.f32 %v599, %v783
      %v785 = vpop.f32.mrb[0].mxu0
      %786 = vmatprep.mubr.bf16.mxu0 0
      %787 = vmatmul.mubr.bf16.gmra.mrb[0].mxu0 %v711
      %v788 = vpop.f32.mrb[0].mxu0
      %v789 = vadd.f32 %v604, %v788
      %v790 = vpop.f32.mrb[0].mxu0
      %v791 = vpop.f32.mrb[0].mxu0
      %v792 = vadd.f32 %v607, %v791
      %v793 = vpop.f32.mrb[0].mxu0
      %794 = vmatprep.mubr.bf16.mxu0 0
      %795 = vmatmul.mubr.bf16.gmra.mrb[0].mxu0 %v714
      %v796 = vpop.f32.mrb[0].mxu0
      %v797 = vadd.f32 %v612, %v796
      %v798 = vpop.f32.mrb[0].mxu0
      %v799 = vpop.f32.mrb[0].mxu0
      %v800 = vadd.f32 %v615, %v799
      %v801 = vpop.f32.mrb[0].mxu0
      %802 = vmatprep.mubr.bf16.mxu0 0
      %803 = vmatmul.mubr.bf16.gmra.mrb[0].mxu0 %v717
      %v804 = vpop.f32.mrb[0].mxu0
      %v805 = vadd.f32 %v620, %v804
      %v806 = vpop.f32.mrb[0].mxu0
      %v807 = vpop.f32.mrb[0].mxu0
      %v808 = vadd.f32 %v623, %v807
      %v809 = vpop.f32.mrb[0].mxu0
      %810 = vmatprep.mubr.bf16.mxu0 0
      %811 = vmatmul.mubr.bf16.gmra.mrb[0].mxu0 %v720
      %v812 = vpop.f32.mrb[0].mxu0
      %v813 = vadd.f32 %v628, %v812
      %v814 = vpop.f32.mrb[0].mxu0
      %v815 = vpop.f32.mrb[0].mxu0
      %v816 = vadd.f32 %v631, %v815
      %v817 = vpop.f32.mrb[0].mxu0
      %818 = vdwg.mxu0
      %vm827 = vcmask 1042432
      %vm828 = vcmask 1046532
      %vm829 = vmor %vm827, %vm828
      %v830 = vrot.slane %v222, 5
      %v831 = vrot.slane %v830, 4
      %v832 = vrot.slane %v223, 5
      %v833 = vsel %vm829, %v831, %v832
      %v834 = vrot.slane %v832, 4
      %v835 = vrot.slane %v224, 5
      %v836 = vsel %vm829, %v834, %v835
      %v837 = vrot.slane %v225, 5
      %v838 = vrot.slane %v837, 4
      %v839 = vrot.slane %v226, 5
      %v840 = vsel %vm829, %v838, %v839
      %v841 = vrot.slane %v839, 4
      %v842 = vrot.slane %v227, 5
      %v843 = vsel %vm829, %v841, %v842
      %v844 = vrot.slane %v228, 5
      %v845 = vrot.slane %v844, 4
      %v846 = vrot.slane %v229, 5
      %v847 = vsel %vm829, %v845, %v846
      %v848 = vrot.slane %v846, 4
      %v849 = vrot.slane %v230, 5
      %v850 = vsel %vm829, %v848, %v849
      %v851 = vrot.slane %v231, 5
      %v852 = vrot.slane %v851, 4
      %v853 = vrot.slane %v232, 5
      %v854 = vsel %vm829, %v852, %v853
      %v855 = vrot.slane %v853, 4
      %v856 = vrot.slane %v233, 5
      %v857 = vsel %vm829, %v855, %v856
      %v858 = vrot.slane %v234, 5
      %v859 = vrot.slane %v858, 4
      %v860 = vrot.slane %v235, 5
      %v861 = vsel %vm829, %v859, %v860
      %v862 = vrot.slane %v860, 4
      %v863 = vrot.slane %v236, 5
      %v864 = vsel %vm829, %v862, %v863
      %v865 = vrot.slane %v237, 5
      %v866 = vrot.slane %v865, 4
      %v867 = vrot.slane %v238, 5
      %v868 = vsel %vm829, %v866, %v867
      %v869 = vrot.slane %v867, 4
      %v870 = vrot.slane %v239, 5
      %v871 = vsel %vm829, %v869, %v870
      %v872 = vrot.slane %v240, 5
      %v873 = vrot.slane %v872, 4
      %v874 = vrot.slane %v241, 5
      %v875 = vsel %vm829, %v873, %v874
      %v876 = vrot.slane %v874, 4
      %v877 = vrot.slane %v242, 5
      %v878 = vsel %vm829, %v876, %v877
      %v879 = vrot.slane %v243, 5
      %v880 = vrot.slane %v879, 4
      %v881 = vrot.slane %v244, 5
      %v882 = vsel %vm829, %v880, %v881
      %v883 = vrot.slane %v881, 4
      %v884 = vrot.slane %v245, 5
      %v885 = vsel %vm829, %v883, %v884
      %s886 = scalar_lea.vmem %s1, 64
      %v887 = vld [vmem:[%s886] sm:$0xf]
      %v888 = vld [vmem:[%s886 + $0x4] sm:$0xf]
      %v889 = vld [vmem:[%s886 + $0x8] sm:$0xf]
      %v890 = vld [vmem:[%s886 + $0xc] sm:$0xf]
      %v891 = vld [vmem:[%s886 + $0x10] sm:$0xf]
      %v892 = vld [vmem:[%s886 + $0x14] sm:$0xf]
      %v893 = vld [vmem:[%s886 + $0x18] sm:$0xf]
      %v894 = vld [vmem:[%s886 + $0x1c] sm:$0xf]
      %v895 = vunpack.c.l.b16 %v833
      %v896 = vunpack.c.l.b16 %v836
      %v897 = vunpack.c.l.b16 %v840
      %v898 = vunpack.c.l.b16 %v843
      %v899 = vunpack.c.l.b16 %v847
      %v900 = vunpack.c.l.b16 %v850
      %v901 = vunpack.c.l.b16 %v854
      %v902 = vunpack.c.l.b16 %v857
      %v903 = vunpack.c.l.b16 %v861
      %v904 = vunpack.c.l.b16 %v864
      %v905 = vunpack.c.l.b16 %v868
      %v906 = vunpack.c.l.b16 %v871
      %v907 = vunpack.c.l.b16 %v875
      %v908 = vunpack.c.l.b16 %v878
      %v909 = vunpack.c.l.b16 %v882
      %v910 = vunpack.c.l.b16 %v885
      %v911 = vpack.c.b16 %v896, %v895
      %v912 = vpack.c.b16 %v898, %v897
      %v913 = vpack.c.b16 %v900, %v899
      %v914 = vpack.c.b16 %v902, %v901
      %v915 = vpack.c.b16 %v904, %v903
      %v916 = vpack.c.b16 %v906, %v905
      %v917 = vpack.c.b16 %v908, %v907
      %v918 = vpack.c.b16 %v910, %v909
      %v927 = vunpack.c.l.b16 %v887
      %v928 = vunpack.c.l.b16 %v888
      %v929 = vunpack.c.l.b16 %v889
      %v930 = vunpack.c.l.b16 %v890
      %v931 = vunpack.c.l.b16 %v891
      %v932 = vunpack.c.l.b16 %v892
      %v933 = vunpack.c.l.b16 %v893
      %v934 = vunpack.c.l.b16 %v894
      %v935 = vpack.c.b16 %v928, %v927
      %v936 = vpack.c.b16 %v930, %v929
      %v937 = vpack.c.b16 %v932, %v931
      %v938 = vpack.c.b16 %v934, %v933
      %v944 = vsel %vm512, %v911, 0
      %v947 = vsel %vm512, %v912, 0
      %v950 = vsel %vm512, %v913, 0
      %v953 = vsel %vm512, %v914, 0
      %v956 = vsel %vm512, %v915, 0
      %v959 = vsel %vm512, %v916, 0
      %v962 = vsel %vm512, %v917, 0
      %v965 = vsel %vm512, %v918, 0
      %967 = vmatprep.subr.bf16.mxu0 0
      %968 = vmatpush1.bf16.msra.mxu0 %v935
      %969 = vmatprep.subr.bf16.mxu0 0
      %970 = vmatpush1.bf16.msra.mxu0 %v936
      %971 = vmatprep.subr.bf16.mxu0 0
      %972 = vmatpush1.bf16.msra.mxu0 %v937
      %973 = vmatprep.subr.bf16.mxu0 0
      %974 = vmatpush1.bf16.msra.mxu0 %v938
      %975 = vmatprep.subr.bf16.mxu0 0
      %976 = vmatpush1.bf16.msra.mxu0 0
      %977 = vmatprep.subr.bf16.mxu0 0
      %978 = vmatpush1.bf16.msra.mxu0 0
      %979 = vmatprep.subr.bf16.mxu0 0
      %980 = vmatpush1.bf16.msra.mxu0 0
      %981 = vmatprep.subr.bf16.mxu0 0
      %982 = vmatpush1.bf16.msra.mxu0 0
      %983 = vmatprep.subr.bf16.mxu0 0
      %984 = vmatpush1.bf16.msra.mxu0 0
      %985 = vmatprep.subr.bf16.mxu0 0
      %986 = vmatpush1.bf16.msra.mxu0 0
      %987 = vmatprep.subr.bf16.mxu0 0
      %988 = vmatpush1.bf16.msra.mxu0 0
      %989 = vmatprep.subr.bf16.mxu0 0
      %990 = vmatpush1.bf16.msra.mxu0 0
      %991 = vmatprep.subr.bf16.mxu0 0
      %992 = vmatpush1.bf16.msra.mxu0 0
      %993 = vmatprep.subr.bf16.mxu0 0
      %994 = vmatpush1.bf16.msra.mxu0 0
      %995 = vmatprep.subr.bf16.mxu0 0
      %996 = vmatpush1.bf16.msra.mxu0 0
      %997 = vmatprep.subr.bf16.mxu0 0
      %998 = vmatpush1.bf16.msra.mxu0 0
      %999 = vmatprep.mubr.bf16.mxu0 0
      %1000 = vmatmul.mubr.bf16.gmra.mrb[0].mxu0 %v944
      %v1001 = vpop.f32.mrb[0].mxu0
      %v1002 = vadd.f32 0.0, %v1001
      %v1003 = vpop.f32.mrb[0].mxu0
      %v1004 = vpop.f32.mrb[0].mxu0
      %v1005 = vadd.f32 0.0, %v1004
      %v1006 = vpop.f32.mrb[0].mxu0
      %1007 = vmatprep.mubr.bf16.mxu0 0
      %1008 = vmatmul.mubr.bf16.gmra.mrb[0].mxu0 %v947
      %v1009 = vpop.f32.mrb[0].mxu0
      %v1010 = vadd.f32 0.0, %v1009
      %v1011 = vpop.f32.mrb[0].mxu0
      %v1012 = vpop.f32.mrb[0].mxu0
      %v1013 = vadd.f32 0.0, %v1012
      %v1014 = vpop.f32.mrb[0].mxu0
      %1015 = vmatprep.mubr.bf16.mxu0 0
      %1016 = vmatmul.mubr.bf16.gmra.mrb[0].mxu0 %v950
      %v1017 = vpop.f32.mrb[0].mxu0
      %v1018 = vadd.f32 0.0, %v1017
      %v1019 = vpop.f32.mrb[0].mxu0
      %v1020 = vpop.f32.mrb[0].mxu0
      %v1021 = vadd.f32 0.0, %v1020
      %v1022 = vpop.f32.mrb[0].mxu0
      %1023 = vmatprep.mubr.bf16.mxu0 0
      %1024 = vmatmul.mubr.bf16.gmra.mrb[0].mxu0 %v953
      %v1025 = vpop.f32.mrb[0].mxu0
      %v1026 = vadd.f32 0.0, %v1025
      %v1027 = vpop.f32.mrb[0].mxu0
      %v1028 = vpop.f32.mrb[0].mxu0
      %v1029 = vadd.f32 0.0, %v1028
      %v1030 = vpop.f32.mrb[0].mxu0
      %1031 = vmatprep.mubr.bf16.mxu0 0
      %1032 = vmatmul.mubr.bf16.gmra.mrb[0].mxu0 %v956
      %v1033 = vpop.f32.mrb[0].mxu0
      %v1034 = vadd.f32 0.0, %v1033
      %v1035 = vpop.f32.mrb[0].mxu0
      %v1036 = vpop.f32.mrb[0].mxu0
      %v1037 = vadd.f32 0.0, %v1036
      %v1038 = vpop.f32.mrb[0].mxu0
      %1039 = vmatprep.mubr.bf16.mxu0 0
      %1040 = vmatmul.mubr.bf16.gmra.mrb[0].mxu0 %v959
      %v1041 = vpop.f32.mrb[0].mxu0
      %v1042 = vadd.f32 0.0, %v1041
      %v1043 = vpop.f32.mrb[0].mxu0
      %v1044 = vpop.f32.mrb[0].mxu0
      %v1045 = vadd.f32 0.0, %v1044
      %v1046 = vpop.f32.mrb[0].mxu0
      %1047 = vmatprep.mubr.bf16.mxu0 0
      %1048 = vmatmul.mubr.bf16.gmra.mrb[0].mxu0 %v962
      %v1049 = vpop.f32.mrb[0].mxu0
      %v1050 = vadd.f32 0.0, %v1049
      %v1051 = vpop.f32.mrb[0].mxu0
      %v1052 = vpop.f32.mrb[0].mxu0
      %v1053 = vadd.f32 0.0, %v1052
      %v1054 = vpop.f32.mrb[0].mxu0
      %1055 = vmatprep.mubr.bf16.mxu0 0
      %1056 = vmatmul.mubr.bf16.gmra.mrb[0].mxu0 %v965
      %v1057 = vpop.f32.mrb[0].mxu0
      %v1058 = vadd.f32 0.0, %v1057
      %v1059 = vpop.f32.mrb[0].mxu0
      %v1060 = vpop.f32.mrb[0].mxu0
      %v1061 = vadd.f32 0.0, %v1060
      %v1062 = vpop.f32.mrb[0].mxu0
      %1063 = vdwg.mxu0
      %v1064 = vadd.f32 %v757, %v1002
      %v1065 = vadd.f32 %v760, %v1005
      %v1066 = vadd.f32 %v765, %v1010
      %v1067 = vadd.f32 %v768, %v1013
      %v1068 = vadd.f32 %v773, %v1018
      %v1069 = vadd.f32 %v776, %v1021
      %v1070 = vadd.f32 %v781, %v1026
      %v1071 = vadd.f32 %v784, %v1029
      %v1072 = vadd.f32 %v789, %v1034
      %v1073 = vadd.f32 %v792, %v1037
      %v1074 = vadd.f32 %v797, %v1042
      %v1075 = vadd.f32 %v800, %v1045
      %v1076 = vadd.f32 %v805, %v1050
      %v1077 = vadd.f32 %v808, %v1053
      %v1078 = vadd.f32 %v813, %v1058
      %v1079 = vadd.f32 %v816, %v1061
      %s1080 = scalar_lea.vmem %s1, 96
      %v1081 = vld [vmem:[%s1080] sm:$0xf]
      %v1082 = vld [vmem:[%s1080 + $0x4] sm:$0xf]
      %v1083 = vld [vmem:[%s1080 + $0x8] sm:$0xf]
      %v1084 = vld [vmem:[%s1080 + $0xc] sm:$0xf]
      %v1085 = vld [vmem:[%s1080 + $0x10] sm:$0xf]
      %v1086 = vld [vmem:[%s1080 + $0x14] sm:$0xf]
      %v1087 = vld [vmem:[%s1080 + $0x18] sm:$0xf]
      %v1088 = vld [vmem:[%s1080 + $0x1c] sm:$0xf]
      %v1091 = vunpack.c.l.b16 %v246
      %v1092 = vunpack.c.l.b16 %v247
      %v1093 = vpack.c.b16 %v1092, %v1091
      %v1102 = vunpack.c.l.b16 %v1081
      %v1103 = vunpack.c.l.b16 %v1082
      %v1104 = vunpack.c.l.b16 %v1083
      %v1105 = vunpack.c.l.b16 %v1084
      %v1106 = vunpack.c.l.b16 %v1085
      %v1107 = vunpack.c.l.b16 %v1086
      %v1108 = vunpack.c.l.b16 %v1087
      %v1109 = vunpack.c.l.b16 %v1088
      %v1110 = vpack.c.b16 %v1103, %v1102
      %v1111 = vpack.c.b16 %v1105, %v1104
      %v1112 = vpack.c.b16 %v1107, %v1106
      %v1113 = vpack.c.b16 %v1109, %v1108
      %v1119 = vsel %vm512, %v1093, 0
      %1121 = vmatprep.subr.bf16.mxu0 0
      %1122 = vmatpush1.bf16.msra.mxu0 %v1110
      %1123 = vmatprep.subr.bf16.mxu0 0
      %1124 = vmatpush1.bf16.msra.mxu0 %v1111
      %1125 = vmatprep.subr.bf16.mxu0 0
      %1126 = vmatpush1.bf16.msra.mxu0 %v1112
      %1127 = vmatprep.subr.bf16.mxu0 0
      %1128 = vmatpush1.bf16.msra.mxu0 %v1113
      %1129 = vmatprep.subr.bf16.mxu0 0
      %1130 = vmatpush1.bf16.msra.mxu0 0
      %1131 = vmatprep.subr.bf16.mxu0 0
      %1132 = vmatpush1.bf16.msra.mxu0 0
      %1133 = vmatprep.subr.bf16.mxu0 0
      %1134 = vmatpush1.bf16.msra.mxu0 0
      %1135 = vmatprep.subr.bf16.mxu0 0
      %1136 = vmatpush1.bf16.msra.mxu0 0
      %1137 = vmatprep.subr.bf16.mxu0 0
      %1138 = vmatpush1.bf16.msra.mxu0 0
      %1139 = vmatprep.subr.bf16.mxu0 0
      %1140 = vmatpush1.bf16.msra.mxu0 0
      %1141 = vmatprep.subr.bf16.mxu0 0
      %1142 = vmatpush1.bf16.msra.mxu0 0
      %1143 = vmatprep.subr.bf16.mxu0 0
      %1144 = vmatpush1.bf16.msra.mxu0 0
      %1145 = vmatprep.subr.bf16.mxu0 0
      %1146 = vmatpush1.bf16.msra.mxu0 0
      %1147 = vmatprep.subr.bf16.mxu0 0
      %1148 = vmatpush1.bf16.msra.mxu0 0
      %1149 = vmatprep.subr.bf16.mxu0 0
      %1150 = vmatpush1.bf16.msra.mxu0 0
      %1151 = vmatprep.subr.bf16.mxu0 0
      %1152 = vmatpush1.bf16.msra.mxu0 0
      %1153 = vmatprep.mubr.bf16.mxu0 0
      %1154 = vmatmul.mubr.bf16.gmra.mrb[0].mxu0 %v702
      %v1155 = vpop.f32.mrb[0].mxu0
      %v1156 = vadd.f32 0.0, %v1155
      %v1157 = vpop.f32.mrb[0].mxu0
      %v1158 = vpop.f32.mrb[0].mxu0
      %v1159 = vadd.f32 0.0, %v1158
      %v1160 = vpop.f32.mrb[0].mxu0
      %1161 = vmatprep.mubr.bf16.mxu0 0
      %1162 = vmatmul.mubr.bf16.gmra.mrb[0].mxu0 %v705
      %v1163 = vpop.f32.mrb[0].mxu0
      %v1164 = vadd.f32 0.0, %v1163
      %v1165 = vpop.f32.mrb[0].mxu0
      %v1166 = vpop.f32.mrb[0].mxu0
      %v1167 = vadd.f32 0.0, %v1166
      %v1168 = vpop.f32.mrb[0].mxu0
      %1169 = vmatprep.mubr.bf16.mxu0 0
      %1170 = vmatmul.mubr.bf16.gmra.mrb[0].mxu0 %v708
      %v1171 = vpop.f32.mrb[0].mxu0
      %v1172 = vadd.f32 0.0, %v1171
      %v1173 = vpop.f32.mrb[0].mxu0
      %v1174 = vpop.f32.mrb[0].mxu0
      %v1175 = vadd.f32 0.0, %v1174
      %v1176 = vpop.f32.mrb[0].mxu0
      %1177 = vmatprep.mubr.bf16.mxu0 0
      %1178 = vmatmul.mubr.bf16.gmra.mrb[0].mxu0 %v711
      %v1179 = vpop.f32.mrb[0].mxu0
      %v1180 = vadd.f32 0.0, %v1179
      %v1181 = vpop.f32.mrb[0].mxu0
      %v1182 = vpop.f32.mrb[0].mxu0
      %v1183 = vadd.f32 0.0, %v1182
      %v1184 = vpop.f32.mrb[0].mxu0
      %1185 = vmatprep.mubr.bf16.mxu0 0
      %1186 = vmatmul.mubr.bf16.gmra.mrb[0].mxu0 %v714
      %v1187 = vpop.f32.mrb[0].mxu0
      %v1188 = vadd.f32 0.0, %v1187
      %v1189 = vpop.f32.mrb[0].mxu0
      %v1190 = vpop.f32.mrb[0].mxu0
      %v1191 = vadd.f32 0.0, %v1190
      %v1192 = vpop.f32.mrb[0].mxu0
      %1193 = vmatprep.mubr.bf16.mxu0 0
      %1194 = vmatmul.mubr.bf16.gmra.mrb[0].mxu0 %v717
      %v1195 = vpop.f32.mrb[0].mxu0
      %v1196 = vadd.f32 0.0, %v1195
      %v1197 = vpop.f32.mrb[0].mxu0
      %v1198 = vpop.f32.mrb[0].mxu0
      %v1199 = vadd.f32 0.0, %v1198
      %v1200 = vpop.f32.mrb[0].mxu0
      %1201 = vmatprep.mubr.bf16.mxu0 0
      %1202 = vmatmul.mubr.bf16.gmra.mrb[0].mxu0 %v720
      %v1203 = vpop.f32.mrb[0].mxu0
      %v1204 = vadd.f32 0.0, %v1203
      %v1205 = vpop.f32.mrb[0].mxu0
      %v1206 = vpop.f32.mrb[0].mxu0
      %v1207 = vadd.f32 0.0, %v1206
      %v1208 = vpop.f32.mrb[0].mxu0
      %1209 = vmatprep.mubr.bf16.mxu0 0
      %1210 = vmatmul.mubr.bf16.gmra.mrb[0].mxu0 %v1119
      %v1211 = vpop.f32.mrb[0].mxu0
      %v1212 = vadd.f32 0.0, %v1211
      %v1213 = vpop.f32.mrb[0].mxu0
      %v1214 = vpop.f32.mrb[0].mxu0
      %v1215 = vadd.f32 0.0, %v1214
      %v1216 = vpop.f32.mrb[0].mxu0
      %1217 = vdwg.mxu0
      %v1218 = vadd.f32 %v1064, %v1156
      %v1219 = vadd.f32 %v1065, %v1159
      %v1220 = vadd.f32 %v1066, %v1164
      %v1221 = vadd.f32 %v1067, %v1167
      %v1222 = vadd.f32 %v1068, %v1172
      %v1223 = vadd.f32 %v1069, %v1175
      %v1224 = vadd.f32 %v1070, %v1180
      %v1225 = vadd.f32 %v1071, %v1183
      %v1226 = vadd.f32 %v1072, %v1188
      %v1227 = vadd.f32 %v1073, %v1191
      %v1228 = vadd.f32 %v1074, %v1196
      %v1229 = vadd.f32 %v1075, %v1199
      %v1230 = vadd.f32 %v1076, %v1204
      %v1231 = vadd.f32 %v1077, %v1207
      %v1232 = vadd.f32 %v1078, %v1212
      %v1233 = vadd.f32 %v1079, %v1215
      %v1235 = vshrl.u32 %v246, 16
      %v1237 = vrot.slane %v1235, 4
      %v1238 = vshll.u32 %v246, 16
      %v1240 = vrot.slane %v1238, 5
      %v1241 = vor.u32 %v1237, %v1240
      %v1242 = vrot.slane %v1241, 4
      %v1244 = vshll.u32 %v247, 16
      %v1246 = vrot.slane %v1244, 5
      %v1247 = vsel %vm262, %v1242, %v1246
      %v1248 = vshrl.u32 %v247, 16
      %v1250 = vrot.slane %v1248, 4
      %v1251 = vor.u32 %v1250, %v1246
      %v1252 = vrot.slane %v1251, 4
      %v1254 = vshll.u32 %v248, 16
      %v1256 = vrot.slane %v1254, 5
      %v1257 = vsel %vm262, %v1252, %v1256
      %s1258 = scalar_lea.vmem %s1, 128
      %v1259 = vld [vmem:[%s1258] sm:$0xf]
      %v1260 = vld [vmem:[%s1258 + $0x4] sm:$0xf]
      %v1261 = vld [vmem:[%s1258 + $0x8] sm:$0xf]
      %v1262 = vld [vmem:[%s1258 + $0xc] sm:$0xf]
      %v1263 = vld [vmem:[%s1258 + $0x10] sm:$0xf]
      %v1264 = vld [vmem:[%s1258 + $0x14] sm:$0xf]
      %v1265 = vld [vmem:[%s1258 + $0x18] sm:$0xf]
      %v1266 = vld [vmem:[%s1258 + $0x1c] sm:$0xf]
      %v1267 = vunpack.c.l.b16 %v1247
      %v1268 = vunpack.c.l.b16 %v1257
      %v1269 = vpack.c.b16 %v1268, %v1267
      %v1278 = vunpack.c.l.b16 %v1259
      %v1279 = vunpack.c.l.b16 %v1260
      %v1280 = vunpack.c.l.b16 %v1261
      %v1281 = vunpack.c.l.b16 %v1262
      %v1282 = vunpack.c.l.b16 %v1263
      %v1283 = vunpack.c.l.b16 %v1264
      %v1284 = vunpack.c.l.b16 %v1265
      %v1285 = vunpack.c.l.b16 %v1266
      %v1286 = vpack.c.b16 %v1279, %v1278
      %v1287 = vpack.c.b16 %v1281, %v1280
      %v1288 = vpack.c.b16 %v1283, %v1282
      %v1289 = vpack.c.b16 %v1285, %v1284
      %v1295 = vsel %vm512, %v1269, 0
      %1297 = vmatprep.subr.bf16.mxu0 0
      %1298 = vmatpush1.bf16.msra.mxu0 %v1286
      %1299 = vmatprep.subr.bf16.mxu0 0
      %1300 = vmatpush1.bf16.msra.mxu0 %v1287
      %1301 = vmatprep.subr.bf16.mxu0 0
      %1302 = vmatpush1.bf16.msra.mxu0 %v1288
      %1303 = vmatprep.subr.bf16.mxu0 0
      %1304 = vmatpush1.bf16.msra.mxu0 %v1289
      %1305 = vmatprep.subr.bf16.mxu0 0
      %1306 = vmatpush1.bf16.msra.mxu0 0
      %1307 = vmatprep.subr.bf16.mxu0 0
      %1308 = vmatpush1.bf16.msra.mxu0 0
      %1309 = vmatprep.subr.bf16.mxu0 0
      %1310 = vmatpush1.bf16.msra.mxu0 0
      %1311 = vmatprep.subr.bf16.mxu0 0
      %1312 = vmatpush1.bf16.msra.mxu0 0
      %1313 = vmatprep.subr.bf16.mxu0 0
      %1314 = vmatpush1.bf16.msra.mxu0 0
      %1315 = vmatprep.subr.bf16.mxu0 0
      %1316 = vmatpush1.bf16.msra.mxu0 0
      %1317 = vmatprep.subr.bf16.mxu0 0
      %1318 = vmatpush1.bf16.msra.mxu0 0
      %1319 = vmatprep.subr.bf16.mxu0 0
      %1320 = vmatpush1.bf16.msra.mxu0 0
      %1321 = vmatprep.subr.bf16.mxu0 0
      %1322 = vmatpush1.bf16.msra.mxu0 0
      %1323 = vmatprep.subr.bf16.mxu0 0
      %1324 = vmatpush1.bf16.msra.mxu0 0
      %1325 = vmatprep.subr.bf16.mxu0 0
      %1326 = vmatpush1.bf16.msra.mxu0 0
      %1327 = vmatprep.subr.bf16.mxu0 0
      %1328 = vmatpush1.bf16.msra.mxu0 0
      %1329 = vmatprep.mubr.bf16.mxu0 0
      %1330 = vmatmul.mubr.bf16.gmra.mrb[0].mxu0 %v517
      %v1331 = vpop.f32.mrb[0].mxu0
      %v1332 = vadd.f32 0.0, %v1331
      %v1333 = vpop.f32.mrb[0].mxu0
      %v1334 = vpop.f32.mrb[0].mxu0
      %v1335 = vadd.f32 0.0, %v1334
      %v1336 = vpop.f32.mrb[0].mxu0
      %1337 = vmatprep.mubr.bf16.mxu0 0
      %1338 = vmatmul.mubr.bf16.gmra.mrb[0].mxu0 %v520
      %v1339 = vpop.f32.mrb[0].mxu0
      %v1340 = vadd.f32 0.0, %v1339
      %v1341 = vpop.f32.mrb[0].mxu0
      %v1342 = vpop.f32.mrb[0].mxu0
      %v1343 = vadd.f32 0.0, %v1342
      %v1344 = vpop.f32.mrb[0].mxu0
      %1345 = vmatprep.mubr.bf16.mxu0 0
      %1346 = vmatmul.mubr.bf16.gmra.mrb[0].mxu0 %v523
      %v1347 = vpop.f32.mrb[0].mxu0
      %v1348 = vadd.f32 0.0, %v1347
      %v1349 = vpop.f32.mrb[0].mxu0
      %v1350 = vpop.f32.mrb[0].mxu0
      %v1351 = vadd.f32 0.0, %v1350
      %v1352 = vpop.f32.mrb[0].mxu0
      %1353 = vmatprep.mubr.bf16.mxu0 0
      %1354 = vmatmul.mubr.bf16.gmra.mrb[0].mxu0 %v526
      %v1355 = vpop.f32.mrb[0].mxu0
      %v1356 = vadd.f32 0.0, %v1355
      %v1357 = vpop.f32.mrb[0].mxu0
      %v1358 = vpop.f32.mrb[0].mxu0
      %v1359 = vadd.f32 0.0, %v1358
      %v1360 = vpop.f32.mrb[0].mxu0
      %1361 = vmatprep.mubr.bf16.mxu0 0
      %1362 = vmatmul.mubr.bf16.gmra.mrb[0].mxu0 %v529
      %v1363 = vpop.f32.mrb[0].mxu0
      %v1364 = vadd.f32 0.0, %v1363
      %v1365 = vpop.f32.mrb[0].mxu0
      %v1366 = vpop.f32.mrb[0].mxu0
      %v1367 = vadd.f32 0.0, %v1366
      %v1368 = vpop.f32.mrb[0].mxu0
      %1369 = vmatprep.mubr.bf16.mxu0 0
      %1370 = vmatmul.mubr.bf16.gmra.mrb[0].mxu0 %v532
      %v1371 = vpop.f32.mrb[0].mxu0
      %v1372 = vadd.f32 0.0, %v1371
      %v1373 = vpop.f32.mrb[0].mxu0
      %v1374 = vpop.f32.mrb[0].mxu0
      %v1375 = vadd.f32 0.0, %v1374
      %v1376 = vpop.f32.mrb[0].mxu0
      %1377 = vmatprep.mubr.bf16.mxu0 0
      %1378 = vmatmul.mubr.bf16.gmra.mrb[0].mxu0 %v535
      %v1379 = vpop.f32.mrb[0].mxu0
      %v1380 = vadd.f32 0.0, %v1379
      %v1381 = vpop.f32.mrb[0].mxu0
      %v1382 = vpop.f32.mrb[0].mxu0
      %v1383 = vadd.f32 0.0, %v1382
      %v1384 = vpop.f32.mrb[0].mxu0
      %1385 = vmatprep.mubr.bf16.mxu0 0
      %1386 = vmatmul.mubr.bf16.gmra.mrb[0].mxu0 %v1295
      %v1387 = vpop.f32.mrb[0].mxu0
      %v1388 = vadd.f32 0.0, %v1387
      %v1389 = vpop.f32.mrb[0].mxu0
      %v1390 = vpop.f32.mrb[0].mxu0
      %v1391 = vadd.f32 0.0, %v1390
      %v1392 = vpop.f32.mrb[0].mxu0
      %1393 = vdwg.mxu0
      %v1394 = vadd.f32 %v1218, %v1332
      %v1395 = vadd.f32 %v1219, %v1335
      %v1396 = vadd.f32 %v1220, %v1340
      %v1397 = vadd.f32 %v1221, %v1343
      %v1398 = vadd.f32 %v1222, %v1348
      %v1399 = vadd.f32 %v1223, %v1351
      %v1400 = vadd.f32 %v1224, %v1356
      %v1401 = vadd.f32 %v1225, %v1359
      %v1402 = vadd.f32 %v1226, %v1364
      %v1403 = vadd.f32 %v1227, %v1367
      %v1404 = vadd.f32 %v1228, %v1372
      %v1405 = vadd.f32 %v1229, %v1375
      %v1406 = vadd.f32 %v1230, %v1380
      %v1407 = vadd.f32 %v1231, %v1383
      %v1408 = vadd.f32 %v1232, %v1388
      %v1409 = vadd.f32 %v1233, %v1391
      %v1411 = vrot.slane %v246, 5
      %v1412 = vrot.slane %v1411, 4
      %v1413 = vrot.slane %v247, 5
      %v1414 = vsel %vm829, %v1412, %v1413
      %v1415 = vrot.slane %v1413, 4
      %v1416 = vrot.slane %v248, 5
      %v1417 = vsel %vm829, %v1415, %v1416
      %s1418 = scalar_lea.vmem %s1, 160
      %v1419 = vld [vmem:[%s1418] sm:$0xf]
      %v1420 = vld [vmem:[%s1418 + $0x4] sm:$0xf]
      %v1421 = vld [vmem:[%s1418 + $0x8] sm:$0xf]
      %v1422 = vld [vmem:[%s1418 + $0xc] sm:$0xf]
      %v1423 = vld [vmem:[%s1418 + $0x10] sm:$0xf]
      %v1424 = vld [vmem:[%s1418 + $0x14] sm:$0xf]
      %v1425 = vld [vmem:[%s1418 + $0x18] sm:$0xf]
      %v1426 = vld [vmem:[%s1418 + $0x1c] sm:$0xf]
      %v1427 = vunpack.c.l.b16 %v1414
      %v1428 = vunpack.c.l.b16 %v1417
      %v1429 = vpack.c.b16 %v1428, %v1427
      %v1438 = vunpack.c.l.b16 %v1419
      %v1439 = vunpack.c.l.b16 %v1420
      %v1440 = vunpack.c.l.b16 %v1421
      %v1441 = vunpack.c.l.b16 %v1422
      %v1442 = vunpack.c.l.b16 %v1423
      %v1443 = vunpack.c.l.b16 %v1424
      %v1444 = vunpack.c.l.b16 %v1425
      %v1445 = vunpack.c.l.b16 %v1426
      %v1446 = vpack.c.b16 %v1439, %v1438
      %v1447 = vpack.c.b16 %v1441, %v1440
      %v1448 = vpack.c.b16 %v1443, %v1442
      %v1449 = vpack.c.b16 %v1445, %v1444
      %v1455 = vsel %vm512, %v1429, 0
      %1457 = vmatprep.subr.bf16.mxu0 0
      %1458 = vmatpush1.bf16.msra.mxu0 %v1446
      %1459 = vmatprep.subr.bf16.mxu0 0
      %1460 = vmatpush1.bf16.msra.mxu0 %v1447
      %1461 = vmatprep.subr.bf16.mxu0 0
      %1462 = vmatpush1.bf16.msra.mxu0 %v1448
      %1463 = vmatprep.subr.bf16.mxu0 0
      %1464 = vmatpush1.bf16.msra.mxu0 %v1449
      %1465 = vmatprep.subr.bf16.mxu0 0
      %1466 = vmatpush1.bf16.msra.mxu0 0
      %1467 = vmatprep.subr.bf16.mxu0 0
      %1468 = vmatpush1.bf16.msra.mxu0 0
      %1469 = vmatprep.subr.bf16.mxu0 0
      %1470 = vmatpush1.bf16.msra.mxu0 0
      %1471 = vmatprep.subr.bf16.mxu0 0
      %1472 = vmatpush1.bf16.msra.mxu0 0
      %1473 = vmatprep.subr.bf16.mxu0 0
      %1474 = vmatpush1.bf16.msra.mxu0 0
      %1475 = vmatprep.subr.bf16.mxu0 0
      %1476 = vmatpush1.bf16.msra.mxu0 0
      %1477 = vmatprep.subr.bf16.mxu0 0
      %1478 = vmatpush1.bf16.msra.mxu0 0
      %1479 = vmatprep.subr.bf16.mxu0 0
      %1480 = vmatpush1.bf16.msra.mxu0 0
      %1481 = vmatprep.subr.bf16.mxu0 0
      %1482 = vmatpush1.bf16.msra.mxu0 0
      %1483 = vmatprep.subr.bf16.mxu0 0
      %1484 = vmatpush1.bf16.msra.mxu0 0
      %1485 = vmatprep.subr.bf16.mxu0 0
      %1486 = vmatpush1.bf16.msra.mxu0 0
      %1487 = vmatprep.subr.bf16.mxu0 0
      %1488 = vmatpush1.bf16.msra.mxu0 0
      %1489 = vmatprep.mubr.bf16.mxu0 0
      %1490 = vmatmul.mubr.bf16.gmra.mrb[0].mxu0 %v947
      %v1491 = vpop.f32.mrb[0].mxu0
      %v1492 = vadd.f32 0.0, %v1491
      %v1493 = vpop.f32.mrb[0].mxu0
      %v1494 = vpop.f32.mrb[0].mxu0
      %v1495 = vadd.f32 0.0, %v1494
      %v1496 = vpop.f32.mrb[0].mxu0
      %1497 = vmatprep.mubr.bf16.mxu0 0
      %1498 = vmatmul.mubr.bf16.gmra.mrb[0].mxu0 %v950
      %v1499 = vpop.f32.mrb[0].mxu0
      %v1500 = vadd.f32 0.0, %v1499
      %v1501 = vpop.f32.mrb[0].mxu0
      %v1502 = vpop.f32.mrb[0].mxu0
      %v1503 = vadd.f32 0.0, %v1502
      %v1504 = vpop.f32.mrb[0].mxu0
      %1505 = vmatprep.mubr.bf16.mxu0 0
      %1506 = vmatmul.mubr.bf16.gmra.mrb[0].mxu0 %v953
      %v1507 = vpop.f32.mrb[0].mxu0
      %v1508 = vadd.f32 0.0, %v1507
      %v1509 = vpop.f32.mrb[0].mxu0
      %v1510 = vpop.f32.mrb[0].mxu0
      %v1511 = vadd.f32 0.0, %v1510
      %v1512 = vpop.f32.mrb[0].mxu0
      %1513 = vmatprep.mubr.bf16.mxu0 0
      %1514 = vmatmul.mubr.bf16.gmra.mrb[0].mxu0 %v956
      %v1515 = vpop.f32.mrb[0].mxu0
      %v1516 = vadd.f32 0.0, %v1515
      %v1517 = vpop.f32.mrb[0].mxu0
      %v1518 = vpop.f32.mrb[0].mxu0
      %v1519 = vadd.f32 0.0, %v1518
      %v1520 = vpop.f32.mrb[0].mxu0
      %1521 = vmatprep.mubr.bf16.mxu0 0
      %1522 = vmatmul.mubr.bf16.gmra.mrb[0].mxu0 %v959
      %v1523 = vpop.f32.mrb[0].mxu0
      %v1524 = vadd.f32 0.0, %v1523
      %v1525 = vpop.f32.mrb[0].mxu0
      %v1526 = vpop.f32.mrb[0].mxu0
      %v1527 = vadd.f32 0.0, %v1526
      %v1528 = vpop.f32.mrb[0].mxu0
      %1529 = vmatprep.mubr.bf16.mxu0 0
      %1530 = vmatmul.mubr.bf16.gmra.mrb[0].mxu0 %v962
      %v1531 = vpop.f32.mrb[0].mxu0
      %v1532 = vadd.f32 0.0, %v1531
      %v1533 = vpop.f32.mrb[0].mxu0
      %v1534 = vpop.f32.mrb[0].mxu0
      %v1535 = vadd.f32 0.0, %v1534
      %v1536 = vpop.f32.mrb[0].mxu0
      %1537 = vmatprep.mubr.bf16.mxu0 0
      %1538 = vmatmul.mubr.bf16.gmra.mrb[0].mxu0 %v965
      %v1539 = vpop.f32.mrb[0].mxu0
      %v1540 = vadd.f32 0.0, %v1539
      %v1541 = vpop.f32.mrb[0].mxu0
      %v1542 = vpop.f32.mrb[0].mxu0
      %v1543 = vadd.f32 0.0, %v1542
      %v1544 = vpop.f32.mrb[0].mxu0
      %1545 = vmatprep.mubr.bf16.mxu0 0
      %1546 = vmatmul.mubr.bf16.gmra.mrb[0].mxu0 %v1455
      %v1547 = vpop.f32.mrb[0].mxu0
      %v1548 = vadd.f32 0.0, %v1547
      %v1549 = vpop.f32.mrb[0].mxu0
      %v1550 = vpop.f32.mrb[0].mxu0
      %v1551 = vadd.f32 0.0, %v1550
      %v1552 = vpop.f32.mrb[0].mxu0
      %1553 = vdwg.mxu0
      %v1554 = vadd.f32 %v1394, %v1492
      %v1555 = vadd.f32 %v1395, %v1495
      %v1556 = vadd.f32 %v1396, %v1500
      %v1557 = vadd.f32 %v1397, %v1503
      %v1558 = vadd.f32 %v1398, %v1508
      %v1559 = vadd.f32 %v1399, %v1511
      %v1560 = vadd.f32 %v1400, %v1516
      %v1561 = vadd.f32 %v1401, %v1519
      %v1562 = vadd.f32 %v1402, %v1524
      %v1563 = vadd.f32 %v1403, %v1527
      %v1564 = vadd.f32 %v1404, %v1532
      %v1565 = vadd.f32 %v1405, %v1535
      %v1566 = vadd.f32 %v1406, %v1540
      %v1567 = vadd.f32 %v1407, %v1543
      %v1568 = vadd.f32 %v1408, %v1548
      %v1569 = vadd.f32 %v1409, %v1551
      %s1570 = scalar_lea.vmem %s1, 192
      %v1571 = vld [vmem:[%s1570] sm:$0xf]
      %v1572 = vld [vmem:[%s1570 + $0x4] sm:$0xf]
      %v1573 = vld [vmem:[%s1570 + $0x8] sm:$0xf]
      %v1574 = vld [vmem:[%s1570 + $0xc] sm:$0xf]
      %v1575 = vld [vmem:[%s1570 + $0x10] sm:$0xf]
      %v1576 = vld [vmem:[%s1570 + $0x14] sm:$0xf]
      %v1577 = vld [vmem:[%s1570 + $0x18] sm:$0xf]
      %v1578 = vld [vmem:[%s1570 + $0x1c] sm:$0xf]
      %v1581 = vunpack.c.l.b16 %v249
      %v1582 = vunpack.c.l.b16 %v250
      %v1583 = vpack.c.b16 %v1582, %v1581
      %v1592 = vunpack.c.l.b16 %v1571
      %v1593 = vunpack.c.l.b16 %v1572
      %v1594 = vunpack.c.l.b16 %v1573
      %v1595 = vunpack.c.l.b16 %v1574
      %v1596 = vunpack.c.l.b16 %v1575
      %v1597 = vunpack.c.l.b16 %v1576
      %v1598 = vunpack.c.l.b16 %v1577
      %v1599 = vunpack.c.l.b16 %v1578
      %v1600 = vpack.c.b16 %v1593, %v1592
      %v1601 = vpack.c.b16 %v1595, %v1594
      %v1602 = vpack.c.b16 %v1597, %v1596
      %v1603 = vpack.c.b16 %v1599, %v1598
      %v1609 = vsel %vm512, %v1583, 0
      %1611 = vmatprep.subr.bf16.mxu0 0
      %1612 = vmatpush1.bf16.msra.mxu0 %v1600
      %1613 = vmatprep.subr.bf16.mxu0 0
      %1614 = vmatpush1.bf16.msra.mxu0 %v1601
      %1615 = vmatprep.subr.bf16.mxu0 0
      %1616 = vmatpush1.bf16.msra.mxu0 %v1602
      %1617 = vmatprep.subr.bf16.mxu0 0
      %1618 = vmatpush1.bf16.msra.mxu0 %v1603
      %1619 = vmatprep.subr.bf16.mxu0 0
      %1620 = vmatpush1.bf16.msra.mxu0 0
      %1621 = vmatprep.subr.bf16.mxu0 0
      %1622 = vmatpush1.bf16.msra.mxu0 0
      %1623 = vmatprep.subr.bf16.mxu0 0
      %1624 = vmatpush1.bf16.msra.mxu0 0
      %1625 = vmatprep.subr.bf16.mxu0 0
      %1626 = vmatpush1.bf16.msra.mxu0 0
      %1627 = vmatprep.subr.bf16.mxu0 0
      %1628 = vmatpush1.bf16.msra.mxu0 0
      %1629 = vmatprep.subr.bf16.mxu0 0
      %1630 = vmatpush1.bf16.msra.mxu0 0
      %1631 = vmatprep.subr.bf16.mxu0 0
      %1632 = vmatpush1.bf16.msra.mxu0 0
      %1633 = vmatprep.subr.bf16.mxu0 0
      %1634 = vmatpush1.bf16.msra.mxu0 0
      %1635 = vmatprep.subr.bf16.mxu0 0
      %1636 = vmatpush1.bf16.msra.mxu0 0
      %1637 = vmatprep.subr.bf16.mxu0 0
      %1638 = vmatpush1.bf16.msra.mxu0 0
      %1639 = vmatprep.subr.bf16.mxu0 0
      %1640 = vmatpush1.bf16.msra.mxu0 0
      %1641 = vmatprep.subr.bf16.mxu0 0
      %1642 = vmatpush1.bf16.msra.mxu0 0
      %1643 = vmatprep.mubr.bf16.mxu0 0
      %1644 = vmatmul.mubr.bf16.gmra.mrb[0].mxu0 %v705
      %v1645 = vpop.f32.mrb[0].mxu0
      %v1646 = vadd.f32 0.0, %v1645
      %v1647 = vpop.f32.mrb[0].mxu0
      %v1648 = vpop.f32.mrb[0].mxu0
      %v1649 = vadd.f32 0.0, %v1648
      %v1650 = vpop.f32.mrb[0].mxu0
      %1651 = vmatprep.mubr.bf16.mxu0 0
      %1652 = vmatmul.mubr.bf16.gmra.mrb[0].mxu0 %v708
      %v1653 = vpop.f32.mrb[0].mxu0
      %v1654 = vadd.f32 0.0, %v1653
      %v1655 = vpop.f32.mrb[0].mxu0
      %v1656 = vpop.f32.mrb[0].mxu0
      %v1657 = vadd.f32 0.0, %v1656
      %v1658 = vpop.f32.mrb[0].mxu0
      %1659 = vmatprep.mubr.bf16.mxu0 0
      %1660 = vmatmul.mubr.bf16.gmra.mrb[0].mxu0 %v711
      %v1661 = vpop.f32.mrb[0].mxu0
      %v1662 = vadd.f32 0.0, %v1661
      %v1663 = vpop.f32.mrb[0].mxu0
      %v1664 = vpop.f32.mrb[0].mxu0
      %v1665 = vadd.f32 0.0, %v1664
      %v1666 = vpop.f32.mrb[0].mxu0
      %1667 = vmatprep.mubr.bf16.mxu0 0
      %1668 = vmatmul.mubr.bf16.gmra.mrb[0].mxu0 %v714
      %v1669 = vpop.f32.mrb[0].mxu0
      %v1670 = vadd.f32 0.0, %v1669
      %v1671 = vpop.f32.mrb[0].mxu0
      %v1672 = vpop.f32.mrb[0].mxu0
      %v1673 = vadd.f32 0.0, %v1672
      %v1674 = vpop.f32.mrb[0].mxu0
      %1675 = vmatprep.mubr.bf16.mxu0 0
      %1676 = vmatmul.mubr.bf16.gmra.mrb[0].mxu0 %v717
      %v1677 = vpop.f32.mrb[0].mxu0
      %v1678 = vadd.f32 0.0, %v1677
      %v1679 = vpop.f32.mrb[0].mxu0
      %v1680 = vpop.f32.mrb[0].mxu0
      %v1681 = vadd.f32 0.0, %v1680
      %v1682 = vpop.f32.mrb[0].mxu0
      %1683 = vmatprep.mubr.bf16.mxu0 0
      %1684 = vmatmul.mubr.bf16.gmra.mrb[0].mxu0 %v720
      %v1685 = vpop.f32.mrb[0].mxu0
      %v1686 = vadd.f32 0.0, %v1685
      %v1687 = vpop.f32.mrb[0].mxu0
      %v1688 = vpop.f32.mrb[0].mxu0
      %v1689 = vadd.f32 0.0, %v1688
      %v1690 = vpop.f32.mrb[0].mxu0
      %1691 = vmatprep.mubr.bf16.mxu0 0
      %1692 = vmatmul.mubr.bf16.gmra.mrb[0].mxu0 %v1119
      %v1693 = vpop.f32.mrb[0].mxu0
      %v1694 = vadd.f32 0.0, %v1693
      %v1695 = vpop.f32.mrb[0].mxu0
      %v1696 = vpop.f32.mrb[0].mxu0
      %v1697 = vadd.f32 0.0, %v1696
      %v1698 = vpop.f32.mrb[0].mxu0
      %1699 = vmatprep.mubr.bf16.mxu0 0
      %1700 = vmatmul.mubr.bf16.gmra.mrb[0].mxu0 %v1609
      %v1701 = vpop.f32.mrb[0].mxu0
      %v1702 = vadd.f32 0.0, %v1701
      %v1703 = vpop.f32.mrb[0].mxu0
      %v1704 = vpop.f32.mrb[0].mxu0
      %v1705 = vadd.f32 0.0, %v1704
      %v1706 = vpop.f32.mrb[0].mxu0
      %1707 = vdwg.mxu0
      %v1708 = vadd.f32 %v1554, %v1646
      %v1709 = vadd.f32 %v1555, %v1649
      %v1710 = vadd.f32 %v1556, %v1654
      %v1711 = vadd.f32 %v1557, %v1657
      %v1712 = vadd.f32 %v1558, %v1662
      %v1713 = vadd.f32 %v1559, %v1665
      %v1714 = vadd.f32 %v1560, %v1670
      %v1715 = vadd.f32 %v1561, %v1673
      %v1716 = vadd.f32 %v1562, %v1678
      %v1717 = vadd.f32 %v1563, %v1681
      %v1718 = vadd.f32 %v1564, %v1686
      %v1719 = vadd.f32 %v1565, %v1689
      %v1720 = vadd.f32 %v1566, %v1694
      %v1721 = vadd.f32 %v1567, %v1697
      %v1722 = vadd.f32 %v1568, %v1702
      %v1723 = vadd.f32 %v1569, %v1705
      %v1725 = vshrl.u32 %v249, 16
      %v1727 = vrot.slane %v1725, 4
      %v1728 = vshll.u32 %v249, 16
      %v1730 = vrot.slane %v1728, 5
      %v1731 = vor.u32 %v1727, %v1730
      %v1732 = vrot.slane %v1731, 4
      %v1734 = vshll.u32 %v250, 16
      %v1736 = vrot.slane %v1734, 5
      %v1737 = vsel %vm262, %v1732, %v1736
      %v1738 = vshrl.u32 %v250, 16
      %v1740 = vrot.slane %v1738, 4
      %v1741 = vor.u32 %v1740, %v1736
      %v1742 = vrot.slane %v1741, 4
      %v1744 = vshll.u32 %v251, 16
      %v1746 = vrot.slane %v1744, 5
      %v1747 = vsel %vm262, %v1742, %v1746
      %s1748 = scalar_lea.vmem %s1, 224
      %v1749 = vld [vmem:[%s1748] sm:$0xf]
      %v1750 = vld [vmem:[%s1748 + $0x4] sm:$0xf]
      %v1751 = vld [vmem:[%s1748 + $0x8] sm:$0xf]
      %v1752 = vld [vmem:[%s1748 + $0xc] sm:$0xf]
      %v1753 = vld [vmem:[%s1748 + $0x10] sm:$0xf]
      %v1754 = vld [vmem:[%s1748 + $0x14] sm:$0xf]
      %v1755 = vld [vmem:[%s1748 + $0x18] sm:$0xf]
      %v1756 = vld [vmem:[%s1748 + $0x1c] sm:$0xf]
      %v1757 = vunpack.c.l.b16 %v1737
      %v1758 = vunpack.c.l.b16 %v1747
      %v1759 = vpack.c.b16 %v1758, %v1757
      %v1768 = vunpack.c.l.b16 %v1749
      %v1769 = vunpack.c.l.b16 %v1750
      %v1770 = vunpack.c.l.b16 %v1751
      %v1771 = vunpack.c.l.b16 %v1752
      %v1772 = vunpack.c.l.b16 %v1753
      %v1773 = vunpack.c.l.b16 %v1754
      %v1774 = vunpack.c.l.b16 %v1755
      %v1775 = vunpack.c.l.b16 %v1756
      %v1776 = vpack.c.b16 %v1769, %v1768
      %v1777 = vpack.c.b16 %v1771, %v1770
      %v1778 = vpack.c.b16 %v1773, %v1772
      %v1779 = vpack.c.b16 %v1775, %v1774
      %v1785 = vsel %vm512, %v1759, 0
      %1787 = vmatprep.subr.bf16.mxu0 0
      %1788 = vmatpush1.bf16.msra.mxu0 %v1776
      %1789 = vmatprep.subr.bf16.mxu0 0
      %1790 = vmatpush1.bf16.msra.mxu0 %v1777
      %1791 = vmatprep.subr.bf16.mxu0 0
      %1792 = vmatpush1.bf16.msra.mxu0 %v1778
      %1793 = vmatprep.subr.bf16.mxu0 0
      %1794 = vmatpush1.bf16.msra.mxu0 %v1779
      %1795 = vmatprep.subr.bf16.mxu0 0
      %1796 = vmatpush1.bf16.msra.mxu0 0
      %1797 = vmatprep.subr.bf16.mxu0 0
      %1798 = vmatpush1.bf16.msra.mxu0 0
      %1799 = vmatprep.subr.bf16.mxu0 0
      %1800 = vmatpush1.bf16.msra.mxu0 0
      %1801 = vmatprep.subr.bf16.mxu0 0
      %1802 = vmatpush1.bf16.msra.mxu0 0
      %1803 = vmatprep.subr.bf16.mxu0 0
      %1804 = vmatpush1.bf16.msra.mxu0 0
      %1805 = vmatprep.subr.bf16.mxu0 0
      %1806 = vmatpush1.bf16.msra.mxu0 0
      %1807 = vmatprep.subr.bf16.mxu0 0
      %1808 = vmatpush1.bf16.msra.mxu0 0
      %1809 = vmatprep.subr.bf16.mxu0 0
      %1810 = vmatpush1.bf16.msra.mxu0 0
      %1811 = vmatprep.subr.bf16.mxu0 0
      %1812 = vmatpush1.bf16.msra.mxu0 0
      %1813 = vmatprep.subr.bf16.mxu0 0
      %1814 = vmatpush1.bf16.msra.mxu0 0
      %1815 = vmatprep.subr.bf16.mxu0 0
      %1816 = vmatpush1.bf16.msra.mxu0 0
      %1817 = vmatprep.subr.bf16.mxu0 0
      %1818 = vmatpush1.bf16.msra.mxu0 0
      %1819 = vmatprep.mubr.bf16.mxu0 0
      %1820 = vmatmul.mubr.bf16.gmra.mrb[0].mxu0 %v520
      %v1821 = vpop.f32.mrb[0].mxu0
      %v1822 = vadd.f32 0.0, %v1821
      %v1823 = vpop.f32.mrb[0].mxu0
      %v1824 = vpop.f32.mrb[0].mxu0
      %v1825 = vadd.f32 0.0, %v1824
      %v1826 = vpop.f32.mrb[0].mxu0
      %1827 = vmatprep.mubr.bf16.mxu0 0
      %1828 = vmatmul.mubr.bf16.gmra.mrb[0].mxu0 %v523
      %v1829 = vpop.f32.mrb[0].mxu0
      %v1830 = vadd.f32 0.0, %v1829
      %v1831 = vpop.f32.mrb[0].mxu0
      %v1832 = vpop.f32.mrb[0].mxu0
      %v1833 = vadd.f32 0.0, %v1832
      %v1834 = vpop.f32.mrb[0].mxu0
      %1835 = vmatprep.mubr.bf16.mxu0 0
      %1836 = vmatmul.mubr.bf16.gmra.mrb[0].mxu0 %v526
      %v1837 = vpop.f32.mrb[0].mxu0
      %v1838 = vadd.f32 0.0, %v1837
      %v1839 = vpop.f32.mrb[0].mxu0
      %v1840 = vpop.f32.mrb[0].mxu0
      %v1841 = vadd.f32 0.0, %v1840
      %v1842 = vpop.f32.mrb[0].mxu0
      %1843 = vmatprep.mubr.bf16.mxu0 0
      %1844 = vmatmul.mubr.bf16.gmra.mrb[0].mxu0 %v529
      %v1845 = vpop.f32.mrb[0].mxu0
      %v1846 = vadd.f32 0.0, %v1845
      %v1847 = vpop.f32.mrb[0].mxu0
      %v1848 = vpop.f32.mrb[0].mxu0
      %v1849 = vadd.f32 0.0, %v1848
      %v1850 = vpop.f32.mrb[0].mxu0
      %1851 = vmatprep.mubr.bf16.mxu0 0
      %1852 = vmatmul.mubr.bf16.gmra.mrb[0].mxu0 %v532
      %v1853 = vpop.f32.mrb[0].mxu0
      %v1854 = vadd.f32 0.0, %v1853
      %v1855 = vpop.f32.mrb[0].mxu0
      %v1856 = vpop.f32.mrb[0].mxu0
      %v1857 = vadd.f32 0.0, %v1856
      %v1858 = vpop.f32.mrb[0].mxu0
      %1859 = vmatprep.mubr.bf16.mxu0 0
      %1860 = vmatmul.mubr.bf16.gmra.mrb[0].mxu0 %v535
      %v1861 = vpop.f32.mrb[0].mxu0
      %v1862 = vadd.f32 0.0, %v1861
      %v1863 = vpop.f32.mrb[0].mxu0
      %v1864 = vpop.f32.mrb[0].mxu0
      %v1865 = vadd.f32 0.0, %v1864
      %v1866 = vpop.f32.mrb[0].mxu0
      %1867 = vmatprep.mubr.bf16.mxu0 0
      %1868 = vmatmul.mubr.bf16.gmra.mrb[0].mxu0 %v1295
      %v1869 = vpop.f32.mrb[0].mxu0
      %v1870 = vadd.f32 0.0, %v1869
      %v1871 = vpop.f32.mrb[0].mxu0
      %v1872 = vpop.f32.mrb[0].mxu0
      %v1873 = vadd.f32 0.0, %v1872
      %v1874 = vpop.f32.mrb[0].mxu0
      %1875 = vmatprep.mubr.bf16.mxu0 0
      %1876 = vmatmul.mubr.bf16.gmra.mrb[0].mxu0 %v1785
      %v1877 = vpop.f32.mrb[0].mxu0
      %v1878 = vadd.f32 0.0, %v1877
      %v1879 = vpop.f32.mrb[0].mxu0
      %v1880 = vpop.f32.mrb[0].mxu0
      %v1881 = vadd.f32 0.0, %v1880
      %v1882 = vpop.f32.mrb[0].mxu0
      %1883 = vdwg.mxu0
      %v1884 = vadd.f32 %v1708, %v1822
      %v1885 = vadd.f32 %v1709, %v1825
      %v1886 = vadd.f32 %v1710, %v1830
      %v1887 = vadd.f32 %v1711, %v1833
      %v1888 = vadd.f32 %v1712, %v1838
      %v1889 = vadd.f32 %v1713, %v1841
      %v1890 = vadd.f32 %v1714, %v1846
      %v1891 = vadd.f32 %v1715, %v1849
      %v1892 = vadd.f32 %v1716, %v1854
      %v1893 = vadd.f32 %v1717, %v1857
      %v1894 = vadd.f32 %v1718, %v1862
      %v1895 = vadd.f32 %v1719, %v1865
      %v1896 = vadd.f32 %v1720, %v1870
      %v1897 = vadd.f32 %v1721, %v1873
      %v1898 = vadd.f32 %v1722, %v1878
      %v1899 = vadd.f32 %v1723, %v1881
      %v1901 = vrot.slane %v249, 5
      %v1902 = vrot.slane %v1901, 4
      %v1903 = vrot.slane %v250, 5
      %v1904 = vsel %vm829, %v1902, %v1903
      %v1905 = vrot.slane %v1903, 4
      %v1906 = vrot.slane %v251, 5
      %v1907 = vsel %vm829, %v1905, %v1906
      %s1908 = scalar_lea.vmem %s1, 256
      %v1909 = vld [vmem:[%s1908] sm:$0xf]
      %v1910 = vld [vmem:[%s1908 + $0x4] sm:$0xf]
      %v1911 = vld [vmem:[%s1908 + $0x8] sm:$0xf]
      %v1912 = vld [vmem:[%s1908 + $0xc] sm:$0xf]
      %v1913 = vld [vmem:[%s1908 + $0x10] sm:$0xf]
      %v1914 = vld [vmem:[%s1908 + $0x14] sm:$0xf]
      %v1915 = vld [vmem:[%s1908 + $0x18] sm:$0xf]
      %v1916 = vld [vmem:[%s1908 + $0x1c] sm:$0xf]
      %v1917 = vunpack.c.l.b16 %v1904
      %v1918 = vunpack.c.l.b16 %v1907
      %v1919 = vpack.c.b16 %v1918, %v1917
      %v1928 = vunpack.c.l.b16 %v1909
      %v1929 = vunpack.c.l.b16 %v1910
      %v1930 = vunpack.c.l.b16 %v1911
      %v1931 = vunpack.c.l.b16 %v1912
      %v1932 = vunpack.c.l.b16 %v1913
      %v1933 = vunpack.c.l.b16 %v1914
      %v1934 = vunpack.c.l.b16 %v1915
      %v1935 = vunpack.c.l.b16 %v1916
      %v1936 = vpack.c.b16 %v1929, %v1928
      %v1937 = vpack.c.b16 %v1931, %v1930
      %v1938 = vpack.c.b16 %v1933, %v1932
      %v1939 = vpack.c.b16 %v1935, %v1934
      %v1945 = vsel %vm512, %v1919, 0
      %1947 = vmatprep.subr.bf16.mxu0 0
      %1948 = vmatpush1.bf16.msra.mxu0 %v1936
      %1949 = vmatprep.subr.bf16.mxu0 0
      %1950 = vmatpush1.bf16.msra.mxu0 %v1937
      %1951 = vmatprep.subr.bf16.mxu0 0
      %1952 = vmatpush1.bf16.msra.mxu0 %v1938
      %1953 = vmatprep.subr.bf16.mxu0 0
      %1954 = vmatpush1.bf16.msra.mxu0 %v1939
      %1955 = vmatprep.subr.bf16.mxu0 0
      %1956 = vmatpush1.bf16.msra.mxu0 0
      %1957 = vmatprep.subr.bf16.mxu0 0
      %1958 = vmatpush1.bf16.msra.mxu0 0
      %1959 = vmatprep.subr.bf16.mxu0 0
      %1960 = vmatpush1.bf16.msra.mxu0 0
      %1961 = vmatprep.subr.bf16.mxu0 0
      %1962 = vmatpush1.bf16.msra.mxu0 0
      %1963 = vmatprep.subr.bf16.mxu0 0
      %1964 = vmatpush1.bf16.msra.mxu0 0
      %1965 = vmatprep.subr.bf16.mxu0 0
      %1966 = vmatpush1.bf16.msra.mxu0 0
      %1967 = vmatprep.subr.bf16.mxu0 0
      %1968 = vmatpush1.bf16.msra.mxu0 0
      %1969 = vmatprep.subr.bf16.mxu0 0
      %1970 = vmatpush1.bf16.msra.mxu0 0
      %1971 = vmatprep.subr.bf16.mxu0 0
      %1972 = vmatpush1.bf16.msra.mxu0 0
      %1973 = vmatprep.subr.bf16.mxu0 0
      %1974 = vmatpush1.bf16.msra.mxu0 0
      %1975 = vmatprep.subr.bf16.mxu0 0
      %1976 = vmatpush1.bf16.msra.mxu0 0
      %1977 = vmatprep.subr.bf16.mxu0 0
      %1978 = vmatpush1.bf16.msra.mxu0 0
      %1979 = vmatprep.mubr.bf16.mxu0 0
      %1980 = vmatmul.mubr.bf16.gmra.mrb[0].mxu0 %v950
      %v1981 = vpop.f32.mrb[0].mxu0
      %v1982 = vadd.f32 0.0, %v1981
      %v1983 = vpop.f32.mrb[0].mxu0
      %v1984 = vpop.f32.mrb[0].mxu0
      %v1985 = vadd.f32 0.0, %v1984
      %v1986 = vpop.f32.mrb[0].mxu0
      %1987 = vmatprep.mubr.bf16.mxu0 0
      %1988 = vmatmul.mubr.bf16.gmra.mrb[0].mxu0 %v953
      %v1989 = vpop.f32.mrb[0].mxu0
      %v1990 = vadd.f32 0.0, %v1989
      %v1991 = vpop.f32.mrb[0].mxu0
      %v1992 = vpop.f32.mrb[0].mxu0
      %v1993 = vadd.f32 0.0, %v1992
      %v1994 = vpop.f32.mrb[0].mxu0
      %1995 = vmatprep.mubr.bf16.mxu0 0
      %1996 = vmatmul.mubr.bf16.gmra.mrb[0].mxu0 %v956
      %v1997 = vpop.f32.mrb[0].mxu0
      %v1998 = vadd.f32 0.0, %v1997
      %v1999 = vpop.f32.mrb[0].mxu0
      %v2000 = vpop.f32.mrb[0].mxu0
      %v2001 = vadd.f32 0.0, %v2000
      %v2002 = vpop.f32.mrb[0].mxu0
      %2003 = vmatprep.mubr.bf16.mxu0 0
      %2004 = vmatmul.mubr.bf16.gmra.mrb[0].mxu0 %v959
      %v2005 = vpop.f32.mrb[0].mxu0
      %v2006 = vadd.f32 0.0, %v2005
      %v2007 = vpop.f32.mrb[0].mxu0
      %v2008 = vpop.f32.mrb[0].mxu0
      %v2009 = vadd.f32 0.0, %v2008
      %v2010 = vpop.f32.mrb[0].mxu0
      %2011 = vmatprep.mubr.bf16.mxu0 0
      %2012 = vmatmul.mubr.bf16.gmra.mrb[0].mxu0 %v962
      %v2013 = vpop.f32.mrb[0].mxu0
      %v2014 = vadd.f32 0.0, %v2013
      %v2015 = vpop.f32.mrb[0].mxu0
      %v2016 = vpop.f32.mrb[0].mxu0
      %v2017 = vadd.f32 0.0, %v2016
      %v2018 = vpop.f32.mrb[0].mxu0
      %2019 = vmatprep.mubr.bf16.mxu0 0
      %2020 = vmatmul.mubr.bf16.gmra.mrb[0].mxu0 %v965
      %v2021 = vpop.f32.mrb[0].mxu0
      %v2022 = vadd.f32 0.0, %v2021
      %v2023 = vpop.f32.mrb[0].mxu0
      %v2024 = vpop.f32.mrb[0].mxu0
      %v2025 = vadd.f32 0.0, %v2024
      %v2026 = vpop.f32.mrb[0].mxu0
      %2027 = vmatprep.mubr.bf16.mxu0 0
      %2028 = vmatmul.mubr.bf16.gmra.mrb[0].mxu0 %v1455
      %v2029 = vpop.f32.mrb[0].mxu0
      %v2030 = vadd.f32 0.0, %v2029
      %v2031 = vpop.f32.mrb[0].mxu0
      %v2032 = vpop.f32.mrb[0].mxu0
      %v2033 = vadd.f32 0.0, %v2032
      %v2034 = vpop.f32.mrb[0].mxu0
      %2035 = vmatprep.mubr.bf16.mxu0 0
      %2036 = vmatmul.mubr.bf16.gmra.mrb[0].mxu0 %v1945
      %v2037 = vpop.f32.mrb[0].mxu0
      %v2038 = vadd.f32 0.0, %v2037
      %v2039 = vpop.f32.mrb[0].mxu0
      %v2040 = vpop.f32.mrb[0].mxu0
      %v2041 = vadd.f32 0.0, %v2040
      %v2042 = vpop.f32.mrb[0].mxu0
      %2043 = vdwg.mxu0
      %v2044 = vadd.f32 %v1884, %v1982
      %v2045 = vadd.f32 %v1885, %v1985
      %v2046 = vadd.f32 %v1886, %v1990
      %v2047 = vadd.f32 %v1887, %v1993
      %v2048 = vadd.f32 %v1888, %v1998
      %v2049 = vadd.f32 %v1889, %v2001
      %v2050 = vadd.f32 %v1890, %v2006
      %v2051 = vadd.f32 %v1891, %v2009
      %v2052 = vadd.f32 %v1892, %v2014
      %v2053 = vadd.f32 %v1893, %v2017
      %v2054 = vadd.f32 %v1894, %v2022
      %v2055 = vadd.f32 %v1895, %v2025
      %v2056 = vadd.f32 %v1896, %v2030
      %v2057 = vadd.f32 %v1897, %v2033
      %v2058 = vadd.f32 %v1898, %v2038
      %v2059 = vadd.f32 %v1899, %v2041
      %p2060 = scmp.eq.s32.totalorder %s20, 0
      // Predicated region
      $region29: #{local_pathway_forward.22} parent=27 // pred_check
        %p2061 = pneg %p2060
      $region30: #{local_pathway_forward.22} parent=27 // pred_check_branch
        %2063 = sbr.rel (%p2061) target = $region32
      $region31: #{local_pathway_forward.22} parent=27 // pred_region
        %vm2064 = vcmask 517120
        %2065 = vst.msk [vmem:[%s220] sm:$0x3] %vm2064, 0.0
      $region32: #{local_pathway_forward.22} parent=27 // pred_fallthru
        _
      %v2066 = vsel %vm512, %v2044, 0.0
      %v2067 = vsel %vm512, %v2045, 0.0
      %v2068 = vadd.f32 %v2066, %v2067
      %v2069 = vsel %vm512, %v2046, 0.0
      %v2070 = vadd.f32 %v2068, %v2069
      %v2071 = vsel %vm512, %v2047, 0.0
      %v2072 = vadd.f32 %v2070, %v2071
      %v2073 = vsel %vm512, %v2048, 0.0
      %v2074 = vadd.f32 %v2072, %v2073
      %v2075 = vsel %vm512, %v2049, 0.0
      %v2076 = vadd.f32 %v2074, %v2075
      %v2077 = vsel %vm512, %v2050, 0.0
      %v2078 = vadd.f32 %v2076, %v2077
      %v2079 = vsel %vm512, %v2051, 0.0
      %v2080 = vadd.f32 %v2078, %v2079
      %v2081 = vsel %vm512, %v2052, 0.0
      %v2082 = vadd.f32 %v2080, %v2081
      %v2083 = vsel %vm512, %v2053, 0.0
      %v2084 = vadd.f32 %v2082, %v2083
      %v2085 = vsel %vm512, %v2054, 0.0
      %v2086 = vadd.f32 %v2084, %v2085
      %v2087 = vsel %vm512, %v2055, 0.0
      %v2088 = vadd.f32 %v2086, %v2087
      %v2089 = vsel %vm512, %v2056, 0.0
      %v2090 = vadd.f32 %v2088, %v2089
      %v2091 = vsel %vm512, %v2057, 0.0
      %v2092 = vadd.f32 %v2090, %v2091
      %v2093 = vsel %vm512, %v2058, 0.0
      %v2094 = vadd.f32 %v2092, %v2093
      %v2095 = vsel %vm512, %v2059, 0.0
      %v2096 = vadd.f32 %v2094, %v2095
      %v2097 = vrot.slane %v2096, 4
      %v2098 = vadd.f32 %v2096, %v2097
      %v2099 = vrot.slane %v2098, 2
      %v2100 = vadd.f32 %v2098, %v2099
      %v2101 = vrot.slane %v2100, 1
      %v2102 = vadd.f32 %v2100, %v2101
      %v2103 = vmul.f32 %v2044, %v2044
      %v2104 = vmul.f32 %v2045, %v2045
      %v2105 = vmul.f32 %v2046, %v2046
      %v2106 = vmul.f32 %v2047, %v2047
      %v2107 = vmul.f32 %v2048, %v2048
      %v2108 = vmul.f32 %v2049, %v2049
      %v2109 = vmul.f32 %v2050, %v2050
      %v2110 = vmul.f32 %v2051, %v2051
      %v2111 = vmul.f32 %v2052, %v2052
      %v2112 = vmul.f32 %v2053, %v2053
      %v2113 = vmul.f32 %v2054, %v2054
      %v2114 = vmul.f32 %v2055, %v2055
      %v2115 = vmul.f32 %v2056, %v2056
      %v2116 = vmul.f32 %v2057, %v2057
      %v2117 = vmul.f32 %v2058, %v2058
      %v2118 = vmul.f32 %v2059, %v2059
      %v2119 = vsel %vm512, %v2103, 0.0
      %v2120 = vsel %vm512, %v2104, 0.0
      %v2121 = vadd.f32 %v2119, %v2120
      %v2122 = vsel %vm512, %v2105, 0.0
      %v2123 = vadd.f32 %v2121, %v2122
      %v2124 = vsel %vm512, %v2106, 0.0
      %v2125 = vadd.f32 %v2123, %v2124
      %v2126 = vsel %vm512, %v2107, 0.0
      %v2127 = vadd.f32 %v2125, %v2126
      %v2128 = vsel %vm512, %v2108, 0.0
      %v2129 = vadd.f32 %v2127, %v2128
      %v2130 = vsel %vm512, %v2109, 0.0
      %v2131 = vadd.f32 %v2129, %v2130
      %v2132 = vsel %vm512, %v2110, 0.0
      %v2133 = vadd.f32 %v2131, %v2132
      %v2134 = vsel %vm512, %v2111, 0.0
      %v2135 = vadd.f32 %v2133, %v2134
      %v2136 = vsel %vm512, %v2112, 0.0
      %v2137 = vadd.f32 %v2135, %v2136
      %v2138 = vsel %vm512, %v2113, 0.0
      %v2139 = vadd.f32 %v2137, %v2138
      %v2140 = vsel %vm512, %v2114, 0.0
      %v2141 = vadd.f32 %v2139, %v2140
      %v2142 = vsel %vm512, %v2115, 0.0
      %v2143 = vadd.f32 %v2141, %v2142
      %v2144 = vsel %vm512, %v2116, 0.0
      %v2145 = vadd.f32 %v2143, %v2144
      %v2146 = vsel %vm512, %v2117, 0.0
      %v2147 = vadd.f32 %v2145, %v2146
      %v2148 = vsel %vm512, %v2118, 0.0
      %v2149 = vadd.f32 %v2147, %v2148
      %v2150 = vrot.slane %v2149, 4
      %v2151 = vadd.f32 %v2149, %v2150
      %v2152 = vrot.slane %v2151, 2
      %v2153 = vadd.f32 %v2151, %v2152
      %v2154 = vrot.slane %v2153, 1
      %v2155 = vadd.f32 %v2153, %v2154
      %v2156 = vld [vmem:[%s220] sm:$0x3]
      %vm2157 = vcmask 1040384
      %v2158 = vsel %vm2157, %v2102, %v2155
      %v2159 = vadd.f32 %v2156, %v2158
      %vm2160 = vcmask 517120
      %2161 = vst.msk [vmem:[%s220] sm:$0x3] %vm2160, %v2159
      %v2162 = vpack.c.bf16 %v2045, %v2044
      %v2163 = vpack.c.bf16 %v2047, %v2046
      %v2164 = vpack.c.bf16 %v2049, %v2048
      %v2165 = vpack.c.bf16 %v2051, %v2050
      %v2166 = vpack.c.bf16 %v2053, %v2052
      %v2167 = vpack.c.bf16 %v2055, %v2054
      %v2168 = vpack.c.bf16 %v2057, %v2056
      %v2169 = vpack.c.bf16 %v2059, %v2058
      %v2178 = vunpack.c.l.b16 %v2162
      %v2179 = vunpack.c.h.b16 %v2162
      %v2180 = vunpack.c.l.b16 %v2163
      %v2181 = vunpack.c.h.b16 %v2163
      %v2182 = vunpack.c.l.b16 %v2164
      %v2183 = vunpack.c.h.b16 %v2164
      %v2184 = vunpack.c.l.b16 %v2165
      %v2185 = vunpack.c.h.b16 %v2165
      %v2186 = vunpack.c.l.b16 %v2166
      %v2187 = vunpack.c.h.b16 %v2166
      %v2188 = vunpack.c.l.b16 %v2167
      %v2189 = vunpack.c.h.b16 %v2167
      %v2190 = vunpack.c.l.b16 %v2168
      %v2191 = vunpack.c.h.b16 %v2168
      %v2192 = vunpack.c.l.b16 %v2169
      %v2193 = vunpack.c.h.b16 %v2169
      %v2194 = vpack.c.b16 %v2178, %v2178
      %v2195 = vpack.c.b16 %v2179, %v2179
      %v2196 = vpack.c.b16 %v2180, %v2180
      %v2197 = vpack.c.b16 %v2181, %v2181
      %v2198 = vpack.c.b16 %v2182, %v2182
      %v2199 = vpack.c.b16 %v2183, %v2183
      %v2200 = vpack.c.b16 %v2184, %v2184
      %v2201 = vpack.c.b16 %v2185, %v2185
      %v2202 = vpack.c.b16 %v2186, %v2186
      %v2203 = vpack.c.b16 %v2187, %v2187
      %v2204 = vpack.c.b16 %v2188, %v2188
      %v2205 = vpack.c.b16 %v2189, %v2189
      %v2206 = vpack.c.b16 %v2190, %v2190
      %v2207 = vpack.c.b16 %v2191, %v2191
      %v2208 = vpack.c.b16 %v2192, %v2192
      %v2209 = vpack.c.b16 %v2193, %v2193
      %vm2226 = vcmask 519168
      %2227 = vst.msk [vmem:[%s215] sm:$0xf] %vm2226, %v2194
      %2228 = vst.msk [vmem:[%s215 + $0x4] sm:$0xf] %vm2226, %v2195
      %2229 = vst.msk [vmem:[%s215 + $0x8] sm:$0xf] %vm2226, %v2196
      %2230 = vst.msk [vmem:[%s215 + $0xc] sm:$0xf] %vm2226, %v2197
      %2231 = vst.msk [vmem:[%s215 + $0x10] sm:$0xf] %vm2226, %v2198
      %2232 = vst.msk [vmem:[%s215 + $0x14] sm:$0xf] %vm2226, %v2199
      %2233 = vst.msk [vmem:[%s215 + $0x18] sm:$0xf] %vm2226, %v2200
      %2234 = vst.msk [vmem:[%s215 + $0x1c] sm:$0xf] %vm2226, %v2201
      %2235 = vst.msk [vmem:[%s215 + $0x20] sm:$0xf] %vm2226, %v2202
      %2236 = vst.msk [vmem:[%s215 + $0x24] sm:$0xf] %vm2226, %v2203
      %2237 = vst.msk [vmem:[%s215 + $0x28] sm:$0xf] %vm2226, %v2204
      %2238 = vst.msk [vmem:[%s215 + $0x2c] sm:$0xf] %vm2226, %v2205
      %2239 = vst.msk [vmem:[%s215 + $0x30] sm:$0xf] %vm2226, %v2206
      %2240 = vst.msk [vmem:[%s215 + $0x34] sm:$0xf] %vm2226, %v2207
      %2241 = vst.msk [vmem:[%s215 + $0x38] sm:$0xf] %vm2226, %v2208
      %2242 = vst.msk [vmem:[%s215 + $0x3c] sm:$0xf] %vm2226, %v2209
      %s2243 = smul.u32 8, %s20
      %p2244 = scmp.lt.s32.totalorder %s19, 1
      %s2245 = scalar_select %p2244, %s19, 1
      %p2246 = scmp.lt.s32.totalorder %s2243, 15
      %s2247 = scalar_select %p2246, %s2243, 15
      %s2248 = smul.addr %s2247, 2
      %s2249 = smul.addr %s2245, 32
      %s2250 = sadd.s32 %s2248, %s2249
      %s2251 = smul.addr %s2250, 4
      %s2252 = scalar_lea.vmem %s2, %s2251
      %p2253 = scmp.lt.s32.totalorder %s19, 1
      %s2254 = scalar_select %p2253, %s19, 1
      %s2255 = smul.addr %s2254, 2
      %s2256 = scalar_lea.vmem %s3, %s2255
      // Predicated region
      $region33: #{local_pathway_forward.22} parent=27 // pred_check
        %p2257 = pneg %p96
      $region34: #{local_pathway_forward.22} parent=27 // pred_check_branch
        %2259 = sbr.rel (%p2257) target = $region36
      $region35: #{local_pathway_forward.22} parent=27 // pred_region
        %s2260 = smul.u32 8, %s20
      $region36: #{local_pathway_forward.22} parent=27 // pred_fallthru
        _
      // Predicated region
      $region37: #{local_pathway_forward.22} parent=27 // pred_check
        %p2261 = pneg %p122
      $region38: #{local_pathway_forward.22} parent=27 // pred_check_branch
        %2263 = sbr.rel (%p2261) target = $region40
      $region39: #{local_pathway_forward.22} parent=27 // pred_region
        _
      $region40: #{local_pathway_forward.22} parent=27 // pred_fallthru
        _
    $region28: #{local_pathway_forward.22} parent=5 // pred_fallthru
      _
    %p2264 = scmp.le.s32.totalorder 2, %s10
    // Predicated region
    $region41: #{local_pathway_forward.22} parent=5 // pred_check
      %p2265 = pneg %p2264
    $region42: #{local_pathway_forward.22} parent=5 // pred_check_branch
      %2267 = sbr.rel (%p2265) target = $region44
    $region43: #{local_pathway_forward.22} parent=5 // pred_region
      %s2268 = ssub.s32 %s10, 2
      // Predicated region
      $region45: #{local_pathway_forward.22} parent=43 // pred_check
        %p2269 = pneg %p102
      $region46: #{local_pathway_forward.22} parent=43 // pred_check_branch
        %2271 = sbr.rel (%p2269) target = $region48
      $region47: #{local_pathway_forward.22} parent=43 // pred_region
        %s2272 = smul.u32 8, %s22
        %p2273 = scmp.lt.s32.totalorder %s21, 1
        %s2274 = scalar_select %p2273, %s21, 1
        %p2275 = scmp.lt.s32.totalorder %s2272, 15
        %s2276 = scalar_select %p2275, %s2272, 15
        %s2277 = smul.addr %s2276, 2
        %s2278 = smul.addr %s2274, 32
        %s2279 = sadd.s32 %s2277, %s2278
        %s2280 = smul.addr %s2279, 4
        %s2281 = scalar_lea.vmem %s2, %s2280
      $region48: #{local_pathway_forward.22} parent=43 // pred_fallthru
        _
      // Predicated region
      $region49: #{local_pathway_forward.22} parent=43 // pred_check
        %p2282 = pneg %p128
      $region50: #{local_pathway_forward.22} parent=43 // pred_check_branch
        %2284 = sbr.rel (%p2282) target = $region52
      $region51: #{local_pathway_forward.22} parent=43 // pred_region
        %p2285 = scmp.lt.s32.totalorder %s21, 1
        %s2286 = scalar_select %p2285, %s21, 1
        %s2287 = smul.addr %s2286, 2
        %s2288 = scalar_lea.vmem %s3, %s2287
      $region52: #{local_pathway_forward.22} parent=43 // pred_fallthru
        _
    $region44: #{local_pathway_forward.22} parent=5 // pred_fallthru
      _
  $region6: #{local_pathway_forward.22} parent=0 // loop_footer
    %s14 = sadd.s32 1, %s10
  $region7: #{local_pathway_forward.22} parent=0 // loop_footer_branch
    %9 = sbr.rel target = $region3
  $region8: #{local_pathway_forward.22} parent=0 // loop_exit
    _

// kernel: local_pathway_forward.40
$region0: #{local_pathway_forward.40}
  #allocation0 [shape = 'u32[]', space=smem, size = 0x4, offset = 0x4, fixed_abs, tag = 'smem constant byte address 0x4 - core index']
  #allocation1 [shape = 'u32[144,128]{1,0:T(1,128)}', space=vmem, size = 0x12000, scoped, tag = 'internal scratch']
  %s0 = inlined_call_operand.vmem [shape: bf16[2,16,16,64], index: 0, kind: input, shape index: {}]
  %s1 = inlined_call_operand.vmem [shape: f32[2,2,64], index: 1, kind: input, shape index: {}]
  %s2 = inlined_call_operand.vmem [shape: f32[2,64], index: 2, kind: input, shape index: {}]
  %s3 = inlined_call_operand.vmem [shape: f32[2,16,16,64], index: 3, kind: output, shape index: {}]
  %s4 = sld [smem:[#allocation0]]
  $region45: #{local_pathway_forward.40} parent=0
    _
  %s6 = ssub.s32 1, %s4
  %s7 = scalar_select 0, %s6, %s4
  loop: start=0, step=1, limit=6
  $region2: #{local_pathway_forward.40} parent=0 // loop_pre_header
    _
  $region3: #{local_pathway_forward.40} parent=0 // loop_header
    %s9 = sphi 0, %s13
    %p10 = scmp.ge.s32.totalorder %s9, 6
    %s16 = sphi 0, %s28
    %s17 = sphi 0, %s24
    %s18 = sphi 0, %s16
    %s19 = sphi 0, %s17
    %s20 = sphi 0, %s18
    %s21 = sphi 0, %s19
    %s33 = sphi 0, %s35
    %s36 = sphi 0, %s33
    %s37 = sphi 0, %s36
    %s53 = sphi 0, %s37
    %s59 = sphi 0, %s61
    %s62 = sphi 0, %s59
    %s63 = sphi 0, %s62
    %s79 = sphi 0, %s63
    %s83 = sphi 0, %s83
    %s85 = sphi 0, %s83
    %s86 = sphi 0, %s85
    %s100 = sphi 0, %s86
    %s108 = sphi 0, %s110
    %s111 = sphi 0, %s108
    %s112 = sphi 0, %s111
    %s128 = sphi 0, %s112
  $region4: #{local_pathway_forward.40} parent=0 // loop_header_branch
    %12 = sbr.rel (%p10) target = $region8
  $region5: #{local_pathway_forward.40} parent=0 // loop_body
    %s14 = ssub.s32 %s9, 1
    %s15 = ssub.s32 %s9, 2
    %s22 = sadd.s32 1, %s17
    %p23 = scmp.ge.s32.totalorder %s22, 2
    %s24 = scalar_select %p23, 0, %s22
    %s25 = sadd.s32 1, %s16
    %s26 = scalar_select %p23, %s25, %s16
    %p27 = scmp.ge.s32.totalorder %s26, 2
    %s28 = scalar_select %p27, 0, %s26
    %s29 = ssub.s32 %s16, %s28
    %s30 = ssub.s32 %s17, %s24
    %s31 = sor.u32 %s29, %s30
    %p32 = scmp.eq.s32.totalorder %s31, 0
    %s34 = sadd.s32 %s33, 1
    %s35 = scalar_select %p32, %s33, %s34
    %p38 = pneg %p32
    %p39 = scmp.eq.s32.totalorder %s9, 3
    %p40 = por %p38, %p39
    %p41 = scmp.ne.s32.totalorder %s33, %s36
    %p42 = scmp.eq.s32.totalorder %s9, 0
    %p43 = por %p41, %p42
    %p44 = scmp.ne.s32.totalorder %s33, %s36
    %p45 = scmp.eq.s32.totalorder %s14, 3
    %p46 = por %p44, %p45
    %p47 = scmp.ne.s32.totalorder %s36, %s37
    %p48 = scmp.eq.s32.totalorder %s14, 0
    %p49 = por %p47, %p48
    %p50 = scmp.ne.s32.totalorder %s36, %s37
    %p51 = scmp.eq.s32.totalorder %s15, 3
    %p52 = por %p50, %p51
    %p54 = scmp.ne.s32.totalorder %s37, %s53
    %p55 = scmp.eq.s32.totalorder %s15, 0
    %p56 = por %p54, %p55
    %s57 = ssub.s32 %s16, %s28
    %p58 = scmp.eq.s32.totalorder %s57, 0
    %s60 = sadd.s32 %s59, 1
    %s61 = scalar_select %p58, %s59, %s60
    %p64 = pneg %p58
    %p65 = scmp.eq.s32.totalorder %s9, 3
    %p66 = por %p64, %p65
    %p67 = scmp.ne.s32.totalorder %s59, %s62
    %p68 = scmp.eq.s32.totalorder %s9, 0
    %p69 = por %p67, %p68
    %p70 = scmp.ne.s32.totalorder %s59, %s62
    %p71 = scmp.eq.s32.totalorder %s14, 3
    %p72 = por %p70, %p71
    %p73 = scmp.ne.s32.totalorder %s62, %s63
    %p74 = scmp.eq.s32.totalorder %s14, 0
    %p75 = por %p73, %p74
    %p76 = scmp.ne.s32.totalorder %s62, %s63
    %p77 = scmp.eq.s32.totalorder %s15, 3
    %p78 = por %p76, %p77
    %p80 = scmp.ne.s32.totalorder %s63, %s79
    %p81 = scmp.eq.s32.totalorder %s15, 0
    %p82 = por %p80, %p81
    %s84 = sadd.s32 %s83, 1
    %p87 = scmp.eq.s32.totalorder %s9, 3
    %p88 = scmp.ne.s32.totalorder %s83, %s85
    %p89 = scmp.eq.s32.totalorder %s9, 0
    %p90 = por %p88, %p89
    %p91 = scmp.ne.s32.totalorder %s83, %s85
    %p92 = scmp.eq.s32.totalorder %s14, 3
    %p93 = por %p91, %p92
    %p94 = scmp.ne.s32.totalorder %s85, %s86
    %p95 = scmp.eq.s32.totalorder %s14, 0
    %p96 = por %p94, %p95
    %p97 = scmp.ne.s32.totalorder %s85, %s86
    %p98 = scmp.eq.s32.totalorder %s15, 3
    %p99 = por %p97, %p98
    %p101 = scmp.ne.s32.totalorder %s86, %s100
    %p102 = scmp.eq.s32.totalorder %s15, 0
    %p103 = por %p101, %p102
    %s104 = ssub.s32 %s16, %s28
    %s105 = ssub.s32 %s17, %s24
    %s106 = sor.u32 %s104, %s105
    %p107 = scmp.eq.s32.totalorder %s106, 0
    %s109 = sadd.s32 %s108, 1
    %s110 = scalar_select %p107, %s108, %s109
    %p113 = pneg %p107
    %p114 = scmp.eq.s32.totalorder %s9, 3
    %p115 = por %p113, %p114
    %p116 = scmp.ne.s32.totalorder %s108, %s111
    %p117 = scmp.eq.s32.totalorder %s9, 0
    %p118 = por %p116, %p117
    %p119 = scmp.ne.s32.totalorder %s108, %s111
    %p120 = scmp.eq.s32.totalorder %s14, 3
    %p121 = por %p119, %p120
    %p122 = scmp.ne.s32.totalorder %s111, %s112
    %p123 = scmp.eq.s32.totalorder %s14, 0
    %p124 = por %p122, %p123
    %p125 = scmp.ne.s32.totalorder %s111, %s112
    %p126 = scmp.eq.s32.totalorder %s15, 3
    %p127 = por %p125, %p126
    %p129 = scmp.ne.s32.totalorder %s112, %s128
    %p130 = scmp.eq.s32.totalorder %s15, 0
    %p131 = por %p129, %p130
    %p132 = scmp.le.s32.totalorder 1, %s9
    %p133 = scmp.lt.s32.totalorder %s9, 5
    %p134 = pnand %p132, %p133
    %p135 = pneg %p134
    // Predicated region
    $region9: #{local_pathway_forward.40} parent=5 // pred_check
      _
    $region10: #{local_pathway_forward.40} parent=5 // pred_check_branch
      %137 = sbr.rel (%p134) target = $region12
    $region11: #{local_pathway_forward.40} parent=5 // pred_region
      %s138 = ssub.s32 %s9, 1
      // Predicated region
      $region13: #{local_pathway_forward.40} parent=11 // pred_check
        %p139 = pneg %p96
      $region14: #{local_pathway_forward.40} parent=11 // pred_check_branch
        %141 = sbr.rel (%p139) target = $region16
      $region15: #{local_pathway_forward.40} parent=11 // pred_region
        _
      $region16: #{local_pathway_forward.40} parent=11 // pred_fallthru
        _
    $region12: #{local_pathway_forward.40} parent=5 // pred_fallthru
      _
    %p142 = scmp.lt.s32.totalorder %s9, 4
    // Predicated region
    $region17: #{local_pathway_forward.40} parent=5 // pred_check
      %p143 = pneg %p142
    $region18: #{local_pathway_forward.40} parent=5 // pred_check_branch
      %145 = sbr.rel (%p143) target = $region20
    $region19: #{local_pathway_forward.40} parent=5 // pred_region
      // Predicated region
      $region21: #{local_pathway_forward.40} parent=19 // pred_check
        %p146 = pneg %p43
      $region22: #{local_pathway_forward.40} parent=19 // pred_check_branch
        %148 = sbr.rel (%p146) target = $region24
      $region23: #{local_pathway_forward.40} parent=19 // pred_region
        %s149 = smul.u32 8, %s17
        %p150 = scmp.lt.s32.totalorder %s16, 1
        %s151 = scalar_select %p150, %s16, 1
        %p152 = scmp.lt.s32.totalorder %s149, 15
        %s153 = scalar_select %p152, %s149, 15
        %s154 = smul.addr %s153, 2
        %s155 = smul.addr %s151, 32
        %s156 = sadd.s32 %s154, %s155
        %s157 = smul.addr %s156, 4
        %s158 = scalar_lea.vmem %s0, %s157
        %s159 = smul.u32 8, %s17
      $region24: #{local_pathway_forward.40} parent=19 // pred_fallthru
        _
      // Predicated region
      $region25: #{local_pathway_forward.40} parent=19 // pred_check
        %p160 = pneg %p69
      $region26: #{local_pathway_forward.40} parent=19 // pred_check_branch
        %162 = sbr.rel (%p160) target = $region28
      $region27: #{local_pathway_forward.40} parent=19 // pred_region
        %p163 = scmp.lt.s32.totalorder %s16, 1
        %s164 = scalar_select %p163, %s16, 1
        %s165 = smul.addr %s164, 2
        %s166 = scalar_lea.vmem %s1, %s165
      $region28: #{local_pathway_forward.40} parent=19 // pred_fallthru
        _
    $region20: #{local_pathway_forward.40} parent=5 // pred_fallthru
      _
    %p167 = scmp.le.s32.totalorder 1, %s9
    %p168 = scmp.lt.s32.totalorder %s9, 5
    %p169 = pnand %p167, %p168
    %p170 = pneg %p169
    // Predicated region
    $region29: #{local_pathway_forward.40} parent=5 // pred_check
      _
    $region30: #{local_pathway_forward.40} parent=5 // pred_check_branch
      %172 = sbr.rel (%p169) target = $region32
    $region31: #{local_pathway_forward.40} parent=5 // pred_region
      %s173 = ssub.s32 %s9, 1
      %s174 = smul.u32 8, %s19
      %p175 = scmp.lt.s32.totalorder %s18, 1
      %s176 = scalar_select %p175, %s18, 1
      %p177 = scmp.lt.s32.totalorder %s174, 15
      %s178 = scalar_select %p177, %s174, 15
      %s179 = smul.addr %s178, 2
      %s180 = smul.addr %s176, 32
      %s181 = sadd.s32 %s179, %s180
      %s182 = smul.addr %s181, 4
      %s183 = scalar_lea.vmem %s0, %s182
      %p184 = pneg %p49
      %p185 = pneg %p46
      %p186 = scmp.lt.s32.totalorder %s18, 1
      %s187 = scalar_select %p186, %s18, 1
      %s188 = smul.addr %s187, 2
      %s189 = scalar_lea.vmem %s1, %s188
      %p190 = pneg %p75
      %p191 = pneg %p72
      %p192 = pneg %p96
      %p193 = pneg %p93
      %p194 = pneg %p124
      %p195 = pneg %p121
      %s196 = smul.u32 8, %s19
      %p197 = scmp.lt.s32.totalorder %s18, 1
      %s198 = scalar_select %p197, %s18, 1
      %p199 = scmp.lt.s32.totalorder %s196, 15
      %s200 = scalar_select %p199, %s196, 15
      %s201 = smul.addr %s200, 2
      %s202 = smul.addr %s198, 32
      %s203 = sadd.s32 %s201, %s202
      %s204 = smul.addr %s203, 8
      %s205 = scalar_lea.vmem %s3, %s204
      %s206 = smul.u32 8, %s19
      %p207 = scmp.lt.s32.totalorder %s18, 1
      %s208 = scalar_select %p207, %s18, 1
      %p209 = scmp.lt.s32.totalorder %s206, 15
      %s210 = scalar_select %p209, %s206, 15
      %s211 = smul.addr %s210, 2
      %s212 = smul.addr %s208, 32
      %s213 = sadd.s32 %s211, %s212
      %s214 = smul.addr %s213, 4
      %s215 = scalar_lea.vmem %s0, %s214
      %s216 = smul.u32 8, %s19
      %p217 = scmp.lt.s32.totalorder %s18, 1
      %s218 = scalar_select %p217, %s18, 1
      %s219 = smul.addr %s218, 2
      %s220 = scalar_lea.vmem %s1, %s219
      %s221 = smul.u32 8, %s19
      %p222 = scmp.lt.s32.totalorder %s18, 1
      %s223 = scalar_select %p222, %s18, 1
      %p224 = scmp.lt.s32.totalorder %s221, 15
      %s225 = scalar_select %p224, %s221, 15
      %s226 = smul.addr %s225, 2
      %s227 = smul.addr %s223, 32
      %s228 = sadd.s32 %s226, %s227
      %s229 = smul.addr %s228, 8
      %s230 = scalar_lea.vmem %s3, %s229
      %s231 = smul.u32 8, %s19
      %v232 = vld [vmem:[%s220] sm:$0x3]
      %v233 = vmul.f32 %v232, 0.00390625
      %v234 = vmul.f32 %v233, %v233
      %v236 = vrot.slane %v234, 7
      %v238 = vsub.f32 %v233, %v236
      %v239 = vadd.f32 %v238, 1e-05
      %v240 = vrsqrt.pop %v239
      %v241 = vld [vmem:[%s215] sm:$0xf]
      %v242 = vld [vmem:[%s215 + $0x4] sm:$0xf]
      %v243 = vld [vmem:[%s215 + $0x8] sm:$0xf]
      %v244 = vld [vmem:[%s215 + $0xc] sm:$0xf]
      %v245 = vld [vmem:[%s215 + $0x10] sm:$0xf]
      %v246 = vld [vmem:[%s215 + $0x14] sm:$0xf]
      %v247 = vld [vmem:[%s215 + $0x18] sm:$0xf]
      %v248 = vld [vmem:[%s215 + $0x1c] sm:$0xf]
      %v249 = vld [vmem:[%s215 + $0x20] sm:$0xf]
      %v250 = vld [vmem:[%s215 + $0x24] sm:$0xf]
      %v251 = vld [vmem:[%s215 + $0x28] sm:$0xf]
      %v252 = vld [vmem:[%s215 + $0x2c] sm:$0xf]
      %v253 = vld [vmem:[%s215 + $0x30] sm:$0xf]
      %v254 = vld [vmem:[%s215 + $0x34] sm:$0xf]
      %v255 = vld [vmem:[%s215 + $0x38] sm:$0xf]
      %v256 = vld [vmem:[%s215 + $0x3c] sm:$0xf]
      %v257 = vunpack.c.l.bf16 %v241
      %v258 = vunpack.c.l.bf16 %v242
      %v259 = vunpack.c.l.bf16 %v243
      %v260 = vunpack.c.l.bf16 %v244
      %v261 = vunpack.c.l.bf16 %v245
      %v262 = vunpack.c.l.bf16 %v246
      %v263 = vunpack.c.l.bf16 %v247
      %v264 = vunpack.c.l.bf16 %v248
      %v265 = vunpack.c.l.bf16 %v249
      %v266 = vunpack.c.l.bf16 %v250
      %v267 = vunpack.c.l.bf16 %v251
      %v268 = vunpack.c.l.bf16 %v252
      %v269 = vunpack.c.l.bf16 %v253
      %v270 = vunpack.c.l.bf16 %v254
      %v271 = vunpack.c.l.bf16 %v255
      %v272 = vunpack.c.l.bf16 %v256
      %v273 = vlaneseq
      %v274 = vshrl.u32 %v273, 7
      %v275 = vsub.s32 0, %v274
      %v276 = vrot.slane %v233, %v275
      %v277 = vsub.f32 %v257, %v276
      %v278 = vsub.f32 %v258, %v276
      %v279 = vsub.f32 %v259, %v276
      %v280 = vsub.f32 %v260, %v276
      %v281 = vsub.f32 %v261, %v276
      %v282 = vsub.f32 %v262, %v276
      %v283 = vsub.f32 %v263, %v276
      %v284 = vsub.f32 %v264, %v276
      %v285 = vsub.f32 %v265, %v276
      %v286 = vsub.f32 %v266, %v276
      %v287 = vsub.f32 %v267, %v276
      %v288 = vsub.f32 %v268, %v276
      %v289 = vsub.f32 %v269, %v276
      %v290 = vsub.f32 %v270, %v276
      %v291 = vsub.f32 %v271, %v276
      %v292 = vsub.f32 %v272, %v276
      %v293 = vlaneseq
      %v294 = vshrl.u32 %v293, 7
      %v295 = vsub.s32 1, %v294
      %v296 = vrot.slane %v240, %v295
      %v297 = vmul.f32 %v277, %v296
      %v298 = vmul.f32 %v278, %v296
      %v299 = vmul.f32 %v279, %v296
      %v300 = vmul.f32 %v280, %v296
      %v301 = vmul.f32 %v281, %v296
      %v302 = vmul.f32 %v282, %v296
      %v303 = vmul.f32 %v283, %v296
      %v304 = vmul.f32 %v284, %v296
      %v305 = vmul.f32 %v285, %v296
      %v306 = vmul.f32 %v286, %v296
      %v307 = vmul.f32 %v287, %v296
      %v308 = vmul.f32 %v288, %v296
      %v309 = vmul.f32 %v289, %v296
      %v310 = vmul.f32 %v290, %v296
      %v311 = vmul.f32 %v291, %v296
      %v312 = vmul.f32 %v292, %v296
      %v313 = vld [vmem:[%s2] sm:$0x3]
      %v314 = vlaneseq
      %v315 = vshrl.u32 %v314, 7
      %v316 = vsub.s32 0, %v315
      %v317 = vrot.slane %v313, %v316
      %v318 = vmul.f32 %v297, %v317
      %v319 = vmul.f32 %v298, %v317
      %v320 = vmul.f32 %v299, %v317
      %v321 = vmul.f32 %v300, %v317
      %v322 = vmul.f32 %v301, %v317
      %v323 = vmul.f32 %v302, %v317
      %v324 = vmul.f32 %v303, %v317
      %v325 = vmul.f32 %v304, %v317
      %v326 = vmul.f32 %v305, %v317
      %v327 = vmul.f32 %v306, %v317
      %v328 = vmul.f32 %v307, %v317
      %v329 = vmul.f32 %v308, %v317
      %v330 = vmul.f32 %v309, %v317
      %v331 = vmul.f32 %v310, %v317
      %v332 = vmul.f32 %v311, %v317
      %v333 = vmul.f32 %v312, %v317
      %v334 = vlaneseq
      %v335 = vshrl.u32 %v334, 7
      %v336 = vsub.s32 1, %v335
      %v337 = vrot.slane %v313, %v336
      %v338 = vadd.f32 %v318, %v337
      %v339 = vadd.f32 %v319, %v337
      %v340 = vadd.f32 %v320, %v337
      %v341 = vadd.f32 %v321, %v337
      %v342 = vadd.f32 %v322, %v337
      %v343 = vadd.f32 %v323, %v337
      %v344 = vadd.f32 %v324, %v337
      %v345 = vadd.f32 %v325, %v337
      %v346 = vadd.f32 %v326, %v337
      %v347 = vadd.f32 %v327, %v337
      %v348 = vadd.f32 %v328, %v337
      %v349 = vadd.f32 %v329, %v337
      %v350 = vadd.f32 %v330, %v337
      %v351 = vadd.f32 %v331, %v337
      %v352 = vadd.f32 %v332, %v337
      %v353 = vadd.f32 %v333, %v337
      %vm354 = vcmask 523264
      %355 = vst.msk [vmem:[%s230] sm:$0xff] %vm354, %v338
      %356 = vst.msk [vmem:[%s230 + $0x8] sm:$0xff] %vm354, %v339
      %357 = vst.msk [vmem:[%s230 + $0x10] sm:$0xff] %vm354, %v340
      %358 = vst.msk [vmem:[%s230 + $0x18] sm:$0xff] %vm354, %v341
      %359 = vst.msk [vmem:[%s230 + $0x20] sm:$0xff] %vm354, %v342
      %360 = vst.msk [vmem:[%s230 + $0x28] sm:$0xff] %vm354, %v343
      %361 = vst.msk [vmem:[%s230 + $0x30] sm:$0xff] %vm354, %v344
      %362 = vst.msk [vmem:[%s230 + $0x38] sm:$0xff] %vm354, %v345
      %363 = vst.msk [vmem:[%s230 + $0x40] sm:$0xff] %vm354, %v346
      %364 = vst.msk [vmem:[%s230 + $0x48] sm:$0xff] %vm354, %v347
      %365 = vst.msk [vmem:[%s230 + $0x50] sm:$0xff] %vm354, %v348
      %366 = vst.msk [vmem:[%s230 + $0x58] sm:$0xff] %vm354, %v349
      %367 = vst.msk [vmem:[%s230 + $0x60] sm:$0xff] %vm354, %v350
      %368 = vst.msk [vmem:[%s230 + $0x68] sm:$0xff] %vm354, %v351
      %369 = vst.msk [vmem:[%s230 + $0x70] sm:$0xff] %vm354, %v352
      %370 = vst.msk [vmem:[%s230 + $0x78] sm:$0xff] %vm354, %v353
      %s371 = smul.u32 8, %s19
      %p372 = scmp.lt.s32.totalorder %s18, 1
      %s373 = scalar_select %p372, %s18, 1
      %p374 = scmp.lt.s32.totalorder %s371, 15
      %s375 = scalar_select %p374, %s371, 15
      %s376 = smul.addr %s375, 2
      %s377 = smul.addr %s373, 32
      %s378 = sadd.s32 %s376, %s377
      %s379 = smul.addr %s378, 8
      %s380 = scalar_lea.vmem %s3, %s379
      // Predicated region
      $region33: #{local_pathway_forward.40} parent=31 // pred_check
        %p381 = pneg %p121
      $region34: #{local_pathway_forward.40} parent=31 // pred_check_branch
        %383 = sbr.rel (%p381) target = $region36
      $region35: #{local_pathway_forward.40} parent=31 // pred_region
        %s384 = smul.u32 8, %s19
      $region36: #{local_pathway_forward.40} parent=31 // pred_fallthru
        _
    $region32: #{local_pathway_forward.40} parent=5 // pred_fallthru
      _
    %p385 = scmp.le.s32.totalorder 2, %s9
    // Predicated region
    $region37: #{local_pathway_forward.40} parent=5 // pred_check
      %p386 = pneg %p385
    $region38: #{local_pathway_forward.40} parent=5 // pred_check_branch
      %388 = sbr.rel (%p386) target = $region40
    $region39: #{local_pathway_forward.40} parent=5 // pred_region
      %s389 = ssub.s32 %s9, 2
      // Predicated region
      $region41: #{local_pathway_forward.40} parent=39 // pred_check
        %p390 = pneg %p127
      $region42: #{local_pathway_forward.40} parent=39 // pred_check_branch
        %392 = sbr.rel (%p390) target = $region44
      $region43: #{local_pathway_forward.40} parent=39 // pred_region
        %s393 = smul.u32 8, %s21
        %p394 = scmp.lt.s32.totalorder %s20, 1
        %s395 = scalar_select %p394, %s20, 1
        %p396 = scmp.lt.s32.totalorder %s393, 15
        %s397 = scalar_select %p396, %s393, 15
        %s398 = smul.addr %s397, 2
        %s399 = smul.addr %s395, 32
        %s400 = sadd.s32 %s398, %s399
        %s401 = smul.addr %s400, 8
        %s402 = scalar_lea.vmem %s3, %s401
      $region44: #{local_pathway_forward.40} parent=39 // pred_fallthru
        _
    $region40: #{local_pathway_forward.40} parent=5 // pred_fallthru
      _
  $region6: #{local_pathway_forward.40} parent=0 // loop_footer
    %s13 = sadd.s32 1, %s9
  $region7: #{local_pathway_forward.40} parent=0 // loop_footer_branch
    %8 = sbr.rel target = $region3
  $region8: #{local_pathway_forward.40} parent=0 // loop_exit
    _

// kernel: local_pathway_forward.39
$region0: #{local_pathway_forward.39}
  #allocation0 [shape = 'u32[]', space=smem, size = 0x4, offset = 0x4, fixed_abs, tag = 'smem constant byte address 0x4 - core index']
  #allocation1 [shape = 'u32[144,128]{1,0:T(1,128)}', space=vmem, size = 0x12000, scoped, tag = 'internal scratch']
  %s0 = inlined_call_operand.vmem [shape: bf16[2,16,16,64], index: 0, kind: input, shape index: {}]
  %s1 = inlined_call_operand.vmem [shape: f32[2,2,64], index: 1, kind: input, shape index: {}]
  %s2 = inlined_call_operand.vmem [shape: bf16[2,16,16,64], index: 2, kind: input, shape index: {}]
  %s3 = inlined_call_operand.vmem [shape: bf16[2,16,16,64], index: 3, kind: output, shape index: {0}]
  %s4 = inlined_call_operand.vmem [shape: f32[2,2,64], index: 4, kind: output, shape index: {1}]
  %5 = xla_tuple %s3, %s4
  %s6 = sld [smem:[#allocation0]]
  $region57: #{local_pathway_forward.39} parent=0
    _
  %s8 = ssub.s32 1, %s6
  %s9 = scalar_select 0, %s8, %s6
  loop: start=0, step=1, limit=6
  $region2: #{local_pathway_forward.39} parent=0 // loop_pre_header
    _
  $region3: #{local_pathway_forward.39} parent=0 // loop_header
    %s11 = sphi 0, %s15
    %p12 = scmp.ge.s32.totalorder %s11, 6
    %s18 = sphi 0, %s30
    %s19 = sphi 0, %s26
    %s20 = sphi 0, %s18
    %s21 = sphi 0, %s19
    %s22 = sphi 0, %s20
    %s23 = sphi 0, %s21
    %s35 = sphi 0, %s37
    %s38 = sphi 0, %s35
    %s39 = sphi 0, %s38
    %s55 = sphi 0, %s39
    %s61 = sphi 0, %s63
    %s64 = sphi 0, %s61
    %s65 = sphi 0, %s64
    %s81 = sphi 0, %s65
    %s89 = sphi 0, %s91
    %s92 = sphi 0, %s89
    %s93 = sphi 0, %s92
    %s109 = sphi 0, %s93
    %s117 = sphi 0, %s119
    %s120 = sphi 0, %s117
    %s121 = sphi 0, %s120
    %s137 = sphi 0, %s121
    %s143 = sphi 0, %s145
    %s146 = sphi 0, %s143
    %s147 = sphi 0, %s146
    %s163 = sphi 0, %s147
  $region4: #{local_pathway_forward.39} parent=0 // loop_header_branch
    %14 = sbr.rel (%p12) target = $region8
  $region5: #{local_pathway_forward.39} parent=0 // loop_body
    %s16 = ssub.s32 %s11, 1
    %s17 = ssub.s32 %s11, 2
    %s24 = sadd.s32 1, %s19
    %p25 = scmp.ge.s32.totalorder %s24, 2
    %s26 = scalar_select %p25, 0, %s24
    %s27 = sadd.s32 1, %s18
    %s28 = scalar_select %p25, %s27, %s18
    %p29 = scmp.ge.s32.totalorder %s28, 2
    %s30 = scalar_select %p29, 0, %s28
    %s31 = ssub.s32 %s18, %s30
    %s32 = ssub.s32 %s19, %s26
    %s33 = sor.u32 %s31, %s32
    %p34 = scmp.eq.s32.totalorder %s33, 0
    %s36 = sadd.s32 %s35, 1
    %s37 = scalar_select %p34, %s35, %s36
    %p40 = pneg %p34
    %p41 = scmp.eq.s32.totalorder %s11, 3
    %p42 = por %p40, %p41
    %p43 = scmp.ne.s32.totalorder %s35, %s38
    %p44 = scmp.eq.s32.totalorder %s11, 0
    %p45 = por %p43, %p44
    %p46 = scmp.ne.s32.totalorder %s35, %s38
    %p47 = scmp.eq.s32.totalorder %s16, 3
    %p48 = por %p46, %p47
    %p49 = scmp.ne.s32.totalorder %s38, %s39
    %p50 = scmp.eq.s32.totalorder %s16, 0
    %p51 = por %p49, %p50
    %p52 = scmp.ne.s32.totalorder %s38, %s39
    %p53 = scmp.eq.s32.totalorder %s17, 3
    %p54 = por %p52, %p53
    %p56 = scmp.ne.s32.totalorder %s39, %s55
    %p57 = scmp.eq.s32.totalorder %s17, 0
    %p58 = por %p56, %p57
    %s59 = ssub.s32 %s18, %s30
    %p60 = scmp.eq.s32.totalorder %s59, 0
    %s62 = sadd.s32 %s61, 1
    %s63 = scalar_select %p60, %s61, %s62
    %p66 = pneg %p60
    %p67 = scmp.eq.s32.totalorder %s11, 3
    %p68 = por %p66, %p67
    %p69 = scmp.ne.s32.totalorder %s61, %s64
    %p70 = scmp.eq.s32.totalorder %s11, 0
    %p71 = por %p69, %p70
    %p72 = scmp.ne.s32.totalorder %s61, %s64
    %p73 = scmp.eq.s32.totalorder %s16, 3
    %p74 = por %p72, %p73
    %p75 = scmp.ne.s32.totalorder %s64, %s65
    %p76 = scmp.eq.s32.totalorder %s16, 0
    %p77 = por %p75, %p76
    %p78 = scmp.ne.s32.totalorder %s64, %s65
    %p79 = scmp.eq.s32.totalorder %s17, 3
    %p80 = por %p78, %p79
    %p82 = scmp.ne.s32.totalorder %s65, %s81
    %p83 = scmp.eq.s32.totalorder %s17, 0
    %p84 = por %p82, %p83
    %s85 = ssub.s32 %s18, %s30
    %s86 = ssub.s32 %s19, %s26
    %s87 = sor.u32 %s85, %s86
    %p88 = scmp.eq.s32.totalorder %s87, 0
    %s90 = sadd.s32 %s89, 1
    %s91 = scalar_select %p88, %s89, %s90
    %p94 = pneg %p88
    %p95 = scmp.eq.s32.totalorder %s11, 3
    %p96 = por %p94, %p95
    %p97 = scmp.ne.s32.totalorder %s89, %s92
    %p98 = scmp.eq.s32.totalorder %s11, 0
    %p99 = por %p97, %p98
    %p100 = scmp.ne.s32.totalorder %s89, %s92
    %p101 = scmp.eq.s32.totalorder %s16, 3
    %p102 = por %p100, %p101
    %p103 = scmp.ne.s32.totalorder %s92, %s93
    %p104 = scmp.eq.s32.totalorder %s16, 0
    %p105 = por %p103, %p104
    %p106 = scmp.ne.s32.totalorder %s92, %s93
    %p107 = scmp.eq.s32.totalorder %s17, 3
    %p108 = por %p106, %p107
    %p110 = scmp.ne.s32.totalorder %s93, %s109
    %p111 = scmp.eq.s32.totalorder %s17, 0
    %p112 = por %p110, %p111
    %s113 = ssub.s32 %s18, %s30
    %s114 = ssub.s32 %s19, %s26
    %s115 = sor.u32 %s113, %s114
    %p116 = scmp.eq.s32.totalorder %s115, 0
    %s118 = sadd.s32 %s117, 1
    %s119 = scalar_select %p116, %s117, %s118
    %p122 = pneg %p116
    %p123 = scmp.eq.s32.totalorder %s11, 3
    %p124 = por %p122, %p123
    %p125 = scmp.ne.s32.totalorder %s117, %s120
    %p126 = scmp.eq.s32.totalorder %s11, 0
    %p127 = por %p125, %p126
    %p128 = scmp.ne.s32.totalorder %s117, %s120
    %p129 = scmp.eq.s32.totalorder %s16, 3
    %p130 = por %p128, %p129
    %p131 = scmp.ne.s32.totalorder %s120, %s121
    %p132 = scmp.eq.s32.totalorder %s16, 0
    %p133 = por %p131, %p132
    %p134 = scmp.ne.s32.totalorder %s120, %s121
    %p135 = scmp.eq.s32.totalorder %s17, 3
    %p136 = por %p134, %p135
    %p138 = scmp.ne.s32.totalorder %s121, %s137
    %p139 = scmp.eq.s32.totalorder %s17, 0
    %p140 = por %p138, %p139
    %s141 = ssub.s32 %s18, %s30
    %p142 = scmp.eq.s32.totalorder %s141, 0
    %s144 = sadd.s32 %s143, 1
    %s145 = scalar_select %p142, %s143, %s144
    %p148 = pneg %p142
    %p149 = scmp.eq.s32.totalorder %s11, 3
    %p150 = por %p148, %p149
    %p151 = scmp.ne.s32.totalorder %s143, %s146
    %p152 = scmp.eq.s32.totalorder %s11, 0
    %p153 = por %p151, %p152
    %p154 = scmp.ne.s32.totalorder %s143, %s146
    %p155 = scmp.eq.s32.totalorder %s16, 3
    %p156 = por %p154, %p155
    %p157 = scmp.ne.s32.totalorder %s146, %s147
    %p158 = scmp.eq.s32.totalorder %s16, 0
    %p159 = por %p157, %p158
    %p160 = scmp.ne.s32.totalorder %s146, %s147
    %p161 = scmp.eq.s32.totalorder %s17, 3
    %p162 = por %p160, %p161
    %p164 = scmp.ne.s32.totalorder %s147, %s163
    %p165 = scmp.eq.s32.totalorder %s17, 0
    %p166 = por %p164, %p165
    %p167 = scmp.le.s32.totalorder 1, %s11
    %p168 = scmp.lt.s32.totalorder %s11, 5
    %p169 = pnand %p167, %p168
    %p170 = pneg %p169
    // Predicated region
    $region9: #{local_pathway_forward.39} parent=5 // pred_check
      _
    $region10: #{local_pathway_forward.39} parent=5 // pred_check_branch
      %172 = sbr.rel (%p169) target = $region12
    $region11: #{local_pathway_forward.39} parent=5 // pred_region
      %s173 = ssub.s32 %s11, 1
    $region12: #{local_pathway_forward.39} parent=5 // pred_fallthru
      _
    %p174 = scmp.lt.s32.totalorder %s11, 4
    // Predicated region
    $region13: #{local_pathway_forward.39} parent=5 // pred_check
      %p175 = pneg %p174
    $region14: #{local_pathway_forward.39} parent=5 // pred_check_branch
      %177 = sbr.rel (%p175) target = $region16
    $region15: #{local_pathway_forward.39} parent=5 // pred_region
      // Predicated region
      $region17: #{local_pathway_forward.39} parent=15 // pred_check
        %p178 = pneg %p45
      $region18: #{local_pathway_forward.39} parent=15 // pred_check_branch
        %180 = sbr.rel (%p178) target = $region20
      $region19: #{local_pathway_forward.39} parent=15 // pred_region
        %s181 = smul.u32 8, %s19
        %p182 = scmp.lt.s32.totalorder %s18, 1
        %s183 = scalar_select %p182, %s18, 1
        %p184 = scmp.lt.s32.totalorder %s181, 15
        %s185 = scalar_select %p184, %s181, 15
        %s186 = smul.addr %s185, 2
        %s187 = smul.addr %s183, 32
        %s188 = sadd.s32 %s186, %s187
        %s189 = smul.addr %s188, 4
        %s190 = scalar_lea.vmem %s0, %s189
        %s191 = smul.u32 8, %s19
      $region20: #{local_pathway_forward.39} parent=15 // pred_fallthru
        _
      // Predicated region
      $region21: #{local_pathway_forward.39} parent=15 // pred_check
        %p192 = pneg %p71
      $region22: #{local_pathway_forward.39} parent=15 // pred_check_branch
        %194 = sbr.rel (%p192) target = $region24
      $region23: #{local_pathway_forward.39} parent=15 // pred_region
        %p195 = scmp.lt.s32.totalorder %s18, 1
        %s196 = scalar_select %p195, %s18, 1
        %s197 = smul.addr %s196, 2
        %s198 = scalar_lea.vmem %s1, %s197
      $region24: #{local_pathway_forward.39} parent=15 // pred_fallthru
        _
      // Predicated region
      $region25: #{local_pathway_forward.39} parent=15 // pred_check
        %p199 = pneg %p99
      $region26: #{local_pathway_forward.39} parent=15 // pred_check_branch
        %201 = sbr.rel (%p199) target = $region28
      $region27: #{local_pathway_forward.39} parent=15 // pred_region
        %s202 = smul.u32 8, %s19
        %p203 = scmp.lt.s32.totalorder %s18, 1
        %s204 = scalar_select %p203, %s18, 1
        %p205 = scmp.lt.s32.totalorder %s202, 15
        %s206 = scalar_select %p205, %s202, 15
        %s207 = smul.addr %s206, 2
        %s208 = smul.addr %s204, 32
        %s209 = sadd.s32 %s207, %s208
        %s210 = smul.addr %s209, 4
        %s211 = scalar_lea.vmem %s2, %s210
        %s212 = smul.u32 8, %s19
      $region28: #{local_pathway_forward.39} parent=15 // pred_fallthru
        _
    $region16: #{local_pathway_forward.39} parent=5 // pred_fallthru
      _
    %p213 = scmp.le.s32.totalorder 1, %s11
    %p214 = scmp.lt.s32.totalorder %s11, 5
    %p215 = pnand %p213, %p214
    %p216 = pneg %p215
    // Predicated region
    $region29: #{local_pathway_forward.39} parent=5 // pred_check
      _
    $region30: #{local_pathway_forward.39} parent=5 // pred_check_branch
      %218 = sbr.rel (%p215) target = $region32
    $region31: #{local_pathway_forward.39} parent=5 // pred_region
      %s219 = ssub.s32 %s11, 1
      %s220 = smul.u32 8, %s21
      %p221 = scmp.lt.s32.totalorder %s20, 1
      %s222 = scalar_select %p221, %s20, 1
      %p223 = scmp.lt.s32.totalorder %s220, 15
      %s224 = scalar_select %p223, %s220, 15
      %s225 = smul.addr %s224, 2
      %s226 = smul.addr %s222, 32
      %s227 = sadd.s32 %s225, %s226
      %s228 = smul.addr %s227, 4
      %s229 = scalar_lea.vmem %s0, %s228
      %p230 = pneg %p51
      %p231 = pneg %p48
      %p232 = scmp.lt.s32.totalorder %s20, 1
      %s233 = scalar_select %p232, %s20, 1
      %s234 = smul.addr %s233, 2
      %s235 = scalar_lea.vmem %s1, %s234
      %p236 = pneg %p77
      %p237 = pneg %p74
      %s238 = smul.u32 8, %s21
      %p239 = scmp.lt.s32.totalorder %s20, 1
      %s240 = scalar_select %p239, %s20, 1
      %p241 = scmp.lt.s32.totalorder %s238, 15
      %s242 = scalar_select %p241, %s238, 15
      %s243 = smul.addr %s242, 2
      %s244 = smul.addr %s240, 32
      %s245 = sadd.s32 %s243, %s244
      %s246 = smul.addr %s245, 4
      %s247 = scalar_lea.vmem %s2, %s246
      %p248 = pneg %p105
      %p249 = pneg %p102
      %p250 = pneg %p133
      %p251 = pneg %p130
      %s252 = smul.u32 8, %s21
      %p253 = scmp.lt.s32.totalorder %s20, 1
      %s254 = scalar_select %p253, %s20, 1
      %p255 = scmp.lt.s32.totalorder %s252, 15
      %s256 = scalar_select %p255, %s252, 15
      %s257 = smul.addr %s256, 2
      %s258 = smul.addr %s254, 32
      %s259 = sadd.s32 %s257, %s258
      %s260 = smul.addr %s259, 4
      %s261 = scalar_lea.vmem %s3, %s260
      %p262 = pneg %p159
      %p263 = pneg %p156
      %p264 = scmp.lt.s32.totalorder %s20, 1
      %s265 = scalar_select %p264, %s20, 1
      %s266 = smul.addr %s265, 2
      %s267 = scalar_lea.vmem %s4, %s266
      %s268 = smul.u32 8, %s21
      %p269 = scmp.lt.s32.totalorder %s20, 1
      %s270 = scalar_select %p269, %s20, 1
      %p271 = scmp.lt.s32.totalorder %s268, 15
      %s272 = scalar_select %p271, %s268, 15
      %s273 = smul.addr %s272, 2
      %s274 = smul.addr %s270, 32
      %s275 = sadd.s32 %s273, %s274
      %s276 = smul.addr %s275, 4
      %s277 = scalar_lea.vmem %s0, %s276
      %s278 = smul.u32 8, %s21
      %p279 = scmp.lt.s32.totalorder %s20, 1
      %s280 = scalar_select %p279, %s20, 1
      %s281 = smul.addr %s280, 2
      %s282 = scalar_lea.vmem %s1, %s281
      %s283 = smul.u32 8, %s21
      %p284 = scmp.lt.s32.totalorder %s20, 1
      %s285 = scalar_select %p284, %s20, 1
      %p286 = scmp.lt.s32.totalorder %s283, 15
      %s287 = scalar_select %p286, %s283, 15
      %s288 = smul.addr %s287, 2
      %s289 = smul.addr %s285, 32
      %s290 = sadd.s32 %s288, %s289
      %s291 = smul.addr %s290, 4
      %s292 = scalar_lea.vmem %s2, %s291
      %s293 = smul.u32 8, %s21
      %s294 = smul.u32 8, %s21
      %p295 = scmp.lt.s32.totalorder %s20, 1
      %s296 = scalar_select %p295, %s20, 1
      %p297 = scmp.lt.s32.totalorder %s294, 15
      %s298 = scalar_select %p297, %s294, 15
      %s299 = smul.addr %s298, 2
      %s300 = smul.addr %s296, 32
      %s301 = sadd.s32 %s299, %s300
      %s302 = smul.addr %s301, 4
      %s303 = scalar_lea.vmem %s3, %s302
      %s304 = smul.u32 8, %s21
      %p305 = scmp.lt.s32.totalorder %s20, 1
      %s306 = scalar_select %p305, %s20, 1
      %s307 = smul.addr %s306, 2
      %s308 = scalar_lea.vmem %s4, %s307
      %v309 = vld [vmem:[%s282] sm:$0x3]
      %v310 = vmul.f32 %v309, 0.00390625
      %v311 = vmul.f32 %v310, %v310
      %v313 = vrot.slane %v311, 7
      %v315 = vsub.f32 %v310, %v313
      %v316 = vadd.f32 %v315, 1e-05
      %v317 = vrsqrt.pop %v316
      %v318 = vld [vmem:[%s277] sm:$0xf]
      %v319 = vld [vmem:[%s277 + $0x4] sm:$0xf]
      %v320 = vld [vmem:[%s277 + $0x8] sm:$0xf]
      %v321 = vld [vmem:[%s277 + $0xc] sm:$0xf]
      %v322 = vld [vmem:[%s277 + $0x10] sm:$0xf]
      %v323 = vld [vmem:[%s277 + $0x14] sm:$0xf]
      %v324 = vld [vmem:[%s277 + $0x18] sm:$0xf]
      %v325 = vld [vmem:[%s277 + $0x1c] sm:$0xf]
      %v326 = vld [vmem:[%s277 + $0x20] sm:$0xf]
      %v327 = vld [vmem:[%s277 + $0x24] sm:$0xf]
      %v328 = vld [vmem:[%s277 + $0x28] sm:$0xf]
      %v329 = vld [vmem:[%s277 + $0x2c] sm:$0xf]
      %v330 = vld [vmem:[%s277 + $0x30] sm:$0xf]
      %v331 = vld [vmem:[%s277 + $0x34] sm:$0xf]
      %v332 = vld [vmem:[%s277 + $0x38] sm:$0xf]
      %v333 = vld [vmem:[%s277 + $0x3c] sm:$0xf]
      %v334 = vunpack.c.l.bf16 %v318
      %v335 = vunpack.c.l.bf16 %v319
      %v336 = vunpack.c.l.bf16 %v320
      %v337 = vunpack.c.l.bf16 %v321
      %v338 = vunpack.c.l.bf16 %v322
      %v339 = vunpack.c.l.bf16 %v323
      %v340 = vunpack.c.l.bf16 %v324
      %v341 = vunpack.c.l.bf16 %v325
      %v342 = vunpack.c.l.bf16 %v326
      %v343 = vunpack.c.l.bf16 %v327
      %v344 = vunpack.c.l.bf16 %v328
      %v345 = vunpack.c.l.bf16 %v329
      %v346 = vunpack.c.l.bf16 %v330
      %v347 = vunpack.c.l.bf16 %v331
      %v348 = vunpack.c.l.bf16 %v332
      %v349 = vunpack.c.l.bf16 %v333
      %v350 = vlaneseq
      %v351 = vshrl.u32 %v350, 7
      %v352 = vsub.s32 0, %v351
      %v353 = vrot.slane %v310, %v352
      %v354 = vsub.f32 %v334, %v353
      %v355 = vsub.f32 %v335, %v353
      %v356 = vsub.f32 %v336, %v353
      %v357 = vsub.f32 %v337, %v353
      %v358 = vsub.f32 %v338, %v353
      %v359 = vsub.f32 %v339, %v353
      %v360 = vsub.f32 %v340, %v353
      %v361 = vsub.f32 %v341, %v353
      %v362 = vsub.f32 %v342, %v353
      %v363 = vsub.f32 %v343, %v353
      %v364 = vsub.f32 %v344, %v353
      %v365 = vsub.f32 %v345, %v353
      %v366 = vsub.f32 %v346, %v353
      %v367 = vsub.f32 %v347, %v353
      %v368 = vsub.f32 %v348, %v353
      %v369 = vsub.f32 %v349, %v353
      %v370 = vlaneseq
      %v371 = vshrl.u32 %v370, 7
      %v372 = vsub.s32 1, %v371
      %v373 = vrot.slane %v317, %v372
      %v374 = vmul.f32 %v354, %v373
      %v375 = vmul.f32 %v355, %v373
      %v376 = vmul.f32 %v356, %v373
      %v377 = vmul.f32 %v357, %v373
      %v378 = vmul.f32 %v358, %v373
      %v379 = vmul.f32 %v359, %v373
      %v380 = vmul.f32 %v360, %v373
      %v381 = vmul.f32 %v361, %v373
      %v382 = vmul.f32 %v362, %v373
      %v383 = vmul.f32 %v363, %v373
      %v384 = vmul.f32 %v364, %v373
      %v385 = vmul.f32 %v365, %v373
      %v386 = vmul.f32 %v366, %v373
      %v387 = vmul.f32 %v367, %v373
      %v388 = vmul.f32 %v368, %v373
      %v389 = vmul.f32 %v369, %v373
      %v390 = vld [vmem:[%s292] sm:$0xf]
      %v391 = vld [vmem:[%s292 + $0x4] sm:$0xf]
      %v392 = vld [vmem:[%s292 + $0x8] sm:$0xf]
      %v393 = vld [vmem:[%s292 + $0xc] sm:$0xf]
      %v394 = vld [vmem:[%s292 + $0x10] sm:$0xf]
      %v395 = vld [vmem:[%s292 + $0x14] sm:$0xf]
      %v396 = vld [vmem:[%s292 + $0x18] sm:$0xf]
      %v397 = vld [vmem:[%s292 + $0x1c] sm:$0xf]
      %v398 = vld [vmem:[%s292 + $0x20] sm:$0xf]
      %v399 = vld [vmem:[%s292 + $0x24] sm:$0xf]
      %v400 = vld [vmem:[%s292 + $0x28] sm:$0xf]
      %v401 = vld [vmem:[%s292 + $0x2c] sm:$0xf]
      %v402 = vld [vmem:[%s292 + $0x30] sm:$0xf]
      %v403 = vld [vmem:[%s292 + $0x34] sm:$0xf]
      %v404 = vld [vmem:[%s292 + $0x38] sm:$0xf]
      %v405 = vld [vmem:[%s292 + $0x3c] sm:$0xf]
      %v406 = vunpack.c.l.bf16 %v390
      %v407 = vunpack.c.l.bf16 %v391
      %v408 = vunpack.c.l.bf16 %v392
      %v409 = vunpack.c.l.bf16 %v393
      %v410 = vunpack.c.l.bf16 %v394
      %v411 = vunpack.c.l.bf16 %v395
      %v412 = vunpack.c.l.bf16 %v396
      %v413 = vunpack.c.l.bf16 %v397
      %v414 = vunpack.c.l.bf16 %v398
      %v415 = vunpack.c.l.bf16 %v399
      %v416 = vunpack.c.l.bf16 %v400
      %v417 = vunpack.c.l.bf16 %v401
      %v418 = vunpack.c.l.bf16 %v402
      %v419 = vunpack.c.l.bf16 %v403
      %v420 = vunpack.c.l.bf16 %v404
      %v421 = vunpack.c.l.bf16 %v405
      %v422 = vadd.f32 %v406, %v374
      %v423 = vadd.f32 %v407, %v375
      %v424 = vadd.f32 %v408, %v376
      %v425 = vadd.f32 %v409, %v377
      %v426 = vadd.f32 %v410, %v378
      %v427 = vadd.f32 %v411, %v379
      %v428 = vadd.f32 %v412, %v380
      %v429 = vadd.f32 %v413, %v381
      %v430 = vadd.f32 %v414, %v382
      %v431 = vadd.f32 %v415, %v383
      %v432 = vadd.f32 %v416, %v384
      %v433 = vadd.f32 %v417, %v385
      %v434 = vadd.f32 %v418, %v386
      %v435 = vadd.f32 %v419, %v387
      %v436 = vadd.f32 %v420, %v388
      %v437 = vadd.f32 %v421, %v389
      %v438 = vpack.c.bf16 %v423, %v422
      %v439 = vpack.c.bf16 %v425, %v424
      %v440 = vpack.c.bf16 %v427, %v426
      %v441 = vpack.c.bf16 %v429, %v428
      %v442 = vpack.c.bf16 %v431, %v430
      %v443 = vpack.c.bf16 %v433, %v432
      %v444 = vpack.c.bf16 %v435, %v434
      %v445 = vpack.c.bf16 %v437, %v436
      %v454 = vunpack.c.l.b16 %v438
      %v455 = vunpack.c.h.b16 %v438
      %v456 = vunpack.c.l.b16 %v439
      %v457 = vunpack.c.h.b16 %v439
      %v458 = vunpack.c.l.b16 %v440
      %v459 = vunpack.c.h.b16 %v440
      %v460 = vunpack.c.l.b16 %v441
      %v461 = vunpack.c.h.b16 %v441
      %v462 = vunpack.c.l.b16 %v442
      %v463 = vunpack.c.h.b16 %v442
      %v464 = vunpack.c.l.b16 %v443
      %v465 = vunpack.c.h.b16 %v443
      %v466 = vunpack.c.l.b16 %v444
      %v467 = vunpack.c.h.b16 %v444
      %v468 = vunpack.c.l.b16 %v445
      %v469 = vunpack.c.h.b16 %v445
      %v470 = vpack.c.b16 %v454, %v454
      %v471 = vpack.c.b16 %v455, %v455
      %v472 = vpack.c.b16 %v456, %v456
      %v473 = vpack.c.b16 %v457, %v457
      %v474 = vpack.c.b16 %v458, %v458
      %v475 = vpack.c.b16 %v459, %v459
      %v476 = vpack.c.b16 %v460, %v460
      %v477 = vpack.c.b16 %v461, %v461
      %v478 = vpack.c.b16 %v462, %v462
      %v479 = vpack.c.b16 %v463, %v463
      %v480 = vpack.c.b16 %v464, %v464
      %v481 = vpack.c.b16 %v465, %v465
      %v482 = vpack.c.b16 %v466, %v466
      %v483 = vpack.c.b16 %v467, %v467
      %v484 = vpack.c.b16 %v468, %v468
      %v485 = vpack.c.b16 %v469, %v469
      %vm502 = vcmask 519168
      %503 = vst.msk [vmem:[%s303] sm:$0xf] %vm502, %v470
      %504 = vst.msk [vmem:[%s303 + $0x4] sm:$0xf] %vm502, %v471
      %505 = vst.msk [vmem:[%s303 + $0x8] sm:$0xf] %vm502, %v472
      %506 = vst.msk [vmem:[%s303 + $0xc] sm:$0xf] %vm502, %v473
      %507 = vst.msk [vmem:[%s303 + $0x10] sm:$0xf] %vm502, %v474
      %508 = vst.msk [vmem:[%s303 + $0x14] sm:$0xf] %vm502, %v475
      %509 = vst.msk [vmem:[%s303 + $0x18] sm:$0xf] %vm502, %v476
      %510 = vst.msk [vmem:[%s303 + $0x1c] sm:$0xf] %vm502, %v477
      %511 = vst.msk [vmem:[%s303 + $0x20] sm:$0xf] %vm502, %v478
      %512 = vst.msk [vmem:[%s303 + $0x24] sm:$0xf] %vm502, %v479
      %513 = vst.msk [vmem:[%s303 + $0x28] sm:$0xf] %vm502, %v480
      %514 = vst.msk [vmem:[%s303 + $0x2c] sm:$0xf] %vm502, %v481
      %515 = vst.msk [vmem:[%s303 + $0x30] sm:$0xf] %vm502, %v482
      %516 = vst.msk [vmem:[%s303 + $0x34] sm:$0xf] %vm502, %v483
      %517 = vst.msk [vmem:[%s303 + $0x38] sm:$0xf] %vm502, %v484
      %518 = vst.msk [vmem:[%s303 + $0x3c] sm:$0xf] %vm502, %v485
      %p519 = scmp.eq.s32.totalorder %s21, 0
      // Predicated region
      $region33: #{local_pathway_forward.39} parent=31 // pred_check
        %p520 = pneg %p519
      $region34: #{local_pathway_forward.39} parent=31 // pred_check_branch
        %522 = sbr.rel (%p520) target = $region36
      $region35: #{local_pathway_forward.39} parent=31 // pred_region
        %vm523 = vcmask 517120
        %524 = vst.msk [vmem:[%s308] sm:$0x3] %vm523, 0.0
      $region36: #{local_pathway_forward.39} parent=31 // pred_fallthru
        _
      %vm525 = vcmask 523264
      %v526 = vsel %vm525, %v422, 0.0
      %v527 = vsel %vm525, %v423, 0.0
      %v528 = vadd.f32 %v526, %v527
      %v529 = vsel %vm525, %v424, 0.0
      %v530 = vadd.f32 %v528, %v529
      %v531 = vsel %vm525, %v425, 0.0
      %v532 = vadd.f32 %v530, %v531
      %v533 = vsel %vm525, %v426, 0.0
      %v534 = vadd.f32 %v532, %v533
      %v535 = vsel %vm525, %v427, 0.0
      %v536 = vadd.f32 %v534, %v535
      %v537 = vsel %vm525, %v428, 0.0
      %v538 = vadd.f32 %v536, %v537
      %v539 = vsel %vm525, %v429, 0.0
      %v540 = vadd.f32 %v538, %v539
      %v541 = vsel %vm525, %v430, 0.0
      %v542 = vadd.f32 %v540, %v541
      %v543 = vsel %vm525, %v431, 0.0
      %v544 = vadd.f32 %v542, %v543
      %v545 = vsel %vm525, %v432, 0.0
      %v546 = vadd.f32 %v544, %v545
      %v547 = vsel %vm525, %v433, 0.0
      %v548 = vadd.f32 %v546, %v547
      %v549 = vsel %vm525, %v434, 0.0
      %v550 = vadd.f32 %v548, %v549
      %v551 = vsel %vm525, %v435, 0.0
      %v552 = vadd.f32 %v550, %v551
      %v553 = vsel %vm525, %v436, 0.0
      %v554 = vadd.f32 %v552, %v553
      %v555 = vsel %vm525, %v437, 0.0
      %v556 = vadd.f32 %v554, %v555
      %v557 = vrot.slane %v556, 4
      %v558 = vadd.f32 %v556, %v557
      %v559 = vrot.slane %v558, 2
      %v560 = vadd.f32 %v558, %v559
      %v561 = vrot.slane %v560, 1
      %v562 = vadd.f32 %v560, %v561
      %v563 = vmul.f32 %v422, %v422
      %v564 = vmul.f32 %v423, %v423
      %v565 = vmul.f32 %v424, %v424
      %v566 = vmul.f32 %v425, %v425
      %v567 = vmul.f32 %v426, %v426
      %v568 = vmul.f32 %v427, %v427
      %v569 = vmul.f32 %v428, %v428
      %v570 = vmul.f32 %v429, %v429
      %v571 = vmul.f32 %v430, %v430
      %v572 = vmul.f32 %v431, %v431
      %v573 = vmul.f32 %v432, %v432
      %v574 = vmul.f32 %v433, %v433
      %v575 = vmul.f32 %v434, %v434
      %v576 = vmul.f32 %v435, %v435
      %v577 = vmul.f32 %v436, %v436
      %v578 = vmul.f32 %v437, %v437
      %v579 = vsel %vm525, %v563, 0.0
      %v580 = vsel %vm525, %v564, 0.0
      %v581 = vadd.f32 %v579, %v580
      %v582 = vsel %vm525, %v565, 0.0
      %v583 = vadd.f32 %v581, %v582
      %v584 = vsel %vm525, %v566, 0.0
      %v585 = vadd.f32 %v583, %v584
      %v586 = vsel %vm525, %v567, 0.0
      %v587 = vadd.f32 %v585, %v586
      %v588 = vsel %vm525, %v568, 0.0
      %v589 = vadd.f32 %v587, %v588
      %v590 = vsel %vm525, %v569, 0.0
      %v591 = vadd.f32 %v589, %v590
      %v592 = vsel %vm525, %v570, 0.0
      %v593 = vadd.f32 %v591, %v592
      %v594 = vsel %vm525, %v571, 0.0
      %v595 = vadd.f32 %v593, %v594
      %v596 = vsel %vm525, %v572, 0.0
      %v597 = vadd.f32 %v595, %v596
      %v598 = vsel %vm525, %v573, 0.0
      %v599 = vadd.f32 %v597, %v598
      %v600 = vsel %vm525, %v574, 0.0
      %v601 = vadd.f32 %v599, %v600
      %v602 = vsel %vm525, %v575, 0.0
      %v603 = vadd.f32 %v601, %v602
      %v604 = vsel %vm525, %v576, 0.0
      %v605 = vadd.f32 %v603, %v604
      %v606 = vsel %vm525, %v577, 0.0
      %v607 = vadd.f32 %v605, %v606
      %v608 = vsel %vm525, %v578, 0.0
      %v609 = vadd.f32 %v607, %v608
      %v610 = vrot.slane %v609, 4
      %v611 = vadd.f32 %v609, %v610
      %v612 = vrot.slane %v611, 2
      %v613 = vadd.f32 %v611, %v612
      %v614 = vrot.slane %v613, 1
      %v615 = vadd.f32 %v613, %v614
      %v616 = vld [vmem:[%s308] sm:$0x3]
      %vm617 = vcmask 1040384
      %v618 = vsel %vm617, %v562, %v615
      %v619 = vadd.f32 %v616, %v618
      %vm620 = vcmask 517120
      %621 = vst.msk [vmem:[%s308] sm:$0x3] %vm620, %v619
      %s622 = smul.u32 8, %s21
      %p623 = scmp.lt.s32.totalorder %s20, 1
      %s624 = scalar_select %p623, %s20, 1
      %p625 = scmp.lt.s32.totalorder %s622, 15
      %s626 = scalar_select %p625, %s622, 15
      %s627 = smul.addr %s626, 2
      %s628 = smul.addr %s624, 32
      %s629 = sadd.s32 %s627, %s628
      %s630 = smul.addr %s629, 4
      %s631 = scalar_lea.vmem %s3, %s630
      %p632 = scmp.lt.s32.totalorder %s20, 1
      %s633 = scalar_select %p632, %s20, 1
      %s634 = smul.addr %s633, 2
      %s635 = scalar_lea.vmem %s4, %s634
      // Predicated region
      $region37: #{local_pathway_forward.39} parent=31 // pred_check
        %p636 = pneg %p130
      $region38: #{local_pathway_forward.39} parent=31 // pred_check_branch
        %638 = sbr.rel (%p636) target = $region40
      $region39: #{local_pathway_forward.39} parent=31 // pred_region
        %s639 = smul.u32 8, %s21
      $region40: #{local_pathway_forward.39} parent=31 // pred_fallthru
        _
      // Predicated region
      $region41: #{local_pathway_forward.39} parent=31 // pred_check
        %p640 = pneg %p156
      $region42: #{local_pathway_forward.39} parent=31 // pred_check_branch
        %642 = sbr.rel (%p640) target = $region44
      $region43: #{local_pathway_forward.39} parent=31 // pred_region
        _
      $region44: #{local_pathway_forward.39} parent=31 // pred_fallthru
        _
    $region32: #{local_pathway_forward.39} parent=5 // pred_fallthru
      _
    %p643 = scmp.le.s32.totalorder 2, %s11
    // Predicated region
    $region45: #{local_pathway_forward.39} parent=5 // pred_check
      %p644 = pneg %p643
    $region46: #{local_pathway_forward.39} parent=5 // pred_check_branch
      %646 = sbr.rel (%p644) target = $region48
    $region47: #{local_pathway_forward.39} parent=5 // pred_region
      %s647 = ssub.s32 %s11, 2
      // Predicated region
      $region49: #{local_pathway_forward.39} parent=47 // pred_check
        %p648 = pneg %p136
      $region50: #{local_pathway_forward.39} parent=47 // pred_check_branch
        %650 = sbr.rel (%p648) target = $region52
      $region51: #{local_pathway_forward.39} parent=47 // pred_region
        %s651 = smul.u32 8, %s23
        %p652 = scmp.lt.s32.totalorder %s22, 1
        %s653 = scalar_select %p652, %s22, 1
        %p654 = scmp.lt.s32.totalorder %s651, 15
        %s655 = scalar_select %p654, %s651, 15
        %s656 = smul.addr %s655, 2
        %s657 = smul.addr %s653, 32
        %s658 = sadd.s32 %s656, %s657
        %s659 = smul.addr %s658, 4
        %s660 = scalar_lea.vmem %s3, %s659
      $region52: #{local_pathway_forward.39} parent=47 // pred_fallthru
        _
      // Predicated region
      $region53: #{local_pathway_forward.39} parent=47 // pred_check
        %p661 = pneg %p162
      $region54: #{local_pathway_forward.39} parent=47 // pred_check_branch
        %663 = sbr.rel (%p661) target = $region56
      $region55: #{local_pathway_forward.39} parent=47 // pred_region
        %p664 = scmp.lt.s32.totalorder %s22, 1
        %s665 = scalar_select %p664, %s22, 1
        %s666 = smul.addr %s665, 2
        %s667 = scalar_lea.vmem %s4, %s666
      $region56: #{local_pathway_forward.39} parent=47 // pred_fallthru
        _
    $region48: #{local_pathway_forward.39} parent=5 // pred_fallthru
      _
  $region6: #{local_pathway_forward.39} parent=0 // loop_footer
    %s15 = sadd.s32 1, %s11
  $region7: #{local_pathway_forward.39} parent=0 // loop_footer_branch
    %10 = sbr.rel target = $region3
  $region8: #{local_pathway_forward.39} parent=0 // loop_exit
    _

// kernel: local_pathway_forward.41
$region0: #{local_pathway_forward.41}
  #allocation0 [shape = 'u32[]', space=smem, size = 0x4, offset = 0x4, fixed_abs, tag = 'smem constant byte address 0x4 - core index']
  #allocation1 [shape = 'u32[144,128]{1,0:T(1,128)}', space=vmem, size = 0x12000, scoped, tag = 'internal scratch']
  %s0 = inlined_call_operand.vmem [shape: bf16[2,2,10,18,64], index: 0, kind: input, shape index: {}]
  %s1 = inlined_call_operand.vmem [shape: bf16[9,64,128], index: 1, kind: input, shape index: {}]
  %s2 = inlined_call_operand.vmem [shape: f32[2,16,16,128], index: 2, kind: output, shape index: {}]
  %s3 = sld [smem:[#allocation0]]
  $region41: #{local_pathway_forward.41} parent=0
    _
  %s5 = ssub.s32 1, %s3
  %s6 = scalar_select 0, %s5, %s3
  loop: start=0, step=1, limit=6
  $region2: #{local_pathway_forward.41} parent=0 // loop_pre_header
    _
  $region3: #{local_pathway_forward.41} parent=0 // loop_header
    %s8 = sphi 0, %s12
    %p9 = scmp.ge.s32.totalorder %s8, 6
    %s15 = sphi 0, %s27
    %s16 = sphi 0, %s23
    %s17 = sphi 0, %s15
    %s18 = sphi 0, %s16
    %s19 = sphi 0, %s17
    %s20 = sphi 0, %s18
    %s32 = sphi 0, %s34
    %s35 = sphi 0, %s32
    %s36 = sphi 0, %s35
    %s52 = sphi 0, %s36
    %s56 = sphi 0, %s56
    %s58 = sphi 0, %s56
    %s59 = sphi 0, %s58
    %s73 = sphi 0, %s59
    %s81 = sphi 0, %s83
    %s84 = sphi 0, %s81
    %s85 = sphi 0, %s84
    %s101 = sphi 0, %s85
  $region4: #{local_pathway_forward.41} parent=0 // loop_header_branch
    %11 = sbr.rel (%p9) target = $region8
  $region5: #{local_pathway_forward.41} parent=0 // loop_body
    %s13 = ssub.s32 %s8, 1
    %s14 = ssub.s32 %s8, 2
    %s21 = sadd.s32 1, %s16
    %p22 = scmp.ge.s32.totalorder %s21, 2
    %s23 = scalar_select %p22, 0, %s21
    %s24 = sadd.s32 1, %s15
    %s25 = scalar_select %p22, %s24, %s15
    %p26 = scmp.ge.s32.totalorder %s25, 2
    %s27 = scalar_select %p26, 0, %s25
    %s28 = ssub.s32 %s15, %s27
    %s29 = ssub.s32 %s16, %s23
    %s30 = sor.u32 %s28, %s29
    %p31 = scmp.eq.s32.totalorder %s30, 0
    %s33 = sadd.s32 %s32, 1
    %s34 = scalar_select %p31, %s32, %s33
    %p37 = pneg %p31
    %p38 = scmp.eq.s32.totalorder %s8, 3
    %p39 = por %p37, %p38
    %p40 = scmp.ne.s32.totalorder %s32, %s35
    %p41 = scmp.eq.s32.totalorder %s8, 0
    %p42 = por %p40, %p41
    %p43 = scmp.ne.s32.totalorder %s32, %s35
    %p44 = scmp.eq.s32.totalorder %s13, 3
    %p45 = por %p43, %p44
    %p46 = scmp.ne.s32.totalorder %s35, %s36
    %p47 = scmp.eq.s32.totalorder %s13, 0
    %p48 = por %p46, %p47
    %p49 = scmp.ne.s32.totalorder %s35, %s36
    %p50 = scmp.eq.s32.totalorder %s14, 3
    %p51 = por %p49, %p50
    %p53 = scmp.ne.s32.totalorder %s36, %s52
    %p54 = scmp.eq.s32.totalorder %s14, 0
    %p55 = por %p53, %p54
    %s57 = sadd.s32 %s56, 1
    %p60 = scmp.eq.s32.totalorder %s8, 3
    %p61 = scmp.ne.s32.totalorder %s56, %s58
    %p62 = scmp.eq.s32.totalorder %s8, 0
    %p63 = por %p61, %p62
    %p64 = scmp.ne.s32.totalorder %s56, %s58
    %p65 = scmp.eq.s32.totalorder %s13, 3
    %p66 = por %p64, %p65
    %p67 = scmp.ne.s32.totalorder %s58, %s59
    %p68 = scmp.eq.s32.totalorder %s13, 0
    %p69 = por %p67, %p68
    %p70 = scmp.ne.s32.totalorder %s58, %s59
    %p71 = scmp.eq.s32.totalorder %s14, 3
    %p72 = por %p70, %p71
    %p74 = scmp.ne.s32.totalorder %s59, %s73
    %p75 = scmp.eq.s32.totalorder %s14, 0
    %p76 = por %p74, %p75
    %s77 = ssub.s32 %s15, %s27
    %s78 = ssub.s32 %s16, %s23
    %s79 = sor.u32 %s77, %s78
    %p80 = scmp.eq.s32.totalorder %s79, 0
    %s82 = sadd.s32 %s81, 1
    %s83 = scalar_select %p80, %s81, %s82
    %p86 = pneg %p80
    %p87 = scmp.eq.s32.totalorder %s8, 3
    %p88 = por %p86, %p87
    %p89 = scmp.ne.s32.totalorder %s81, %s84
    %p90 = scmp.eq.s32.totalorder %s8, 0
    %p91 = por %p89, %p90
    %p92 = scmp.ne.s32.totalorder %s81, %s84
    %p93 = scmp.eq.s32.totalorder %s13, 3
    %p94 = por %p92, %p93
    %p95 = scmp.ne.s32.totalorder %s84, %s85
    %p96 = scmp.eq.s32.totalorder %s13, 0
    %p97 = por %p95, %p96
    %p98 = scmp.ne.s32.totalorder %s84, %s85
    %p99 = scmp.eq.s32.totalorder %s14, 3
    %p100 = por %p98, %p99
    %p102 = scmp.ne.s32.totalorder %s85, %s101
    %p103 = scmp.eq.s32.totalorder %s14, 0
    %p104 = por %p102, %p103
    %p105 = scmp.le.s32.totalorder 1, %s8
    %p106 = scmp.lt.s32.totalorder %s8, 5
    %p107 = pnand %p105, %p106
    %p108 = pneg %p107
    // Predicated region
    $region9: #{local_pathway_forward.41} parent=5 // pred_check
      _
    $region10: #{local_pathway_forward.41} parent=5 // pred_check_branch
      %110 = sbr.rel (%p107) target = $region12
    $region11: #{local_pathway_forward.41} parent=5 // pred_region
      %s111 = ssub.s32 %s8, 1
      // Predicated region
      $region13: #{local_pathway_forward.41} parent=11 // pred_check
        %p112 = pneg %p69
      $region14: #{local_pathway_forward.41} parent=11 // pred_check_branch
        %114 = sbr.rel (%p112) target = $region16
      $region15: #{local_pathway_forward.41} parent=11 // pred_region
        _
      $region16: #{local_pathway_forward.41} parent=11 // pred_fallthru
        _
    $region12: #{local_pathway_forward.41} parent=5 // pred_fallthru
      _
    %p115 = scmp.lt.s32.totalorder %s8, 4
    // Predicated region
    $region17: #{local_pathway_forward.41} parent=5 // pred_check
      %p116 = pneg %p115
    $region18: #{local_pathway_forward.41} parent=5 // pred_check_branch
      %118 = sbr.rel (%p116) target = $region20
    $region19: #{local_pathway_forward.41} parent=5 // pred_region
      // Predicated region
      $region21: #{local_pathway_forward.41} parent=19 // pred_check
        %p119 = pneg %p42
      $region22: #{local_pathway_forward.41} parent=19 // pred_check_branch
        %121 = sbr.rel (%p119) target = $region24
      $region23: #{local_pathway_forward.41} parent=19 // pred_region
        %p122 = scmp.lt.s32.totalorder %s15, 1
        %s123 = scalar_select %p122, %s15, 1
        %p124 = scmp.lt.s32.totalorder %s16, 1
        %s125 = scalar_select %p124, %s16, 1
        %s126 = smul.addr %s125, 30
        %s127 = smul.addr %s123, 60
        %s128 = sadd.s32 %s126, %s127
        %s129 = smul.addr %s128, 4
        %s130 = scalar_lea.vmem %s0, %s129
      $region24: #{local_pathway_forward.41} parent=19 // pred_fallthru
        _
    $region20: #{local_pathway_forward.41} parent=5 // pred_fallthru
      _
    %p131 = scmp.le.s32.totalorder 1, %s8
    %p132 = scmp.lt.s32.totalorder %s8, 5
    %p133 = pnand %p131, %p132
    %p134 = pneg %p133
    // Predicated region
    $region25: #{local_pathway_forward.41} parent=5 // pred_check
      _
    $region26: #{local_pathway_forward.41} parent=5 // pred_check_branch
      %136 = sbr.rel (%p133) target = $region28
    $region27: #{local_pathway_forward.41} parent=5 // pred_region
      %s137 = ssub.s32 %s8, 1
      %p138 = scmp.lt.s32.totalorder %s17, 1
      %s139 = scalar_select %p138, %s17, 1
      %p140 = scmp.lt.s32.totalorder %s18, 1
      %s141 = scalar_select %p140, %s18, 1
      %s142 = smul.addr %s141, 30
      %s143 = smul.addr %s139, 60
      %s144 = sadd.s32 %s142, %s143
      %s145 = smul.addr %s144, 4
      %s146 = scalar_lea.vmem %s0, %s145
      %p147 = pneg %p48
      %p148 = pneg %p45
      %p149 = pneg %p69
      %p150 = pneg %p66
      %p151 = pneg %p97
      %p152 = pneg %p94
      %s153 = smul.u32 8, %s18
      %p154 = scmp.lt.s32.totalorder %s17, 1
      %s155 = scalar_select %p154, %s17, 1
      %p156 = scmp.lt.s32.totalorder %s153, 15
      %s157 = scalar_select %p156, %s153, 15
      %s158 = smul.addr %s157, 2
      %s159 = smul.addr %s155, 32
      %s160 = sadd.s32 %s158, %s159
      %s161 = smul.addr %s160, 8
      %s162 = scalar_lea.vmem %s2, %s161
      %p163 = scmp.lt.s32.totalorder %s17, 1
      %s164 = scalar_select %p163, %s17, 1
      %p165 = scmp.lt.s32.totalorder %s18, 1
      %s166 = scalar_select %p165, %s18, 1
      %s167 = smul.addr %s166, 30
      %s168 = smul.addr %s164, 60
      %s169 = sadd.s32 %s167, %s168
      %s170 = smul.addr %s169, 4
      %s171 = scalar_lea.vmem %s0, %s170
      %s172 = smul.u32 8, %s18
      %p173 = scmp.lt.s32.totalorder %s17, 1
      %s174 = scalar_select %p173, %s17, 1
      %p175 = scmp.lt.s32.totalorder %s172, 15
      %s176 = scalar_select %p175, %s172, 15
      %s177 = smul.addr %s176, 2
      %s178 = smul.addr %s174, 32
      %s179 = sadd.s32 %s177, %s178
      %s180 = smul.addr %s179, 8
      %s181 = scalar_lea.vmem %s2, %s180
      %s182 = smul.u32 8, %s18
      %v184 = vld [vmem:[%s171] sm:$0xf]
      %v185 = vld [vmem:[%s171 + $0x4] sm:$0xf]
      %v186 = vld [vmem:[%s171 + $0x8] sm:$0x1]
      %v187 = vld [vmem:[%s171 + $0xc] sm:$0xf]
      %v188 = vld [vmem:[%s171 + $0x10] sm:$0xf]
      %v189 = vld [vmem:[%s171 + $0x14] sm:$0x1]
      %v190 = vld [vmem:[%s171 + $0x18] sm:$0xf]
      %v191 = vld [vmem:[%s171 + $0x1c] sm:$0xf]
      %v192 = vld [vmem:[%s171 + $0x20] sm:$0x1]
      %v193 = vld [vmem:[%s171 + $0x24] sm:$0xf]
      %v194 = vld [vmem:[%s171 + $0x28] sm:$0xf]
      %v195 = vld [vmem:[%s171 + $0x2c] sm:$0x1]
      %v196 = vld [vmem:[%s171 + $0x30] sm:$0xf]
      %v197 = vld [vmem:[%s171 + $0x34] sm:$0xf]
      %v198 = vld [vmem:[%s171 + $0x38] sm:$0x1]
      %v199 = vld [vmem:[%s171 + $0x3c] sm:$0xf]
      %v200 = vld [vmem:[%s171 + $0x40] sm:$0xf]
      %v201 = vld [vmem:[%s171 + $0x44] sm:$0x1]
      %v202 = vld [vmem:[%s171 + $0x48] sm:$0xf]
      %v203 = vld [vmem:[%s171 + $0x4c] sm:$0xf]
      %v204 = vld [vmem:[%s171 + $0x50] sm:$0x1]
      %v205 = vld [vmem:[%s171 + $0x54] sm:$0xf]
      %v206 = vld [vmem:[%s171 + $0x58] sm:$0xf]
      %v207 = vld [vmem:[%s171 + $0x5c] sm:$0x1]
      %v208 = vld [vmem:[%s171 + $0x60] sm:$0xf]
      %v209 = vld [vmem:[%s171 + $0x64] sm:$0xf]
      %v210 = vld [vmem:[%s171 + $0x68] sm:$0x1]
      %v211 = vld [vmem:[%s171 + $0x6c] sm:$0xf]
      %v212 = vld [vmem:[%s171 + $0x70] sm:$0xf]
      %v213 = vld [vmem:[%s171 + $0x74] sm:$0x1]
      %v214 = vld [vmem:[%s1] sm:$0xf]
      %v215 = vld [vmem:[%s1 + $0x4] sm:$0xf]
      %v216 = vld [vmem:[%s1 + $0x8] sm:$0xf]
      %v217 = vld [vmem:[%s1 + $0xc] sm:$0xf]
      %v218 = vld [vmem:[%s1 + $0x10] sm:$0xf]
      %v219 = vld [vmem:[%s1 + $0x14] sm:$0xf]
      %v220 = vld [vmem:[%s1 + $0x18] sm:$0xf]
      %v221 = vld [vmem:[%s1 + $0x1c] sm:$0xf]
      %vm222 = vsmask.f32 3328
      %vm223 = vsmask.f32 7440
      %vm224 = vmor %vm222, %vm223
      %v226 = vshrl.u32 %v184, 16
      %v228 = vrot.slane %v226, 4
      %v229 = vshll.u32 %v184, 16
      %v231 = vrot.slane %v229, 5
      %v232 = vor.u32 %v228, %v231
      %v233 = vrot.slane %v232, 4
      %v235 = vshll.u32 %v185, 16
      %v237 = vrot.slane %v235, 5
      %v238 = vsel %vm224, %v233, %v237
      %v239 = vshrl.u32 %v185, 16
      %v241 = vrot.slane %v239, 4
      %v242 = vor.u32 %v241, %v237
      %v243 = vrot.slane %v242, 4
      %v245 = vshll.u32 %v186, 16
      %v247 = vrot.slane %v245, 5
      %v248 = vsel %vm224, %v243, %v247
      %v250 = vshrl.u32 %v187, 16
      %v252 = vrot.slane %v250, 4
      %v253 = vshll.u32 %v187, 16
      %v255 = vrot.slane %v253, 5
      %v256 = vor.u32 %v252, %v255
      %v257 = vrot.slane %v256, 4
      %v259 = vshll.u32 %v188, 16
      %v261 = vrot.slane %v259, 5
      %v262 = vsel %vm224, %v257, %v261
      %v263 = vshrl.u32 %v188, 16
      %v265 = vrot.slane %v263, 4
      %v266 = vor.u32 %v265, %v261
      %v267 = vrot.slane %v266, 4
      %v269 = vshll.u32 %v189, 16
      %v271 = vrot.slane %v269, 5
      %v272 = vsel %vm224, %v267, %v271
      %v274 = vshrl.u32 %v190, 16
      %v276 = vrot.slane %v274, 4
      %v277 = vshll.u32 %v190, 16
      %v279 = vrot.slane %v277, 5
      %v280 = vor.u32 %v276, %v279
      %v281 = vrot.slane %v280, 4
      %v283 = vshll.u32 %v191, 16
      %v285 = vrot.slane %v283, 5
      %v286 = vsel %vm224, %v281, %v285
      %v287 = vshrl.u32 %v191, 16
      %v289 = vrot.slane %v287, 4
      %v290 = vor.u32 %v289, %v285
      %v291 = vrot.slane %v290, 4
      %v293 = vshll.u32 %v192, 16
      %v295 = vrot.slane %v293, 5
      %v296 = vsel %vm224, %v291, %v295
      %v298 = vshrl.u32 %v193, 16
      %v300 = vrot.slane %v298, 4
      %v301 = vshll.u32 %v193, 16
      %v303 = vrot.slane %v301, 5
      %v304 = vor.u32 %v300, %v303
      %v305 = vrot.slane %v304, 4
      %v307 = vshll.u32 %v194, 16
      %v309 = vrot.slane %v307, 5
      %v310 = vsel %vm224, %v305, %v309
      %v311 = vshrl.u32 %v194, 16
      %v313 = vrot.slane %v311, 4
      %v314 = vor.u32 %v313, %v309
      %v315 = vrot.slane %v314, 4
      %v317 = vshll.u32 %v195, 16
      %v319 = vrot.slane %v317, 5
      %v320 = vsel %vm224, %v315, %v319
      %v322 = vshrl.u32 %v196, 16
      %v324 = vrot.slane %v322, 4
      %v325 = vshll.u32 %v196, 16
      %v327 = vrot.slane %v325, 5
      %v328 = vor.u32 %v324, %v327
      %v329 = vrot.slane %v328, 4
      %v331 = vshll.u32 %v197, 16
      %v333 = vrot.slane %v331, 5
      %v334 = vsel %vm224, %v329, %v333
      %v335 = vshrl.u32 %v197, 16
      %v337 = vrot.slane %v335, 4
      %v338 = vor.u32 %v337, %v333
      %v339 = vrot.slane %v338, 4
      %v341 = vshll.u32 %v198, 16
      %v343 = vrot.slane %v341, 5
      %v344 = vsel %vm224, %v339, %v343
      %v346 = vshrl.u32 %v199, 16
      %v348 = vrot.slane %v346, 4
      %v349 = vshll.u32 %v199, 16
      %v351 = vrot.slane %v349, 5
      %v352 = vor.u32 %v348, %v351
      %v353 = vrot.slane %v352, 4
      %v355 = vshll.u32 %v200, 16
      %v357 = vrot.slane %v355, 5
      %v358 = vsel %vm224, %v353, %v357
      %v359 = vshrl.u32 %v200, 16
      %v361 = vrot.slane %v359, 4
      %v362 = vor.u32 %v361, %v357
      %v363 = vrot.slane %v362, 4
      %v365 = vshll.u32 %v201, 16
      %v367 = vrot.slane %v365, 5
      %v368 = vsel %vm224, %v363, %v367
      %v370 = vshrl.u32 %v202, 16
      %v372 = vrot.slane %v370, 4
      %v373 = vshll.u32 %v202, 16
      %v375 = vrot.slane %v373, 5
      %v376 = vor.u32 %v372, %v375
      %v377 = vrot.slane %v376, 4
      %v379 = vshll.u32 %v203, 16
      %v381 = vrot.slane %v379, 5
      %v382 = vsel %vm224, %v377, %v381
      %v383 = vshrl.u32 %v203, 16
      %v385 = vrot.slane %v383, 4
      %v386 = vor.u32 %v385, %v381
      %v387 = vrot.slane %v386, 4
      %v389 = vshll.u32 %v204, 16
      %v391 = vrot.slane %v389, 5
      %v392 = vsel %vm224, %v387, %v391
      %v394 = vshrl.u32 %v205, 16
      %v396 = vrot.slane %v394, 4
      %v397 = vshll.u32 %v205, 16
      %v399 = vrot.slane %v397, 5
      %v400 = vor.u32 %v396, %v399
      %v401 = vrot.slane %v400, 4
      %v403 = vshll.u32 %v206, 16
      %v405 = vrot.slane %v403, 5
      %v406 = vsel %vm224, %v401, %v405
      %v407 = vshrl.u32 %v206, 16
      %v409 = vrot.slane %v407, 4
      %v410 = vor.u32 %v409, %v405
      %v411 = vrot.slane %v410, 4
      %v413 = vshll.u32 %v207, 16
      %v415 = vrot.slane %v413, 5
      %v416 = vsel %vm224, %v411, %v415
      %s417 = scalar_lea.vmem %s1, 32
      %v418 = vld [vmem:[%s417] sm:$0xf]
      %v419 = vld [vmem:[%s417 + $0x4] sm:$0xf]
      %v420 = vld [vmem:[%s417 + $0x8] sm:$0xf]
      %v421 = vld [vmem:[%s417 + $0xc] sm:$0xf]
      %v422 = vld [vmem:[%s417 + $0x10] sm:$0xf]
      %v423 = vld [vmem:[%s417 + $0x14] sm:$0xf]
      %v424 = vld [vmem:[%s417 + $0x18] sm:$0xf]
      %v425 = vld [vmem:[%s417 + $0x1c] sm:$0xf]
      %v426 = vunpack.c.l.b16 %v238
      %v427 = vunpack.c.l.b16 %v248
      %v428 = vunpack.c.l.b16 %v262
      %v429 = vunpack.c.l.b16 %v272
      %v430 = vunpack.c.l.b16 %v286
      %v431 = vunpack.c.l.b16 %v296
      %v432 = vunpack.c.l.b16 %v310
      %v433 = vunpack.c.l.b16 %v320
      %v434 = vunpack.c.l.b16 %v334
      %v435 = vunpack.c.l.b16 %v344
      %v436 = vunpack.c.l.b16 %v358
      %v437 = vunpack.c.l.b16 %v368
      %v438 = vunpack.c.l.b16 %v382
      %v439 = vunpack.c.l.b16 %v392
      %v440 = vunpack.c.l.b16 %v406
      %v441 = vunpack.c.l.b16 %v416
      %v442 = vpack.c.b16 %v427, %v426
      %v443 = vpack.c.b16 %v429, %v428
      %v444 = vpack.c.b16 %v431, %v430
      %v445 = vpack.c.b16 %v433, %v432
      %v446 = vpack.c.b16 %v435, %v434
      %v447 = vpack.c.b16 %v437, %v436
      %v448 = vpack.c.b16 %v439, %v438
      %v449 = vpack.c.b16 %v441, %v440
      %v458 = vunpack.c.l.b16 %v418
      %v459 = vunpack.c.l.b16 %v419
      %v460 = vunpack.c.l.b16 %v420
      %v461 = vunpack.c.l.b16 %v421
      %v462 = vunpack.c.l.b16 %v422
      %v463 = vunpack.c.l.b16 %v423
      %v464 = vunpack.c.l.b16 %v424
      %v465 = vunpack.c.l.b16 %v425
      %v466 = vpack.c.b16 %v459, %v458
      %v467 = vpack.c.b16 %v461, %v460
      %v468 = vpack.c.b16 %v463, %v462
      %v469 = vpack.c.b16 %v465, %v464
      %vm474 = vcmask 523264
      %v476 = vsel %vm474, %v442, 0
      %v479 = vsel %vm474, %v443, 0
      %v482 = vsel %vm474, %v444, 0
      %v485 = vsel %vm474, %v445, 0
      %v488 = vsel %vm474, %v446, 0
      %v491 = vsel %vm474, %v447, 0
      %v494 = vsel %vm474, %v448, 0
      %v497 = vsel %vm474, %v449, 0
      %499 = vmatprep.subr.bf16.mxu0 0
      %500 = vmatpush1.bf16.msra.mxu0 %v466
      %501 = vmatprep.subr.bf16.mxu0 0
      %502 = vmatpush1.bf16.msra.mxu0 %v467
      %503 = vmatprep.subr.bf16.mxu0 0
      %504 = vmatpush1.bf16.msra.mxu0 %v468
      %505 = vmatprep.subr.bf16.mxu0 0
      %506 = vmatpush1.bf16.msra.mxu0 %v469
      %507 = vmatprep.subr.bf16.mxu0 0
      %508 = vmatpush1.bf16.msra.mxu0 0
      %509 = vmatprep.subr.bf16.mxu0 0
      %510 = vmatpush1.bf16.msra.mxu0 0
      %511 = vmatprep.subr.bf16.mxu0 0
      %512 = vmatpush1.bf16.msra.mxu0 0
      %513 = vmatprep.subr.bf16.mxu0 0
      %514 = vmatpush1.bf16.msra.mxu0 0
      %515 = vmatprep.subr.bf16.mxu0 0
      %516 = vmatpush1.bf16.msra.mxu0 0
      %517 = vmatprep.subr.bf16.mxu0 0
      %518 = vmatpush1.bf16.msra.mxu0 0
      %519 = vmatprep.subr.bf16.mxu0 0
      %520 = vmatpush1.bf16.msra.mxu0 0
      %521 = vmatprep.subr.bf16.mxu0 0
      %522 = vmatpush1.bf16.msra.mxu0 0
      %523 = vmatprep.subr.bf16.mxu0 0
      %524 = vmatpush1.bf16.msra.mxu0 0
      %525 = vmatprep.subr.bf16.mxu0 0
      %526 = vmatpush1.bf16.msra.mxu0 0
      %527 = vmatprep.subr.bf16.mxu0 0
      %528 = vmatpush1.bf16.msra.mxu0 0
      %529 = vmatprep.subr.bf16.mxu0 0
      %530 = vmatpush1.bf16.msra.mxu0 0
      %531 = vmatprep.mubr.bf16.mxu0 0
      %532 = vmatmul.mubr.bf16.gmra.mrb[0].mxu0 %v476
      %v533 = vpop.f32.mrb[0].mxu0
      %v534 = vadd.f32 0.0, %v533
      %v535 = vpop.f32.mrb[0].mxu0
      %v536 = vpop.f32.mrb[0].mxu0
      %v537 = vadd.f32 0.0, %v536
      %v538 = vpop.f32.mrb[0].mxu0
      %539 = vmatprep.mubr.bf16.mxu0 0
      %540 = vmatmul.mubr.bf16.gmra.mrb[0].mxu0 %v479
      %v541 = vpop.f32.mrb[0].mxu0
      %v542 = vadd.f32 0.0, %v541
      %v543 = vpop.f32.mrb[0].mxu0
      %v544 = vpop.f32.mrb[0].mxu0
      %v545 = vadd.f32 0.0, %v544
      %v546 = vpop.f32.mrb[0].mxu0
      %547 = vmatprep.mubr.bf16.mxu0 0
      %548 = vmatmul.mubr.bf16.gmra.mrb[0].mxu0 %v482
      %v549 = vpop.f32.mrb[0].mxu0
      %v550 = vadd.f32 0.0, %v549
      %v551 = vpop.f32.mrb[0].mxu0
      %v552 = vpop.f32.mrb[0].mxu0
      %v553 = vadd.f32 0.0, %v552
      %v554 = vpop.f32.mrb[0].mxu0
      %555 = vmatprep.mubr.bf16.mxu0 0
      %556 = vmatmul.mubr.bf16.gmra.mrb[0].mxu0 %v485
      %v557 = vpop.f32.mrb[0].mxu0
      %v558 = vadd.f32 0.0, %v557
      %v559 = vpop.f32.mrb[0].mxu0
      %v560 = vpop.f32.mrb[0].mxu0
      %v561 = vadd.f32 0.0, %v560
      %v562 = vpop.f32.mrb[0].mxu0
      %563 = vmatprep.mubr.bf16.mxu0 0
      %564 = vmatmul.mubr.bf16.gmra.mrb[0].mxu0 %v488
      %v565 = vpop.f32.mrb[0].mxu0
      %v566 = vadd.f32 0.0, %v565
      %v567 = vpop.f32.mrb[0].mxu0
      %v568 = vpop.f32.mrb[0].mxu0
      %v569 = vadd.f32 0.0, %v568
      %v570 = vpop.f32.mrb[0].mxu0
      %571 = vmatprep.mubr.bf16.mxu0 0
      %572 = vmatmul.mubr.bf16.gmra.mrb[0].mxu0 %v491
      %v573 = vpop.f32.mrb[0].mxu0
      %v574 = vadd.f32 0.0, %v573
      %v575 = vpop.f32.mrb[0].mxu0
      %v576 = vpop.f32.mrb[0].mxu0
      %v577 = vadd.f32 0.0, %v576
      %v578 = vpop.f32.mrb[0].mxu0
      %579 = vmatprep.mubr.bf16.mxu0 0
      %580 = vmatmul.mubr.bf16.gmra.mrb[0].mxu0 %v494
      %v581 = vpop.f32.mrb[0].mxu0
      %v582 = vadd.f32 0.0, %v581
      %v583 = vpop.f32.mrb[0].mxu0
      %v584 = vpop.f32.mrb[0].mxu0
      %v585 = vadd.f32 0.0, %v584
      %v586 = vpop.f32.mrb[0].mxu0
      %587 = vmatprep.mubr.bf16.mxu0 0
      %588 = vmatmul.mubr.bf16.gmra.mrb[0].mxu0 %v497
      %v589 = vpop.f32.mrb[0].mxu0
      %v590 = vadd.f32 0.0, %v589
      %v591 = vpop.f32.mrb[0].mxu0
      %v592 = vpop.f32.mrb[0].mxu0
      %v593 = vadd.f32 0.0, %v592
      %v594 = vpop.f32.mrb[0].mxu0
      %595 = vdwg.mxu0
      %v612 = vunpack.c.l.b16 %v184
      %v613 = vunpack.c.l.b16 %v185
      %v614 = vunpack.c.l.b16 %v187
      %v615 = vunpack.c.l.b16 %v188
      %v616 = vunpack.c.l.b16 %v190
      %v617 = vunpack.c.l.b16 %v191
      %v618 = vunpack.c.l.b16 %v193
      %v619 = vunpack.c.l.b16 %v194
      %v620 = vunpack.c.l.b16 %v196
      %v621 = vunpack.c.l.b16 %v197
      %v622 = vunpack.c.l.b16 %v199
      %v623 = vunpack.c.l.b16 %v200
      %v624 = vunpack.c.l.b16 %v202
      %v625 = vunpack.c.l.b16 %v203
      %v626 = vunpack.c.l.b16 %v205
      %v627 = vunpack.c.l.b16 %v206
      %v628 = vpack.c.b16 %v613, %v612
      %v629 = vpack.c.b16 %v615, %v614
      %v630 = vpack.c.b16 %v617, %v616
      %v631 = vpack.c.b16 %v619, %v618
      %v632 = vpack.c.b16 %v621, %v620
      %v633 = vpack.c.b16 %v623, %v622
      %v634 = vpack.c.b16 %v625, %v624
      %v635 = vpack.c.b16 %v627, %v626
      %v644 = vunpack.c.l.b16 %v214
      %v645 = vunpack.c.l.b16 %v215
      %v646 = vunpack.c.l.b16 %v216
      %v647 = vunpack.c.l.b16 %v217
      %v648 = vunpack.c.l.b16 %v218
      %v649 = vunpack.c.l.b16 %v219
      %v650 = vunpack.c.l.b16 %v220
      %v651 = vunpack.c.l.b16 %v221
      %v652 = vpack.c.b16 %v645, %v644
      %v653 = vpack.c.b16 %v647, %v646
      %v654 = vpack.c.b16 %v649, %v648
      %v655 = vpack.c.b16 %v651, %v650
      %v661 = vsel %vm474, %v628, 0
      %v664 = vsel %vm474, %v629, 0
      %v667 = vsel %vm474, %v630, 0
      %v670 = vsel %vm474, %v631, 0
      %v673 = vsel %vm474, %v632, 0
      %v676 = vsel %vm474, %v633, 0
      %v679 = vsel %vm474, %v634, 0
      %v682 = vsel %vm474, %v635, 0
      %684 = vmatprep.subr.bf16.mxu0 0
      %685 = vmatpush1.bf16.msra.mxu0 %v652
      %686 = vmatprep.subr.bf16.mxu0 0
      %687 = vmatpush1.bf16.msra.mxu0 %v653
      %688 = vmatprep.subr.bf16.mxu0 0
      %689 = vmatpush1.bf16.msra.mxu0 %v654
      %690 = vmatprep.subr.bf16.mxu0 0
      %691 = vmatpush1.bf16.msra.mxu0 %v655
      %692 = vmatprep.subr.bf16.mxu0 0
      %693 = vmatpush1.bf16.msra.mxu0 0
      %694 = vmatprep.subr.bf16.mxu0 0
      %695 = vmatpush1.bf16.msra.mxu0 0
      %696 = vmatprep.subr.bf16.mxu0 0
      %697 = vmatpush1.bf16.msra.mxu0 0
      %698 = vmatprep.subr.bf16.mxu0 0
      %699 = vmatpush1.bf16.msra.mxu0 0
      %700 = vmatprep.subr.bf16.mxu0 0
      %701 = vmatpush1.bf16.msra.mxu0 0
      %702 = vmatprep.subr.bf16.mxu0 0
      %703 = vmatpush1.bf16.msra.mxu0 0
      %704 = vmatprep.subr.bf16.mxu0 0
      %705 = vmatpush1.bf16.msra.mxu0 0
      %706 = vmatprep.subr.bf16.mxu0 0
      %707 = vmatpush1.bf16.msra.mxu0 0
      %708 = vmatprep.subr.bf16.mxu0 0
      %709 = vmatpush1.bf16.msra.mxu0 0
      %710 = vmatprep.subr.bf16.mxu0 0
      %711 = vmatpush1.bf16.msra.mxu0 0
      %712 = vmatprep.subr.bf16.mxu0 0
      %713 = vmatpush1.bf16.msra.mxu0 0
      %714 = vmatprep.subr.bf16.mxu0 0
      %715 = vmatpush1.bf16.msra.mxu0 0
      %716 = vmatprep.mubr.bf16.mxu0 0
      %717 = vmatmul.mubr.bf16.gmra.mrb[0].mxu0 %v661
      %v718 = vpop.f32.mrb[0].mxu0
      %v719 = vadd.f32 %v534, %v718
      %v720 = vpop.f32.mrb[0].mxu0
      %v721 = vpop.f32.mrb[0].mxu0
      %v722 = vadd.f32 %v537, %v721
      %v723 = vpop.f32.mrb[0].mxu0
      %724 = vmatprep.mubr.bf16.mxu0 0
      %725 = vmatmul.mubr.bf16.gmra.mrb[0].mxu0 %v664
      %v726 = vpop.f32.mrb[0].mxu0
      %v727 = vadd.f32 %v542, %v726
      %v728 = vpop.f32.mrb[0].mxu0
      %v729 = vpop.f32.mrb[0].mxu0
      %v730 = vadd.f32 %v545, %v729
      %v731 = vpop.f32.mrb[0].mxu0
      %732 = vmatprep.mubr.bf16.mxu0 0
      %733 = vmatmul.mubr.bf16.gmra.mrb[0].mxu0 %v667
      %v734 = vpop.f32.mrb[0].mxu0
      %v735 = vadd.f32 %v550, %v734
      %v736 = vpop.f32.mrb[0].mxu0
      %v737 = vpop.f32.mrb[0].mxu0
      %v738 = vadd.f32 %v553, %v737
      %v739 = vpop.f32.mrb[0].mxu0
      %740 = vmatprep.mubr.bf16.mxu0 0
      %741 = vmatmul.mubr.bf16.gmra.mrb[0].mxu0 %v670
      %v742 = vpop.f32.mrb[0].mxu0
      %v743 = vadd.f32 %v558, %v742
      %v744 = vpop.f32.mrb[0].mxu0
      %v745 = vpop.f32.mrb[0].mxu0
      %v746 = vadd.f32 %v561, %v745
      %v747 = vpop.f32.mrb[0].mxu0
      %748 = vmatprep.mubr.bf16.mxu0 0
      %749 = vmatmul.mubr.bf16.gmra.mrb[0].mxu0 %v673
      %v750 = vpop.f32.mrb[0].mxu0
      %v751 = vadd.f32 %v566, %v750
      %v752 = vpop.f32.mrb[0].mxu0
      %v753 = vpop.f32.mrb[0].mxu0
      %v754 = vadd.f32 %v569, %v753
      %v755 = vpop.f32.mrb[0].mxu0
      %756 = vmatprep.mubr.bf16.mxu0 0
      %757 = vmatmul.mubr.bf16.gmra.mrb[0].mxu0 %v676
      %v758 = vpop.f32.mrb[0].mxu0
      %v759 = vadd.f32 %v574, %v758
      %v760 = vpop.f32.mrb[0].mxu0
      %v761 = vpop.f32.mrb[0].mxu0
      %v762 = vadd.f32 %v577, %v761
      %v763 = vpop.f32.mrb[0].mxu0
      %764 = vmatprep.mubr.bf16.mxu0 0
      %765 = vmatmul.mubr.bf16.gmra.mrb[0].mxu0 %v679
      %v766 = vpop.f32.mrb[0].mxu0
      %v767 = vadd.f32 %v582, %v766
      %v768 = vpop.f32.mrb[0].mxu0
      %v769 = vpop.f32.mrb[0].mxu0
      %v770 = vadd.f32 %v585, %v769
      %v771 = vpop.f32.mrb[0].mxu0
      %772 = vmatprep.mubr.bf16.mxu0 0
      %773 = vmatmul.mubr.bf16.gmra.mrb[0].mxu0 %v682
      %v774 = vpop.f32.mrb[0].mxu0
      %v775 = vadd.f32 %v590, %v774
      %v776 = vpop.f32.mrb[0].mxu0
      %v777 = vpop.f32.mrb[0].mxu0
      %v778 = vadd.f32 %v593, %v777
      %v779 = vpop.f32.mrb[0].mxu0
      %780 = vdwg.mxu0
      %vm789 = vcmask 1042432
      %vm790 = vcmask 1046532
      %vm791 = vmor %vm789, %vm790
      %v792 = vrot.slane %v184, 5
      %v793 = vrot.slane %v792, 4
      %v794 = vrot.slane %v185, 5
      %v795 = vsel %vm791, %v793, %v794
      %v796 = vrot.slane %v794, 4
      %v797 = vrot.slane %v186, 5
      %v798 = vsel %vm791, %v796, %v797
      %v799 = vrot.slane %v187, 5
      %v800 = vrot.slane %v799, 4
      %v801 = vrot.slane %v188, 5
      %v802 = vsel %vm791, %v800, %v801
      %v803 = vrot.slane %v801, 4
      %v804 = vrot.slane %v189, 5
      %v805 = vsel %vm791, %v803, %v804
      %v806 = vrot.slane %v190, 5
      %v807 = vrot.slane %v806, 4
      %v808 = vrot.slane %v191, 5
      %v809 = vsel %vm791, %v807, %v808
      %v810 = vrot.slane %v808, 4
      %v811 = vrot.slane %v192, 5
      %v812 = vsel %vm791, %v810, %v811
      %v813 = vrot.slane %v193, 5
      %v814 = vrot.slane %v813, 4
      %v815 = vrot.slane %v194, 5
      %v816 = vsel %vm791, %v814, %v815
      %v817 = vrot.slane %v815, 4
      %v818 = vrot.slane %v195, 5
      %v819 = vsel %vm791, %v817, %v818
      %v820 = vrot.slane %v196, 5
      %v821 = vrot.slane %v820, 4
      %v822 = vrot.slane %v197, 5
      %v823 = vsel %vm791, %v821, %v822
      %v824 = vrot.slane %v822, 4
      %v825 = vrot.slane %v198, 5
      %v826 = vsel %vm791, %v824, %v825
      %v827 = vrot.slane %v199, 5
      %v828 = vrot.slane %v827, 4
      %v829 = vrot.slane %v200, 5
      %v830 = vsel %vm791, %v828, %v829
      %v831 = vrot.slane %v829, 4
      %v832 = vrot.slane %v201, 5
      %v833 = vsel %vm791, %v831, %v832
      %v834 = vrot.slane %v202, 5
      %v835 = vrot.slane %v834, 4
      %v836 = vrot.slane %v203, 5
      %v837 = vsel %vm791, %v835, %v836
      %v838 = vrot.slane %v836, 4
      %v839 = vrot.slane %v204, 5
      %v840 = vsel %vm791, %v838, %v839
      %v841 = vrot.slane %v205, 5
      %v842 = vrot.slane %v841, 4
      %v843 = vrot.slane %v206, 5
      %v844 = vsel %vm791, %v842, %v843
      %v845 = vrot.slane %v843, 4
      %v846 = vrot.slane %v207, 5
      %v847 = vsel %vm791, %v845, %v846
      %s848 = scalar_lea.vmem %s1, 64
      %v849 = vld [vmem:[%s848] sm:$0xf]
      %v850 = vld [vmem:[%s848 + $0x4] sm:$0xf]
      %v851 = vld [vmem:[%s848 + $0x8] sm:$0xf]
      %v852 = vld [vmem:[%s848 + $0xc] sm:$0xf]
      %v853 = vld [vmem:[%s848 + $0x10] sm:$0xf]
      %v854 = vld [vmem:[%s848 + $0x14] sm:$0xf]
      %v855 = vld [vmem:[%s848 + $0x18] sm:$0xf]
      %v856 = vld [vmem:[%s848 + $0x1c] sm:$0xf]
      %v857 = vunpack.c.l.b16 %v795
      %v858 = vunpack.c.l.b16 %v798
      %v859 = vunpack.c.l.b16 %v802
      %v860 = vunpack.c.l.b16 %v805
      %v861 = vunpack.c.l.b16 %v809
      %v862 = vunpack.c.l.b16 %v812
      %v863 = vunpack.c.l.b16 %v816
      %v864 = vunpack.c.l.b16 %v819
      %v865 = vunpack.c.l.b16 %v823
      %v866 = vunpack.c.l.b16 %v826
      %v867 = vunpack.c.l.b16 %v830
      %v868 = vunpack.c.l.b16 %v833
      %v869 = vunpack.c.l.b16 %v837
      %v870 = vunpack.c.l.b16 %v840
      %v871 = vunpack.c.l.b16 %v844
      %v872 = vunpack.c.l.b16 %v847
      %v873 = vpack.c.b16 %v858, %v857
      %v874 = vpack.c.b16 %v860, %v859
      %v875 = vpack.c.b16 %v862, %v861
      %v876 = vpack.c.b16 %v864, %v863
      %v877 = vpack.c.b16 %v866, %v865
      %v878 = vpack.c.b16 %v868, %v867
      %v879 = vpack.c.b16 %v870, %v869
      %v880 = vpack.c.b16 %v872, %v871
      %v889 = vunpack.c.l.b16 %v849
      %v890 = vunpack.c.l.b16 %v850
      %v891 = vunpack.c.l.b16 %v851
      %v892 = vunpack.c.l.b16 %v852
      %v893 = vunpack.c.l.b16 %v853
      %v894 = vunpack.c.l.b16 %v854
      %v895 = vunpack.c.l.b16 %v855
      %v896 = vunpack.c.l.b16 %v856
      %v897 = vpack.c.b16 %v890, %v889
      %v898 = vpack.c.b16 %v892, %v891
      %v899 = vpack.c.b16 %v894, %v893
      %v900 = vpack.c.b16 %v896, %v895
      %v906 = vsel %vm474, %v873, 0
      %v909 = vsel %vm474, %v874, 0
      %v912 = vsel %vm474, %v875, 0
      %v915 = vsel %vm474, %v876, 0
      %v918 = vsel %vm474, %v877, 0
      %v921 = vsel %vm474, %v878, 0
      %v924 = vsel %vm474, %v879, 0
      %v927 = vsel %vm474, %v880, 0
      %929 = vmatprep.subr.bf16.mxu0 0
      %930 = vmatpush1.bf16.msra.mxu0 %v897
      %931 = vmatprep.subr.bf16.mxu0 0
      %932 = vmatpush1.bf16.msra.mxu0 %v898
      %933 = vmatprep.subr.bf16.mxu0 0
      %934 = vmatpush1.bf16.msra.mxu0 %v899
      %935 = vmatprep.subr.bf16.mxu0 0
      %936 = vmatpush1.bf16.msra.mxu0 %v900
      %937 = vmatprep.subr.bf16.mxu0 0
      %938 = vmatpush1.bf16.msra.mxu0 0
      %939 = vmatprep.subr.bf16.mxu0 0
      %940 = vmatpush1.bf16.msra.mxu0 0
      %941 = vmatprep.subr.bf16.mxu0 0
      %942 = vmatpush1.bf16.msra.mxu0 0
      %943 = vmatprep.subr.bf16.mxu0 0
      %944 = vmatpush1.bf16.msra.mxu0 0
      %945 = vmatprep.subr.bf16.mxu0 0
      %946 = vmatpush1.bf16.msra.mxu0 0
      %947 = vmatprep.subr.bf16.mxu0 0
      %948 = vmatpush1.bf16.msra.mxu0 0
      %949 = vmatprep.subr.bf16.mxu0 0
      %950 = vmatpush1.bf16.msra.mxu0 0
      %951 = vmatprep.subr.bf16.mxu0 0
      %952 = vmatpush1.bf16.msra.mxu0 0
      %953 = vmatprep.subr.bf16.mxu0 0
      %954 = vmatpush1.bf16.msra.mxu0 0
      %955 = vmatprep.subr.bf16.mxu0 0
      %956 = vmatpush1.bf16.msra.mxu0 0
      %957 = vmatprep.subr.bf16.mxu0 0
      %958 = vmatpush1.bf16.msra.mxu0 0
      %959 = vmatprep.subr.bf16.mxu0 0
      %960 = vmatpush1.bf16.msra.mxu0 0
      %961 = vmatprep.mubr.bf16.mxu0 0
      %962 = vmatmul.mubr.bf16.gmra.mrb[0].mxu0 %v906
      %v963 = vpop.f32.mrb[0].mxu0
      %v964 = vadd.f32 0.0, %v963
      %v965 = vpop.f32.mrb[0].mxu0
      %v966 = vpop.f32.mrb[0].mxu0
      %v967 = vadd.f32 0.0, %v966
      %v968 = vpop.f32.mrb[0].mxu0
      %969 = vmatprep.mubr.bf16.mxu0 0
      %970 = vmatmul.mubr.bf16.gmra.mrb[0].mxu0 %v909
      %v971 = vpop.f32.mrb[0].mxu0
      %v972 = vadd.f32 0.0, %v971
      %v973 = vpop.f32.mrb[0].mxu0
      %v974 = vpop.f32.mrb[0].mxu0
      %v975 = vadd.f32 0.0, %v974
      %v976 = vpop.f32.mrb[0].mxu0
      %977 = vmatprep.mubr.bf16.mxu0 0
      %978 = vmatmul.mubr.bf16.gmra.mrb[0].mxu0 %v912
      %v979 = vpop.f32.mrb[0].mxu0
      %v980 = vadd.f32 0.0, %v979
      %v981 = vpop.f32.mrb[0].mxu0
      %v982 = vpop.f32.mrb[0].mxu0
      %v983 = vadd.f32 0.0, %v982
      %v984 = vpop.f32.mrb[0].mxu0
      %985 = vmatprep.mubr.bf16.mxu0 0
      %986 = vmatmul.mubr.bf16.gmra.mrb[0].mxu0 %v915
      %v987 = vpop.f32.mrb[0].mxu0
      %v988 = vadd.f32 0.0, %v987
      %v989 = vpop.f32.mrb[0].mxu0
      %v990 = vpop.f32.mrb[0].mxu0
      %v991 = vadd.f32 0.0, %v990
      %v992 = vpop.f32.mrb[0].mxu0
      %993 = vmatprep.mubr.bf16.mxu0 0
      %994 = vmatmul.mubr.bf16.gmra.mrb[0].mxu0 %v918
      %v995 = vpop.f32.mrb[0].mxu0
      %v996 = vadd.f32 0.0, %v995
      %v997 = vpop.f32.mrb[0].mxu0
      %v998 = vpop.f32.mrb[0].mxu0
      %v999 = vadd.f32 0.0, %v998
      %v1000 = vpop.f32.mrb[0].mxu0
      %1001 = vmatprep.mubr.bf16.mxu0 0
      %1002 = vmatmul.mubr.bf16.gmra.mrb[0].mxu0 %v921
      %v1003 = vpop.f32.mrb[0].mxu0
      %v1004 = vadd.f32 0.0, %v1003
      %v1005 = vpop.f32.mrb[0].mxu0
      %v1006 = vpop.f32.mrb[0].mxu0
      %v1007 = vadd.f32 0.0, %v1006
      %v1008 = vpop.f32.mrb[0].mxu0
      %1009 = vmatprep.mubr.bf16.mxu0 0
      %1010 = vmatmul.mubr.bf16.gmra.mrb[0].mxu0 %v924
      %v1011 = vpop.f32.mrb[0].mxu0
      %v1012 = vadd.f32 0.0, %v1011
      %v1013 = vpop.f32.mrb[0].mxu0
      %v1014 = vpop.f32.mrb[0].mxu0
      %v1015 = vadd.f32 0.0, %v1014
      %v1016 = vpop.f32.mrb[0].mxu0
      %1017 = vmatprep.mubr.bf16.mxu0 0
      %1018 = vmatmul.mubr.bf16.gmra.mrb[0].mxu0 %v927
      %v1019 = vpop.f32.mrb[0].mxu0
      %v1020 = vadd.f32 0.0, %v1019
      %v1021 = vpop.f32.mrb[0].mxu0
      %v1022 = vpop.f32.mrb[0].mxu0
      %v1023 = vadd.f32 0.0, %v1022
      %v1024 = vpop.f32.mrb[0].mxu0
      %1025 = vdwg.mxu0
      %v1026 = vadd.f32 %v719, %v964
      %v1027 = vadd.f32 %v722, %v967
      %v1028 = vadd.f32 %v727, %v972
      %v1029 = vadd.f32 %v730, %v975
      %v1030 = vadd.f32 %v735, %v980
      %v1031 = vadd.f32 %v738, %v983
      %v1032 = vadd.f32 %v743, %v988
      %v1033 = vadd.f32 %v746, %v991
      %v1034 = vadd.f32 %v751, %v996
      %v1035 = vadd.f32 %v754, %v999
      %v1036 = vadd.f32 %v759, %v1004
      %v1037 = vadd.f32 %v762, %v1007
      %v1038 = vadd.f32 %v767, %v1012
      %v1039 = vadd.f32 %v770, %v1015
      %v1040 = vadd.f32 %v775, %v1020
      %v1041 = vadd.f32 %v778, %v1023
      %s1042 = scalar_lea.vmem %s1, 96
      %v1043 = vld [vmem:[%s1042] sm:$0xf]
      %v1044 = vld [vmem:[%s1042 + $0x4] sm:$0xf]
      %v1045 = vld [vmem:[%s1042 + $0x8] sm:$0xf]
      %v1046 = vld [vmem:[%s1042 + $0xc] sm:$0xf]
      %v1047 = vld [vmem:[%s1042 + $0x10] sm:$0xf]
      %v1048 = vld [vmem:[%s1042 + $0x14] sm:$0xf]
      %v1049 = vld [vmem:[%s1042 + $0x18] sm:$0xf]
      %v1050 = vld [vmem:[%s1042 + $0x1c] sm:$0xf]
      %v1053 = vunpack.c.l.b16 %v208
      %v1054 = vunpack.c.l.b16 %v209
      %v1055 = vpack.c.b16 %v1054, %v1053
      %v1064 = vunpack.c.l.b16 %v1043
      %v1065 = vunpack.c.l.b16 %v1044
      %v1066 = vunpack.c.l.b16 %v1045
      %v1067 = vunpack.c.l.b16 %v1046
      %v1068 = vunpack.c.l.b16 %v1047
      %v1069 = vunpack.c.l.b16 %v1048
      %v1070 = vunpack.c.l.b16 %v1049
      %v1071 = vunpack.c.l.b16 %v1050
      %v1072 = vpack.c.b16 %v1065, %v1064
      %v1073 = vpack.c.b16 %v1067, %v1066
      %v1074 = vpack.c.b16 %v1069, %v1068
      %v1075 = vpack.c.b16 %v1071, %v1070
      %v1081 = vsel %vm474, %v1055, 0
      %1083 = vmatprep.subr.bf16.mxu0 0
      %1084 = vmatpush1.bf16.msra.mxu0 %v1072
      %1085 = vmatprep.subr.bf16.mxu0 0
      %1086 = vmatpush1.bf16.msra.mxu0 %v1073
      %1087 = vmatprep.subr.bf16.mxu0 0
      %1088 = vmatpush1.bf16.msra.mxu0 %v1074
      %1089 = vmatprep.subr.bf16.mxu0 0
      %1090 = vmatpush1.bf16.msra.mxu0 %v1075
      %1091 = vmatprep.subr.bf16.mxu0 0
      %1092 = vmatpush1.bf16.msra.mxu0 0
      %1093 = vmatprep.subr.bf16.mxu0 0
      %1094 = vmatpush1.bf16.msra.mxu0 0
      %1095 = vmatprep.subr.bf16.mxu0 0
      %1096 = vmatpush1.bf16.msra.mxu0 0
      %1097 = vmatprep.subr.bf16.mxu0 0
      %1098 = vmatpush1.bf16.msra.mxu0 0
      %1099 = vmatprep.subr.bf16.mxu0 0
      %1100 = vmatpush1.bf16.msra.mxu0 0
      %1101 = vmatprep.subr.bf16.mxu0 0
      %1102 = vmatpush1.bf16.msra.mxu0 0
      %1103 = vmatprep.subr.bf16.mxu0 0
      %1104 = vmatpush1.bf16.msra.mxu0 0
      %1105 = vmatprep.subr.bf16.mxu0 0
      %1106 = vmatpush1.bf16.msra.mxu0 0
      %1107 = vmatprep.subr.bf16.mxu0 0
      %1108 = vmatpush1.bf16.msra.mxu0 0
      %1109 = vmatprep.subr.bf16.mxu0 0
      %1110 = vmatpush1.bf16.msra.mxu0 0
      %1111 = vmatprep.subr.bf16.mxu0 0
      %1112 = vmatpush1.bf16.msra.mxu0 0
      %1113 = vmatprep.subr.bf16.mxu0 0
      %1114 = vmatpush1.bf16.msra.mxu0 0
      %1115 = vmatprep.mubr.bf16.mxu0 0
      %1116 = vmatmul.mubr.bf16.gmra.mrb[0].mxu0 %v664
      %v1117 = vpop.f32.mrb[0].mxu0
      %v1118 = vadd.f32 0.0, %v1117
      %v1119 = vpop.f32.mrb[0].mxu0
      %v1120 = vpop.f32.mrb[0].mxu0
      %v1121 = vadd.f32 0.0, %v1120
      %v1122 = vpop.f32.mrb[0].mxu0
      %1123 = vmatprep.mubr.bf16.mxu0 0
      %1124 = vmatmul.mubr.bf16.gmra.mrb[0].mxu0 %v667
      %v1125 = vpop.f32.mrb[0].mxu0
      %v1126 = vadd.f32 0.0, %v1125
      %v1127 = vpop.f32.mrb[0].mxu0
      %v1128 = vpop.f32.mrb[0].mxu0
      %v1129 = vadd.f32 0.0, %v1128
      %v1130 = vpop.f32.mrb[0].mxu0
      %1131 = vmatprep.mubr.bf16.mxu0 0
      %1132 = vmatmul.mubr.bf16.gmra.mrb[0].mxu0 %v670
      %v1133 = vpop.f32.mrb[0].mxu0
      %v1134 = vadd.f32 0.0, %v1133
      %v1135 = vpop.f32.mrb[0].mxu0
      %v1136 = vpop.f32.mrb[0].mxu0
      %v1137 = vadd.f32 0.0, %v1136
      %v1138 = vpop.f32.mrb[0].mxu0
      %1139 = vmatprep.mubr.bf16.mxu0 0
      %1140 = vmatmul.mubr.bf16.gmra.mrb[0].mxu0 %v673
      %v1141 = vpop.f32.mrb[0].mxu0
      %v1142 = vadd.f32 0.0, %v1141
      %v1143 = vpop.f32.mrb[0].mxu0
      %v1144 = vpop.f32.mrb[0].mxu0
      %v1145 = vadd.f32 0.0, %v1144
      %v1146 = vpop.f32.mrb[0].mxu0
      %1147 = vmatprep.mubr.bf16.mxu0 0
      %1148 = vmatmul.mubr.bf16.gmra.mrb[0].mxu0 %v676
      %v1149 = vpop.f32.mrb[0].mxu0
      %v1150 = vadd.f32 0.0, %v1149
      %v1151 = vpop.f32.mrb[0].mxu0
      %v1152 = vpop.f32.mrb[0].mxu0
      %v1153 = vadd.f32 0.0, %v1152
      %v1154 = vpop.f32.mrb[0].mxu0
      %1155 = vmatprep.mubr.bf16.mxu0 0
      %1156 = vmatmul.mubr.bf16.gmra.mrb[0].mxu0 %v679
      %v1157 = vpop.f32.mrb[0].mxu0
      %v1158 = vadd.f32 0.0, %v1157
      %v1159 = vpop.f32.mrb[0].mxu0
      %v1160 = vpop.f32.mrb[0].mxu0
      %v1161 = vadd.f32 0.0, %v1160
      %v1162 = vpop.f32.mrb[0].mxu0
      %1163 = vmatprep.mubr.bf16.mxu0 0
      %1164 = vmatmul.mubr.bf16.gmra.mrb[0].mxu0 %v682
      %v1165 = vpop.f32.mrb[0].mxu0
      %v1166 = vadd.f32 0.0, %v1165
      %v1167 = vpop.f32.mrb[0].mxu0
      %v1168 = vpop.f32.mrb[0].mxu0
      %v1169 = vadd.f32 0.0, %v1168
      %v1170 = vpop.f32.mrb[0].mxu0
      %1171 = vmatprep.mubr.bf16.mxu0 0
      %1172 = vmatmul.mubr.bf16.gmra.mrb[0].mxu0 %v1081
      %v1173 = vpop.f32.mrb[0].mxu0
      %v1174 = vadd.f32 0.0, %v1173
      %v1175 = vpop.f32.mrb[0].mxu0
      %v1176 = vpop.f32.mrb[0].mxu0
      %v1177 = vadd.f32 0.0, %v1176
      %v1178 = vpop.f32.mrb[0].mxu0
      %1179 = vdwg.mxu0
      %v1180 = vadd.f32 %v1026, %v1118
      %v1181 = vadd.f32 %v1027, %v1121
      %v1182 = vadd.f32 %v1028, %v1126
      %v1183 = vadd.f32 %v1029, %v1129
      %v1184 = vadd.f32 %v1030, %v1134
      %v1185 = vadd.f32 %v1031, %v1137
      %v1186 = vadd.f32 %v1032, %v1142
      %v1187 = vadd.f32 %v1033, %v1145
      %v1188 = vadd.f32 %v1034, %v1150
      %v1189 = vadd.f32 %v1035, %v1153
      %v1190 = vadd.f32 %v1036, %v1158
      %v1191 = vadd.f32 %v1037, %v1161
      %v1192 = vadd.f32 %v1038, %v1166
      %v1193 = vadd.f32 %v1039, %v1169
      %v1194 = vadd.f32 %v1040, %v1174
      %v1195 = vadd.f32 %v1041, %v1177
      %v1197 = vshrl.u32 %v208, 16
      %v1199 = vrot.slane %v1197, 4
      %v1200 = vshll.u32 %v208, 16
      %v1202 = vrot.slane %v1200, 5
      %v1203 = vor.u32 %v1199, %v1202
      %v1204 = vrot.slane %v1203, 4
      %v1206 = vshll.u32 %v209, 16
      %v1208 = vrot.slane %v1206, 5
      %v1209 = vsel %vm224, %v1204, %v1208
      %v1210 = vshrl.u32 %v209, 16
      %v1212 = vrot.slane %v1210, 4
      %v1213 = vor.u32 %v1212, %v1208
      %v1214 = vrot.slane %v1213, 4
      %v1216 = vshll.u32 %v210, 16
      %v1218 = vrot.slane %v1216, 5
      %v1219 = vsel %vm224, %v1214, %v1218
      %s1220 = scalar_lea.vmem %s1, 128
      %v1221 = vld [vmem:[%s1220] sm:$0xf]
      %v1222 = vld [vmem:[%s1220 + $0x4] sm:$0xf]
      %v1223 = vld [vmem:[%s1220 + $0x8] sm:$0xf]
      %v1224 = vld [vmem:[%s1220 + $0xc] sm:$0xf]
      %v1225 = vld [vmem:[%s1220 + $0x10] sm:$0xf]
      %v1226 = vld [vmem:[%s1220 + $0x14] sm:$0xf]
      %v1227 = vld [vmem:[%s1220 + $0x18] sm:$0xf]
      %v1228 = vld [vmem:[%s1220 + $0x1c] sm:$0xf]
      %v1229 = vunpack.c.l.b16 %v1209
      %v1230 = vunpack.c.l.b16 %v1219
      %v1231 = vpack.c.b16 %v1230, %v1229
      %v1240 = vunpack.c.l.b16 %v1221
      %v1241 = vunpack.c.l.b16 %v1222
      %v1242 = vunpack.c.l.b16 %v1223
      %v1243 = vunpack.c.l.b16 %v1224
      %v1244 = vunpack.c.l.b16 %v1225
      %v1245 = vunpack.c.l.b16 %v1226
      %v1246 = vunpack.c.l.b16 %v1227
      %v1247 = vunpack.c.l.b16 %v1228
      %v1248 = vpack.c.b16 %v1241, %v1240
      %v1249 = vpack.c.b16 %v1243, %v1242
      %v1250 = vpack.c.b16 %v1245, %v1244
      %v1251 = vpack.c.b16 %v1247, %v1246
      %v1257 = vsel %vm474, %v1231, 0
      %1259 = vmatprep.subr.bf16.mxu0 0
      %1260 = vmatpush1.bf16.msra.mxu0 %v1248
      %1261 = vmatprep.subr.bf16.mxu0 0
      %1262 = vmatpush1.bf16.msra.mxu0 %v1249
      %1263 = vmatprep.subr.bf16.mxu0 0
      %1264 = vmatpush1.bf16.msra.mxu0 %v1250
      %1265 = vmatprep.subr.bf16.mxu0 0
      %1266 = vmatpush1.bf16.msra.mxu0 %v1251
      %1267 = vmatprep.subr.bf16.mxu0 0
      %1268 = vmatpush1.bf16.msra.mxu0 0
      %1269 = vmatprep.subr.bf16.mxu0 0
      %1270 = vmatpush1.bf16.msra.mxu0 0
      %1271 = vmatprep.subr.bf16.mxu0 0
      %1272 = vmatpush1.bf16.msra.mxu0 0
      %1273 = vmatprep.subr.bf16.mxu0 0
      %1274 = vmatpush1.bf16.msra.mxu0 0
      %1275 = vmatprep.subr.bf16.mxu0 0
      %1276 = vmatpush1.bf16.msra.mxu0 0
      %1277 = vmatprep.subr.bf16.mxu0 0
      %1278 = vmatpush1.bf16.msra.mxu0 0
      %1279 = vmatprep.subr.bf16.mxu0 0
      %1280 = vmatpush1.bf16.msra.mxu0 0
      %1281 = vmatprep.subr.bf16.mxu0 0
      %1282 = vmatpush1.bf16.msra.mxu0 0
      %1283 = vmatprep.subr.bf16.mxu0 0
      %1284 = vmatpush1.bf16.msra.mxu0 0
      %1285 = vmatprep.subr.bf16.mxu0 0
      %1286 = vmatpush1.bf16.msra.mxu0 0
      %1287 = vmatprep.subr.bf16.mxu0 0
      %1288 = vmatpush1.bf16.msra.mxu0 0
      %1289 = vmatprep.subr.bf16.mxu0 0
      %1290 = vmatpush1.bf16.msra.mxu0 0
      %1291 = vmatprep.mubr.bf16.mxu0 0
      %1292 = vmatmul.mubr.bf16.gmra.mrb[0].mxu0 %v479
      %v1293 = vpop.f32.mrb[0].mxu0
      %v1294 = vadd.f32 0.0, %v1293
      %v1295 = vpop.f32.mrb[0].mxu0
      %v1296 = vpop.f32.mrb[0].mxu0
      %v1297 = vadd.f32 0.0, %v1296
      %v1298 = vpop.f32.mrb[0].mxu0
      %1299 = vmatprep.mubr.bf16.mxu0 0
      %1300 = vmatmul.mubr.bf16.gmra.mrb[0].mxu0 %v482
      %v1301 = vpop.f32.mrb[0].mxu0
      %v1302 = vadd.f32 0.0, %v1301
      %v1303 = vpop.f32.mrb[0].mxu0
      %v1304 = vpop.f32.mrb[0].mxu0
      %v1305 = vadd.f32 0.0, %v1304
      %v1306 = vpop.f32.mrb[0].mxu0
      %1307 = vmatprep.mubr.bf16.mxu0 0
      %1308 = vmatmul.mubr.bf16.gmra.mrb[0].mxu0 %v485
      %v1309 = vpop.f32.mrb[0].mxu0
      %v1310 = vadd.f32 0.0, %v1309
      %v1311 = vpop.f32.mrb[0].mxu0
      %v1312 = vpop.f32.mrb[0].mxu0
      %v1313 = vadd.f32 0.0, %v1312
      %v1314 = vpop.f32.mrb[0].mxu0
      %1315 = vmatprep.mubr.bf16.mxu0 0
      %1316 = vmatmul.mubr.bf16.gmra.mrb[0].mxu0 %v488
      %v1317 = vpop.f32.mrb[0].mxu0
      %v1318 = vadd.f32 0.0, %v1317
      %v1319 = vpop.f32.mrb[0].mxu0
      %v1320 = vpop.f32.mrb[0].mxu0
      %v1321 = vadd.f32 0.0, %v1320
      %v1322 = vpop.f32.mrb[0].mxu0
      %1323 = vmatprep.mubr.bf16.mxu0 0
      %1324 = vmatmul.mubr.bf16.gmra.mrb[0].mxu0 %v491
      %v1325 = vpop.f32.mrb[0].mxu0
      %v1326 = vadd.f32 0.0, %v1325
      %v1327 = vpop.f32.mrb[0].mxu0
      %v1328 = vpop.f32.mrb[0].mxu0
      %v1329 = vadd.f32 0.0, %v1328
      %v1330 = vpop.f32.mrb[0].mxu0
      %1331 = vmatprep.mubr.bf16.mxu0 0
      %1332 = vmatmul.mubr.bf16.gmra.mrb[0].mxu0 %v494
      %v1333 = vpop.f32.mrb[0].mxu0
      %v1334 = vadd.f32 0.0, %v1333
      %v1335 = vpop.f32.mrb[0].mxu0
      %v1336 = vpop.f32.mrb[0].mxu0
      %v1337 = vadd.f32 0.0, %v1336
      %v1338 = vpop.f32.mrb[0].mxu0
      %1339 = vmatprep.mubr.bf16.mxu0 0
      %1340 = vmatmul.mubr.bf16.gmra.mrb[0].mxu0 %v497
      %v1341 = vpop.f32.mrb[0].mxu0
      %v1342 = vadd.f32 0.0, %v1341
      %v1343 = vpop.f32.mrb[0].mxu0
      %v1344 = vpop.f32.mrb[0].mxu0
      %v1345 = vadd.f32 0.0, %v1344
      %v1346 = vpop.f32.mrb[0].mxu0
      %1347 = vmatprep.mubr.bf16.mxu0 0
      %1348 = vmatmul.mubr.bf16.gmra.mrb[0].mxu0 %v1257
      %v1349 = vpop.f32.mrb[0].mxu0
      %v1350 = vadd.f32 0.0, %v1349
      %v1351 = vpop.f32.mrb[0].mxu0
      %v1352 = vpop.f32.mrb[0].mxu0
      %v1353 = vadd.f32 0.0, %v1352
      %v1354 = vpop.f32.mrb[0].mxu0
      %1355 = vdwg.mxu0
      %v1356 = vadd.f32 %v1180, %v1294
      %v1357 = vadd.f32 %v1181, %v1297
      %v1358 = vadd.f32 %v1182, %v1302
      %v1359 = vadd.f32 %v1183, %v1305
      %v1360 = vadd.f32 %v1184, %v1310
      %v1361 = vadd.f32 %v1185, %v1313
      %v1362 = vadd.f32 %v1186, %v1318
      %v1363 = vadd.f32 %v1187, %v1321
      %v1364 = vadd.f32 %v1188, %v1326
      %v1365 = vadd.f32 %v1189, %v1329
      %v1366 = vadd.f32 %v1190, %v1334
      %v1367 = vadd.f32 %v1191, %v1337
      %v1368 = vadd.f32 %v1192, %v1342
      %v1369 = vadd.f32 %v1193, %v1345
      %v1370 = vadd.f32 %v1194, %v1350
      %v1371 = vadd.f32 %v1195, %v1353
      %v1373 = vrot.slane %v208, 5
      %v1374 = vrot.slane %v1373, 4
      %v1375 = vrot.slane %v209, 5
      %v1376 = vsel %vm791, %v1374, %v1375
      %v1377 = vrot.slane %v1375, 4
      %v1378 = vrot.slane %v210, 5
      %v1379 = vsel %vm791, %v1377, %v1378
      %s1380 = scalar_lea.vmem %s1, 160
      %v1381 = vld [vmem:[%s1380] sm:$0xf]
      %v1382 = vld [vmem:[%s1380 + $0x4] sm:$0xf]
      %v1383 = vld [vmem:[%s1380 + $0x8] sm:$0xf]
      %v1384 = vld [vmem:[%s1380 + $0xc] sm:$0xf]
      %v1385 = vld [vmem:[%s1380 + $0x10] sm:$0xf]
      %v1386 = vld [vmem:[%s1380 + $0x14] sm:$0xf]
      %v1387 = vld [vmem:[%s1380 + $0x18] sm:$0xf]
      %v1388 = vld [vmem:[%s1380 + $0x1c] sm:$0xf]
      %v1389 = vunpack.c.l.b16 %v1376
      %v1390 = vunpack.c.l.b16 %v1379
      %v1391 = vpack.c.b16 %v1390, %v1389
      %v1400 = vunpack.c.l.b16 %v1381
      %v1401 = vunpack.c.l.b16 %v1382
      %v1402 = vunpack.c.l.b16 %v1383
      %v1403 = vunpack.c.l.b16 %v1384
      %v1404 = vunpack.c.l.b16 %v1385
      %v1405 = vunpack.c.l.b16 %v1386
      %v1406 = vunpack.c.l.b16 %v1387
      %v1407 = vunpack.c.l.b16 %v1388
      %v1408 = vpack.c.b16 %v1401, %v1400
      %v1409 = vpack.c.b16 %v1403, %v1402
      %v1410 = vpack.c.b16 %v1405, %v1404
      %v1411 = vpack.c.b16 %v1407, %v1406
      %v1417 = vsel %vm474, %v1391, 0
      %1419 = vmatprep.subr.bf16.mxu0 0
      %1420 = vmatpush1.bf16.msra.mxu0 %v1408
      %1421 = vmatprep.subr.bf16.mxu0 0
      %1422 = vmatpush1.bf16.msra.mxu0 %v1409
      %1423 = vmatprep.subr.bf16.mxu0 0
      %1424 = vmatpush1.bf16.msra.mxu0 %v1410
      %1425 = vmatprep.subr.bf16.mxu0 0
      %1426 = vmatpush1.bf16.msra.mxu0 %v1411
      %1427 = vmatprep.subr.bf16.mxu0 0
      %1428 = vmatpush1.bf16.msra.mxu0 0
      %1429 = vmatprep.subr.bf16.mxu0 0
      %1430 = vmatpush1.bf16.msra.mxu0 0
      %1431 = vmatprep.subr.bf16.mxu0 0
      %1432 = vmatpush1.bf16.msra.mxu0 0
      %1433 = vmatprep.subr.bf16.mxu0 0
      %1434 = vmatpush1.bf16.msra.mxu0 0
      %1435 = vmatprep.subr.bf16.mxu0 0
      %1436 = vmatpush1.bf16.msra.mxu0 0
      %1437 = vmatprep.subr.bf16.mxu0 0
      %1438 = vmatpush1.bf16.msra.mxu0 0
      %1439 = vmatprep.subr.bf16.mxu0 0
      %1440 = vmatpush1.bf16.msra.mxu0 0
      %1441 = vmatprep.subr.bf16.mxu0 0
      %1442 = vmatpush1.bf16.msra.mxu0 0
      %1443 = vmatprep.subr.bf16.mxu0 0
      %1444 = vmatpush1.bf16.msra.mxu0 0
      %1445 = vmatprep.subr.bf16.mxu0 0
      %1446 = vmatpush1.bf16.msra.mxu0 0
      %1447 = vmatprep.subr.bf16.mxu0 0
      %1448 = vmatpush1.bf16.msra.mxu0 0
      %1449 = vmatprep.subr.bf16.mxu0 0
      %1450 = vmatpush1.bf16.msra.mxu0 0
      %1451 = vmatprep.mubr.bf16.mxu0 0
      %1452 = vmatmul.mubr.bf16.gmra.mrb[0].mxu0 %v909
      %v1453 = vpop.f32.mrb[0].mxu0
      %v1454 = vadd.f32 0.0, %v1453
      %v1455 = vpop.f32.mrb[0].mxu0
      %v1456 = vpop.f32.mrb[0].mxu0
      %v1457 = vadd.f32 0.0, %v1456
      %v1458 = vpop.f32.mrb[0].mxu0
      %1459 = vmatprep.mubr.bf16.mxu0 0
      %1460 = vmatmul.mubr.bf16.gmra.mrb[0].mxu0 %v912
      %v1461 = vpop.f32.mrb[0].mxu0
      %v1462 = vadd.f32 0.0, %v1461
      %v1463 = vpop.f32.mrb[0].mxu0
      %v1464 = vpop.f32.mrb[0].mxu0
      %v1465 = vadd.f32 0.0, %v1464
      %v1466 = vpop.f32.mrb[0].mxu0
      %1467 = vmatprep.mubr.bf16.mxu0 0
      %1468 = vmatmul.mubr.bf16.gmra.mrb[0].mxu0 %v915
      %v1469 = vpop.f32.mrb[0].mxu0
      %v1470 = vadd.f32 0.0, %v1469
      %v1471 = vpop.f32.mrb[0].mxu0
      %v1472 = vpop.f32.mrb[0].mxu0
      %v1473 = vadd.f32 0.0, %v1472
      %v1474 = vpop.f32.mrb[0].mxu0
      %1475 = vmatprep.mubr.bf16.mxu0 0
      %1476 = vmatmul.mubr.bf16.gmra.mrb[0].mxu0 %v918
      %v1477 = vpop.f32.mrb[0].mxu0
      %v1478 = vadd.f32 0.0, %v1477
      %v1479 = vpop.f32.mrb[0].mxu0
      %v1480 = vpop.f32.mrb[0].mxu0
      %v1481 = vadd.f32 0.0, %v1480
      %v1482 = vpop.f32.mrb[0].mxu0
      %1483 = vmatprep.mubr.bf16.mxu0 0
      %1484 = vmatmul.mubr.bf16.gmra.mrb[0].mxu0 %v921
      %v1485 = vpop.f32.mrb[0].mxu0
      %v1486 = vadd.f32 0.0, %v1485
      %v1487 = vpop.f32.mrb[0].mxu0
      %v1488 = vpop.f32.mrb[0].mxu0
      %v1489 = vadd.f32 0.0, %v1488
      %v1490 = vpop.f32.mrb[0].mxu0
      %1491 = vmatprep.mubr.bf16.mxu0 0
      %1492 = vmatmul.mubr.bf16.gmra.mrb[0].mxu0 %v924
      %v1493 = vpop.f32.mrb[0].mxu0
      %v1494 = vadd.f32 0.0, %v1493
      %v1495 = vpop.f32.mrb[0].mxu0
      %v1496 = vpop.f32.mrb[0].mxu0
      %v1497 = vadd.f32 0.0, %v1496
      %v1498 = vpop.f32.mrb[0].mxu0
      %1499 = vmatprep.mubr.bf16.mxu0 0
      %1500 = vmatmul.mubr.bf16.gmra.mrb[0].mxu0 %v927
      %v1501 = vpop.f32.mrb[0].mxu0
      %v1502 = vadd.f32 0.0, %v1501
      %v1503 = vpop.f32.mrb[0].mxu0
      %v1504 = vpop.f32.mrb[0].mxu0
      %v1505 = vadd.f32 0.0, %v1504
      %v1506 = vpop.f32.mrb[0].mxu0
      %1507 = vmatprep.mubr.bf16.mxu0 0
      %1508 = vmatmul.mubr.bf16.gmra.mrb[0].mxu0 %v1417
      %v1509 = vpop.f32.mrb[0].mxu0
      %v1510 = vadd.f32 0.0, %v1509
      %v1511 = vpop.f32.mrb[0].mxu0
      %v1512 = vpop.f32.mrb[0].mxu0
      %v1513 = vadd.f32 0.0, %v1512
      %v1514 = vpop.f32.mrb[0].mxu0
      %1515 = vdwg.mxu0
      %v1516 = vadd.f32 %v1356, %v1454
      %v1517 = vadd.f32 %v1357, %v1457
      %v1518 = vadd.f32 %v1358, %v1462
      %v1519 = vadd.f32 %v1359, %v1465
      %v1520 = vadd.f32 %v1360, %v1470
      %v1521 = vadd.f32 %v1361, %v1473
      %v1522 = vadd.f32 %v1362, %v1478
      %v1523 = vadd.f32 %v1363, %v1481
      %v1524 = vadd.f32 %v1364, %v1486
      %v1525 = vadd.f32 %v1365, %v1489
      %v1526 = vadd.f32 %v1366, %v1494
      %v1527 = vadd.f32 %v1367, %v1497
      %v1528 = vadd.f32 %v1368, %v1502
      %v1529 = vadd.f32 %v1369, %v1505
      %v1530 = vadd.f32 %v1370, %v1510
      %v1531 = vadd.f32 %v1371, %v1513
      %s1532 = scalar_lea.vmem %s1, 192
      %v1533 = vld [vmem:[%s1532] sm:$0xf]
      %v1534 = vld [vmem:[%s1532 + $0x4] sm:$0xf]
      %v1535 = vld [vmem:[%s1532 + $0x8] sm:$0xf]
      %v1536 = vld [vmem:[%s1532 + $0xc] sm:$0xf]
      %v1537 = vld [vmem:[%s1532 + $0x10] sm:$0xf]
      %v1538 = vld [vmem:[%s1532 + $0x14] sm:$0xf]
      %v1539 = vld [vmem:[%s1532 + $0x18] sm:$0xf]
      %v1540 = vld [vmem:[%s1532 + $0x1c] sm:$0xf]
      %v1543 = vunpack.c.l.b16 %v211
      %v1544 = vunpack.c.l.b16 %v212
      %v1545 = vpack.c.b16 %v1544, %v1543
      %v1554 = vunpack.c.l.b16 %v1533
      %v1555 = vunpack.c.l.b16 %v1534
      %v1556 = vunpack.c.l.b16 %v1535
      %v1557 = vunpack.c.l.b16 %v1536
      %v1558 = vunpack.c.l.b16 %v1537
      %v1559 = vunpack.c.l.b16 %v1538
      %v1560 = vunpack.c.l.b16 %v1539
      %v1561 = vunpack.c.l.b16 %v1540
      %v1562 = vpack.c.b16 %v1555, %v1554
      %v1563 = vpack.c.b16 %v1557, %v1556
      %v1564 = vpack.c.b16 %v1559, %v1558
      %v1565 = vpack.c.b16 %v1561, %v1560
      %v1571 = vsel %vm474, %v1545, 0
      %1573 = vmatprep.subr.bf16.mxu0 0
      %1574 = vmatpush1.bf16.msra.mxu0 %v1562
      %1575 = vmatprep.subr.bf16.mxu0 0
      %1576 = vmatpush1.bf16.msra.mxu0 %v1563
      %1577 = vmatprep.subr.bf16.mxu0 0
      %1578 = vmatpush1.bf16.msra.mxu0 %v1564
      %1579 = vmatprep.subr.bf16.mxu0 0
      %1580 = vmatpush1.bf16.msra.mxu0 %v1565
      %1581 = vmatprep.subr.bf16.mxu0 0
      %1582 = vmatpush1.bf16.msra.mxu0 0
      %1583 = vmatprep.subr.bf16.mxu0 0
      %1584 = vmatpush1.bf16.msra.mxu0 0
      %1585 = vmatprep.subr.bf16.mxu0 0
      %1586 = vmatpush1.bf16.msra.mxu0 0
      %1587 = vmatprep.subr.bf16.mxu0 0
      %1588 = vmatpush1.bf16.msra.mxu0 0
      %1589 = vmatprep.subr.bf16.mxu0 0
      %1590 = vmatpush1.bf16.msra.mxu0 0
      %1591 = vmatprep.subr.bf16.mxu0 0
      %1592 = vmatpush1.bf16.msra.mxu0 0
      %1593 = vmatprep.subr.bf16.mxu0 0
      %1594 = vmatpush1.bf16.msra.mxu0 0
      %1595 = vmatprep.subr.bf16.mxu0 0
      %1596 = vmatpush1.bf16.msra.mxu0 0
      %1597 = vmatprep.subr.bf16.mxu0 0
      %1598 = vmatpush1.bf16.msra.mxu0 0
      %1599 = vmatprep.subr.bf16.mxu0 0
      %1600 = vmatpush1.bf16.msra.mxu0 0
      %1601 = vmatprep.subr.bf16.mxu0 0
      %1602 = vmatpush1.bf16.msra.mxu0 0
      %1603 = vmatprep.subr.bf16.mxu0 0
      %1604 = vmatpush1.bf16.msra.mxu0 0
      %1605 = vmatprep.mubr.bf16.mxu0 0
      %1606 = vmatmul.mubr.bf16.gmra.mrb[0].mxu0 %v667
      %v1607 = vpop.f32.mrb[0].mxu0
      %v1608 = vadd.f32 0.0, %v1607
      %v1609 = vpop.f32.mrb[0].mxu0
      %v1610 = vpop.f32.mrb[0].mxu0
      %v1611 = vadd.f32 0.0, %v1610
      %v1612 = vpop.f32.mrb[0].mxu0
      %1613 = vmatprep.mubr.bf16.mxu0 0
      %1614 = vmatmul.mubr.bf16.gmra.mrb[0].mxu0 %v670
      %v1615 = vpop.f32.mrb[0].mxu0
      %v1616 = vadd.f32 0.0, %v1615
      %v1617 = vpop.f32.mrb[0].mxu0
      %v1618 = vpop.f32.mrb[0].mxu0
      %v1619 = vadd.f32 0.0, %v1618
      %v1620 = vpop.f32.mrb[0].mxu0
      %1621 = vmatprep.mubr.bf16.mxu0 0
      %1622 = vmatmul.mubr.bf16.gmra.mrb[0].mxu0 %v673
      %v1623 = vpop.f32.mrb[0].mxu0
      %v1624 = vadd.f32 0.0, %v1623
      %v1625 = vpop.f32.mrb[0].mxu0
      %v1626 = vpop.f32.mrb[0].mxu0
      %v1627 = vadd.f32 0.0, %v1626
      %v1628 = vpop.f32.mrb[0].mxu0
      %1629 = vmatprep.mubr.bf16.mxu0 0
      %1630 = vmatmul.mubr.bf16.gmra.mrb[0].mxu0 %v676
      %v1631 = vpop.f32.mrb[0].mxu0
      %v1632 = vadd.f32 0.0, %v1631
      %v1633 = vpop.f32.mrb[0].mxu0
      %v1634 = vpop.f32.mrb[0].mxu0
      %v1635 = vadd.f32 0.0, %v1634
      %v1636 = vpop.f32.mrb[0].mxu0
      %1637 = vmatprep.mubr.bf16.mxu0 0
      %1638 = vmatmul.mubr.bf16.gmra.mrb[0].mxu0 %v679
      %v1639 = vpop.f32.mrb[0].mxu0
      %v1640 = vadd.f32 0.0, %v1639
      %v1641 = vpop.f32.mrb[0].mxu0
      %v1642 = vpop.f32.mrb[0].mxu0
      %v1643 = vadd.f32 0.0, %v1642
      %v1644 = vpop.f32.mrb[0].mxu0
      %1645 = vmatprep.mubr.bf16.mxu0 0
      %1646 = vmatmul.mubr.bf16.gmra.mrb[0].mxu0 %v682
      %v1647 = vpop.f32.mrb[0].mxu0
      %v1648 = vadd.f32 0.0, %v1647
      %v1649 = vpop.f32.mrb[0].mxu0
      %v1650 = vpop.f32.mrb[0].mxu0
      %v1651 = vadd.f32 0.0, %v1650
      %v1652 = vpop.f32.mrb[0].mxu0
      %1653 = vmatprep.mubr.bf16.mxu0 0
      %1654 = vmatmul.mubr.bf16.gmra.mrb[0].mxu0 %v1081
      %v1655 = vpop.f32.mrb[0].mxu0
      %v1656 = vadd.f32 0.0, %v1655
      %v1657 = vpop.f32.mrb[0].mxu0
      %v1658 = vpop.f32.mrb[0].mxu0
      %v1659 = vadd.f32 0.0, %v1658
      %v1660 = vpop.f32.mrb[0].mxu0
      %1661 = vmatprep.mubr.bf16.mxu0 0
      %1662 = vmatmul.mubr.bf16.gmra.mrb[0].mxu0 %v1571
      %v1663 = vpop.f32.mrb[0].mxu0
      %v1664 = vadd.f32 0.0, %v1663
      %v1665 = vpop.f32.mrb[0].mxu0
      %v1666 = vpop.f32.mrb[0].mxu0
      %v1667 = vadd.f32 0.0, %v1666
      %v1668 = vpop.f32.mrb[0].mxu0
      %1669 = vdwg.mxu0
      %v1670 = vadd.f32 %v1516, %v1608
      %v1671 = vadd.f32 %v1517, %v1611
      %v1672 = vadd.f32 %v1518, %v1616
      %v1673 = vadd.f32 %v1519, %v1619
      %v1674 = vadd.f32 %v1520, %v1624
      %v1675 = vadd.f32 %v1521, %v1627
      %v1676 = vadd.f32 %v1522, %v1632
      %v1677 = vadd.f32 %v1523, %v1635
      %v1678 = vadd.f32 %v1524, %v1640
      %v1679 = vadd.f32 %v1525, %v1643
      %v1680 = vadd.f32 %v1526, %v1648
      %v1681 = vadd.f32 %v1527, %v1651
      %v1682 = vadd.f32 %v1528, %v1656
      %v1683 = vadd.f32 %v1529, %v1659
      %v1684 = vadd.f32 %v1530, %v1664
      %v1685 = vadd.f32 %v1531, %v1667
      %v1687 = vshrl.u32 %v211, 16
      %v1689 = vrot.slane %v1687, 4
      %v1690 = vshll.u32 %v211, 16
      %v1692 = vrot.slane %v1690, 5
      %v1693 = vor.u32 %v1689, %v1692
      %v1694 = vrot.slane %v1693, 4
      %v1696 = vshll.u32 %v212, 16
      %v1698 = vrot.slane %v1696, 5
      %v1699 = vsel %vm224, %v1694, %v1698
      %v1700 = vshrl.u32 %v212, 16
      %v1702 = vrot.slane %v1700, 4
      %v1703 = vor.u32 %v1702, %v1698
      %v1704 = vrot.slane %v1703, 4
      %v1706 = vshll.u32 %v213, 16
      %v1708 = vrot.slane %v1706, 5
      %v1709 = vsel %vm224, %v1704, %v1708
      %s1710 = scalar_lea.vmem %s1, 224
      %v1711 = vld [vmem:[%s1710] sm:$0xf]
      %v1712 = vld [vmem:[%s1710 + $0x4] sm:$0xf]
      %v1713 = vld [vmem:[%s1710 + $0x8] sm:$0xf]
      %v1714 = vld [vmem:[%s1710 + $0xc] sm:$0xf]
      %v1715 = vld [vmem:[%s1710 + $0x10] sm:$0xf]
      %v1716 = vld [vmem:[%s1710 + $0x14] sm:$0xf]
      %v1717 = vld [vmem:[%s1710 + $0x18] sm:$0xf]
      %v1718 = vld [vmem:[%s1710 + $0x1c] sm:$0xf]
      %v1719 = vunpack.c.l.b16 %v1699
      %v1720 = vunpack.c.l.b16 %v1709
      %v1721 = vpack.c.b16 %v1720, %v1719
      %v1730 = vunpack.c.l.b16 %v1711
      %v1731 = vunpack.c.l.b16 %v1712
      %v1732 = vunpack.c.l.b16 %v1713
      %v1733 = vunpack.c.l.b16 %v1714
      %v1734 = vunpack.c.l.b16 %v1715
      %v1735 = vunpack.c.l.b16 %v1716
      %v1736 = vunpack.c.l.b16 %v1717
      %v1737 = vunpack.c.l.b16 %v1718
      %v1738 = vpack.c.b16 %v1731, %v1730
      %v1739 = vpack.c.b16 %v1733, %v1732
      %v1740 = vpack.c.b16 %v1735, %v1734
      %v1741 = vpack.c.b16 %v1737, %v1736
      %v1747 = vsel %vm474, %v1721, 0
      %1749 = vmatprep.subr.bf16.mxu0 0
      %1750 = vmatpush1.bf16.msra.mxu0 %v1738
      %1751 = vmatprep.subr.bf16.mxu0 0
      %1752 = vmatpush1.bf16.msra.mxu0 %v1739
      %1753 = vmatprep.subr.bf16.mxu0 0
      %1754 = vmatpush1.bf16.msra.mxu0 %v1740
      %1755 = vmatprep.subr.bf16.mxu0 0
      %1756 = vmatpush1.bf16.msra.mxu0 %v1741
      %1757 = vmatprep.subr.bf16.mxu0 0
      %1758 = vmatpush1.bf16.msra.mxu0 0
      %1759 = vmatprep.subr.bf16.mxu0 0
      %1760 = vmatpush1.bf16.msra.mxu0 0
      %1761 = vmatprep.subr.bf16.mxu0 0
      %1762 = vmatpush1.bf16.msra.mxu0 0
      %1763 = vmatprep.subr.bf16.mxu0 0
      %1764 = vmatpush1.bf16.msra.mxu0 0
      %1765 = vmatprep.subr.bf16.mxu0 0
      %1766 = vmatpush1.bf16.msra.mxu0 0
      %1767 = vmatprep.subr.bf16.mxu0 0
      %1768 = vmatpush1.bf16.msra.mxu0 0
      %1769 = vmatprep.subr.bf16.mxu0 0
      %1770 = vmatpush1.bf16.msra.mxu0 0
      %1771 = vmatprep.subr.bf16.mxu0 0
      %1772 = vmatpush1.bf16.msra.mxu0 0
      %1773 = vmatprep.subr.bf16.mxu0 0
      %1774 = vmatpush1.bf16.msra.mxu0 0
      %1775 = vmatprep.subr.bf16.mxu0 0
      %1776 = vmatpush1.bf16.msra.mxu0 0
      %1777 = vmatprep.subr.bf16.mxu0 0
      %1778 = vmatpush1.bf16.msra.mxu0 0
      %1779 = vmatprep.subr.bf16.mxu0 0
      %1780 = vmatpush1.bf16.msra.mxu0 0
      %1781 = vmatprep.mubr.bf16.mxu0 0
      %1782 = vmatmul.mubr.bf16.gmra.mrb[0].mxu0 %v482
      %v1783 = vpop.f32.mrb[0].mxu0
      %v1784 = vadd.f32 0.0, %v1783
      %v1785 = vpop.f32.mrb[0].mxu0
      %v1786 = vpop.f32.mrb[0].mxu0
      %v1787 = vadd.f32 0.0, %v1786
      %v1788 = vpop.f32.mrb[0].mxu0
      %1789 = vmatprep.mubr.bf16.mxu0 0
      %1790 = vmatmul.mubr.bf16.gmra.mrb[0].mxu0 %v485
      %v1791 = vpop.f32.mrb[0].mxu0
      %v1792 = vadd.f32 0.0, %v1791
      %v1793 = vpop.f32.mrb[0].mxu0
      %v1794 = vpop.f32.mrb[0].mxu0
      %v1795 = vadd.f32 0.0, %v1794
      %v1796 = vpop.f32.mrb[0].mxu0
      %1797 = vmatprep.mubr.bf16.mxu0 0
      %1798 = vmatmul.mubr.bf16.gmra.mrb[0].mxu0 %v488
      %v1799 = vpop.f32.mrb[0].mxu0
      %v1800 = vadd.f32 0.0, %v1799
      %v1801 = vpop.f32.mrb[0].mxu0
      %v1802 = vpop.f32.mrb[0].mxu0
      %v1803 = vadd.f32 0.0, %v1802
      %v1804 = vpop.f32.mrb[0].mxu0
      %1805 = vmatprep.mubr.bf16.mxu0 0
      %1806 = vmatmul.mubr.bf16.gmra.mrb[0].mxu0 %v491
      %v1807 = vpop.f32.mrb[0].mxu0
      %v1808 = vadd.f32 0.0, %v1807
      %v1809 = vpop.f32.mrb[0].mxu0
      %v1810 = vpop.f32.mrb[0].mxu0
      %v1811 = vadd.f32 0.0, %v1810
      %v1812 = vpop.f32.mrb[0].mxu0
      %1813 = vmatprep.mubr.bf16.mxu0 0
      %1814 = vmatmul.mubr.bf16.gmra.mrb[0].mxu0 %v494
      %v1815 = vpop.f32.mrb[0].mxu0
      %v1816 = vadd.f32 0.0, %v1815
      %v1817 = vpop.f32.mrb[0].mxu0
      %v1818 = vpop.f32.mrb[0].mxu0
      %v1819 = vadd.f32 0.0, %v1818
      %v1820 = vpop.f32.mrb[0].mxu0
      %1821 = vmatprep.mubr.bf16.mxu0 0
      %1822 = vmatmul.mubr.bf16.gmra.mrb[0].mxu0 %v497
      %v1823 = vpop.f32.mrb[0].mxu0
      %v1824 = vadd.f32 0.0, %v1823
      %v1825 = vpop.f32.mrb[0].mxu0
      %v1826 = vpop.f32.mrb[0].mxu0
      %v1827 = vadd.f32 0.0, %v1826
      %v1828 = vpop.f32.mrb[0].mxu0
      %1829 = vmatprep.mubr.bf16.mxu0 0
      %1830 = vmatmul.mubr.bf16.gmra.mrb[0].mxu0 %v1257
      %v1831 = vpop.f32.mrb[0].mxu0
      %v1832 = vadd.f32 0.0, %v1831
      %v1833 = vpop.f32.mrb[0].mxu0
      %v1834 = vpop.f32.mrb[0].mxu0
      %v1835 = vadd.f32 0.0, %v1834
      %v1836 = vpop.f32.mrb[0].mxu0
      %1837 = vmatprep.mubr.bf16.mxu0 0
      %1838 = vmatmul.mubr.bf16.gmra.mrb[0].mxu0 %v1747
      %v1839 = vpop.f32.mrb[0].mxu0
      %v1840 = vadd.f32 0.0, %v1839
      %v1841 = vpop.f32.mrb[0].mxu0
      %v1842 = vpop.f32.mrb[0].mxu0
      %v1843 = vadd.f32 0.0, %v1842
      %v1844 = vpop.f32.mrb[0].mxu0
      %1845 = vdwg.mxu0
      %v1846 = vadd.f32 %v1670, %v1784
      %v1847 = vadd.f32 %v1671, %v1787
      %v1848 = vadd.f32 %v1672, %v1792
      %v1849 = vadd.f32 %v1673, %v1795
      %v1850 = vadd.f32 %v1674, %v1800
      %v1851 = vadd.f32 %v1675, %v1803
      %v1852 = vadd.f32 %v1676, %v1808
      %v1853 = vadd.f32 %v1677, %v1811
      %v1854 = vadd.f32 %v1678, %v1816
      %v1855 = vadd.f32 %v1679, %v1819
      %v1856 = vadd.f32 %v1680, %v1824
      %v1857 = vadd.f32 %v1681, %v1827
      %v1858 = vadd.f32 %v1682, %v1832
      %v1859 = vadd.f32 %v1683, %v1835
      %v1860 = vadd.f32 %v1684, %v1840
      %v1861 = vadd.f32 %v1685, %v1843
      %v1863 = vrot.slane %v211, 5
      %v1864 = vrot.slane %v1863, 4
      %v1865 = vrot.slane %v212, 5
      %v1866 = vsel %vm791, %v1864, %v1865
      %v1867 = vrot.slane %v1865, 4
      %v1868 = vrot.slane %v213, 5
      %v1869 = vsel %vm791, %v1867, %v1868
      %s1870 = scalar_lea.vmem %s1, 256
      %v1871 = vld [vmem:[%s1870] sm:$0xf]
      %v1872 = vld [vmem:[%s1870 + $0x4] sm:$0xf]
      %v1873 = vld [vmem:[%s1870 + $0x8] sm:$0xf]
      %v1874 = vld [vmem:[%s1870 + $0xc] sm:$0xf]
      %v1875 = vld [vmem:[%s1870 + $0x10] sm:$0xf]
      %v1876 = vld [vmem:[%s1870 + $0x14] sm:$0xf]
      %v1877 = vld [vmem:[%s1870 + $0x18] sm:$0xf]
      %v1878 = vld [vmem:[%s1870 + $0x1c] sm:$0xf]
      %v1879 = vunpack.c.l.b16 %v1866
      %v1880 = vunpack.c.l.b16 %v1869
      %v1881 = vpack.c.b16 %v1880, %v1879
      %v1890 = vunpack.c.l.b16 %v1871
      %v1891 = vunpack.c.l.b16 %v1872
      %v1892 = vunpack.c.l.b16 %v1873
      %v1893 = vunpack.c.l.b16 %v1874
      %v1894 = vunpack.c.l.b16 %v1875
      %v1895 = vunpack.c.l.b16 %v1876
      %v1896 = vunpack.c.l.b16 %v1877
      %v1897 = vunpack.c.l.b16 %v1878
      %v1898 = vpack.c.b16 %v1891, %v1890
      %v1899 = vpack.c.b16 %v1893, %v1892
      %v1900 = vpack.c.b16 %v1895, %v1894
      %v1901 = vpack.c.b16 %v1897, %v1896
      %v1907 = vsel %vm474, %v1881, 0
      %1909 = vmatprep.subr.bf16.mxu0 0
      %1910 = vmatpush1.bf16.msra.mxu0 %v1898
      %1911 = vmatprep.subr.bf16.mxu0 0
      %1912 = vmatpush1.bf16.msra.mxu0 %v1899
      %1913 = vmatprep.subr.bf16.mxu0 0
      %1914 = vmatpush1.bf16.msra.mxu0 %v1900
      %1915 = vmatprep.subr.bf16.mxu0 0
      %1916 = vmatpush1.bf16.msra.mxu0 %v1901
      %1917 = vmatprep.subr.bf16.mxu0 0
      %1918 = vmatpush1.bf16.msra.mxu0 0
      %1919 = vmatprep.subr.bf16.mxu0 0
      %1920 = vmatpush1.bf16.msra.mxu0 0
      %1921 = vmatprep.subr.bf16.mxu0 0
      %1922 = vmatpush1.bf16.msra.mxu0 0
      %1923 = vmatprep.subr.bf16.mxu0 0
      %1924 = vmatpush1.bf16.msra.mxu0 0
      %1925 = vmatprep.subr.bf16.mxu0 0
      %1926 = vmatpush1.bf16.msra.mxu0 0
      %1927 = vmatprep.subr.bf16.mxu0 0
      %1928 = vmatpush1.bf16.msra.mxu0 0
      %1929 = vmatprep.subr.bf16.mxu0 0
      %1930 = vmatpush1.bf16.msra.mxu0 0
      %1931 = vmatprep.subr.bf16.mxu0 0
      %1932 = vmatpush1.bf16.msra.mxu0 0
      %1933 = vmatprep.subr.bf16.mxu0 0
      %1934 = vmatpush1.bf16.msra.mxu0 0
      %1935 = vmatprep.subr.bf16.mxu0 0
      %1936 = vmatpush1.bf16.msra.mxu0 0
      %1937 = vmatprep.subr.bf16.mxu0 0
      %1938 = vmatpush1.bf16.msra.mxu0 0
      %1939 = vmatprep.subr.bf16.mxu0 0
      %1940 = vmatpush1.bf16.msra.mxu0 0
      %1941 = vmatprep.mubr.bf16.mxu0 0
      %1942 = vmatmul.mubr.bf16.gmra.mrb[0].mxu0 %v912
      %v1943 = vpop.f32.mrb[0].mxu0
      %v1944 = vadd.f32 0.0, %v1943
      %v1945 = vpop.f32.mrb[0].mxu0
      %v1946 = vpop.f32.mrb[0].mxu0
      %v1947 = vadd.f32 0.0, %v1946
      %v1948 = vpop.f32.mrb[0].mxu0
      %1949 = vmatprep.mubr.bf16.mxu0 0
      %1950 = vmatmul.mubr.bf16.gmra.mrb[0].mxu0 %v915
      %v1951 = vpop.f32.mrb[0].mxu0
      %v1952 = vadd.f32 0.0, %v1951
      %v1953 = vpop.f32.mrb[0].mxu0
      %v1954 = vpop.f32.mrb[0].mxu0
      %v1955 = vadd.f32 0.0, %v1954
      %v1956 = vpop.f32.mrb[0].mxu0
      %1957 = vmatprep.mubr.bf16.mxu0 0
      %1958 = vmatmul.mubr.bf16.gmra.mrb[0].mxu0 %v918
      %v1959 = vpop.f32.mrb[0].mxu0
      %v1960 = vadd.f32 0.0, %v1959
      %v1961 = vpop.f32.mrb[0].mxu0
      %v1962 = vpop.f32.mrb[0].mxu0
      %v1963 = vadd.f32 0.0, %v1962
      %v1964 = vpop.f32.mrb[0].mxu0
      %1965 = vmatprep.mubr.bf16.mxu0 0
      %1966 = vmatmul.mubr.bf16.gmra.mrb[0].mxu0 %v921
      %v1967 = vpop.f32.mrb[0].mxu0
      %v1968 = vadd.f32 0.0, %v1967
      %v1969 = vpop.f32.mrb[0].mxu0
      %v1970 = vpop.f32.mrb[0].mxu0
      %v1971 = vadd.f32 0.0, %v1970
      %v1972 = vpop.f32.mrb[0].mxu0
      %1973 = vmatprep.mubr.bf16.mxu0 0
      %1974 = vmatmul.mubr.bf16.gmra.mrb[0].mxu0 %v924
      %v1975 = vpop.f32.mrb[0].mxu0
      %v1976 = vadd.f32 0.0, %v1975
      %v1977 = vpop.f32.mrb[0].mxu0
      %v1978 = vpop.f32.mrb[0].mxu0
      %v1979 = vadd.f32 0.0, %v1978
      %v1980 = vpop.f32.mrb[0].mxu0
      %1981 = vmatprep.mubr.bf16.mxu0 0
      %1982 = vmatmul.mubr.bf16.gmra.mrb[0].mxu0 %v927
      %v1983 = vpop.f32.mrb[0].mxu0
      %v1984 = vadd.f32 0.0, %v1983
      %v1985 = vpop.f32.mrb[0].mxu0
      %v1986 = vpop.f32.mrb[0].mxu0
      %v1987 = vadd.f32 0.0, %v1986
      %v1988 = vpop.f32.mrb[0].mxu0
      %1989 = vmatprep.mubr.bf16.mxu0 0
      %1990 = vmatmul.mubr.bf16.gmra.mrb[0].mxu0 %v1417
      %v1991 = vpop.f32.mrb[0].mxu0
      %v1992 = vadd.f32 0.0, %v1991
      %v1993 = vpop.f32.mrb[0].mxu0
      %v1994 = vpop.f32.mrb[0].mxu0
      %v1995 = vadd.f32 0.0, %v1994
      %v1996 = vpop.f32.mrb[0].mxu0
      %1997 = vmatprep.mubr.bf16.mxu0 0
      %1998 = vmatmul.mubr.bf16.gmra.mrb[0].mxu0 %v1907
      %v1999 = vpop.f32.mrb[0].mxu0
      %v2000 = vadd.f32 0.0, %v1999
      %v2001 = vpop.f32.mrb[0].mxu0
      %v2002 = vpop.f32.mrb[0].mxu0
      %v2003 = vadd.f32 0.0, %v2002
      %v2004 = vpop.f32.mrb[0].mxu0
      %2005 = vdwg.mxu0
      %v2006 = vadd.f32 %v1846, %v1944
      %v2007 = vadd.f32 %v1847, %v1947
      %v2008 = vadd.f32 %v1848, %v1952
      %v2009 = vadd.f32 %v1849, %v1955
      %v2010 = vadd.f32 %v1850, %v1960
      %v2011 = vadd.f32 %v1851, %v1963
      %v2012 = vadd.f32 %v1852, %v1968
      %v2013 = vadd.f32 %v1853, %v1971
      %v2014 = vadd.f32 %v1854, %v1976
      %v2015 = vadd.f32 %v1855, %v1979
      %v2016 = vadd.f32 %v1856, %v1984
      %v2017 = vadd.f32 %v1857, %v1987
      %v2018 = vadd.f32 %v1858, %v1992
      %v2019 = vadd.f32 %v1859, %v1995
      %v2020 = vadd.f32 %v1860, %v2000
      %v2021 = vadd.f32 %v1861, %v2003
      %v2022 = vtanh.pop %v2006
      %v2023 = vtanh.pop %v2007
      %v2024 = vtanh.pop %v2008
      %v2025 = vtanh.pop %v2009
      %v2026 = vtanh.pop %v2010
      %v2027 = vtanh.pop %v2011
      %v2028 = vtanh.pop %v2012
      %v2029 = vtanh.pop %v2013
      %v2030 = vtanh.pop %v2014
      %v2031 = vtanh.pop %v2015
      %v2032 = vtanh.pop %v2016
      %v2033 = vtanh.pop %v2017
      %v2034 = vtanh.pop %v2018
      %v2035 = vtanh.pop %v2019
      %v2036 = vtanh.pop %v2020
      %v2037 = vtanh.pop %v2021
      %2038 = vst [vmem:[%s181] sm:$0xff] %v2022
      %2039 = vst [vmem:[%s181 + $0x8] sm:$0xff] %v2023
      %2040 = vst [vmem:[%s181 + $0x10] sm:$0xff] %v2024
      %2041 = vst [vmem:[%s181 + $0x18] sm:$0xff] %v2025
      %2042 = vst [vmem:[%s181 + $0x20] sm:$0xff] %v2026
      %2043 = vst [vmem:[%s181 + $0x28] sm:$0xff] %v2027
      %2044 = vst [vmem:[%s181 + $0x30] sm:$0xff] %v2028
      %2045 = vst [vmem:[%s181 + $0x38] sm:$0xff] %v2029
      %2046 = vst [vmem:[%s181 + $0x40] sm:$0xff] %v2030
      %2047 = vst [vmem:[%s181 + $0x48] sm:$0xff] %v2031
      %2048 = vst [vmem:[%s181 + $0x50] sm:$0xff] %v2032
      %2049 = vst [vmem:[%s181 + $0x58] sm:$0xff] %v2033
      %2050 = vst [vmem:[%s181 + $0x60] sm:$0xff] %v2034
      %2051 = vst [vmem:[%s181 + $0x68] sm:$0xff] %v2035
      %2052 = vst [vmem:[%s181 + $0x70] sm:$0xff] %v2036
      %2053 = vst [vmem:[%s181 + $0x78] sm:$0xff] %v2037
      %s2054 = smul.u32 8, %s18
      %p2055 = scmp.lt.s32.totalorder %s17, 1
      %s2056 = scalar_select %p2055, %s17, 1
      %p2057 = scmp.lt.s32.totalorder %s2054, 15
      %s2058 = scalar_select %p2057, %s2054, 15
      %s2059 = smul.addr %s2058, 2
      %s2060 = smul.addr %s2056, 32
      %s2061 = sadd.s32 %s2059, %s2060
      %s2062 = smul.addr %s2061, 8
      %s2063 = scalar_lea.vmem %s2, %s2062
      // Predicated region
      $region29: #{local_pathway_forward.41} parent=27 // pred_check
        %p2064 = pneg %p94
      $region30: #{local_pathway_forward.41} parent=27 // pred_check_branch
        %2066 = sbr.rel (%p2064) target = $region32
      $region31: #{local_pathway_forward.41} parent=27 // pred_region
        %s2067 = smul.u32 8, %s18
      $region32: #{local_pathway_forward.41} parent=27 // pred_fallthru
        _
    $region28: #{local_pathway_forward.41} parent=5 // pred_fallthru
      _
    %p2068 = scmp.le.s32.totalorder 2, %s8
    // Predicated region
    $region33: #{local_pathway_forward.41} parent=5 // pred_check
      %p2069 = pneg %p2068
    $region34: #{local_pathway_forward.41} parent=5 // pred_check_branch
      %2071 = sbr.rel (%p2069) target = $region36
    $region35: #{local_pathway_forward.41} parent=5 // pred_region
      %s2072 = ssub.s32 %s8, 2
      // Predicated region
      $region37: #{local_pathway_forward.41} parent=35 // pred_check
        %p2073 = pneg %p100
      $region38: #{local_pathway_forward.41} parent=35 // pred_check_branch
        %2075 = sbr.rel (%p2073) target = $region40
      $region39: #{local_pathway_forward.41} parent=35 // pred_region
        %s2076 = smul.u32 8, %s20
        %p2077 = scmp.lt.s32.totalorder %s19, 1
        %s2078 = scalar_select %p2077, %s19, 1
        %p2079 = scmp.lt.s32.totalorder %s2076, 15
        %s2080 = scalar_select %p2079, %s2076, 15
        %s2081 = smul.addr %s2080, 2
        %s2082 = smul.addr %s2078, 32
        %s2083 = sadd.s32 %s2081, %s2082
        %s2084 = smul.addr %s2083, 8
        %s2085 = scalar_lea.vmem %s2, %s2084
      $region40: #{local_pathway_forward.41} parent=35 // pred_fallthru
        _
    $region36: #{local_pathway_forward.41} parent=5 // pred_fallthru
      _
  $region6: #{local_pathway_forward.41} parent=0 // loop_footer
    %s12 = sadd.s32 1, %s8
  $region7: #{local_pathway_forward.41} parent=0 // loop_footer_branch
    %7 = sbr.rel target = $region3
  $region8: #{local_pathway_forward.41} parent=0 // loop_exit
    _

</llo_original>
